<compile_context>
chip_gen: v6e
topology: v6e:2x2x1
jax: 0.10.0
libtpu: 0.0.40
codegen_flags: <defaults>
</compile_context>

<pallas_src>
import functools

import jax
import jax.numpy as jnp
from jax.experimental import pallas as pl
from jax.experimental.pallas import tpu as pltpu


def _round_up(x, m):
    return (x + m - 1) // m * m


# ----------------------------------------------------------------------------
# Pallas kernel: 3x3 conv (9 shifted matmuls) + folded BN + ReLU
# ----------------------------------------------------------------------------
def _conv3x3_bn_relu_kernel(x_ref, w_ref, scale_ref, bias_ref, o_ref, *, wp):
    """One (batch, row-tile) grid step.

    x_ref:     ((TH+2)*(W+2)+2, Cin)  bf16 flattened padded halo tile
    w_ref:     (9, Cin, Cout_pad)     bf16 conv taps, index = kh*3 + kw
    scale_ref: (1, Cout_pad)          f32 folded BN scale
    bias_ref:  (1, Cout_pad)          f32 folded BN bias
    o_ref:     (TH*(W+2), Cout_pad)   output rows with stride W+2 (the 2 extra
                                      columns per row are garbage, stripped by
                                      the wrapper)
    wp:        W + 2 (padded width), static Python int.
    """
    m, cout = o_ref.shape
    acc = jnp.zeros((m, cout), jnp.float32)
    for kh in range(3):
        for kw in range(3):
            off = kh * wp + kw                       # static offset
            tap = x_ref[off:off + m, :]              # (m, Cin) bf16 shifted view
            acc = acc + jnp.dot(tap, w_ref[kh * 3 + kw],
                                preferred_element_type=jnp.float32)
    y = acc * scale_ref[...] + bias_ref[...]          # f32 epilogue
    o_ref[...] = jnp.maximum(y, 0.0).astype(o_ref.dtype)


# ----------------------------------------------------------------------------
# Wrapper: tiling, channel padding, BN folding, layout plumbing (plain JAX)
# ----------------------------------------------------------------------------
def _pick_tile_h(H, W, Cin, Cout_pad, out_itemsize, budget_bytes=12 * 1024 * 1024):
    """Largest divisor of H whose double-buffered tiles fit a conservative
    VMEM budget (safe on v5e's 16 MiB scoped default and v7x's 64 MiB VMEM)."""
    best = 1
    for th in range(1, H + 1):
        if H % th:
            continue
        m = th * (W + 2)
        l_in = (th + 2) * (W + 2) + 2
        need = (2 * (l_in * Cin * 2 + m * Cout_pad * out_itemsize)   # dbl-buffered in/out
                + m * Cout_pad * 4                                   # f32 accumulator
                + 9 * Cin * Cout_pad * 2 + 2 * Cout_pad * 4)         # resident weights
        if need <= budget_bytes:
            best = th
    return best


def conv3x3_bn_relu(x_nhwc, w, gamma, beta, mean, var, eps=1e-5,
                    out_dtype=jnp.float32):
    """3x3 'same' conv (no conv bias) + folded BatchNorm (eval) + ReLU, NHWC."""
    N, H, W, Cin = x_nhwc.shape
    Cout = w.shape[-1]
    Cout_pad = _round_up(Cout, 128)              # lane-dense output stores
    out_itemsize = jnp.dtype(out_dtype).itemsize

    # Fold BN into per-channel scale/bias; zero-pad channels to Cout_pad.
    scale = (gamma / jnp.sqrt(var + eps)).astype(jnp.float32)
    bias = (beta - mean * scale).astype(jnp.float32)
    pad_c = Cout_pad - Cout
    scale_p = jnp.pad(scale.reshape(1, Cout), ((0, 0), (0, pad_c)))
    bias_p = jnp.pad(bias.reshape(1, Cout), ((0, 0), (0, pad_c)))
    w_taps = jnp.pad(w.reshape(9, Cin, Cout),
                     ((0, 0), (0, 0), (0, pad_c))).astype(jnp.bfloat16)

    TH = _pick_tile_h(H, W, Cin, Cout_pad, out_itemsize)
    num_h = H // TH
    M = TH * (W + 2)                      # output rows per tile (incl. 2 junk/row)
    L_in = (TH + 2) * (W + 2) + 2         # flat halo tile rows (+2 slack for last tap)

    # Pad spatially, cut overlapping row tiles (2-row halo), flatten (h, w) so
    # the kernel sees a 2-D matrix whose 9 conv taps are contiguous shifted
    # row slices (implicit im2col; only ~(TH+2)/TH input duplication).
    xp = jnp.pad(x_nhwc, ((0, 0), (1, 1), (1, 1), (0, 0))).astype(jnp.bfloat16)
    tiles = jnp.stack([xp[:, i * TH:i * TH + TH + 2] for i in range(num_h)], axis=1)
    flat = tiles.reshape(N, num_h, (TH + 2) * (W + 2), Cin)
    flat = jnp.pad(flat, ((0, 0), (0, 0), (0, 2), (0, 0)))

    flops = 2 * N * num_h * 9 * M * Cin * Cout_pad
    bytes_accessed = (flat.size * 2 + w_taps.size * 2
                      + (scale_p.size + bias_p.size) * 4
                      + N * num_h * M * Cout_pad * out_itemsize)

    kernel = functools.partial(_conv3x3_bn_relu_kernel, wp=W + 2)
    out = pl.pallas_call(
        kernel,
        out_shape=jax.ShapeDtypeStruct((N, num_h, M, Cout_pad), out_dtype),
        grid=(N, num_h),
        in_specs=[
            # Halo tile: new block every grid step.
            pl.BlockSpec((None, None, L_in, Cin), lambda n, i: (n, i, 0, 0)),
            # Weights / scale / bias: constant block index -> VMEM-resident.
            pl.BlockSpec((9, Cin, Cout_pad), lambda n, i: (0, 0, 0)),
            pl.BlockSpec((1, Cout_pad), lambda n, i: (0, 0)),
            pl.BlockSpec((1, Cout_pad), lambda n, i: (0, 0)),
        ],
        out_specs=pl.BlockSpec((None, None, M, Cout_pad), lambda n, i: (n, i, 0, 0)),
        compiler_params=pltpu.CompilerParams(
            dimension_semantics=("parallel", "parallel")),
        cost_estimate=pl.CostEstimate(flops=flops, transcendentals=0,
                                      bytes_accessed=bytes_accessed),
    )(flat, w_taps, scale_p, bias_p)

    # Strip the 2 garbage columns per row and the padded output channels.
    # TODO(synk): for very large Cin add a K grid axis with a VMEM accumulator.
    out = out.reshape(N, num_h, TH, W + 2, Cout_pad)[:, :, :, :W, :Cout]
    return out.reshape(N, H, W, Cout)


# ----------------------------------------------------------------------------
# MyConv / MBM (double conv) forward
# ----------------------------------------------------------------------------
def make_params(key, in_channels, out_channels):
    ks = jax.random.split(key, 10)
    p = {}
    p["w1"] = 0.1 * jax.random.normal(ks[0], (3, 3, in_channels, out_channels), jnp.float32)
    p["g1"] = 1.0 + 0.05 * jax.random.normal(ks[1], (out_channels,), jnp.float32)
    p["b1"] = 0.05 * jax.random.normal(ks[2], (out_channels,), jnp.float32)
    p["m1"] = 0.05 * jax.random.normal(ks[3], (out_channels,), jnp.float32)
    p["v1"] = 1.0 + jnp.abs(0.1 * jax.random.normal(ks[4], (out_channels,), jnp.float32))
    p["w2"] = 0.1 * jax.random.normal(ks[5], (3, 3, out_channels, out_channels), jnp.float32)
    p["g2"] = 1.0 + 0.05 * jax.random.normal(ks[6], (out_channels,), jnp.float32)
    p["b2"] = 0.05 * jax.random.normal(ks[7], (out_channels,), jnp.float32)
    p["m2"] = 0.05 * jax.random.normal(ks[8], (out_channels,), jnp.float32)
    p["v2"] = 1.0 + jnp.abs(0.1 * jax.random.normal(ks[9], (out_channels,), jnp.float32))
    return p


@jax.jit
def myconv_forward(x_nchw, params):
    """Matches MyConv.forward: x (N, Cin, H, W) -> (N, Cout, H, W)."""
    x = jnp.transpose(x_nchw, (0, 2, 3, 1))                       # NCHW -> NHWC
    # TODO(synk): if callers can accept NHWC, drop the two transposes.
    y = conv3x3_bn_relu(x, params["w1"], params["g1"], params["b1"],
                        params["m1"], params["v1"], out_dtype=jnp.bfloat16)
    y = conv3x3_bn_relu(y, params["w2"], params["g2"], params["b2"],
                        params["m2"], params["v2"], out_dtype=jnp.float32)
    return jnp.transpose(y, (0, 3, 1, 2))                         # NHWC -> NCHW


# ----------------------------------------------------------------------------
# Pure-JAX reference (mirrors the kernel's bf16 operand / f32-accum numerics)
# ----------------------------------------------------------------------------
def _ref_conv3x3_bn_relu(x_nhwc, w, gamma, beta, mean, var, eps=1e-5):
    y = jax.lax.conv_general_dilated(
        x_nhwc.astype(jnp.bfloat16), w.astype(jnp.bfloat16),
        window_strides=(1, 1), padding="SAME",
        dimension_numbers=("NHWC", "HWIO", "NHWC"),
        preferred_element_type=jnp.float32)
    scale = gamma / jnp.sqrt(var + eps)
    return jnp.maximum(y * scale + (beta - mean * scale), 0.0)


def _ref_forward(x_nchw, p):
    x = jnp.transpose(x_nchw, (0, 2, 3, 1))
    y = _ref_conv3x3_bn_relu(x, p["w1"], p["g1"], p["b1"], p["m1"], p["v1"])
    y = y.astype(jnp.bfloat16)          # mirror bf16 intermediate activation
    y = _ref_conv3x3_bn_relu(y, p["w2"], p["g2"], p["b2"], p["m2"], p["v2"])
    return jnp.transpose(y, (0, 3, 1, 2))


if __name__ == "__main__":
    key = jax.random.PRNGKey(0)
    k_x, k_p = jax.random.split(key)

    N, Cin, Cout, H, W = 2, 4, 8, 16, 16
    x = jax.random.normal(k_x, (N, Cin, H, W), jnp.float32)
    params = make_params(k_p, Cin, Cout)

    out = jax.block_until_ready(myconv_forward(x, params))
    ref = jax.block_until_ready(_ref_forward(x, params))

    assert out.shape == (N, Cout, H, W), out.shape
    max_err = float(jnp.max(jnp.abs(out - ref)))
    assert max_err < 2e-2, max_err

    print("KERNEL_OK")
</pallas_src>

<mosaic_0001>
module attributes {stable_mosaic.version = 11 : i64} {
  func.func @_conv3x3_bn_relu_kernel(%arg0: i32, %arg1: i32, %arg2: memref<1x1x326x4xbf16, #tpu.memory_space<vmem>>, %arg3: memref<9x4x128xbf16, #tpu.memory_space<vmem>>, %arg4: memref<1x128xf32, #tpu.memory_space<vmem>>, %arg5: memref<1x128xf32, #tpu.memory_space<vmem>>, %arg6: memref<1x1x288x128xbf16, #tpu.memory_space<vmem>>) attributes {dimension_semantics = [#tpu.dimension_semantics<parallel>, #tpu.dimension_semantics<parallel>], iteration_bounds = array<i64: 2, 1>, scalar_prefetch = 0 : i64, scratch_operands = 0 : i64, tpu.core_type = #tpu.core_type<tc>, window_params = [{transform_indices = @transform_0, window_bounds = array<i64: 1, 1, 326, 4>}, {pipeline_mode = #tpu.pipeline_mode<synchronous>, transform_indices = @transform_1, window_bounds = array<i64: 9, 4, 128>}, {pipeline_mode = #tpu.pipeline_mode<synchronous>, transform_indices = @transform_2, window_bounds = array<i64: 1, 128>}, {pipeline_mode = #tpu.pipeline_mode<synchronous>, transform_indices = @transform_3, window_bounds = array<i64: 1, 128>}, {transform_indices = @transform_4, window_bounds = array<i64: 1, 1, 288, 128>}]} {
    %cst = arith.constant 0.000000e+00 : f32
    %0 = vector.broadcast %cst : f32 to vector<288x128xf32>
    %c0 = arith.constant 0 : index
    %c0_0 = arith.constant 0 : index
    %c0_1 = arith.constant 0 : index
    %c0_2 = arith.constant 0 : index
    %1 = vector.load %arg2[%c0, %c0_0, %c0_1, %c0_2] : memref<1x1x326x4xbf16, #tpu.memory_space<vmem>>, vector<1x1x288x4xbf16>
    %2 = vector.shape_cast %1 : vector<1x1x288x4xbf16> to vector<288x4xbf16>
    %c0_3 = arith.constant 0 : index
    %c0_4 = arith.constant 0 : index
    %c0_5 = arith.constant 0 : index
    %3 = vector.load %arg3[%c0_3, %c0_4, %c0_5] : memref<9x4x128xbf16, #tpu.memory_space<vmem>>, vector<1x4x128xbf16>
    %4 = vector.shape_cast %3 : vector<1x4x128xbf16> to vector<4x128xbf16>
    %cst_6 = arith.constant dense<0.000000e+00> : vector<288x128xf32>
    %5 = tpu.matmul %2, %4, %cst_6 {dimension_numbers = #tpu.dot_dimension_numbers<[1], [0], [0], [1], [0, 0, 1, 1], [], []>} : vector<288x4xbf16>, vector<4x128xbf16>, vector<288x128xf32> -> vector<288x128xf32>
    %6 = arith.addf %0, %5 : vector<288x128xf32>
    %c0_7 = arith.constant 0 : index
    %c0_8 = arith.constant 0 : index
    %c1 = arith.constant 1 : index
    %c0_9 = arith.constant 0 : index
    %7 = vector.load %arg2[%c0_7, %c0_8, %c1, %c0_9] : memref<1x1x326x4xbf16, #tpu.memory_space<vmem>>, vector<1x1x288x4xbf16>
    %8 = vector.shape_cast %7 : vector<1x1x288x4xbf16> to vector<288x4xbf16>
    %c1_10 = arith.constant 1 : index
    %c0_11 = arith.constant 0 : index
    %c0_12 = arith.constant 0 : index
    %9 = vector.load %arg3[%c1_10, %c0_11, %c0_12] : memref<9x4x128xbf16, #tpu.memory_space<vmem>>, vector<1x4x128xbf16>
    %10 = vector.shape_cast %9 : vector<1x4x128xbf16> to vector<4x128xbf16>
    %cst_13 = arith.constant dense<0.000000e+00> : vector<288x128xf32>
    %11 = tpu.matmul %8, %10, %cst_13 {dimension_numbers = #tpu.dot_dimension_numbers<[1], [0], [0], [1], [0, 0, 1, 1], [], []>} : vector<288x4xbf16>, vector<4x128xbf16>, vector<288x128xf32> -> vector<288x128xf32>
    %12 = arith.addf %6, %11 : vector<288x128xf32>
    %c0_14 = arith.constant 0 : index
    %c0_15 = arith.constant 0 : index
    %c2 = arith.constant 2 : index
    %c0_16 = arith.constant 0 : index
    %13 = vector.load %arg2[%c0_14, %c0_15, %c2, %c0_16] : memref<1x1x326x4xbf16, #tpu.memory_space<vmem>>, vector<1x1x288x4xbf16>
    %14 = vector.shape_cast %13 : vector<1x1x288x4xbf16> to vector<288x4xbf16>
    %c2_17 = arith.constant 2 : index
    %c0_18 = arith.constant 0 : index
    %c0_19 = arith.constant 0 : index
    %15 = vector.load %arg3[%c2_17, %c0_18, %c0_19] : memref<9x4x128xbf16, #tpu.memory_space<vmem>>, vector<1x4x128xbf16>
    %16 = vector.shape_cast %15 : vector<1x4x128xbf16> to vector<4x128xbf16>
    %cst_20 = arith.constant dense<0.000000e+00> : vector<288x128xf32>
    %17 = tpu.matmul %14, %16, %cst_20 {dimension_numbers = #tpu.dot_dimension_numbers<[1], [0], [0], [1], [0, 0, 1, 1], [], []>} : vector<288x4xbf16>, vector<4x128xbf16>, vector<288x128xf32> -> vector<288x128xf32>
    %18 = arith.addf %12, %17 : vector<288x128xf32>
    %c0_21 = arith.constant 0 : index
    %c0_22 = arith.constant 0 : index
    %c18 = arith.constant 18 : index
    %c0_23 = arith.constant 0 : index
    %19 = vector.load %arg2[%c0_21, %c0_22, %c18, %c0_23] : memref<1x1x326x4xbf16, #tpu.memory_space<vmem>>, vector<1x1x288x4xbf16>
    %20 = vector.shape_cast %19 : vector<1x1x288x4xbf16> to vector<288x4xbf16>
    %c3 = arith.constant 3 : index
    %c0_24 = arith.constant 0 : index
    %c0_25 = arith.constant 0 : index
    %21 = vector.load %arg3[%c3, %c0_24, %c0_25] : memref<9x4x128xbf16, #tpu.memory_space<vmem>>, vector<1x4x128xbf16>
    %22 = vector.shape_cast %21 : vector<1x4x128xbf16> to vector<4x128xbf16>
    %cst_26 = arith.constant dense<0.000000e+00> : vector<288x128xf32>
    %23 = tpu.matmul %20, %22, %cst_26 {dimension_numbers = #tpu.dot_dimension_numbers<[1], [0], [0], [1], [0, 0, 1, 1], [], []>} : vector<288x4xbf16>, vector<4x128xbf16>, vector<288x128xf32> -> vector<288x128xf32>
    %24 = arith.addf %18, %23 : vector<288x128xf32>
    %c0_27 = arith.constant 0 : index
    %c0_28 = arith.constant 0 : index
    %c19 = arith.constant 19 : index
    %c0_29 = arith.constant 0 : index
    %25 = vector.load %arg2[%c0_27, %c0_28, %c19, %c0_29] : memref<1x1x326x4xbf16, #tpu.memory_space<vmem>>, vector<1x1x288x4xbf16>
    %26 = vector.shape_cast %25 : vector<1x1x288x4xbf16> to vector<288x4xbf16>
    %c4 = arith.constant 4 : index
    %c0_30 = arith.constant 0 : index
    %c0_31 = arith.constant 0 : index
    %27 = vector.load %arg3[%c4, %c0_30, %c0_31] : memref<9x4x128xbf16, #tpu.memory_space<vmem>>, vector<1x4x128xbf16>
    %28 = vector.shape_cast %27 : vector<1x4x128xbf16> to vector<4x128xbf16>
    %cst_32 = arith.constant dense<0.000000e+00> : vector<288x128xf32>
    %29 = tpu.matmul %26, %28, %cst_32 {dimension_numbers = #tpu.dot_dimension_numbers<[1], [0], [0], [1], [0, 0, 1, 1], [], []>} : vector<288x4xbf16>, vector<4x128xbf16>, vector<288x128xf32> -> vector<288x128xf32>
    %30 = arith.addf %24, %29 : vector<288x128xf32>
    %c0_33 = arith.constant 0 : index
    %c0_34 = arith.constant 0 : index
    %c20 = arith.constant 20 : index
    %c0_35 = arith.constant 0 : index
    %31 = vector.load %arg2[%c0_33, %c0_34, %c20, %c0_35] : memref<1x1x326x4xbf16, #tpu.memory_space<vmem>>, vector<1x1x288x4xbf16>
    %32 = vector.shape_cast %31 : vector<1x1x288x4xbf16> to vector<288x4xbf16>
    %c5 = arith.constant 5 : index
    %c0_36 = arith.constant 0 : index
    %c0_37 = arith.constant 0 : index
    %33 = vector.load %arg3[%c5, %c0_36, %c0_37] : memref<9x4x128xbf16, #tpu.memory_space<vmem>>, vector<1x4x128xbf16>
    %34 = vector.shape_cast %33 : vector<1x4x128xbf16> to vector<4x128xbf16>
    %cst_38 = arith.constant dense<0.000000e+00> : vector<288x128xf32>
    %35 = tpu.matmul %32, %34, %cst_38 {dimension_numbers = #tpu.dot_dimension_numbers<[1], [0], [0], [1], [0, 0, 1, 1], [], []>} : vector<288x4xbf16>, vector<4x128xbf16>, vector<288x128xf32> -> vector<288x128xf32>
    %36 = arith.addf %30, %35 : vector<288x128xf32>
    %c0_39 = arith.constant 0 : index
    %c0_40 = arith.constant 0 : index
    %c36 = arith.constant 36 : index
    %c0_41 = arith.constant 0 : index
    %37 = vector.load %arg2[%c0_39, %c0_40, %c36, %c0_41] : memref<1x1x326x4xbf16, #tpu.memory_space<vmem>>, vector<1x1x288x4xbf16>
    %38 = vector.shape_cast %37 : vector<1x1x288x4xbf16> to vector<288x4xbf16>
    %c6 = arith.constant 6 : index
    %c0_42 = arith.constant 0 : index
    %c0_43 = arith.constant 0 : index
    %39 = vector.load %arg3[%c6, %c0_42, %c0_43] : memref<9x4x128xbf16, #tpu.memory_space<vmem>>, vector<1x4x128xbf16>
    %40 = vector.shape_cast %39 : vector<1x4x128xbf16> to vector<4x128xbf16>
    %cst_44 = arith.constant dense<0.000000e+00> : vector<288x128xf32>
    %41 = tpu.matmul %38, %40, %cst_44 {dimension_numbers = #tpu.dot_dimension_numbers<[1], [0], [0], [1], [0, 0, 1, 1], [], []>} : vector<288x4xbf16>, vector<4x128xbf16>, vector<288x128xf32> -> vector<288x128xf32>
    %42 = arith.addf %36, %41 : vector<288x128xf32>
    %c0_45 = arith.constant 0 : index
    %c0_46 = arith.constant 0 : index
    %c37 = arith.constant 37 : index
    %c0_47 = arith.constant 0 : index
    %43 = vector.load %arg2[%c0_45, %c0_46, %c37, %c0_47] : memref<1x1x326x4xbf16, #tpu.memory_space<vmem>>, vector<1x1x288x4xbf16>
    %44 = vector.shape_cast %43 : vector<1x1x288x4xbf16> to vector<288x4xbf16>
    %c7 = arith.constant 7 : index
    %c0_48 = arith.constant 0 : index
    %c0_49 = arith.constant 0 : index
    %45 = vector.load %arg3[%c7, %c0_48, %c0_49] : memref<9x4x128xbf16, #tpu.memory_space<vmem>>, vector<1x4x128xbf16>
    %46 = vector.shape_cast %45 : vector<1x4x128xbf16> to vector<4x128xbf16>
    %cst_50 = arith.constant dense<0.000000e+00> : vector<288x128xf32>
    %47 = tpu.matmul %44, %46, %cst_50 {dimension_numbers = #tpu.dot_dimension_numbers<[1], [0], [0], [1], [0, 0, 1, 1], [], []>} : vector<288x4xbf16>, vector<4x128xbf16>, vector<288x128xf32> -> vector<288x128xf32>
    %48 = arith.addf %42, %47 : vector<288x128xf32>
    %c0_51 = arith.constant 0 : index
    %c0_52 = arith.constant 0 : index
    %c38 = arith.constant 38 : index
    %c0_53 = arith.constant 0 : index
    %49 = vector.load %arg2[%c0_51, %c0_52, %c38, %c0_53] : memref<1x1x326x4xbf16, #tpu.memory_space<vmem>>, vector<1x1x288x4xbf16>
    %50 = vector.shape_cast %49 : vector<1x1x288x4xbf16> to vector<288x4xbf16>
    %c8 = arith.constant 8 : index
    %c0_54 = arith.constant 0 : index
    %c0_55 = arith.constant 0 : index
    %51 = vector.load %arg3[%c8, %c0_54, %c0_55] : memref<9x4x128xbf16, #tpu.memory_space<vmem>>, vector<1x4x128xbf16>
    %52 = vector.shape_cast %51 : vector<1x4x128xbf16> to vector<4x128xbf16>
    %cst_56 = arith.constant dense<0.000000e+00> : vector<288x128xf32>
    %53 = tpu.matmul %50, %52, %cst_56 {dimension_numbers = #tpu.dot_dimension_numbers<[1], [0], [0], [1], [0, 0, 1, 1], [], []>} : vector<288x4xbf16>, vector<4x128xbf16>, vector<288x128xf32> -> vector<288x128xf32>
    %54 = arith.addf %48, %53 : vector<288x128xf32>
    %c0_57 = arith.constant 0 : index
    %c0_58 = arith.constant 0 : index
    %55 = vector.load %arg4[%c0_57, %c0_58] : memref<1x128xf32, #tpu.memory_space<vmem>>, vector<1x128xf32>
    %56 = vector.broadcast %55 : vector<1x128xf32> to vector<288x128xf32>
    %57 = arith.mulf %54, %56 : vector<288x128xf32>
    %c0_59 = arith.constant 0 : index
    %c0_60 = arith.constant 0 : index
    %58 = vector.load %arg5[%c0_59, %c0_60] : memref<1x128xf32, #tpu.memory_space<vmem>>, vector<1x128xf32>
    %59 = vector.broadcast %58 : vector<1x128xf32> to vector<288x128xf32>
    %60 = arith.addf %57, %59 : vector<288x128xf32>
    %cst_61 = arith.constant 0.000000e+00 : f32
    %61 = vector.broadcast %cst_61 : f32 to vector<288x128xf32>
    %62 = arith.maximumf %60, %61 : vector<288x128xf32>
    %63 = arith.truncf %62 : vector<288x128xf32> to vector<288x128xbf16>
    %c0_62 = arith.constant 0 : index
    %c0_63 = arith.constant 0 : index
    %c0_64 = arith.constant 0 : index
    %c0_65 = arith.constant 0 : index
    %64 = vector.load %arg6[%c0_62, %c0_63, %c0_64, %c0_65] : memref<1x1x288x128xbf16, #tpu.memory_space<vmem>>, vector<1x1x288x128xbf16>
    %65 = vector.shape_cast %64 : vector<1x1x288x128xbf16> to vector<288x128xbf16>
    %66 = vector.shape_cast %63 : vector<288x128xbf16> to vector<1x1x288x128xbf16>
    tpu.vector_store %arg6[%c0_62, %c0_63, %c0_64, %c0_65], %66 {strides = array<i32>} : memref<1x1x288x128xbf16, #tpu.memory_space<vmem>>, vector<1x1x288x128xbf16>,
    return
  }
  func.func @transform_0(%arg0: i32, %arg1: i32) -> (i32, i32, i32, i32) {
    %c0_i32 = arith.constant 0 : i32
    %c0_i32_0 = arith.constant 0 : i32
    %c0_i32_1 = arith.constant 0 : i32
    return %arg0, %arg1, %c0_i32, %c0_i32_0 : i32, i32, i32, i32
  }
  func.func @transform_1(%arg0: i32, %arg1: i32) -> (i32, i32, i32) {
    %c0_i32 = arith.constant 0 : i32
    %c0_i32_0 = arith.constant 0 : i32
    %c0_i32_1 = arith.constant 0 : i32
    %c0_i32_2 = arith.constant 0 : i32
    return %c0_i32, %c0_i32_0, %c0_i32_1 : i32, i32, i32
  }
  func.func @transform_2(%arg0: i32, %arg1: i32) -> (i32, i32) {
    %c0_i32 = arith.constant 0 : i32
    %c0_i32_0 = arith.constant 0 : i32
    %c0_i32_1 = arith.constant 0 : i32
    return %c0_i32, %c0_i32_0 : i32, i32
  }
  func.func @transform_3(%arg0: i32, %arg1: i32) -> (i32, i32) {
    %c0_i32 = arith.constant 0 : i32
    %c0_i32_0 = arith.constant 0 : i32
    %c0_i32_1 = arith.constant 0 : i32
    return %c0_i32, %c0_i32_0 : i32, i32
  }
  func.func @transform_4(%arg0: i32, %arg1: i32) -> (i32, i32, i32, i32) {
    %c0_i32 = arith.constant 0 : i32
    %c0_i32_0 = arith.constant 0 : i32
    %c0_i32_1 = arith.constant 0 : i32
    return %arg0, %arg1, %c0_i32, %c0_i32_0 : i32, i32, i32, i32
  }
}

module attributes {stable_mosaic.version = 11 : i64} {
  func.func @_conv3x3_bn_relu_kernel(%arg0: i32, %arg1: i32, %arg2: memref<1x1x326x8xbf16, #tpu.memory_space<vmem>>, %arg3: memref<9x8x128xbf16, #tpu.memory_space<vmem>>, %arg4: memref<1x128xf32, #tpu.memory_space<vmem>>, %arg5: memref<1x128xf32, #tpu.memory_space<vmem>>, %arg6: memref<1x1x288x128xf32, #tpu.memory_space<vmem>>) attributes {dimension_semantics = [#tpu.dimension_semantics<parallel>, #tpu.dimension_semantics<parallel>], iteration_bounds = array<i64: 2, 1>, scalar_prefetch = 0 : i64, scratch_operands = 0 : i64, tpu.core_type = #tpu.core_type<tc>, window_params = [{transform_indices = @transform_0, window_bounds = array<i64: 1, 1, 326, 8>}, {pipeline_mode = #tpu.pipeline_mode<synchronous>, transform_indices = @transform_1, window_bounds = array<i64: 9, 8, 128>}, {pipeline_mode = #tpu.pipeline_mode<synchronous>, transform_indices = @transform_2, window_bounds = array<i64: 1, 128>}, {pipeline_mode = #tpu.pipeline_mode<synchronous>, transform_indices = @transform_3, window_bounds = array<i64: 1, 128>}, {transform_indices = @transform_4, window_bounds = array<i64: 1, 1, 288, 128>}]} {
    %cst = arith.constant 0.000000e+00 : f32
    %0 = vector.broadcast %cst : f32 to vector<288x128xf32>
    %c0 = arith.constant 0 : index
    %c0_0 = arith.constant 0 : index
    %c0_1 = arith.constant 0 : index
    %c0_2 = arith.constant 0 : index
    %1 = vector.load %arg2[%c0, %c0_0, %c0_1, %c0_2] : memref<1x1x326x8xbf16, #tpu.memory_space<vmem>>, vector<1x1x288x8xbf16>
    %2 = vector.shape_cast %1 : vector<1x1x288x8xbf16> to vector<288x8xbf16>
    %c0_3 = arith.constant 0 : index
    %c0_4 = arith.constant 0 : index
    %c0_5 = arith.constant 0 : index
    %3 = vector.load %arg3[%c0_3, %c0_4, %c0_5] : memref<9x8x128xbf16, #tpu.memory_space<vmem>>, vector<1x8x128xbf16>
    %4 = vector.shape_cast %3 : vector<1x8x128xbf16> to vector<8x128xbf16>
    %cst_6 = arith.constant dense<0.000000e+00> : vector<288x128xf32>
    %5 = tpu.matmul %2, %4, %cst_6 {dimension_numbers = #tpu.dot_dimension_numbers<[1], [0], [0], [1], [0, 0, 1, 1], [], []>} : vector<288x8xbf16>, vector<8x128xbf16>, vector<288x128xf32> -> vector<288x128xf32>
    %6 = arith.addf %0, %5 : vector<288x128xf32>
    %c0_7 = arith.constant 0 : index
    %c0_8 = arith.constant 0 : index
    %c1 = arith.constant 1 : index
    %c0_9 = arith.constant 0 : index
    %7 = vector.load %arg2[%c0_7, %c0_8, %c1, %c0_9] : memref<1x1x326x8xbf16, #tpu.memory_space<vmem>>, vector<1x1x288x8xbf16>
    %8 = vector.shape_cast %7 : vector<1x1x288x8xbf16> to vector<288x8xbf16>
    %c1_10 = arith.constant 1 : index
    %c0_11 = arith.constant 0 : index
    %c0_12 = arith.constant 0 : index
    %9 = vector.load %arg3[%c1_10, %c0_11, %c0_12] : memref<9x8x128xbf16, #tpu.memory_space<vmem>>, vector<1x8x128xbf16>
    %10 = vector.shape_cast %9 : vector<1x8x128xbf16> to vector<8x128xbf16>
    %cst_13 = arith.constant dense<0.000000e+00> : vector<288x128xf32>
    %11 = tpu.matmul %8, %10, %cst_13 {dimension_numbers = #tpu.dot_dimension_numbers<[1], [0], [0], [1], [0, 0, 1, 1], [], []>} : vector<288x8xbf16>, vector<8x128xbf16>, vector<288x128xf32> -> vector<288x128xf32>
    %12 = arith.addf %6, %11 : vector<288x128xf32>
    %c0_14 = arith.constant 0 : index
    %c0_15 = arith.constant 0 : index
    %c2 = arith.constant 2 : index
    %c0_16 = arith.constant 0 : index
    %13 = vector.load %arg2[%c0_14, %c0_15, %c2, %c0_16] : memref<1x1x326x8xbf16, #tpu.memory_space<vmem>>, vector<1x1x288x8xbf16>
    %14 = vector.shape_cast %13 : vector<1x1x288x8xbf16> to vector<288x8xbf16>
    %c2_17 = arith.constant 2 : index
    %c0_18 = arith.constant 0 : index
    %c0_19 = arith.constant 0 : index
    %15 = vector.load %arg3[%c2_17, %c0_18, %c0_19] : memref<9x8x128xbf16, #tpu.memory_space<vmem>>, vector<1x8x128xbf16>
    %16 = vector.shape_cast %15 : vector<1x8x128xbf16> to vector<8x128xbf16>
    %cst_20 = arith.constant dense<0.000000e+00> : vector<288x128xf32>
    %17 = tpu.matmul %14, %16, %cst_20 {dimension_numbers = #tpu.dot_dimension_numbers<[1], [0], [0], [1], [0, 0, 1, 1], [], []>} : vector<288x8xbf16>, vector<8x128xbf16>, vector<288x128xf32> -> vector<288x128xf32>
    %18 = arith.addf %12, %17 : vector<288x128xf32>
    %c0_21 = arith.constant 0 : index
    %c0_22 = arith.constant 0 : index
    %c18 = arith.constant 18 : index
    %c0_23 = arith.constant 0 : index
    %19 = vector.load %arg2[%c0_21, %c0_22, %c18, %c0_23] : memref<1x1x326x8xbf16, #tpu.memory_space<vmem>>, vector<1x1x288x8xbf16>
    %20 = vector.shape_cast %19 : vector<1x1x288x8xbf16> to vector<288x8xbf16>
    %c3 = arith.constant 3 : index
    %c0_24 = arith.constant 0 : index
    %c0_25 = arith.constant 0 : index
    %21 = vector.load %arg3[%c3, %c0_24, %c0_25] : memref<9x8x128xbf16, #tpu.memory_space<vmem>>, vector<1x8x128xbf16>
    %22 = vector.shape_cast %21 : vector<1x8x128xbf16> to vector<8x128xbf16>
    %cst_26 = arith.constant dense<0.000000e+00> : vector<288x128xf32>
    %23 = tpu.matmul %20, %22, %cst_26 {dimension_numbers = #tpu.dot_dimension_numbers<[1], [0], [0], [1], [0, 0, 1, 1], [], []>} : vector<288x8xbf16>, vector<8x128xbf16>, vector<288x128xf32> -> vector<288x128xf32>
    %24 = arith.addf %18, %23 : vector<288x128xf32>
    %c0_27 = arith.constant 0 : index
    %c0_28 = arith.constant 0 : index
    %c19 = arith.constant 19 : index
    %c0_29 = arith.constant 0 : index
    %25 = vector.load %arg2[%c0_27, %c0_28, %c19, %c0_29] : memref<1x1x326x8xbf16, #tpu.memory_space<vmem>>, vector<1x1x288x8xbf16>
    %26 = vector.shape_cast %25 : vector<1x1x288x8xbf16> to vector<288x8xbf16>
    %c4 = arith.constant 4 : index
    %c0_30 = arith.constant 0 : index
    %c0_31 = arith.constant 0 : index
    %27 = vector.load %arg3[%c4, %c0_30, %c0_31] : memref<9x8x128xbf16, #tpu.memory_space<vmem>>, vector<1x8x128xbf16>
    %28 = vector.shape_cast %27 : vector<1x8x128xbf16> to vector<8x128xbf16>
    %cst_32 = arith.constant dense<0.000000e+00> : vector<288x128xf32>
    %29 = tpu.matmul %26, %28, %cst_32 {dimension_numbers = #tpu.dot_dimension_numbers<[1], [0], [0], [1], [0, 0, 1, 1], [], []>} : vector<288x8xbf16>, vector<8x128xbf16>, vector<288x128xf32> -> vector<288x128xf32>
    %30 = arith.addf %24, %29 : vector<288x128xf32>
    %c0_33 = arith.constant 0 : index
    %c0_34 = arith.constant 0 : index
    %c20 = arith.constant 20 : index
    %c0_35 = arith.constant 0 : index
    %31 = vector.load %arg2[%c0_33, %c0_34, %c20, %c0_35] : memref<1x1x326x8xbf16, #tpu.memory_space<vmem>>, vector<1x1x288x8xbf16>
    %32 = vector.shape_cast %31 : vector<1x1x288x8xbf16> to vector<288x8xbf16>
    %c5 = arith.constant 5 : index
    %c0_36 = arith.constant 0 : index
    %c0_37 = arith.constant 0 : index
    %33 = vector.load %arg3[%c5, %c0_36, %c0_37] : memref<9x8x128xbf16, #tpu.memory_space<vmem>>, vector<1x8x128xbf16>
    %34 = vector.shape_cast %33 : vector<1x8x128xbf16> to vector<8x128xbf16>
    %cst_38 = arith.constant dense<0.000000e+00> : vector<288x128xf32>
    %35 = tpu.matmul %32, %34, %cst_38 {dimension_numbers = #tpu.dot_dimension_numbers<[1], [0], [0], [1], [0, 0, 1, 1], [], []>} : vector<288x8xbf16>, vector<8x128xbf16>, vector<288x128xf32> -> vector<288x128xf32>
    %36 = arith.addf %30, %35 : vector<288x128xf32>
    %c0_39 = arith.constant 0 : index
    %c0_40 = arith.constant 0 : index
    %c36 = arith.constant 36 : index
    %c0_41 = arith.constant 0 : index
    %37 = vector.load %arg2[%c0_39, %c0_40, %c36, %c0_41] : memref<1x1x326x8xbf16, #tpu.memory_space<vmem>>, vector<1x1x288x8xbf16>
    %38 = vector.shape_cast %37 : vector<1x1x288x8xbf16> to vector<288x8xbf16>
    %c6 = arith.constant 6 : index
    %c0_42 = arith.constant 0 : index
    %c0_43 = arith.constant 0 : index
    %39 = vector.load %arg3[%c6, %c0_42, %c0_43] : memref<9x8x128xbf16, #tpu.memory_space<vmem>>, vector<1x8x128xbf16>
    %40 = vector.shape_cast %39 : vector<1x8x128xbf16> to vector<8x128xbf16>
    %cst_44 = arith.constant dense<0.000000e+00> : vector<288x128xf32>
    %41 = tpu.matmul %38, %40, %cst_44 {dimension_numbers = #tpu.dot_dimension_numbers<[1], [0], [0], [1], [0, 0, 1, 1], [], []>} : vector<288x8xbf16>, vector<8x128xbf16>, vector<288x128xf32> -> vector<288x128xf32>
    %42 = arith.addf %36, %41 : vector<288x128xf32>
    %c0_45 = arith.constant 0 : index
    %c0_46 = arith.constant 0 : index
    %c37 = arith.constant 37 : index
    %c0_47 = arith.constant 0 : index
    %43 = vector.load %arg2[%c0_45, %c0_46, %c37, %c0_47] : memref<1x1x326x8xbf16, #tpu.memory_space<vmem>>, vector<1x1x288x8xbf16>
    %44 = vector.shape_cast %43 : vector<1x1x288x8xbf16> to vector<288x8xbf16>
    %c7 = arith.constant 7 : index
    %c0_48 = arith.constant 0 : index
    %c0_49 = arith.constant 0 : index
    %45 = vector.load %arg3[%c7, %c0_48, %c0_49] : memref<9x8x128xbf16, #tpu.memory_space<vmem>>, vector<1x8x128xbf16>
    %46 = vector.shape_cast %45 : vector<1x8x128xbf16> to vector<8x128xbf16>
    %cst_50 = arith.constant dense<0.000000e+00> : vector<288x128xf32>
    %47 = tpu.matmul %44, %46, %cst_50 {dimension_numbers = #tpu.dot_dimension_numbers<[1], [0], [0], [1], [0, 0, 1, 1], [], []>} : vector<288x8xbf16>, vector<8x128xbf16>, vector<288x128xf32> -> vector<288x128xf32>
    %48 = arith.addf %42, %47 : vector<288x128xf32>
    %c0_51 = arith.constant 0 : index
    %c0_52 = arith.constant 0 : index
    %c38 = arith.constant 38 : index
    %c0_53 = arith.constant 0 : index
    %49 = vector.load %arg2[%c0_51, %c0_52, %c38, %c0_53] : memref<1x1x326x8xbf16, #tpu.memory_space<vmem>>, vector<1x1x288x8xbf16>
    %50 = vector.shape_cast %49 : vector<1x1x288x8xbf16> to vector<288x8xbf16>
    %c8 = arith.constant 8 : index
    %c0_54 = arith.constant 0 : index
    %c0_55 = arith.constant 0 : index
    %51 = vector.load %arg3[%c8, %c0_54, %c0_55] : memref<9x8x128xbf16, #tpu.memory_space<vmem>>, vector<1x8x128xbf16>
    %52 = vector.shape_cast %51 : vector<1x8x128xbf16> to vector<8x128xbf16>
    %cst_56 = arith.constant dense<0.000000e+00> : vector<288x128xf32>
    %53 = tpu.matmul %50, %52, %cst_56 {dimension_numbers = #tpu.dot_dimension_numbers<[1], [0], [0], [1], [0, 0, 1, 1], [], []>} : vector<288x8xbf16>, vector<8x128xbf16>, vector<288x128xf32> -> vector<288x128xf32>
    %54 = arith.addf %48, %53 : vector<288x128xf32>
    %c0_57 = arith.constant 0 : index
    %c0_58 = arith.constant 0 : index
    %55 = vector.load %arg4[%c0_57, %c0_58] : memref<1x128xf32, #tpu.memory_space<vmem>>, vector<1x128xf32>
    %56 = vector.broadcast %55 : vector<1x128xf32> to vector<288x128xf32>
    %57 = arith.mulf %54, %56 : vector<288x128xf32>
    %c0_59 = arith.constant 0 : index
    %c0_60 = arith.constant 0 : index
    %58 = vector.load %arg5[%c0_59, %c0_60] : memref<1x128xf32, #tpu.memory_space<vmem>>, vector<1x128xf32>
    %59 = vector.broadcast %58 : vector<1x128xf32> to vector<288x128xf32>
    %60 = arith.addf %57, %59 : vector<288x128xf32>
    %cst_61 = arith.constant 0.000000e+00 : f32
    %61 = vector.broadcast %cst_61 : f32 to vector<288x128xf32>
    %62 = arith.maximumf %60, %61 : vector<288x128xf32>
    %c0_62 = arith.constant 0 : index
    %c0_63 = arith.constant 0 : index
    %c0_64 = arith.constant 0 : index
    %c0_65 = arith.constant 0 : index
    %63 = vector.load %arg6[%c0_62, %c0_63, %c0_64, %c0_65] : memref<1x1x288x128xf32, #tpu.memory_space<vmem>>, vector<1x1x288x128xf32>
    %64 = vector.shape_cast %63 : vector<1x1x288x128xf32> to vector<288x128xf32>
    %65 = vector.shape_cast %62 : vector<288x128xf32> to vector<1x1x288x128xf32>
    tpu.vector_store %arg6[%c0_62, %c0_63, %c0_64, %c0_65], %65 {strides = array<i32>} : memref<1x1x288x128xf32, #tpu.memory_space<vmem>>, vector<1x1x288x128xf32>,
    return
  }
  func.func @transform_0(%arg0: i32, %arg1: i32) -> (i32, i32, i32, i32) {
    %c0_i32 = arith.constant 0 : i32
    %c0_i32_0 = arith.constant 0 : i32
    %c0_i32_1 = arith.constant 0 : i32
    return %arg0, %arg1, %c0_i32, %c0_i32_0 : i32, i32, i32, i32
  }
  func.func @transform_1(%arg0: i32, %arg1: i32) -> (i32, i32, i32) {
    %c0_i32 = arith.constant 0 : i32
    %c0_i32_0 = arith.constant 0 : i32
    %c0_i32_1 = arith.constant 0 : i32
    %c0_i32_2 = arith.constant 0 : i32
    return %c0_i32, %c0_i32_0, %c0_i32_1 : i32, i32, i32
  }
  func.func @transform_2(%arg0: i32, %arg1: i32) -> (i32, i32) {
    %c0_i32 = arith.constant 0 : i32
    %c0_i32_0 = arith.constant 0 : i32
    %c0_i32_1 = arith.constant 0 : i32
    return %c0_i32, %c0_i32_0 : i32, i32
  }
  func.func @transform_3(%arg0: i32, %arg1: i32) -> (i32, i32) {
    %c0_i32 = arith.constant 0 : i32
    %c0_i32_0 = arith.constant 0 : i32
    %c0_i32_1 = arith.constant 0 : i32
    return %c0_i32, %c0_i32_0 : i32, i32
  }
  func.func @transform_4(%arg0: i32, %arg1: i32) -> (i32, i32, i32, i32) {
    %c0_i32 = arith.constant 0 : i32
    %c0_i32_0 = arith.constant 0 : i32
    %c0_i32_1 = arith.constant 0 : i32
    return %arg0, %arg1, %c0_i32, %c0_i32_0 : i32, i32, i32, i32
  }
}

</mosaic_0001>

<llo_original>
// kernel: myconv_forward.2
$region0: #{myconv_forward.2}
  #allocation0 [shape = 'u32[]', space=smem, size = 0x4, offset = 0x4, fixed_abs, tag = 'smem constant byte address 0x4 - core index']
  #allocation1 [shape = 'u32[144,128]{1,0:T(1,128)}', space=vmem, size = 0x12000, scoped, tag = 'internal scratch']
  %s0 = inlined_call_operand.vmem [shape: bf16[2,1,326,4], index: 0, kind: input, shape index: {}]
  %s1 = inlined_call_operand.vmem [shape: bf16[9,4,128], index: 1, kind: input, shape index: {}]
  %s2 = inlined_call_operand.vmem [shape: f32[1,128], index: 2, kind: input, shape index: {}]
  %s3 = inlined_call_operand.vmem [shape: f32[1,128], index: 3, kind: input, shape index: {}]
  %s4 = inlined_call_operand.vmem [shape: bf16[2,1,288,128], index: 4, kind: output, shape index: {}]
  %s5 = sld [smem:[#allocation0]]
  $region49: #{myconv_forward.2} parent=0
    _
  %s7 = ssub.s32 1, %s5
  %s8 = scalar_select 0, %s7, %s5
  loop: start=0, step=1, limit=4
  $region2: #{myconv_forward.2} parent=0 // loop_pre_header
    _
  $region3: #{myconv_forward.2} parent=0 // loop_header
    %s10 = sphi 0, %s14
    %p11 = scmp.ge.s32.totalorder %s10, 4
    %s17 = sphi 0, %s29
    %s18 = sphi 0, %s25
    %s19 = sphi 0, %s17
    %s20 = sphi 0, %s18
    %s21 = sphi 0, %s19
    %s22 = sphi 0, %s20
    %s34 = sphi 0, %s36
    %s37 = sphi 0, %s34
    %s38 = sphi 0, %s37
    %s54 = sphi 0, %s38
    %s58 = sphi 0, %s58
    %s60 = sphi 0, %s58
    %s61 = sphi 0, %s60
    %s75 = sphi 0, %s61
    %s79 = sphi 0, %s79
    %s81 = sphi 0, %s79
    %s82 = sphi 0, %s81
    %s96 = sphi 0, %s82
    %s100 = sphi 0, %s100
    %s102 = sphi 0, %s100
    %s103 = sphi 0, %s102
    %s117 = sphi 0, %s103
    %s125 = sphi 0, %s127
    %s128 = sphi 0, %s125
    %s129 = sphi 0, %s128
    %s145 = sphi 0, %s129
  $region4: #{myconv_forward.2} parent=0 // loop_header_branch
    %13 = sbr.rel (%p11) target = $region8
  $region5: #{myconv_forward.2} parent=0 // loop_body
    %s15 = ssub.s32 %s10, 1
    %s16 = ssub.s32 %s10, 2
    %s23 = sadd.s32 1, %s18
    %p24 = scmp.ge.s32.totalorder %s23, 1
    %s25 = scalar_select %p24, 0, %s23
    %s26 = sadd.s32 1, %s17
    %s27 = scalar_select %p24, %s26, %s17
    %p28 = scmp.ge.s32.totalorder %s27, 2
    %s29 = scalar_select %p28, 0, %s27
    %s30 = ssub.s32 %s17, %s29
    %s31 = ssub.s32 %s18, %s25
    %s32 = sor.u32 %s30, %s31
    %p33 = scmp.eq.s32.totalorder %s32, 0
    %s35 = sadd.s32 %s34, 1
    %s36 = scalar_select %p33, %s34, %s35
    %p39 = pneg %p33
    %p40 = scmp.eq.s32.totalorder %s10, 1
    %p41 = por %p39, %p40
    %p42 = scmp.ne.s32.totalorder %s34, %s37
    %p43 = scmp.eq.s32.totalorder %s10, 0
    %p44 = por %p42, %p43
    %p45 = scmp.ne.s32.totalorder %s34, %s37
    %p46 = scmp.eq.s32.totalorder %s15, 1
    %p47 = por %p45, %p46
    %p48 = scmp.ne.s32.totalorder %s37, %s38
    %p49 = scmp.eq.s32.totalorder %s15, 0
    %p50 = por %p48, %p49
    %p51 = scmp.ne.s32.totalorder %s37, %s38
    %p52 = scmp.eq.s32.totalorder %s16, 1
    %p53 = por %p51, %p52
    %p55 = scmp.ne.s32.totalorder %s38, %s54
    %p56 = scmp.eq.s32.totalorder %s16, 0
    %p57 = por %p55, %p56
    %s59 = sadd.s32 %s58, 1
    %p62 = scmp.eq.s32.totalorder %s10, 1
    %p63 = scmp.ne.s32.totalorder %s58, %s60
    %p64 = scmp.eq.s32.totalorder %s10, 0
    %p65 = por %p63, %p64
    %p66 = scmp.ne.s32.totalorder %s58, %s60
    %p67 = scmp.eq.s32.totalorder %s15, 1
    %p68 = por %p66, %p67
    %p69 = scmp.ne.s32.totalorder %s60, %s61
    %p70 = scmp.eq.s32.totalorder %s15, 0
    %p71 = por %p69, %p70
    %p72 = scmp.ne.s32.totalorder %s60, %s61
    %p73 = scmp.eq.s32.totalorder %s16, 1
    %p74 = por %p72, %p73
    %p76 = scmp.ne.s32.totalorder %s61, %s75
    %p77 = scmp.eq.s32.totalorder %s16, 0
    %p78 = por %p76, %p77
    %s80 = sadd.s32 %s79, 1
    %p83 = scmp.eq.s32.totalorder %s10, 1
    %p84 = scmp.ne.s32.totalorder %s79, %s81
    %p85 = scmp.eq.s32.totalorder %s10, 0
    %p86 = por %p84, %p85
    %p87 = scmp.ne.s32.totalorder %s79, %s81
    %p88 = scmp.eq.s32.totalorder %s15, 1
    %p89 = por %p87, %p88
    %p90 = scmp.ne.s32.totalorder %s81, %s82
    %p91 = scmp.eq.s32.totalorder %s15, 0
    %p92 = por %p90, %p91
    %p93 = scmp.ne.s32.totalorder %s81, %s82
    %p94 = scmp.eq.s32.totalorder %s16, 1
    %p95 = por %p93, %p94
    %p97 = scmp.ne.s32.totalorder %s82, %s96
    %p98 = scmp.eq.s32.totalorder %s16, 0
    %p99 = por %p97, %p98
    %s101 = sadd.s32 %s100, 1
    %p104 = scmp.eq.s32.totalorder %s10, 1
    %p105 = scmp.ne.s32.totalorder %s100, %s102
    %p106 = scmp.eq.s32.totalorder %s10, 0
    %p107 = por %p105, %p106
    %p108 = scmp.ne.s32.totalorder %s100, %s102
    %p109 = scmp.eq.s32.totalorder %s15, 1
    %p110 = por %p108, %p109
    %p111 = scmp.ne.s32.totalorder %s102, %s103
    %p112 = scmp.eq.s32.totalorder %s15, 0
    %p113 = por %p111, %p112
    %p114 = scmp.ne.s32.totalorder %s102, %s103
    %p115 = scmp.eq.s32.totalorder %s16, 1
    %p116 = por %p114, %p115
    %p118 = scmp.ne.s32.totalorder %s103, %s117
    %p119 = scmp.eq.s32.totalorder %s16, 0
    %p120 = por %p118, %p119
    %s121 = ssub.s32 %s17, %s29
    %s122 = ssub.s32 %s18, %s25
    %s123 = sor.u32 %s121, %s122
    %p124 = scmp.eq.s32.totalorder %s123, 0
    %s126 = sadd.s32 %s125, 1
    %s127 = scalar_select %p124, %s125, %s126
    %p130 = pneg %p124
    %p131 = scmp.eq.s32.totalorder %s10, 1
    %p132 = por %p130, %p131
    %p133 = scmp.ne.s32.totalorder %s125, %s128
    %p134 = scmp.eq.s32.totalorder %s10, 0
    %p135 = por %p133, %p134
    %p136 = scmp.ne.s32.totalorder %s125, %s128
    %p137 = scmp.eq.s32.totalorder %s15, 1
    %p138 = por %p136, %p137
    %p139 = scmp.ne.s32.totalorder %s128, %s129
    %p140 = scmp.eq.s32.totalorder %s15, 0
    %p141 = por %p139, %p140
    %p142 = scmp.ne.s32.totalorder %s128, %s129
    %p143 = scmp.eq.s32.totalorder %s16, 1
    %p144 = por %p142, %p143
    %p146 = scmp.ne.s32.totalorder %s129, %s145
    %p147 = scmp.eq.s32.totalorder %s16, 0
    %p148 = por %p146, %p147
    %p149 = scmp.le.s32.totalorder 1, %s10
    %p150 = scmp.lt.s32.totalorder %s10, 3
    %p151 = pnand %p149, %p150
    %p152 = pneg %p151
    // Predicated region
    $region9: #{myconv_forward.2} parent=5 // pred_check
      _
    $region10: #{myconv_forward.2} parent=5 // pred_check_branch
      %154 = sbr.rel (%p151) target = $region12
    $region11: #{myconv_forward.2} parent=5 // pred_region
      %s155 = ssub.s32 %s10, 1
      // Predicated region
      $region13: #{myconv_forward.2} parent=11 // pred_check
        %p156 = pneg %p71
      $region14: #{myconv_forward.2} parent=11 // pred_check_branch
        %158 = sbr.rel (%p156) target = $region16
      $region15: #{myconv_forward.2} parent=11 // pred_region
        _
      $region16: #{myconv_forward.2} parent=11 // pred_fallthru
        _
      // Predicated region
      $region17: #{myconv_forward.2} parent=11 // pred_check
        %p159 = pneg %p92
      $region18: #{myconv_forward.2} parent=11 // pred_check_branch
        %161 = sbr.rel (%p159) target = $region20
      $region19: #{myconv_forward.2} parent=11 // pred_region
        _
      $region20: #{myconv_forward.2} parent=11 // pred_fallthru
        _
      // Predicated region
      $region21: #{myconv_forward.2} parent=11 // pred_check
        %p162 = pneg %p113
      $region22: #{myconv_forward.2} parent=11 // pred_check_branch
        %164 = sbr.rel (%p162) target = $region24
      $region23: #{myconv_forward.2} parent=11 // pred_region
        _
      $region24: #{myconv_forward.2} parent=11 // pred_fallthru
        _
    $region12: #{myconv_forward.2} parent=5 // pred_fallthru
      _
    %p165 = scmp.lt.s32.totalorder %s10, 2
    // Predicated region
    $region25: #{myconv_forward.2} parent=5 // pred_check
      %p166 = pneg %p165
    $region26: #{myconv_forward.2} parent=5 // pred_check_branch
      %168 = sbr.rel (%p166) target = $region28
    $region27: #{myconv_forward.2} parent=5 // pred_region
      // Predicated region
      $region29: #{myconv_forward.2} parent=27 // pred_check
        %p169 = pneg %p44
      $region30: #{myconv_forward.2} parent=27 // pred_check_branch
        %171 = sbr.rel (%p169) target = $region32
      $region31: #{myconv_forward.2} parent=27 // pred_region
        %p172 = scmp.lt.s32.totalorder %s17, 1
        %s173 = scalar_select %p172, %s17, 1
        %p174 = scmp.lt.s32.totalorder %s18, 0
        %s175 = scalar_select %p174, %s18, 0
        %s176 = smul.addr %s175, 41
        %s177 = smul.addr %s173, 41
        %s178 = sadd.s32 %s176, %s177
        %s179 = smul.addr %s178, 4
        %s180 = scalar_lea.vmem %s0, %s179
      $region32: #{myconv_forward.2} parent=27 // pred_fallthru
        _
    $region28: #{myconv_forward.2} parent=5 // pred_fallthru
      _
    %p181 = scmp.le.s32.totalorder 1, %s10
    %p182 = scmp.lt.s32.totalorder %s10, 3
    %p183 = pnand %p181, %p182
    %p184 = pneg %p183
    // Predicated region
    $region33: #{myconv_forward.2} parent=5 // pred_check
      _
    $region34: #{myconv_forward.2} parent=5 // pred_check_branch
      %186 = sbr.rel (%p183) target = $region36
    $region35: #{myconv_forward.2} parent=5 // pred_region
      %s187 = ssub.s32 %s10, 1
      %p188 = scmp.lt.s32.totalorder %s19, 1
      %s189 = scalar_select %p188, %s19, 1
      %p190 = scmp.lt.s32.totalorder %s20, 0
      %s191 = scalar_select %p190, %s20, 0
      %s192 = smul.addr %s191, 41
      %s193 = smul.addr %s189, 41
      %s194 = sadd.s32 %s192, %s193
      %s195 = smul.addr %s194, 4
      %s196 = scalar_lea.vmem %s0, %s195
      %p197 = pneg %p50
      %p198 = pneg %p47
      %p199 = pneg %p71
      %p200 = pneg %p68
      %p201 = pneg %p92
      %p202 = pneg %p89
      %p203 = pneg %p113
      %p204 = pneg %p110
      %p205 = pneg %p141
      %p206 = pneg %p138
      %p207 = scmp.lt.s32.totalorder %s19, 1
      %s208 = scalar_select %p207, %s19, 1
      %p209 = scmp.lt.s32.totalorder %s20, 0
      %s210 = scalar_select %p209, %s20, 0
      %s211 = smul.addr %s210, 36
      %s212 = smul.addr %s208, 36
      %s213 = sadd.s32 %s211, %s212
      %s214 = smul.addr %s213, 4
      %s215 = scalar_lea.vmem %s4, %s214
      %p216 = scmp.lt.s32.totalorder %s19, 1
      %s217 = scalar_select %p216, %s19, 1
      %p218 = scmp.lt.s32.totalorder %s20, 0
      %s219 = scalar_select %p218, %s20, 0
      %s220 = smul.addr %s219, 41
      %s221 = smul.addr %s217, 41
      %s222 = sadd.s32 %s220, %s221
      %s223 = smul.addr %s222, 4
      %s224 = scalar_lea.vmem %s0, %s223
      %p225 = scmp.lt.s32.totalorder %s19, 1
      %s226 = scalar_select %p225, %s19, 1
      %p227 = scmp.lt.s32.totalorder %s20, 0
      %s228 = scalar_select %p227, %s20, 0
      %s229 = smul.addr %s228, 36
      %s230 = smul.addr %s226, 36
      %s231 = sadd.s32 %s229, %s230
      %s232 = smul.addr %s231, 4
      %s233 = scalar_lea.vmem %s4, %s232
      %v235 = vld [vmem:[%s224] sm:$0xf]
      %v236 = vld [vmem:[%s224 + $0x4] sm:$0xf]
      %v237 = vld [vmem:[%s224 + $0x8] sm:$0xf]
      %v238 = vld [vmem:[%s224 + $0xc] sm:$0xf]
      %v239 = vld [vmem:[%s224 + $0x10] sm:$0xf]
      %v240 = vld [vmem:[%s224 + $0x14] sm:$0xf]
      %v241 = vld [vmem:[%s224 + $0x18] sm:$0xf]
      %v242 = vld [vmem:[%s224 + $0x1c] sm:$0xf]
      %v243 = vld [vmem:[%s224 + $0x20] sm:$0xf]
      %v244 = vld [vmem:[%s224 + $0x24] sm:$0xf]
      %v245 = vld [vmem:[%s224 + $0x28] sm:$0xf]
      %v246 = vld [vmem:[%s224 + $0x2c] sm:$0xf]
      %v247 = vld [vmem:[%s224 + $0x30] sm:$0xf]
      %v248 = vld [vmem:[%s224 + $0x34] sm:$0xf]
      %v249 = vld [vmem:[%s224 + $0x38] sm:$0xf]
      %v250 = vld [vmem:[%s224 + $0x3c] sm:$0xf]
      %v251 = vld [vmem:[%s224 + $0x40] sm:$0xf]
      %v252 = vld [vmem:[%s224 + $0x44] sm:$0xf]
      %v253 = vld [vmem:[%s224 + $0x48] sm:$0xf]
      %v254 = vld [vmem:[%s224 + $0x4c] sm:$0xf]
      %v255 = vld [vmem:[%s224 + $0x50] sm:$0xf]
      %v256 = vld [vmem:[%s224 + $0x54] sm:$0xf]
      %v257 = vld [vmem:[%s224 + $0x58] sm:$0xf]
      %v258 = vld [vmem:[%s224 + $0x5c] sm:$0xf]
      %v259 = vld [vmem:[%s224 + $0x60] sm:$0xf]
      %v260 = vld [vmem:[%s224 + $0x64] sm:$0xf]
      %v261 = vld [vmem:[%s224 + $0x68] sm:$0xf]
      %v262 = vld [vmem:[%s224 + $0x6c] sm:$0xf]
      %v263 = vld [vmem:[%s224 + $0x70] sm:$0xf]
      %v264 = vld [vmem:[%s224 + $0x74] sm:$0xf]
      %v265 = vld [vmem:[%s224 + $0x78] sm:$0xf]
      %v266 = vld [vmem:[%s224 + $0x7c] sm:$0xf]
      %v267 = vld [vmem:[%s224 + $0x80] sm:$0xf]
      %v268 = vld [vmem:[%s224 + $0x84] sm:$0xf]
      %v269 = vld [vmem:[%s224 + $0x88] sm:$0xf]
      %v270 = vld [vmem:[%s224 + $0x8c] sm:$0xf]
      %v271 = vld [vmem:[%s1] sm:$0x3]
      %v272 = vld [vmem:[%s224 + $0x90] sm:$0x1]
      %s273 = scalar_lea.vmem %s1, 2
      %v274 = vld [vmem:[%s273] sm:$0x3]
      %v312 = vunpack.c.l.b16 %v235
      %v313 = vunpack.c.l.b16 %v236
      %v314 = vunpack.c.l.b16 %v237
      %v315 = vunpack.c.l.b16 %v238
      %v316 = vunpack.c.l.b16 %v239
      %v317 = vunpack.c.l.b16 %v240
      %v318 = vunpack.c.l.b16 %v241
      %v319 = vunpack.c.l.b16 %v242
      %v320 = vunpack.c.l.b16 %v243
      %v321 = vunpack.c.l.b16 %v244
      %v322 = vunpack.c.l.b16 %v245
      %v323 = vunpack.c.l.b16 %v246
      %v324 = vunpack.c.l.b16 %v247
      %v325 = vunpack.c.l.b16 %v248
      %v326 = vunpack.c.l.b16 %v249
      %v327 = vunpack.c.l.b16 %v250
      %v328 = vunpack.c.l.b16 %v251
      %v329 = vunpack.c.l.b16 %v252
      %v330 = vunpack.c.l.b16 %v253
      %v331 = vunpack.c.l.b16 %v254
      %v332 = vunpack.c.l.b16 %v255
      %v333 = vunpack.c.l.b16 %v256
      %v334 = vunpack.c.l.b16 %v257
      %v335 = vunpack.c.l.b16 %v258
      %v336 = vunpack.c.l.b16 %v259
      %v337 = vunpack.c.l.b16 %v260
      %v338 = vunpack.c.l.b16 %v261
      %v339 = vunpack.c.l.b16 %v262
      %v340 = vunpack.c.l.b16 %v263
      %v341 = vunpack.c.l.b16 %v264
      %v342 = vunpack.c.l.b16 %v265
      %v343 = vunpack.c.l.b16 %v266
      %v344 = vunpack.c.l.b16 %v267
      %v345 = vunpack.c.l.b16 %v268
      %v346 = vunpack.c.l.b16 %v269
      %v347 = vunpack.c.l.b16 %v270
      %v348 = vunpack.c.l.b16 %v272
      %v349 = vpack.c.b16 %v313, %v312
      %v350 = vpack.c.b16 %v315, %v314
      %v351 = vpack.c.b16 %v317, %v316
      %v352 = vpack.c.b16 %v319, %v318
      %v353 = vpack.c.b16 %v321, %v320
      %v354 = vpack.c.b16 %v323, %v322
      %v355 = vpack.c.b16 %v325, %v324
      %v356 = vpack.c.b16 %v327, %v326
      %v357 = vpack.c.b16 %v329, %v328
      %v358 = vpack.c.b16 %v331, %v330
      %v359 = vpack.c.b16 %v333, %v332
      %v360 = vpack.c.b16 %v335, %v334
      %v361 = vpack.c.b16 %v337, %v336
      %v362 = vpack.c.b16 %v339, %v338
      %v363 = vpack.c.b16 %v341, %v340
      %v364 = vpack.c.b16 %v343, %v342
      %v365 = vpack.c.b16 %v345, %v344
      %v366 = vpack.c.b16 %v347, %v346
      %v367 = vpack.c.b16 %v348, %v348
      %vm368 = vsmask.f32 7424
      %v370 = vshrl.u32 %v349, 16
      %v372 = vshll.u32 %v349, 16
      %v374 = vrot.slane %v372, 1
      %v375 = vor.u32 %v370, %v374
      %v377 = vshll.u32 %v350, 16
      %v379 = vrot.slane %v377, 1
      %v380 = vsel %vm368, %v375, %v379
      %v381 = vshrl.u32 %v350, 16
      %v383 = vor.u32 %v381, %v379
      %v385 = vshll.u32 %v351, 16
      %v387 = vrot.slane %v385, 1
      %v388 = vsel %vm368, %v383, %v387
      %v389 = vshrl.u32 %v351, 16
      %v391 = vor.u32 %v389, %v387
      %v393 = vshll.u32 %v352, 16
      %v395 = vrot.slane %v393, 1
      %v396 = vsel %vm368, %v391, %v395
      %v397 = vshrl.u32 %v352, 16
      %v399 = vor.u32 %v397, %v395
      %v401 = vshll.u32 %v353, 16
      %v403 = vrot.slane %v401, 1
      %v404 = vsel %vm368, %v399, %v403
      %v405 = vshrl.u32 %v353, 16
      %v407 = vor.u32 %v405, %v403
      %v409 = vshll.u32 %v354, 16
      %v411 = vrot.slane %v409, 1
      %v412 = vsel %vm368, %v407, %v411
      %v413 = vshrl.u32 %v354, 16
      %v415 = vor.u32 %v413, %v411
      %v417 = vshll.u32 %v355, 16
      %v419 = vrot.slane %v417, 1
      %v420 = vsel %vm368, %v415, %v419
      %v421 = vshrl.u32 %v355, 16
      %v423 = vor.u32 %v421, %v419
      %v425 = vshll.u32 %v356, 16
      %v427 = vrot.slane %v425, 1
      %v428 = vsel %vm368, %v423, %v427
      %v429 = vshrl.u32 %v356, 16
      %v431 = vor.u32 %v429, %v427
      %v433 = vshll.u32 %v357, 16
      %v435 = vrot.slane %v433, 1
      %v436 = vsel %vm368, %v431, %v435
      %v437 = vshrl.u32 %v357, 16
      %v439 = vor.u32 %v437, %v435
      %v441 = vshll.u32 %v358, 16
      %v443 = vrot.slane %v441, 1
      %v444 = vsel %vm368, %v439, %v443
      %v445 = vshrl.u32 %v358, 16
      %v447 = vor.u32 %v445, %v443
      %v449 = vshll.u32 %v359, 16
      %v451 = vrot.slane %v449, 1
      %v452 = vsel %vm368, %v447, %v451
      %v453 = vshrl.u32 %v359, 16
      %v455 = vor.u32 %v453, %v451
      %v457 = vshll.u32 %v360, 16
      %v459 = vrot.slane %v457, 1
      %v460 = vsel %vm368, %v455, %v459
      %v461 = vshrl.u32 %v360, 16
      %v463 = vor.u32 %v461, %v459
      %v465 = vshll.u32 %v361, 16
      %v467 = vrot.slane %v465, 1
      %v468 = vsel %vm368, %v463, %v467
      %v469 = vshrl.u32 %v361, 16
      %v471 = vor.u32 %v469, %v467
      %v473 = vshll.u32 %v362, 16
      %v475 = vrot.slane %v473, 1
      %v476 = vsel %vm368, %v471, %v475
      %v477 = vshrl.u32 %v362, 16
      %v479 = vor.u32 %v477, %v475
      %v481 = vshll.u32 %v363, 16
      %v483 = vrot.slane %v481, 1
      %v484 = vsel %vm368, %v479, %v483
      %v485 = vshrl.u32 %v363, 16
      %v487 = vor.u32 %v485, %v483
      %v489 = vshll.u32 %v364, 16
      %v491 = vrot.slane %v489, 1
      %v492 = vsel %vm368, %v487, %v491
      %v493 = vshrl.u32 %v364, 16
      %v495 = vor.u32 %v493, %v491
      %v497 = vshll.u32 %v365, 16
      %v499 = vrot.slane %v497, 1
      %v500 = vsel %vm368, %v495, %v499
      %v501 = vshrl.u32 %v365, 16
      %v503 = vor.u32 %v501, %v499
      %v505 = vshll.u32 %v366, 16
      %v507 = vrot.slane %v505, 1
      %v508 = vsel %vm368, %v503, %v507
      %v509 = vshrl.u32 %v366, 16
      %v511 = vor.u32 %v509, %v507
      %v513 = vshll.u32 %v367, 16
      %v515 = vrot.slane %v513, 1
      %v516 = vsel %vm368, %v511, %v515
      %vm517 = vcmask 31744
      %v519 = vsel %vm517, %v380, 0
      %v522 = vsel %vm517, %v388, 0
      %v525 = vsel %vm517, %v396, 0
      %v528 = vsel %vm517, %v404, 0
      %v531 = vsel %vm517, %v412, 0
      %v534 = vsel %vm517, %v420, 0
      %v537 = vsel %vm517, %v428, 0
      %v540 = vsel %vm517, %v436, 0
      %v543 = vsel %vm517, %v444, 0
      %v546 = vsel %vm517, %v452, 0
      %v549 = vsel %vm517, %v460, 0
      %v552 = vsel %vm517, %v468, 0
      %v555 = vsel %vm517, %v476, 0
      %v558 = vsel %vm517, %v484, 0
      %v561 = vsel %vm517, %v492, 0
      %v564 = vsel %vm517, %v500, 0
      %v567 = vsel %vm517, %v508, 0
      %v570 = vsel %vm517, %v516, 0
      %vm572 = vcmask 1041408
      %v574 = vsel %vm572, %v274, 0
      %576 = vmatprep.subr.bf16.mxu0 0
      %577 = vmatpush1.bf16.msra.mxu0 0
      %578 = vmatprep.subr.bf16.mxu0 0
      %579 = vmatpush1.bf16.msra.mxu0 0
      %580 = vmatprep.subr.bf16.mxu0 0
      %581 = vmatpush1.bf16.msra.mxu0 0
      %582 = vmatprep.subr.bf16.mxu0 0
      %583 = vmatpush1.bf16.msra.mxu0 0
      %584 = vmatprep.subr.bf16.mxu0 0
      %585 = vmatpush1.bf16.msra.mxu0 0
      %586 = vmatprep.subr.bf16.mxu0 0
      %587 = vmatpush1.bf16.msra.mxu0 0
      %588 = vmatprep.subr.bf16.mxu0 0
      %589 = vmatpush1.bf16.msra.mxu0 0
      %590 = vmatprep.subr.bf16.mxu0 0
      %591 = vmatpush1.bf16.msra.mxu0 %v574
      %592 = vmatprep.subr.bf16.mxu0 0
      %593 = vmatpush2.bf16.msra.mxu0 0
      %594 = vmatprep.subr.bf16.mxu0 0
      %595 = vmatpush2.bf16.msra.mxu0 0
      %596 = vmatprep.subr.bf16.mxu0 0
      %597 = vmatpush2.bf16.msra.mxu0 0
      %598 = vmatprep.subr.bf16.mxu0 0
      %599 = vmatpush2.bf16.msra.mxu0 0
      %600 = vmatprep.subr.bf16.mxu0 0
      %601 = vmatpush2.bf16.msra.mxu0 0
      %602 = vmatprep.subr.bf16.mxu0 0
      %603 = vmatpush2.bf16.msra.mxu0 0
      %604 = vmatprep.subr.bf16.mxu0 0
      %605 = vmatpush2.bf16.msra.mxu0 0
      %606 = vmatprep.subr.bf16.mxu0 0
      %607 = vmatpush2.bf16.msra.mxu0 0
      %608 = vmatprep.mubr.bf16.mxu0 0
      %609 = vmatmul.mubr.bf16.gmra.mxu0 %v519
      %v610 = vpop.f32.mrf.mxu0
      %v611 = vadd.f32 0.0, %v610
      %v612 = vpop.f32.mrf.mxu0
      %v613 = vpop.f32.mrf.mxu0
      %v614 = vadd.f32 0.0, %v613
      %v615 = vpop.f32.mrf.mxu0
      %616 = vmatprep.mubr.bf16.mxu0 0
      %617 = vmatmul.mubr.bf16.gmra.mxu0 %v522
      %v618 = vpop.f32.mrf.mxu0
      %v619 = vadd.f32 0.0, %v618
      %v620 = vpop.f32.mrf.mxu0
      %v621 = vpop.f32.mrf.mxu0
      %v622 = vadd.f32 0.0, %v621
      %v623 = vpop.f32.mrf.mxu0
      %624 = vmatprep.mubr.bf16.mxu0 0
      %625 = vmatmul.mubr.bf16.gmra.mxu0 %v525
      %v626 = vpop.f32.mrf.mxu0
      %v627 = vadd.f32 0.0, %v626
      %v628 = vpop.f32.mrf.mxu0
      %v629 = vpop.f32.mrf.mxu0
      %v630 = vadd.f32 0.0, %v629
      %v631 = vpop.f32.mrf.mxu0
      %632 = vmatprep.mubr.bf16.mxu0 0
      %633 = vmatmul.mubr.bf16.gmra.mxu0 %v528
      %v634 = vpop.f32.mrf.mxu0
      %v635 = vadd.f32 0.0, %v634
      %v636 = vpop.f32.mrf.mxu0
      %v637 = vpop.f32.mrf.mxu0
      %v638 = vadd.f32 0.0, %v637
      %v639 = vpop.f32.mrf.mxu0
      %640 = vmatprep.mubr.bf16.mxu0 0
      %641 = vmatmul.mubr.bf16.gmra.mxu0 %v531
      %v642 = vpop.f32.mrf.mxu0
      %v643 = vadd.f32 0.0, %v642
      %v644 = vpop.f32.mrf.mxu0
      %v645 = vpop.f32.mrf.mxu0
      %v646 = vadd.f32 0.0, %v645
      %v647 = vpop.f32.mrf.mxu0
      %648 = vmatprep.mubr.bf16.mxu0 0
      %649 = vmatmul.mubr.bf16.gmra.mxu0 %v534
      %v650 = vpop.f32.mrf.mxu0
      %v651 = vadd.f32 0.0, %v650
      %v652 = vpop.f32.mrf.mxu0
      %v653 = vpop.f32.mrf.mxu0
      %v654 = vadd.f32 0.0, %v653
      %v655 = vpop.f32.mrf.mxu0
      %656 = vmatprep.mubr.bf16.mxu0 0
      %657 = vmatmul.mubr.bf16.gmra.mxu0 %v537
      %v658 = vpop.f32.mrf.mxu0
      %v659 = vadd.f32 0.0, %v658
      %v660 = vpop.f32.mrf.mxu0
      %v661 = vpop.f32.mrf.mxu0
      %v662 = vadd.f32 0.0, %v661
      %v663 = vpop.f32.mrf.mxu0
      %664 = vmatprep.mubr.bf16.mxu0 0
      %665 = vmatmul.mubr.bf16.gmra.mxu0 %v540
      %v666 = vpop.f32.mrf.mxu0
      %v667 = vadd.f32 0.0, %v666
      %v668 = vpop.f32.mrf.mxu0
      %v669 = vpop.f32.mrf.mxu0
      %v670 = vadd.f32 0.0, %v669
      %v671 = vpop.f32.mrf.mxu0
      %672 = vmatprep.mubr.bf16.mxu0 0
      %673 = vmatmul.mubr.bf16.gmra.mxu0 %v543
      %v674 = vpop.f32.mrf.mxu0
      %v675 = vadd.f32 0.0, %v674
      %v676 = vpop.f32.mrf.mxu0
      %v677 = vpop.f32.mrf.mxu0
      %v678 = vadd.f32 0.0, %v677
      %v679 = vpop.f32.mrf.mxu0
      %680 = vmatprep.mubr.bf16.mxu0 0
      %681 = vmatmul.mubr.bf16.gmra.mxu0 %v546
      %v682 = vpop.f32.mrf.mxu0
      %v683 = vadd.f32 0.0, %v682
      %v684 = vpop.f32.mrf.mxu0
      %v685 = vpop.f32.mrf.mxu0
      %v686 = vadd.f32 0.0, %v685
      %v687 = vpop.f32.mrf.mxu0
      %688 = vmatprep.mubr.bf16.mxu0 0
      %689 = vmatmul.mubr.bf16.gmra.mxu0 %v549
      %v690 = vpop.f32.mrf.mxu0
      %v691 = vadd.f32 0.0, %v690
      %v692 = vpop.f32.mrf.mxu0
      %v693 = vpop.f32.mrf.mxu0
      %v694 = vadd.f32 0.0, %v693
      %v695 = vpop.f32.mrf.mxu0
      %696 = vmatprep.mubr.bf16.mxu0 0
      %697 = vmatmul.mubr.bf16.gmra.mxu0 %v552
      %v698 = vpop.f32.mrf.mxu0
      %v699 = vadd.f32 0.0, %v698
      %v700 = vpop.f32.mrf.mxu0
      %v701 = vpop.f32.mrf.mxu0
      %v702 = vadd.f32 0.0, %v701
      %v703 = vpop.f32.mrf.mxu0
      %704 = vmatprep.mubr.bf16.mxu0 0
      %705 = vmatmul.mubr.bf16.gmra.mxu0 %v555
      %v706 = vpop.f32.mrf.mxu0
      %v707 = vadd.f32 0.0, %v706
      %v708 = vpop.f32.mrf.mxu0
      %v709 = vpop.f32.mrf.mxu0
      %v710 = vadd.f32 0.0, %v709
      %v711 = vpop.f32.mrf.mxu0
      %712 = vmatprep.mubr.bf16.mxu0 0
      %713 = vmatmul.mubr.bf16.gmra.mxu0 %v558
      %v714 = vpop.f32.mrf.mxu0
      %v715 = vadd.f32 0.0, %v714
      %v716 = vpop.f32.mrf.mxu0
      %v717 = vpop.f32.mrf.mxu0
      %v718 = vadd.f32 0.0, %v717
      %v719 = vpop.f32.mrf.mxu0
      %720 = vmatprep.mubr.bf16.mxu0 0
      %721 = vmatmul.mubr.bf16.gmra.mxu0 %v561
      %v722 = vpop.f32.mrf.mxu0
      %v723 = vadd.f32 0.0, %v722
      %v724 = vpop.f32.mrf.mxu0
      %v725 = vpop.f32.mrf.mxu0
      %v726 = vadd.f32 0.0, %v725
      %v727 = vpop.f32.mrf.mxu0
      %728 = vmatprep.mubr.bf16.mxu0 0
      %729 = vmatmul.mubr.bf16.gmra.mxu0 %v564
      %v730 = vpop.f32.mrf.mxu0
      %v731 = vadd.f32 0.0, %v730
      %v732 = vpop.f32.mrf.mxu0
      %v733 = vpop.f32.mrf.mxu0
      %v734 = vadd.f32 0.0, %v733
      %v735 = vpop.f32.mrf.mxu0
      %736 = vmatprep.mubr.bf16.mxu0 0
      %737 = vmatmul.mubr.bf16.gmra.mxu0 %v567
      %v738 = vpop.f32.mrf.mxu0
      %v739 = vadd.f32 0.0, %v738
      %v740 = vpop.f32.mrf.mxu0
      %v741 = vpop.f32.mrf.mxu0
      %v742 = vadd.f32 0.0, %v741
      %v743 = vpop.f32.mrf.mxu0
      %744 = vmatprep.mubr.bf16.mxu0 0
      %745 = vmatmul.mubr.bf16.gmra.mxu0 %v570
      %v746 = vpop.f32.mrf.mxu0
      %v747 = vadd.f32 0.0, %v746
      %v748 = vpop.f32.mrf.mxu0
      %v749 = vpop.f32.mrf.mxu0
      %v750 = vadd.f32 0.0, %v749
      %v751 = vpop.f32.mrf.mxu0
      %752 = vdwg.mxu0
      %v753 = vsel %vm517, %v349, 0
      %v755 = vsel %vm517, %v350, 0
      %v757 = vsel %vm517, %v351, 0
      %v759 = vsel %vm517, %v352, 0
      %v761 = vsel %vm517, %v353, 0
      %v763 = vsel %vm517, %v354, 0
      %v765 = vsel %vm517, %v355, 0
      %v767 = vsel %vm517, %v356, 0
      %v769 = vsel %vm517, %v357, 0
      %v771 = vsel %vm517, %v358, 0
      %v773 = vsel %vm517, %v359, 0
      %v775 = vsel %vm517, %v360, 0
      %v777 = vsel %vm517, %v361, 0
      %v779 = vsel %vm517, %v362, 0
      %v781 = vsel %vm517, %v363, 0
      %v783 = vsel %vm517, %v364, 0
      %v785 = vsel %vm517, %v365, 0
      %v787 = vsel %vm517, %v366, 0
      %v790 = vsel %vm572, %v271, 0
      %792 = vmatprep.subr.bf16.mxu0 0
      %793 = vmatpush1.bf16.msra.mxu0 0
      %794 = vmatprep.subr.bf16.mxu0 0
      %795 = vmatpush1.bf16.msra.mxu0 0
      %796 = vmatprep.subr.bf16.mxu0 0
      %797 = vmatpush1.bf16.msra.mxu0 0
      %798 = vmatprep.subr.bf16.mxu0 0
      %799 = vmatpush1.bf16.msra.mxu0 0
      %800 = vmatprep.subr.bf16.mxu0 0
      %801 = vmatpush1.bf16.msra.mxu0 0
      %802 = vmatprep.subr.bf16.mxu0 0
      %803 = vmatpush1.bf16.msra.mxu0 0
      %804 = vmatprep.subr.bf16.mxu0 0
      %805 = vmatpush1.bf16.msra.mxu0 0
      %806 = vmatprep.subr.bf16.mxu0 0
      %807 = vmatpush1.bf16.msra.mxu0 %v790
      %808 = vmatprep.subr.bf16.mxu0 0
      %809 = vmatpush2.bf16.msra.mxu0 0
      %810 = vmatprep.subr.bf16.mxu0 0
      %811 = vmatpush2.bf16.msra.mxu0 0
      %812 = vmatprep.subr.bf16.mxu0 0
      %813 = vmatpush2.bf16.msra.mxu0 0
      %814 = vmatprep.subr.bf16.mxu0 0
      %815 = vmatpush2.bf16.msra.mxu0 0
      %816 = vmatprep.subr.bf16.mxu0 0
      %817 = vmatpush2.bf16.msra.mxu0 0
      %818 = vmatprep.subr.bf16.mxu0 0
      %819 = vmatpush2.bf16.msra.mxu0 0
      %820 = vmatprep.subr.bf16.mxu0 0
      %821 = vmatpush2.bf16.msra.mxu0 0
      %822 = vmatprep.subr.bf16.mxu0 0
      %823 = vmatpush2.bf16.msra.mxu0 0
      %824 = vmatprep.mubr.bf16.mxu0 0
      %825 = vmatmul.mubr.bf16.gmra.mxu0 %v753
      %v826 = vpop.f32.mrf.mxu0
      %v827 = vadd.f32 %v611, %v826
      %v828 = vpop.f32.mrf.mxu0
      %v829 = vpop.f32.mrf.mxu0
      %v830 = vadd.f32 %v614, %v829
      %v831 = vpop.f32.mrf.mxu0
      %832 = vmatprep.mubr.bf16.mxu0 0
      %833 = vmatmul.mubr.bf16.gmra.mxu0 %v755
      %v834 = vpop.f32.mrf.mxu0
      %v835 = vadd.f32 %v619, %v834
      %v836 = vpop.f32.mrf.mxu0
      %v837 = vpop.f32.mrf.mxu0
      %v838 = vadd.f32 %v622, %v837
      %v839 = vpop.f32.mrf.mxu0
      %840 = vmatprep.mubr.bf16.mxu0 0
      %841 = vmatmul.mubr.bf16.gmra.mxu0 %v757
      %v842 = vpop.f32.mrf.mxu0
      %v843 = vadd.f32 %v627, %v842
      %v844 = vpop.f32.mrf.mxu0
      %v845 = vpop.f32.mrf.mxu0
      %v846 = vadd.f32 %v630, %v845
      %v847 = vpop.f32.mrf.mxu0
      %848 = vmatprep.mubr.bf16.mxu0 0
      %849 = vmatmul.mubr.bf16.gmra.mxu0 %v759
      %v850 = vpop.f32.mrf.mxu0
      %v851 = vadd.f32 %v635, %v850
      %v852 = vpop.f32.mrf.mxu0
      %v853 = vpop.f32.mrf.mxu0
      %v854 = vadd.f32 %v638, %v853
      %v855 = vpop.f32.mrf.mxu0
      %856 = vmatprep.mubr.bf16.mxu0 0
      %857 = vmatmul.mubr.bf16.gmra.mxu0 %v761
      %v858 = vpop.f32.mrf.mxu0
      %v859 = vadd.f32 %v643, %v858
      %v860 = vpop.f32.mrf.mxu0
      %v861 = vpop.f32.mrf.mxu0
      %v862 = vadd.f32 %v646, %v861
      %v863 = vpop.f32.mrf.mxu0
      %864 = vmatprep.mubr.bf16.mxu0 0
      %865 = vmatmul.mubr.bf16.gmra.mxu0 %v763
      %v866 = vpop.f32.mrf.mxu0
      %v867 = vadd.f32 %v651, %v866
      %v868 = vpop.f32.mrf.mxu0
      %v869 = vpop.f32.mrf.mxu0
      %v870 = vadd.f32 %v654, %v869
      %v871 = vpop.f32.mrf.mxu0
      %872 = vmatprep.mubr.bf16.mxu0 0
      %873 = vmatmul.mubr.bf16.gmra.mxu0 %v765
      %v874 = vpop.f32.mrf.mxu0
      %v875 = vadd.f32 %v659, %v874
      %v876 = vpop.f32.mrf.mxu0
      %v877 = vpop.f32.mrf.mxu0
      %v878 = vadd.f32 %v662, %v877
      %v879 = vpop.f32.mrf.mxu0
      %880 = vmatprep.mubr.bf16.mxu0 0
      %881 = vmatmul.mubr.bf16.gmra.mxu0 %v767
      %v882 = vpop.f32.mrf.mxu0
      %v883 = vadd.f32 %v667, %v882
      %v884 = vpop.f32.mrf.mxu0
      %v885 = vpop.f32.mrf.mxu0
      %v886 = vadd.f32 %v670, %v885
      %v887 = vpop.f32.mrf.mxu0
      %888 = vmatprep.mubr.bf16.mxu0 0
      %889 = vmatmul.mubr.bf16.gmra.mxu0 %v769
      %v890 = vpop.f32.mrf.mxu0
      %v891 = vadd.f32 %v675, %v890
      %v892 = vpop.f32.mrf.mxu0
      %v893 = vpop.f32.mrf.mxu0
      %v894 = vadd.f32 %v678, %v893
      %v895 = vpop.f32.mrf.mxu0
      %896 = vmatprep.mubr.bf16.mxu0 0
      %897 = vmatmul.mubr.bf16.gmra.mxu0 %v771
      %v898 = vpop.f32.mrf.mxu0
      %v899 = vadd.f32 %v683, %v898
      %v900 = vpop.f32.mrf.mxu0
      %v901 = vpop.f32.mrf.mxu0
      %v902 = vadd.f32 %v686, %v901
      %v903 = vpop.f32.mrf.mxu0
      %904 = vmatprep.mubr.bf16.mxu0 0
      %905 = vmatmul.mubr.bf16.gmra.mxu0 %v773
      %v906 = vpop.f32.mrf.mxu0
      %v907 = vadd.f32 %v691, %v906
      %v908 = vpop.f32.mrf.mxu0
      %v909 = vpop.f32.mrf.mxu0
      %v910 = vadd.f32 %v694, %v909
      %v911 = vpop.f32.mrf.mxu0
      %912 = vmatprep.mubr.bf16.mxu0 0
      %913 = vmatmul.mubr.bf16.gmra.mxu0 %v775
      %v914 = vpop.f32.mrf.mxu0
      %v915 = vadd.f32 %v699, %v914
      %v916 = vpop.f32.mrf.mxu0
      %v917 = vpop.f32.mrf.mxu0
      %v918 = vadd.f32 %v702, %v917
      %v919 = vpop.f32.mrf.mxu0
      %920 = vmatprep.mubr.bf16.mxu0 0
      %921 = vmatmul.mubr.bf16.gmra.mxu0 %v777
      %v922 = vpop.f32.mrf.mxu0
      %v923 = vadd.f32 %v707, %v922
      %v924 = vpop.f32.mrf.mxu0
      %v925 = vpop.f32.mrf.mxu0
      %v926 = vadd.f32 %v710, %v925
      %v927 = vpop.f32.mrf.mxu0
      %928 = vmatprep.mubr.bf16.mxu0 0
      %929 = vmatmul.mubr.bf16.gmra.mxu0 %v779
      %v930 = vpop.f32.mrf.mxu0
      %v931 = vadd.f32 %v715, %v930
      %v932 = vpop.f32.mrf.mxu0
      %v933 = vpop.f32.mrf.mxu0
      %v934 = vadd.f32 %v718, %v933
      %v935 = vpop.f32.mrf.mxu0
      %936 = vmatprep.mubr.bf16.mxu0 0
      %937 = vmatmul.mubr.bf16.gmra.mxu0 %v781
      %v938 = vpop.f32.mrf.mxu0
      %v939 = vadd.f32 %v723, %v938
      %v940 = vpop.f32.mrf.mxu0
      %v941 = vpop.f32.mrf.mxu0
      %v942 = vadd.f32 %v726, %v941
      %v943 = vpop.f32.mrf.mxu0
      %944 = vmatprep.mubr.bf16.mxu0 0
      %945 = vmatmul.mubr.bf16.gmra.mxu0 %v783
      %v946 = vpop.f32.mrf.mxu0
      %v947 = vadd.f32 %v731, %v946
      %v948 = vpop.f32.mrf.mxu0
      %v949 = vpop.f32.mrf.mxu0
      %v950 = vadd.f32 %v734, %v949
      %v951 = vpop.f32.mrf.mxu0
      %952 = vmatprep.mubr.bf16.mxu0 0
      %953 = vmatmul.mubr.bf16.gmra.mxu0 %v785
      %v954 = vpop.f32.mrf.mxu0
      %v955 = vadd.f32 %v739, %v954
      %v956 = vpop.f32.mrf.mxu0
      %v957 = vpop.f32.mrf.mxu0
      %v958 = vadd.f32 %v742, %v957
      %v959 = vpop.f32.mrf.mxu0
      %960 = vmatprep.mubr.bf16.mxu0 0
      %961 = vmatmul.mubr.bf16.gmra.mxu0 %v787
      %v962 = vpop.f32.mrf.mxu0
      %v963 = vadd.f32 %v747, %v962
      %v964 = vpop.f32.mrf.mxu0
      %v965 = vpop.f32.mrf.mxu0
      %v966 = vadd.f32 %v750, %v965
      %v967 = vpop.f32.mrf.mxu0
      %968 = vdwg.mxu0
      %v969 = vld [vmem:[%s224] sm:$0xe]
      %s970 = scalar_lea.vmem %s1, 4
      %v971 = vld [vmem:[%s970] sm:$0x3]
      %v973 = vunpack.c.l.b16 %v969
      %v974 = vpack.c.b16 %v313, %v973
      %vm975 = vcmask 1046528
      %v976 = vrot.slane %v974, 1
      %v977 = vrot.slane %v350, 1
      %v978 = vsel %vm975, %v976, %v977
      %v979 = vrot.slane %v351, 1
      %v980 = vsel %vm975, %v977, %v979
      %v981 = vrot.slane %v352, 1
      %v982 = vsel %vm975, %v979, %v981
      %v983 = vrot.slane %v353, 1
      %v984 = vsel %vm975, %v981, %v983
      %v985 = vrot.slane %v354, 1
      %v986 = vsel %vm975, %v983, %v985
      %v987 = vrot.slane %v355, 1
      %v988 = vsel %vm975, %v985, %v987
      %v989 = vrot.slane %v356, 1
      %v990 = vsel %vm975, %v987, %v989
      %v991 = vrot.slane %v357, 1
      %v992 = vsel %vm975, %v989, %v991
      %v993 = vrot.slane %v358, 1
      %v994 = vsel %vm975, %v991, %v993
      %v995 = vrot.slane %v359, 1
      %v996 = vsel %vm975, %v993, %v995
      %v997 = vrot.slane %v360, 1
      %v998 = vsel %vm975, %v995, %v997
      %v999 = vrot.slane %v361, 1
      %v1000 = vsel %vm975, %v997, %v999
      %v1001 = vrot.slane %v362, 1
      %v1002 = vsel %vm975, %v999, %v1001
      %v1003 = vrot.slane %v363, 1
      %v1004 = vsel %vm975, %v1001, %v1003
      %v1005 = vrot.slane %v364, 1
      %v1006 = vsel %vm975, %v1003, %v1005
      %v1007 = vrot.slane %v365, 1
      %v1008 = vsel %vm975, %v1005, %v1007
      %v1009 = vrot.slane %v366, 1
      %v1010 = vsel %vm975, %v1007, %v1009
      %v1011 = vrot.slane %v367, 1
      %v1012 = vsel %vm975, %v1009, %v1011
      %v1014 = vsel %vm517, %v978, 0
      %v1017 = vsel %vm517, %v980, 0
      %v1020 = vsel %vm517, %v982, 0
      %v1023 = vsel %vm517, %v984, 0
      %v1026 = vsel %vm517, %v986, 0
      %v1029 = vsel %vm517, %v988, 0
      %v1032 = vsel %vm517, %v990, 0
      %v1035 = vsel %vm517, %v992, 0
      %v1038 = vsel %vm517, %v994, 0
      %v1041 = vsel %vm517, %v996, 0
      %v1044 = vsel %vm517, %v998, 0
      %v1047 = vsel %vm517, %v1000, 0
      %v1050 = vsel %vm517, %v1002, 0
      %v1053 = vsel %vm517, %v1004, 0
      %v1056 = vsel %vm517, %v1006, 0
      %v1059 = vsel %vm517, %v1008, 0
      %v1062 = vsel %vm517, %v1010, 0
      %v1065 = vsel %vm517, %v1012, 0
      %v1068 = vsel %vm572, %v971, 0
      %1070 = vmatprep.subr.bf16.mxu0 0
      %1071 = vmatpush1.bf16.msra.mxu0 0
      %1072 = vmatprep.subr.bf16.mxu0 0
      %1073 = vmatpush1.bf16.msra.mxu0 0
      %1074 = vmatprep.subr.bf16.mxu0 0
      %1075 = vmatpush1.bf16.msra.mxu0 0
      %1076 = vmatprep.subr.bf16.mxu0 0
      %1077 = vmatpush1.bf16.msra.mxu0 0
      %1078 = vmatprep.subr.bf16.mxu0 0
      %1079 = vmatpush1.bf16.msra.mxu0 0
      %1080 = vmatprep.subr.bf16.mxu0 0
      %1081 = vmatpush1.bf16.msra.mxu0 0
      %1082 = vmatprep.subr.bf16.mxu0 0
      %1083 = vmatpush1.bf16.msra.mxu0 0
      %1084 = vmatprep.subr.bf16.mxu0 0
      %1085 = vmatpush1.bf16.msra.mxu0 %v1068
      %1086 = vmatprep.subr.bf16.mxu0 0
      %1087 = vmatpush2.bf16.msra.mxu0 0
      %1088 = vmatprep.subr.bf16.mxu0 0
      %1089 = vmatpush2.bf16.msra.mxu0 0
      %1090 = vmatprep.subr.bf16.mxu0 0
      %1091 = vmatpush2.bf16.msra.mxu0 0
      %1092 = vmatprep.subr.bf16.mxu0 0
      %1093 = vmatpush2.bf16.msra.mxu0 0
      %1094 = vmatprep.subr.bf16.mxu0 0
      %1095 = vmatpush2.bf16.msra.mxu0 0
      %1096 = vmatprep.subr.bf16.mxu0 0
      %1097 = vmatpush2.bf16.msra.mxu0 0
      %1098 = vmatprep.subr.bf16.mxu0 0
      %1099 = vmatpush2.bf16.msra.mxu0 0
      %1100 = vmatprep.subr.bf16.mxu0 0
      %1101 = vmatpush2.bf16.msra.mxu0 0
      %1102 = vmatprep.mubr.bf16.mxu0 0
      %1103 = vmatmul.mubr.bf16.gmra.mxu0 %v1014
      %v1104 = vpop.f32.mrf.mxu0
      %v1105 = vadd.f32 0.0, %v1104
      %v1106 = vpop.f32.mrf.mxu0
      %v1107 = vpop.f32.mrf.mxu0
      %v1108 = vadd.f32 0.0, %v1107
      %v1109 = vpop.f32.mrf.mxu0
      %1110 = vmatprep.mubr.bf16.mxu0 0
      %1111 = vmatmul.mubr.bf16.gmra.mxu0 %v1017
      %v1112 = vpop.f32.mrf.mxu0
      %v1113 = vadd.f32 0.0, %v1112
      %v1114 = vpop.f32.mrf.mxu0
      %v1115 = vpop.f32.mrf.mxu0
      %v1116 = vadd.f32 0.0, %v1115
      %v1117 = vpop.f32.mrf.mxu0
      %1118 = vmatprep.mubr.bf16.mxu0 0
      %1119 = vmatmul.mubr.bf16.gmra.mxu0 %v1020
      %v1120 = vpop.f32.mrf.mxu0
      %v1121 = vadd.f32 0.0, %v1120
      %v1122 = vpop.f32.mrf.mxu0
      %v1123 = vpop.f32.mrf.mxu0
      %v1124 = vadd.f32 0.0, %v1123
      %v1125 = vpop.f32.mrf.mxu0
      %1126 = vmatprep.mubr.bf16.mxu0 0
      %1127 = vmatmul.mubr.bf16.gmra.mxu0 %v1023
      %v1128 = vpop.f32.mrf.mxu0
      %v1129 = vadd.f32 0.0, %v1128
      %v1130 = vpop.f32.mrf.mxu0
      %v1131 = vpop.f32.mrf.mxu0
      %v1132 = vadd.f32 0.0, %v1131
      %v1133 = vpop.f32.mrf.mxu0
      %1134 = vmatprep.mubr.bf16.mxu0 0
      %1135 = vmatmul.mubr.bf16.gmra.mxu0 %v1026
      %v1136 = vpop.f32.mrf.mxu0
      %v1137 = vadd.f32 0.0, %v1136
      %v1138 = vpop.f32.mrf.mxu0
      %v1139 = vpop.f32.mrf.mxu0
      %v1140 = vadd.f32 0.0, %v1139
      %v1141 = vpop.f32.mrf.mxu0
      %1142 = vmatprep.mubr.bf16.mxu0 0
      %1143 = vmatmul.mubr.bf16.gmra.mxu0 %v1029
      %v1144 = vpop.f32.mrf.mxu0
      %v1145 = vadd.f32 0.0, %v1144
      %v1146 = vpop.f32.mrf.mxu0
      %v1147 = vpop.f32.mrf.mxu0
      %v1148 = vadd.f32 0.0, %v1147
      %v1149 = vpop.f32.mrf.mxu0
      %1150 = vmatprep.mubr.bf16.mxu0 0
      %1151 = vmatmul.mubr.bf16.gmra.mxu0 %v1032
      %v1152 = vpop.f32.mrf.mxu0
      %v1153 = vadd.f32 0.0, %v1152
      %v1154 = vpop.f32.mrf.mxu0
      %v1155 = vpop.f32.mrf.mxu0
      %v1156 = vadd.f32 0.0, %v1155
      %v1157 = vpop.f32.mrf.mxu0
      %1158 = vmatprep.mubr.bf16.mxu0 0
      %1159 = vmatmul.mubr.bf16.gmra.mxu0 %v1035
      %v1160 = vpop.f32.mrf.mxu0
      %v1161 = vadd.f32 0.0, %v1160
      %v1162 = vpop.f32.mrf.mxu0
      %v1163 = vpop.f32.mrf.mxu0
      %v1164 = vadd.f32 0.0, %v1163
      %v1165 = vpop.f32.mrf.mxu0
      %1166 = vmatprep.mubr.bf16.mxu0 0
      %1167 = vmatmul.mubr.bf16.gmra.mxu0 %v1038
      %v1168 = vpop.f32.mrf.mxu0
      %v1169 = vadd.f32 0.0, %v1168
      %v1170 = vpop.f32.mrf.mxu0
      %v1171 = vpop.f32.mrf.mxu0
      %v1172 = vadd.f32 0.0, %v1171
      %v1173 = vpop.f32.mrf.mxu0
      %1174 = vmatprep.mubr.bf16.mxu0 0
      %1175 = vmatmul.mubr.bf16.gmra.mxu0 %v1041
      %v1176 = vpop.f32.mrf.mxu0
      %v1177 = vadd.f32 0.0, %v1176
      %v1178 = vpop.f32.mrf.mxu0
      %v1179 = vpop.f32.mrf.mxu0
      %v1180 = vadd.f32 0.0, %v1179
      %v1181 = vpop.f32.mrf.mxu0
      %1182 = vmatprep.mubr.bf16.mxu0 0
      %1183 = vmatmul.mubr.bf16.gmra.mxu0 %v1044
      %v1184 = vpop.f32.mrf.mxu0
      %v1185 = vadd.f32 0.0, %v1184
      %v1186 = vpop.f32.mrf.mxu0
      %v1187 = vpop.f32.mrf.mxu0
      %v1188 = vadd.f32 0.0, %v1187
      %v1189 = vpop.f32.mrf.mxu0
      %1190 = vmatprep.mubr.bf16.mxu0 0
      %1191 = vmatmul.mubr.bf16.gmra.mxu0 %v1047
      %v1192 = vpop.f32.mrf.mxu0
      %v1193 = vadd.f32 0.0, %v1192
      %v1194 = vpop.f32.mrf.mxu0
      %v1195 = vpop.f32.mrf.mxu0
      %v1196 = vadd.f32 0.0, %v1195
      %v1197 = vpop.f32.mrf.mxu0
      %1198 = vmatprep.mubr.bf16.mxu0 0
      %1199 = vmatmul.mubr.bf16.gmra.mxu0 %v1050
      %v1200 = vpop.f32.mrf.mxu0
      %v1201 = vadd.f32 0.0, %v1200
      %v1202 = vpop.f32.mrf.mxu0
      %v1203 = vpop.f32.mrf.mxu0
      %v1204 = vadd.f32 0.0, %v1203
      %v1205 = vpop.f32.mrf.mxu0
      %1206 = vmatprep.mubr.bf16.mxu0 0
      %1207 = vmatmul.mubr.bf16.gmra.mxu0 %v1053
      %v1208 = vpop.f32.mrf.mxu0
      %v1209 = vadd.f32 0.0, %v1208
      %v1210 = vpop.f32.mrf.mxu0
      %v1211 = vpop.f32.mrf.mxu0
      %v1212 = vadd.f32 0.0, %v1211
      %v1213 = vpop.f32.mrf.mxu0
      %1214 = vmatprep.mubr.bf16.mxu0 0
      %1215 = vmatmul.mubr.bf16.gmra.mxu0 %v1056
      %v1216 = vpop.f32.mrf.mxu0
      %v1217 = vadd.f32 0.0, %v1216
      %v1218 = vpop.f32.mrf.mxu0
      %v1219 = vpop.f32.mrf.mxu0
      %v1220 = vadd.f32 0.0, %v1219
      %v1221 = vpop.f32.mrf.mxu0
      %1222 = vmatprep.mubr.bf16.mxu0 0
      %1223 = vmatmul.mubr.bf16.gmra.mxu0 %v1059
      %v1224 = vpop.f32.mrf.mxu0
      %v1225 = vadd.f32 0.0, %v1224
      %v1226 = vpop.f32.mrf.mxu0
      %v1227 = vpop.f32.mrf.mxu0
      %v1228 = vadd.f32 0.0, %v1227
      %v1229 = vpop.f32.mrf.mxu0
      %1230 = vmatprep.mubr.bf16.mxu0 0
      %1231 = vmatmul.mubr.bf16.gmra.mxu0 %v1062
      %v1232 = vpop.f32.mrf.mxu0
      %v1233 = vadd.f32 0.0, %v1232
      %v1234 = vpop.f32.mrf.mxu0
      %v1235 = vpop.f32.mrf.mxu0
      %v1236 = vadd.f32 0.0, %v1235
      %v1237 = vpop.f32.mrf.mxu0
      %1238 = vmatprep.mubr.bf16.mxu0 0
      %1239 = vmatmul.mubr.bf16.gmra.mxu0 %v1065
      %v1240 = vpop.f32.mrf.mxu0
      %v1241 = vadd.f32 0.0, %v1240
      %v1242 = vpop.f32.mrf.mxu0
      %v1243 = vpop.f32.mrf.mxu0
      %v1244 = vadd.f32 0.0, %v1243
      %v1245 = vpop.f32.mrf.mxu0
      %1246 = vdwg.mxu0
      %v1247 = vadd.f32 %v827, %v1105
      %v1248 = vadd.f32 %v830, %v1108
      %v1249 = vadd.f32 %v835, %v1113
      %v1250 = vadd.f32 %v838, %v1116
      %v1251 = vadd.f32 %v843, %v1121
      %v1252 = vadd.f32 %v846, %v1124
      %v1253 = vadd.f32 %v851, %v1129
      %v1254 = vadd.f32 %v854, %v1132
      %v1255 = vadd.f32 %v859, %v1137
      %v1256 = vadd.f32 %v862, %v1140
      %v1257 = vadd.f32 %v867, %v1145
      %v1258 = vadd.f32 %v870, %v1148
      %v1259 = vadd.f32 %v875, %v1153
      %v1260 = vadd.f32 %v878, %v1156
      %v1261 = vadd.f32 %v883, %v1161
      %v1262 = vadd.f32 %v886, %v1164
      %v1263 = vadd.f32 %v891, %v1169
      %v1264 = vadd.f32 %v894, %v1172
      %v1265 = vadd.f32 %v899, %v1177
      %v1266 = vadd.f32 %v902, %v1180
      %v1267 = vadd.f32 %v907, %v1185
      %v1268 = vadd.f32 %v910, %v1188
      %v1269 = vadd.f32 %v915, %v1193
      %v1270 = vadd.f32 %v918, %v1196
      %v1271 = vadd.f32 %v923, %v1201
      %v1272 = vadd.f32 %v926, %v1204
      %v1273 = vadd.f32 %v931, %v1209
      %v1274 = vadd.f32 %v934, %v1212
      %v1275 = vadd.f32 %v939, %v1217
      %v1276 = vadd.f32 %v942, %v1220
      %v1277 = vadd.f32 %v947, %v1225
      %v1278 = vadd.f32 %v950, %v1228
      %v1279 = vadd.f32 %v955, %v1233
      %v1280 = vadd.f32 %v958, %v1236
      %v1281 = vadd.f32 %v963, %v1241
      %v1282 = vadd.f32 %v966, %v1244
      %v1283 = vld [vmem:[%s224 + $0x8] sm:$0xe]
      %v1284 = vld [vmem:[%s224 + $0xc] sm:$0xf]
      %v1285 = vld [vmem:[%s224 + $0x10] sm:$0xf]
      %v1286 = vld [vmem:[%s224 + $0x14] sm:$0xf]
      %v1287 = vld [vmem:[%s224 + $0x18] sm:$0xf]
      %v1288 = vld [vmem:[%s224 + $0x1c] sm:$0xf]
      %v1289 = vld [vmem:[%s224 + $0x20] sm:$0xf]
      %v1290 = vld [vmem:[%s224 + $0x24] sm:$0xf]
      %v1291 = vld [vmem:[%s224 + $0x28] sm:$0xf]
      %v1292 = vld [vmem:[%s224 + $0x2c] sm:$0xf]
      %v1293 = vld [vmem:[%s224 + $0x30] sm:$0xf]
      %v1294 = vld [vmem:[%s224 + $0x34] sm:$0xf]
      %v1295 = vld [vmem:[%s224 + $0x38] sm:$0xf]
      %v1296 = vld [vmem:[%s224 + $0x3c] sm:$0xf]
      %v1297 = vld [vmem:[%s224 + $0x40] sm:$0xf]
      %v1298 = vld [vmem:[%s224 + $0x44] sm:$0xf]
      %v1299 = vld [vmem:[%s224 + $0x48] sm:$0xf]
      %v1300 = vld [vmem:[%s224 + $0x4c] sm:$0xf]
      %v1301 = vld [vmem:[%s224 + $0x50] sm:$0xf]
      %v1302 = vld [vmem:[%s224 + $0x54] sm:$0xf]
      %v1303 = vld [vmem:[%s224 + $0x58] sm:$0xf]
      %v1304 = vld [vmem:[%s224 + $0x5c] sm:$0xf]
      %v1305 = vld [vmem:[%s224 + $0x60] sm:$0xf]
      %v1306 = vld [vmem:[%s224 + $0x64] sm:$0xf]
      %v1307 = vld [vmem:[%s224 + $0x68] sm:$0xf]
      %v1308 = vld [vmem:[%s224 + $0x6c] sm:$0xf]
      %v1309 = vld [vmem:[%s224 + $0x70] sm:$0xf]
      %v1310 = vld [vmem:[%s224 + $0x74] sm:$0xf]
      %v1311 = vld [vmem:[%s224 + $0x78] sm:$0xf]
      %v1312 = vld [vmem:[%s224 + $0x7c] sm:$0xf]
      %v1313 = vld [vmem:[%s224 + $0x80] sm:$0xf]
      %v1314 = vld [vmem:[%s224 + $0x84] sm:$0xf]
      %v1315 = vld [vmem:[%s224 + $0x88] sm:$0xf]
      %v1316 = vld [vmem:[%s224 + $0x8c] sm:$0xf]
      %v1317 = vld [vmem:[%s224 + $0x90] sm:$0xf]
      %v1318 = vld [vmem:[%s224 + $0x94] sm:$0xf]
      %v1319 = vld [vmem:[%s224 + $0x98] sm:$0x1]
      %s1320 = scalar_lea.vmem %s1, 6
      %v1321 = vld [vmem:[%s1320] sm:$0x3]
      %v1359 = vunpack.c.l.b16 %v1283
      %v1360 = vunpack.c.l.b16 %v1284
      %v1361 = vunpack.c.l.b16 %v1285
      %v1362 = vunpack.c.l.b16 %v1286
      %v1363 = vunpack.c.l.b16 %v1287
      %v1364 = vunpack.c.l.b16 %v1288
      %v1365 = vunpack.c.l.b16 %v1289
      %v1366 = vunpack.c.l.b16 %v1290
      %v1367 = vunpack.c.l.b16 %v1291
      %v1368 = vunpack.c.l.b16 %v1292
      %v1369 = vunpack.c.l.b16 %v1293
      %v1370 = vunpack.c.l.b16 %v1294
      %v1371 = vunpack.c.l.b16 %v1295
      %v1372 = vunpack.c.l.b16 %v1296
      %v1373 = vunpack.c.l.b16 %v1297
      %v1374 = vunpack.c.l.b16 %v1298
      %v1375 = vunpack.c.l.b16 %v1299
      %v1376 = vunpack.c.l.b16 %v1300
      %v1377 = vunpack.c.l.b16 %v1301
      %v1378 = vunpack.c.l.b16 %v1302
      %v1379 = vunpack.c.l.b16 %v1303
      %v1380 = vunpack.c.l.b16 %v1304
      %v1381 = vunpack.c.l.b16 %v1305
      %v1382 = vunpack.c.l.b16 %v1306
      %v1383 = vunpack.c.l.b16 %v1307
      %v1384 = vunpack.c.l.b16 %v1308
      %v1385 = vunpack.c.l.b16 %v1309
      %v1386 = vunpack.c.l.b16 %v1310
      %v1387 = vunpack.c.l.b16 %v1311
      %v1388 = vunpack.c.l.b16 %v1312
      %v1389 = vunpack.c.l.b16 %v1313
      %v1390 = vunpack.c.l.b16 %v1314
      %v1391 = vunpack.c.l.b16 %v1315
      %v1392 = vunpack.c.l.b16 %v1316
      %v1393 = vunpack.c.l.b16 %v1317
      %v1394 = vunpack.c.l.b16 %v1318
      %v1395 = vunpack.c.l.b16 %v1319
      %v1396 = vpack.c.b16 %v1360, %v1359
      %v1397 = vpack.c.b16 %v1362, %v1361
      %v1398 = vpack.c.b16 %v1364, %v1363
      %v1399 = vpack.c.b16 %v1366, %v1365
      %v1400 = vpack.c.b16 %v1368, %v1367
      %v1401 = vpack.c.b16 %v1370, %v1369
      %v1402 = vpack.c.b16 %v1372, %v1371
      %v1403 = vpack.c.b16 %v1374, %v1373
      %v1404 = vpack.c.b16 %v1376, %v1375
      %v1405 = vpack.c.b16 %v1378, %v1377
      %v1406 = vpack.c.b16 %v1380, %v1379
      %v1407 = vpack.c.b16 %v1382, %v1381
      %v1408 = vpack.c.b16 %v1384, %v1383
      %v1409 = vpack.c.b16 %v1386, %v1385
      %v1410 = vpack.c.b16 %v1388, %v1387
      %v1411 = vpack.c.b16 %v1390, %v1389
      %v1412 = vpack.c.b16 %v1392, %v1391
      %v1413 = vpack.c.b16 %v1394, %v1393
      %v1414 = vpack.c.b16 %v1395, %v1395
      %v1415 = vrot.slane %v1396, 1
      %v1416 = vrot.slane %v1397, 1
      %v1417 = vsel %vm975, %v1415, %v1416
      %v1418 = vrot.slane %v1398, 1
      %v1419 = vsel %vm975, %v1416, %v1418
      %v1420 = vrot.slane %v1399, 1
      %v1421 = vsel %vm975, %v1418, %v1420
      %v1422 = vrot.slane %v1400, 1
      %v1423 = vsel %vm975, %v1420, %v1422
      %v1424 = vrot.slane %v1401, 1
      %v1425 = vsel %vm975, %v1422, %v1424
      %v1426 = vrot.slane %v1402, 1
      %v1427 = vsel %vm975, %v1424, %v1426
      %v1428 = vrot.slane %v1403, 1
      %v1429 = vsel %vm975, %v1426, %v1428
      %v1430 = vrot.slane %v1404, 1
      %v1431 = vsel %vm975, %v1428, %v1430
      %v1432 = vrot.slane %v1405, 1
      %v1433 = vsel %vm975, %v1430, %v1432
      %v1434 = vrot.slane %v1406, 1
      %v1435 = vsel %vm975, %v1432, %v1434
      %v1436 = vrot.slane %v1407, 1
      %v1437 = vsel %vm975, %v1434, %v1436
      %v1438 = vrot.slane %v1408, 1
      %v1439 = vsel %vm975, %v1436, %v1438
      %v1440 = vrot.slane %v1409, 1
      %v1441 = vsel %vm975, %v1438, %v1440
      %v1442 = vrot.slane %v1410, 1
      %v1443 = vsel %vm975, %v1440, %v1442
      %v1444 = vrot.slane %v1411, 1
      %v1445 = vsel %vm975, %v1442, %v1444
      %v1446 = vrot.slane %v1412, 1
      %v1447 = vsel %vm975, %v1444, %v1446
      %v1448 = vrot.slane %v1413, 1
      %v1449 = vsel %vm975, %v1446, %v1448
      %v1450 = vrot.slane %v1414, 1
      %v1451 = vsel %vm975, %v1448, %v1450
      %v1453 = vsel %vm517, %v1417, 0
      %v1456 = vsel %vm517, %v1419, 0
      %v1459 = vsel %vm517, %v1421, 0
      %v1462 = vsel %vm517, %v1423, 0
      %v1465 = vsel %vm517, %v1425, 0
      %v1468 = vsel %vm517, %v1427, 0
      %v1471 = vsel %vm517, %v1429, 0
      %v1474 = vsel %vm517, %v1431, 0
      %v1477 = vsel %vm517, %v1433, 0
      %v1480 = vsel %vm517, %v1435, 0
      %v1483 = vsel %vm517, %v1437, 0
      %v1486 = vsel %vm517, %v1439, 0
      %v1489 = vsel %vm517, %v1441, 0
      %v1492 = vsel %vm517, %v1443, 0
      %v1495 = vsel %vm517, %v1445, 0
      %v1498 = vsel %vm517, %v1447, 0
      %v1501 = vsel %vm517, %v1449, 0
      %v1504 = vsel %vm517, %v1451, 0
      %v1507 = vsel %vm572, %v1321, 0
      %1509 = vmatprep.subr.bf16.mxu0 0
      %1510 = vmatpush1.bf16.msra.mxu0 0
      %1511 = vmatprep.subr.bf16.mxu0 0
      %1512 = vmatpush1.bf16.msra.mxu0 0
      %1513 = vmatprep.subr.bf16.mxu0 0
      %1514 = vmatpush1.bf16.msra.mxu0 0
      %1515 = vmatprep.subr.bf16.mxu0 0
      %1516 = vmatpush1.bf16.msra.mxu0 0
      %1517 = vmatprep.subr.bf16.mxu0 0
      %1518 = vmatpush1.bf16.msra.mxu0 0
      %1519 = vmatprep.subr.bf16.mxu0 0
      %1520 = vmatpush1.bf16.msra.mxu0 0
      %1521 = vmatprep.subr.bf16.mxu0 0
      %1522 = vmatpush1.bf16.msra.mxu0 0
      %1523 = vmatprep.subr.bf16.mxu0 0
      %1524 = vmatpush1.bf16.msra.mxu0 %v1507
      %1525 = vmatprep.subr.bf16.mxu0 0
      %1526 = vmatpush2.bf16.msra.mxu0 0
      %1527 = vmatprep.subr.bf16.mxu0 0
      %1528 = vmatpush2.bf16.msra.mxu0 0
      %1529 = vmatprep.subr.bf16.mxu0 0
      %1530 = vmatpush2.bf16.msra.mxu0 0
      %1531 = vmatprep.subr.bf16.mxu0 0
      %1532 = vmatpush2.bf16.msra.mxu0 0
      %1533 = vmatprep.subr.bf16.mxu0 0
      %1534 = vmatpush2.bf16.msra.mxu0 0
      %1535 = vmatprep.subr.bf16.mxu0 0
      %1536 = vmatpush2.bf16.msra.mxu0 0
      %1537 = vmatprep.subr.bf16.mxu0 0
      %1538 = vmatpush2.bf16.msra.mxu0 0
      %1539 = vmatprep.subr.bf16.mxu0 0
      %1540 = vmatpush2.bf16.msra.mxu0 0
      %1541 = vmatprep.mubr.bf16.mxu0 0
      %1542 = vmatmul.mubr.bf16.gmra.mxu0 %v1453
      %v1543 = vpop.f32.mrf.mxu0
      %v1544 = vadd.f32 0.0, %v1543
      %v1545 = vpop.f32.mrf.mxu0
      %v1546 = vpop.f32.mrf.mxu0
      %v1547 = vadd.f32 0.0, %v1546
      %v1548 = vpop.f32.mrf.mxu0
      %1549 = vmatprep.mubr.bf16.mxu0 0
      %1550 = vmatmul.mubr.bf16.gmra.mxu0 %v1456
      %v1551 = vpop.f32.mrf.mxu0
      %v1552 = vadd.f32 0.0, %v1551
      %v1553 = vpop.f32.mrf.mxu0
      %v1554 = vpop.f32.mrf.mxu0
      %v1555 = vadd.f32 0.0, %v1554
      %v1556 = vpop.f32.mrf.mxu0
      %1557 = vmatprep.mubr.bf16.mxu0 0
      %1558 = vmatmul.mubr.bf16.gmra.mxu0 %v1459
      %v1559 = vpop.f32.mrf.mxu0
      %v1560 = vadd.f32 0.0, %v1559
      %v1561 = vpop.f32.mrf.mxu0
      %v1562 = vpop.f32.mrf.mxu0
      %v1563 = vadd.f32 0.0, %v1562
      %v1564 = vpop.f32.mrf.mxu0
      %1565 = vmatprep.mubr.bf16.mxu0 0
      %1566 = vmatmul.mubr.bf16.gmra.mxu0 %v1462
      %v1567 = vpop.f32.mrf.mxu0
      %v1568 = vadd.f32 0.0, %v1567
      %v1569 = vpop.f32.mrf.mxu0
      %v1570 = vpop.f32.mrf.mxu0
      %v1571 = vadd.f32 0.0, %v1570
      %v1572 = vpop.f32.mrf.mxu0
      %1573 = vmatprep.mubr.bf16.mxu0 0
      %1574 = vmatmul.mubr.bf16.gmra.mxu0 %v1465
      %v1575 = vpop.f32.mrf.mxu0
      %v1576 = vadd.f32 0.0, %v1575
      %v1577 = vpop.f32.mrf.mxu0
      %v1578 = vpop.f32.mrf.mxu0
      %v1579 = vadd.f32 0.0, %v1578
      %v1580 = vpop.f32.mrf.mxu0
      %1581 = vmatprep.mubr.bf16.mxu0 0
      %1582 = vmatmul.mubr.bf16.gmra.mxu0 %v1468
      %v1583 = vpop.f32.mrf.mxu0
      %v1584 = vadd.f32 0.0, %v1583
      %v1585 = vpop.f32.mrf.mxu0
      %v1586 = vpop.f32.mrf.mxu0
      %v1587 = vadd.f32 0.0, %v1586
      %v1588 = vpop.f32.mrf.mxu0
      %1589 = vmatprep.mubr.bf16.mxu0 0
      %1590 = vmatmul.mubr.bf16.gmra.mxu0 %v1471
      %v1591 = vpop.f32.mrf.mxu0
      %v1592 = vadd.f32 0.0, %v1591
      %v1593 = vpop.f32.mrf.mxu0
      %v1594 = vpop.f32.mrf.mxu0
      %v1595 = vadd.f32 0.0, %v1594
      %v1596 = vpop.f32.mrf.mxu0
      %1597 = vmatprep.mubr.bf16.mxu0 0
      %1598 = vmatmul.mubr.bf16.gmra.mxu0 %v1474
      %v1599 = vpop.f32.mrf.mxu0
      %v1600 = vadd.f32 0.0, %v1599
      %v1601 = vpop.f32.mrf.mxu0
      %v1602 = vpop.f32.mrf.mxu0
      %v1603 = vadd.f32 0.0, %v1602
      %v1604 = vpop.f32.mrf.mxu0
      %1605 = vmatprep.mubr.bf16.mxu0 0
      %1606 = vmatmul.mubr.bf16.gmra.mxu0 %v1477
      %v1607 = vpop.f32.mrf.mxu0
      %v1608 = vadd.f32 0.0, %v1607
      %v1609 = vpop.f32.mrf.mxu0
      %v1610 = vpop.f32.mrf.mxu0
      %v1611 = vadd.f32 0.0, %v1610
      %v1612 = vpop.f32.mrf.mxu0
      %1613 = vmatprep.mubr.bf16.mxu0 0
      %1614 = vmatmul.mubr.bf16.gmra.mxu0 %v1480
      %v1615 = vpop.f32.mrf.mxu0
      %v1616 = vadd.f32 0.0, %v1615
      %v1617 = vpop.f32.mrf.mxu0
      %v1618 = vpop.f32.mrf.mxu0
      %v1619 = vadd.f32 0.0, %v1618
      %v1620 = vpop.f32.mrf.mxu0
      %1621 = vmatprep.mubr.bf16.mxu0 0
      %1622 = vmatmul.mubr.bf16.gmra.mxu0 %v1483
      %v1623 = vpop.f32.mrf.mxu0
      %v1624 = vadd.f32 0.0, %v1623
      %v1625 = vpop.f32.mrf.mxu0
      %v1626 = vpop.f32.mrf.mxu0
      %v1627 = vadd.f32 0.0, %v1626
      %v1628 = vpop.f32.mrf.mxu0
      %1629 = vmatprep.mubr.bf16.mxu0 0
      %1630 = vmatmul.mubr.bf16.gmra.mxu0 %v1486
      %v1631 = vpop.f32.mrf.mxu0
      %v1632 = vadd.f32 0.0, %v1631
      %v1633 = vpop.f32.mrf.mxu0
      %v1634 = vpop.f32.mrf.mxu0
      %v1635 = vadd.f32 0.0, %v1634
      %v1636 = vpop.f32.mrf.mxu0
      %1637 = vmatprep.mubr.bf16.mxu0 0
      %1638 = vmatmul.mubr.bf16.gmra.mxu0 %v1489
      %v1639 = vpop.f32.mrf.mxu0
      %v1640 = vadd.f32 0.0, %v1639
      %v1641 = vpop.f32.mrf.mxu0
      %v1642 = vpop.f32.mrf.mxu0
      %v1643 = vadd.f32 0.0, %v1642
      %v1644 = vpop.f32.mrf.mxu0
      %1645 = vmatprep.mubr.bf16.mxu0 0
      %1646 = vmatmul.mubr.bf16.gmra.mxu0 %v1492
      %v1647 = vpop.f32.mrf.mxu0
      %v1648 = vadd.f32 0.0, %v1647
      %v1649 = vpop.f32.mrf.mxu0
      %v1650 = vpop.f32.mrf.mxu0
      %v1651 = vadd.f32 0.0, %v1650
      %v1652 = vpop.f32.mrf.mxu0
      %1653 = vmatprep.mubr.bf16.mxu0 0
      %1654 = vmatmul.mubr.bf16.gmra.mxu0 %v1495
      %v1655 = vpop.f32.mrf.mxu0
      %v1656 = vadd.f32 0.0, %v1655
      %v1657 = vpop.f32.mrf.mxu0
      %v1658 = vpop.f32.mrf.mxu0
      %v1659 = vadd.f32 0.0, %v1658
      %v1660 = vpop.f32.mrf.mxu0
      %1661 = vmatprep.mubr.bf16.mxu0 0
      %1662 = vmatmul.mubr.bf16.gmra.mxu0 %v1498
      %v1663 = vpop.f32.mrf.mxu0
      %v1664 = vadd.f32 0.0, %v1663
      %v1665 = vpop.f32.mrf.mxu0
      %v1666 = vpop.f32.mrf.mxu0
      %v1667 = vadd.f32 0.0, %v1666
      %v1668 = vpop.f32.mrf.mxu0
      %1669 = vmatprep.mubr.bf16.mxu0 0
      %1670 = vmatmul.mubr.bf16.gmra.mxu0 %v1501
      %v1671 = vpop.f32.mrf.mxu0
      %v1672 = vadd.f32 0.0, %v1671
      %v1673 = vpop.f32.mrf.mxu0
      %v1674 = vpop.f32.mrf.mxu0
      %v1675 = vadd.f32 0.0, %v1674
      %v1676 = vpop.f32.mrf.mxu0
      %1677 = vmatprep.mubr.bf16.mxu0 0
      %1678 = vmatmul.mubr.bf16.gmra.mxu0 %v1504
      %v1679 = vpop.f32.mrf.mxu0
      %v1680 = vadd.f32 0.0, %v1679
      %v1681 = vpop.f32.mrf.mxu0
      %v1682 = vpop.f32.mrf.mxu0
      %v1683 = vadd.f32 0.0, %v1682
      %v1684 = vpop.f32.mrf.mxu0
      %1685 = vdwg.mxu0
      %v1686 = vadd.f32 %v1247, %v1544
      %v1687 = vadd.f32 %v1248, %v1547
      %v1688 = vadd.f32 %v1249, %v1552
      %v1689 = vadd.f32 %v1250, %v1555
      %v1690 = vadd.f32 %v1251, %v1560
      %v1691 = vadd.f32 %v1252, %v1563
      %v1692 = vadd.f32 %v1253, %v1568
      %v1693 = vadd.f32 %v1254, %v1571
      %v1694 = vadd.f32 %v1255, %v1576
      %v1695 = vadd.f32 %v1256, %v1579
      %v1696 = vadd.f32 %v1257, %v1584
      %v1697 = vadd.f32 %v1258, %v1587
      %v1698 = vadd.f32 %v1259, %v1592
      %v1699 = vadd.f32 %v1260, %v1595
      %v1700 = vadd.f32 %v1261, %v1600
      %v1701 = vadd.f32 %v1262, %v1603
      %v1702 = vadd.f32 %v1263, %v1608
      %v1703 = vadd.f32 %v1264, %v1611
      %v1704 = vadd.f32 %v1265, %v1616
      %v1705 = vadd.f32 %v1266, %v1619
      %v1706 = vadd.f32 %v1267, %v1624
      %v1707 = vadd.f32 %v1268, %v1627
      %v1708 = vadd.f32 %v1269, %v1632
      %v1709 = vadd.f32 %v1270, %v1635
      %v1710 = vadd.f32 %v1271, %v1640
      %v1711 = vadd.f32 %v1272, %v1643
      %v1712 = vadd.f32 %v1273, %v1648
      %v1713 = vadd.f32 %v1274, %v1651
      %v1714 = vadd.f32 %v1275, %v1656
      %v1715 = vadd.f32 %v1276, %v1659
      %v1716 = vadd.f32 %v1277, %v1664
      %v1717 = vadd.f32 %v1278, %v1667
      %v1718 = vadd.f32 %v1279, %v1672
      %v1719 = vadd.f32 %v1280, %v1675
      %v1720 = vadd.f32 %v1281, %v1680
      %v1721 = vadd.f32 %v1282, %v1683
      %v1722 = vld [vmem:[%s224 + $0x98] sm:$0x3]
      %s1723 = scalar_lea.vmem %s1, 8
      %v1724 = vld [vmem:[%s1723] sm:$0x3]
      %v1726 = vunpack.c.l.b16 %v1722
      %v1727 = vpack.c.b16 %v1726, %v1726
      %vm1728 = vsmask.f32 6400
      %v1730 = vshrl.u32 %v1396, 16
      %v1732 = vrot.slane %v1730, 1
      %v1733 = vshll.u32 %v1396, 16
      %v1735 = vrot.slane %v1733, 2
      %v1736 = vor.u32 %v1732, %v1735
      %v1738 = vshrl.u32 %v1397, 16
      %v1740 = vrot.slane %v1738, 1
      %v1741 = vshll.u32 %v1397, 16
      %v1743 = vrot.slane %v1741, 2
      %v1744 = vor.u32 %v1740, %v1743
      %v1745 = vsel %vm1728, %v1736, %v1744
      %v1747 = vshrl.u32 %v1398, 16
      %v1749 = vrot.slane %v1747, 1
      %v1750 = vshll.u32 %v1398, 16
      %v1752 = vrot.slane %v1750, 2
      %v1753 = vor.u32 %v1749, %v1752
      %v1754 = vsel %vm1728, %v1744, %v1753
      %v1756 = vshrl.u32 %v1399, 16
      %v1758 = vrot.slane %v1756, 1
      %v1759 = vshll.u32 %v1399, 16
      %v1761 = vrot.slane %v1759, 2
      %v1762 = vor.u32 %v1758, %v1761
      %v1763 = vsel %vm1728, %v1753, %v1762
      %v1765 = vshrl.u32 %v1400, 16
      %v1767 = vrot.slane %v1765, 1
      %v1768 = vshll.u32 %v1400, 16
      %v1770 = vrot.slane %v1768, 2
      %v1771 = vor.u32 %v1767, %v1770
      %v1772 = vsel %vm1728, %v1762, %v1771
      %v1774 = vshrl.u32 %v1401, 16
      %v1776 = vrot.slane %v1774, 1
      %v1777 = vshll.u32 %v1401, 16
      %v1779 = vrot.slane %v1777, 2
      %v1780 = vor.u32 %v1776, %v1779
      %v1781 = vsel %vm1728, %v1771, %v1780
      %v1783 = vshrl.u32 %v1402, 16
      %v1785 = vrot.slane %v1783, 1
      %v1786 = vshll.u32 %v1402, 16
      %v1788 = vrot.slane %v1786, 2
      %v1789 = vor.u32 %v1785, %v1788
      %v1790 = vsel %vm1728, %v1780, %v1789
      %v1792 = vshrl.u32 %v1403, 16
      %v1794 = vrot.slane %v1792, 1
      %v1795 = vshll.u32 %v1403, 16
      %v1797 = vrot.slane %v1795, 2
      %v1798 = vor.u32 %v1794, %v1797
      %v1799 = vsel %vm1728, %v1789, %v1798
      %v1801 = vshrl.u32 %v1404, 16
      %v1803 = vrot.slane %v1801, 1
      %v1804 = vshll.u32 %v1404, 16
      %v1806 = vrot.slane %v1804, 2
      %v1807 = vor.u32 %v1803, %v1806
      %v1808 = vsel %vm1728, %v1798, %v1807
      %v1810 = vshrl.u32 %v1405, 16
      %v1812 = vrot.slane %v1810, 1
      %v1813 = vshll.u32 %v1405, 16
      %v1815 = vrot.slane %v1813, 2
      %v1816 = vor.u32 %v1812, %v1815
      %v1817 = vsel %vm1728, %v1807, %v1816
      %v1819 = vshrl.u32 %v1406, 16
      %v1821 = vrot.slane %v1819, 1
      %v1822 = vshll.u32 %v1406, 16
      %v1824 = vrot.slane %v1822, 2
      %v1825 = vor.u32 %v1821, %v1824
      %v1826 = vsel %vm1728, %v1816, %v1825
      %v1828 = vshrl.u32 %v1407, 16
      %v1830 = vrot.slane %v1828, 1
      %v1831 = vshll.u32 %v1407, 16
      %v1833 = vrot.slane %v1831, 2
      %v1834 = vor.u32 %v1830, %v1833
      %v1835 = vsel %vm1728, %v1825, %v1834
      %v1837 = vshrl.u32 %v1408, 16
      %v1839 = vrot.slane %v1837, 1
      %v1840 = vshll.u32 %v1408, 16
      %v1842 = vrot.slane %v1840, 2
      %v1843 = vor.u32 %v1839, %v1842
      %v1844 = vsel %vm1728, %v1834, %v1843
      %v1846 = vshrl.u32 %v1409, 16
      %v1848 = vrot.slane %v1846, 1
      %v1849 = vshll.u32 %v1409, 16
      %v1851 = vrot.slane %v1849, 2
      %v1852 = vor.u32 %v1848, %v1851
      %v1853 = vsel %vm1728, %v1843, %v1852
      %v1855 = vshrl.u32 %v1410, 16
      %v1857 = vrot.slane %v1855, 1
      %v1858 = vshll.u32 %v1410, 16
      %v1860 = vrot.slane %v1858, 2
      %v1861 = vor.u32 %v1857, %v1860
      %v1862 = vsel %vm1728, %v1852, %v1861
      %v1864 = vshrl.u32 %v1411, 16
      %v1866 = vrot.slane %v1864, 1
      %v1867 = vshll.u32 %v1411, 16
      %v1869 = vrot.slane %v1867, 2
      %v1870 = vor.u32 %v1866, %v1869
      %v1871 = vsel %vm1728, %v1861, %v1870
      %v1873 = vshrl.u32 %v1412, 16
      %v1875 = vrot.slane %v1873, 1
      %v1876 = vshll.u32 %v1412, 16
      %v1878 = vrot.slane %v1876, 2
      %v1879 = vor.u32 %v1875, %v1878
      %v1880 = vsel %vm1728, %v1870, %v1879
      %v1882 = vshrl.u32 %v1413, 16
      %v1884 = vrot.slane %v1882, 1
      %v1885 = vshll.u32 %v1413, 16
      %v1887 = vrot.slane %v1885, 2
      %v1888 = vor.u32 %v1884, %v1887
      %v1889 = vsel %vm1728, %v1879, %v1888
      %v1891 = vshrl.u32 %v1727, 16
      %v1893 = vrot.slane %v1891, 1
      %v1894 = vshll.u32 %v1727, 16
      %v1896 = vrot.slane %v1894, 2
      %v1897 = vor.u32 %v1893, %v1896
      %v1898 = vsel %vm1728, %v1888, %v1897
      %v1900 = vsel %vm517, %v1745, 0
      %v1903 = vsel %vm517, %v1754, 0
      %v1906 = vsel %vm517, %v1763, 0
      %v1909 = vsel %vm517, %v1772, 0
      %v1912 = vsel %vm517, %v1781, 0
      %v1915 = vsel %vm517, %v1790, 0
      %v1918 = vsel %vm517, %v1799, 0
      %v1921 = vsel %vm517, %v1808, 0
      %v1924 = vsel %vm517, %v1817, 0
      %v1927 = vsel %vm517, %v1826, 0
      %v1930 = vsel %vm517, %v1835, 0
      %v1933 = vsel %vm517, %v1844, 0
      %v1936 = vsel %vm517, %v1853, 0
      %v1939 = vsel %vm517, %v1862, 0
      %v1942 = vsel %vm517, %v1871, 0
      %v1945 = vsel %vm517, %v1880, 0
      %v1948 = vsel %vm517, %v1889, 0
      %v1951 = vsel %vm517, %v1898, 0
      %v1954 = vsel %vm572, %v1724, 0
      %1956 = vmatprep.subr.bf16.mxu0 0
      %1957 = vmatpush1.bf16.msra.mxu0 0
      %1958 = vmatprep.subr.bf16.mxu0 0
      %1959 = vmatpush1.bf16.msra.mxu0 0
      %1960 = vmatprep.subr.bf16.mxu0 0
      %1961 = vmatpush1.bf16.msra.mxu0 0
      %1962 = vmatprep.subr.bf16.mxu0 0
      %1963 = vmatpush1.bf16.msra.mxu0 0
      %1964 = vmatprep.subr.bf16.mxu0 0
      %1965 = vmatpush1.bf16.msra.mxu0 0
      %1966 = vmatprep.subr.bf16.mxu0 0
      %1967 = vmatpush1.bf16.msra.mxu0 0
      %1968 = vmatprep.subr.bf16.mxu0 0
      %1969 = vmatpush1.bf16.msra.mxu0 0
      %1970 = vmatprep.subr.bf16.mxu0 0
      %1971 = vmatpush1.bf16.msra.mxu0 %v1954
      %1972 = vmatprep.subr.bf16.mxu0 0
      %1973 = vmatpush2.bf16.msra.mxu0 0
      %1974 = vmatprep.subr.bf16.mxu0 0
      %1975 = vmatpush2.bf16.msra.mxu0 0
      %1976 = vmatprep.subr.bf16.mxu0 0
      %1977 = vmatpush2.bf16.msra.mxu0 0
      %1978 = vmatprep.subr.bf16.mxu0 0
      %1979 = vmatpush2.bf16.msra.mxu0 0
      %1980 = vmatprep.subr.bf16.mxu0 0
      %1981 = vmatpush2.bf16.msra.mxu0 0
      %1982 = vmatprep.subr.bf16.mxu0 0
      %1983 = vmatpush2.bf16.msra.mxu0 0
      %1984 = vmatprep.subr.bf16.mxu0 0
      %1985 = vmatpush2.bf16.msra.mxu0 0
      %1986 = vmatprep.subr.bf16.mxu0 0
      %1987 = vmatpush2.bf16.msra.mxu0 0
      %1988 = vmatprep.mubr.bf16.mxu0 0
      %1989 = vmatmul.mubr.bf16.gmra.mxu0 %v1900
      %v1990 = vpop.f32.mrf.mxu0
      %v1991 = vadd.f32 0.0, %v1990
      %v1992 = vpop.f32.mrf.mxu0
      %v1993 = vpop.f32.mrf.mxu0
      %v1994 = vadd.f32 0.0, %v1993
      %v1995 = vpop.f32.mrf.mxu0
      %1996 = vmatprep.mubr.bf16.mxu0 0
      %1997 = vmatmul.mubr.bf16.gmra.mxu0 %v1903
      %v1998 = vpop.f32.mrf.mxu0
      %v1999 = vadd.f32 0.0, %v1998
      %v2000 = vpop.f32.mrf.mxu0
      %v2001 = vpop.f32.mrf.mxu0
      %v2002 = vadd.f32 0.0, %v2001
      %v2003 = vpop.f32.mrf.mxu0
      %2004 = vmatprep.mubr.bf16.mxu0 0
      %2005 = vmatmul.mubr.bf16.gmra.mxu0 %v1906
      %v2006 = vpop.f32.mrf.mxu0
      %v2007 = vadd.f32 0.0, %v2006
      %v2008 = vpop.f32.mrf.mxu0
      %v2009 = vpop.f32.mrf.mxu0
      %v2010 = vadd.f32 0.0, %v2009
      %v2011 = vpop.f32.mrf.mxu0
      %2012 = vmatprep.mubr.bf16.mxu0 0
      %2013 = vmatmul.mubr.bf16.gmra.mxu0 %v1909
      %v2014 = vpop.f32.mrf.mxu0
      %v2015 = vadd.f32 0.0, %v2014
      %v2016 = vpop.f32.mrf.mxu0
      %v2017 = vpop.f32.mrf.mxu0
      %v2018 = vadd.f32 0.0, %v2017
      %v2019 = vpop.f32.mrf.mxu0
      %2020 = vmatprep.mubr.bf16.mxu0 0
      %2021 = vmatmul.mubr.bf16.gmra.mxu0 %v1912
      %v2022 = vpop.f32.mrf.mxu0
      %v2023 = vadd.f32 0.0, %v2022
      %v2024 = vpop.f32.mrf.mxu0
      %v2025 = vpop.f32.mrf.mxu0
      %v2026 = vadd.f32 0.0, %v2025
      %v2027 = vpop.f32.mrf.mxu0
      %2028 = vmatprep.mubr.bf16.mxu0 0
      %2029 = vmatmul.mubr.bf16.gmra.mxu0 %v1915
      %v2030 = vpop.f32.mrf.mxu0
      %v2031 = vadd.f32 0.0, %v2030
      %v2032 = vpop.f32.mrf.mxu0
      %v2033 = vpop.f32.mrf.mxu0
      %v2034 = vadd.f32 0.0, %v2033
      %v2035 = vpop.f32.mrf.mxu0
      %2036 = vmatprep.mubr.bf16.mxu0 0
      %2037 = vmatmul.mubr.bf16.gmra.mxu0 %v1918
      %v2038 = vpop.f32.mrf.mxu0
      %v2039 = vadd.f32 0.0, %v2038
      %v2040 = vpop.f32.mrf.mxu0
      %v2041 = vpop.f32.mrf.mxu0
      %v2042 = vadd.f32 0.0, %v2041
      %v2043 = vpop.f32.mrf.mxu0
      %2044 = vmatprep.mubr.bf16.mxu0 0
      %2045 = vmatmul.mubr.bf16.gmra.mxu0 %v1921
      %v2046 = vpop.f32.mrf.mxu0
      %v2047 = vadd.f32 0.0, %v2046
      %v2048 = vpop.f32.mrf.mxu0
      %v2049 = vpop.f32.mrf.mxu0
      %v2050 = vadd.f32 0.0, %v2049
      %v2051 = vpop.f32.mrf.mxu0
      %2052 = vmatprep.mubr.bf16.mxu0 0
      %2053 = vmatmul.mubr.bf16.gmra.mxu0 %v1924
      %v2054 = vpop.f32.mrf.mxu0
      %v2055 = vadd.f32 0.0, %v2054
      %v2056 = vpop.f32.mrf.mxu0
      %v2057 = vpop.f32.mrf.mxu0
      %v2058 = vadd.f32 0.0, %v2057
      %v2059 = vpop.f32.mrf.mxu0
      %2060 = vmatprep.mubr.bf16.mxu0 0
      %2061 = vmatmul.mubr.bf16.gmra.mxu0 %v1927
      %v2062 = vpop.f32.mrf.mxu0
      %v2063 = vadd.f32 0.0, %v2062
      %v2064 = vpop.f32.mrf.mxu0
      %v2065 = vpop.f32.mrf.mxu0
      %v2066 = vadd.f32 0.0, %v2065
      %v2067 = vpop.f32.mrf.mxu0
      %2068 = vmatprep.mubr.bf16.mxu0 0
      %2069 = vmatmul.mubr.bf16.gmra.mxu0 %v1930
      %v2070 = vpop.f32.mrf.mxu0
      %v2071 = vadd.f32 0.0, %v2070
      %v2072 = vpop.f32.mrf.mxu0
      %v2073 = vpop.f32.mrf.mxu0
      %v2074 = vadd.f32 0.0, %v2073
      %v2075 = vpop.f32.mrf.mxu0
      %2076 = vmatprep.mubr.bf16.mxu0 0
      %2077 = vmatmul.mubr.bf16.gmra.mxu0 %v1933
      %v2078 = vpop.f32.mrf.mxu0
      %v2079 = vadd.f32 0.0, %v2078
      %v2080 = vpop.f32.mrf.mxu0
      %v2081 = vpop.f32.mrf.mxu0
      %v2082 = vadd.f32 0.0, %v2081
      %v2083 = vpop.f32.mrf.mxu0
      %2084 = vmatprep.mubr.bf16.mxu0 0
      %2085 = vmatmul.mubr.bf16.gmra.mxu0 %v1936
      %v2086 = vpop.f32.mrf.mxu0
      %v2087 = vadd.f32 0.0, %v2086
      %v2088 = vpop.f32.mrf.mxu0
      %v2089 = vpop.f32.mrf.mxu0
      %v2090 = vadd.f32 0.0, %v2089
      %v2091 = vpop.f32.mrf.mxu0
      %2092 = vmatprep.mubr.bf16.mxu0 0
      %2093 = vmatmul.mubr.bf16.gmra.mxu0 %v1939
      %v2094 = vpop.f32.mrf.mxu0
      %v2095 = vadd.f32 0.0, %v2094
      %v2096 = vpop.f32.mrf.mxu0
      %v2097 = vpop.f32.mrf.mxu0
      %v2098 = vadd.f32 0.0, %v2097
      %v2099 = vpop.f32.mrf.mxu0
      %2100 = vmatprep.mubr.bf16.mxu0 0
      %2101 = vmatmul.mubr.bf16.gmra.mxu0 %v1942
      %v2102 = vpop.f32.mrf.mxu0
      %v2103 = vadd.f32 0.0, %v2102
      %v2104 = vpop.f32.mrf.mxu0
      %v2105 = vpop.f32.mrf.mxu0
      %v2106 = vadd.f32 0.0, %v2105
      %v2107 = vpop.f32.mrf.mxu0
      %2108 = vmatprep.mubr.bf16.mxu0 0
      %2109 = vmatmul.mubr.bf16.gmra.mxu0 %v1945
      %v2110 = vpop.f32.mrf.mxu0
      %v2111 = vadd.f32 0.0, %v2110
      %v2112 = vpop.f32.mrf.mxu0
      %v2113 = vpop.f32.mrf.mxu0
      %v2114 = vadd.f32 0.0, %v2113
      %v2115 = vpop.f32.mrf.mxu0
      %2116 = vmatprep.mubr.bf16.mxu0 0
      %2117 = vmatmul.mubr.bf16.gmra.mxu0 %v1948
      %v2118 = vpop.f32.mrf.mxu0
      %v2119 = vadd.f32 0.0, %v2118
      %v2120 = vpop.f32.mrf.mxu0
      %v2121 = vpop.f32.mrf.mxu0
      %v2122 = vadd.f32 0.0, %v2121
      %v2123 = vpop.f32.mrf.mxu0
      %2124 = vmatprep.mubr.bf16.mxu0 0
      %2125 = vmatmul.mubr.bf16.gmra.mxu0 %v1951
      %v2126 = vpop.f32.mrf.mxu0
      %v2127 = vadd.f32 0.0, %v2126
      %v2128 = vpop.f32.mrf.mxu0
      %v2129 = vpop.f32.mrf.mxu0
      %v2130 = vadd.f32 0.0, %v2129
      %v2131 = vpop.f32.mrf.mxu0
      %2132 = vdwg.mxu0
      %v2133 = vadd.f32 %v1686, %v1991
      %v2134 = vadd.f32 %v1687, %v1994
      %v2135 = vadd.f32 %v1688, %v1999
      %v2136 = vadd.f32 %v1689, %v2002
      %v2137 = vadd.f32 %v1690, %v2007
      %v2138 = vadd.f32 %v1691, %v2010
      %v2139 = vadd.f32 %v1692, %v2015
      %v2140 = vadd.f32 %v1693, %v2018
      %v2141 = vadd.f32 %v1694, %v2023
      %v2142 = vadd.f32 %v1695, %v2026
      %v2143 = vadd.f32 %v1696, %v2031
      %v2144 = vadd.f32 %v1697, %v2034
      %v2145 = vadd.f32 %v1698, %v2039
      %v2146 = vadd.f32 %v1699, %v2042
      %v2147 = vadd.f32 %v1700, %v2047
      %v2148 = vadd.f32 %v1701, %v2050
      %v2149 = vadd.f32 %v1702, %v2055
      %v2150 = vadd.f32 %v1703, %v2058
      %v2151 = vadd.f32 %v1704, %v2063
      %v2152 = vadd.f32 %v1705, %v2066
      %v2153 = vadd.f32 %v1706, %v2071
      %v2154 = vadd.f32 %v1707, %v2074
      %v2155 = vadd.f32 %v1708, %v2079
      %v2156 = vadd.f32 %v1709, %v2082
      %v2157 = vadd.f32 %v1710, %v2087
      %v2158 = vadd.f32 %v1711, %v2090
      %v2159 = vadd.f32 %v1712, %v2095
      %v2160 = vadd.f32 %v1713, %v2098
      %v2161 = vadd.f32 %v1714, %v2103
      %v2162 = vadd.f32 %v1715, %v2106
      %v2163 = vadd.f32 %v1716, %v2111
      %v2164 = vadd.f32 %v1717, %v2114
      %v2165 = vadd.f32 %v1718, %v2119
      %v2166 = vadd.f32 %v1719, %v2122
      %v2167 = vadd.f32 %v1720, %v2127
      %v2168 = vadd.f32 %v1721, %v2130
      %v2169 = vld [vmem:[%s224 + $0x8] sm:$0xc]
      %s2170 = scalar_lea.vmem %s1, 10
      %v2171 = vld [vmem:[%s2170] sm:$0x3]
      %v2173 = vunpack.c.l.b16 %v2169
      %v2174 = vpack.c.b16 %v1360, %v2173
      %vm2175 = vcmask 1045504
      %v2176 = vrot.slane %v2174, 2
      %v2177 = vrot.slane %v1397, 2
      %v2178 = vsel %vm2175, %v2176, %v2177
      %v2179 = vrot.slane %v1398, 2
      %v2180 = vsel %vm2175, %v2177, %v2179
      %v2181 = vrot.slane %v1399, 2
      %v2182 = vsel %vm2175, %v2179, %v2181
      %v2183 = vrot.slane %v1400, 2
      %v2184 = vsel %vm2175, %v2181, %v2183
      %v2185 = vrot.slane %v1401, 2
      %v2186 = vsel %vm2175, %v2183, %v2185
      %v2187 = vrot.slane %v1402, 2
      %v2188 = vsel %vm2175, %v2185, %v2187
      %v2189 = vrot.slane %v1403, 2
      %v2190 = vsel %vm2175, %v2187, %v2189
      %v2191 = vrot.slane %v1404, 2
      %v2192 = vsel %vm2175, %v2189, %v2191
      %v2193 = vrot.slane %v1405, 2
      %v2194 = vsel %vm2175, %v2191, %v2193
      %v2195 = vrot.slane %v1406, 2
      %v2196 = vsel %vm2175, %v2193, %v2195
      %v2197 = vrot.slane %v1407, 2
      %v2198 = vsel %vm2175, %v2195, %v2197
      %v2199 = vrot.slane %v1408, 2
      %v2200 = vsel %vm2175, %v2197, %v2199
      %v2201 = vrot.slane %v1409, 2
      %v2202 = vsel %vm2175, %v2199, %v2201
      %v2203 = vrot.slane %v1410, 2
      %v2204 = vsel %vm2175, %v2201, %v2203
      %v2205 = vrot.slane %v1411, 2
      %v2206 = vsel %vm2175, %v2203, %v2205
      %v2207 = vrot.slane %v1412, 2
      %v2208 = vsel %vm2175, %v2205, %v2207
      %v2209 = vrot.slane %v1413, 2
      %v2210 = vsel %vm2175, %v2207, %v2209
      %v2211 = vrot.slane %v1727, 2
      %v2212 = vsel %vm2175, %v2209, %v2211
      %v2214 = vsel %vm517, %v2178, 0
      %v2217 = vsel %vm517, %v2180, 0
      %v2220 = vsel %vm517, %v2182, 0
      %v2223 = vsel %vm517, %v2184, 0
      %v2226 = vsel %vm517, %v2186, 0
      %v2229 = vsel %vm517, %v2188, 0
      %v2232 = vsel %vm517, %v2190, 0
      %v2235 = vsel %vm517, %v2192, 0
      %v2238 = vsel %vm517, %v2194, 0
      %v2241 = vsel %vm517, %v2196, 0
      %v2244 = vsel %vm517, %v2198, 0
      %v2247 = vsel %vm517, %v2200, 0
      %v2250 = vsel %vm517, %v2202, 0
      %v2253 = vsel %vm517, %v2204, 0
      %v2256 = vsel %vm517, %v2206, 0
      %v2259 = vsel %vm517, %v2208, 0
      %v2262 = vsel %vm517, %v2210, 0
      %v2265 = vsel %vm517, %v2212, 0
      %v2268 = vsel %vm572, %v2171, 0
      %2270 = vmatprep.subr.bf16.mxu0 0
      %2271 = vmatpush1.bf16.msra.mxu0 0
      %2272 = vmatprep.subr.bf16.mxu0 0
      %2273 = vmatpush1.bf16.msra.mxu0 0
      %2274 = vmatprep.subr.bf16.mxu0 0
      %2275 = vmatpush1.bf16.msra.mxu0 0
      %2276 = vmatprep.subr.bf16.mxu0 0
      %2277 = vmatpush1.bf16.msra.mxu0 0
      %2278 = vmatprep.subr.bf16.mxu0 0
      %2279 = vmatpush1.bf16.msra.mxu0 0
      %2280 = vmatprep.subr.bf16.mxu0 0
      %2281 = vmatpush1.bf16.msra.mxu0 0
      %2282 = vmatprep.subr.bf16.mxu0 0
      %2283 = vmatpush1.bf16.msra.mxu0 0
      %2284 = vmatprep.subr.bf16.mxu0 0
      %2285 = vmatpush1.bf16.msra.mxu0 %v2268
      %2286 = vmatprep.subr.bf16.mxu0 0
      %2287 = vmatpush2.bf16.msra.mxu0 0
      %2288 = vmatprep.subr.bf16.mxu0 0
      %2289 = vmatpush2.bf16.msra.mxu0 0
      %2290 = vmatprep.subr.bf16.mxu0 0
      %2291 = vmatpush2.bf16.msra.mxu0 0
      %2292 = vmatprep.subr.bf16.mxu0 0
      %2293 = vmatpush2.bf16.msra.mxu0 0
      %2294 = vmatprep.subr.bf16.mxu0 0
      %2295 = vmatpush2.bf16.msra.mxu0 0
      %2296 = vmatprep.subr.bf16.mxu0 0
      %2297 = vmatpush2.bf16.msra.mxu0 0
      %2298 = vmatprep.subr.bf16.mxu0 0
      %2299 = vmatpush2.bf16.msra.mxu0 0
      %2300 = vmatprep.subr.bf16.mxu0 0
      %2301 = vmatpush2.bf16.msra.mxu0 0
      %2302 = vmatprep.mubr.bf16.mxu0 0
      %2303 = vmatmul.mubr.bf16.gmra.mxu0 %v2214
      %v2304 = vpop.f32.mrf.mxu0
      %v2305 = vadd.f32 0.0, %v2304
      %v2306 = vpop.f32.mrf.mxu0
      %v2307 = vpop.f32.mrf.mxu0
      %v2308 = vadd.f32 0.0, %v2307
      %v2309 = vpop.f32.mrf.mxu0
      %2310 = vmatprep.mubr.bf16.mxu0 0
      %2311 = vmatmul.mubr.bf16.gmra.mxu0 %v2217
      %v2312 = vpop.f32.mrf.mxu0
      %v2313 = vadd.f32 0.0, %v2312
      %v2314 = vpop.f32.mrf.mxu0
      %v2315 = vpop.f32.mrf.mxu0
      %v2316 = vadd.f32 0.0, %v2315
      %v2317 = vpop.f32.mrf.mxu0
      %2318 = vmatprep.mubr.bf16.mxu0 0
      %2319 = vmatmul.mubr.bf16.gmra.mxu0 %v2220
      %v2320 = vpop.f32.mrf.mxu0
      %v2321 = vadd.f32 0.0, %v2320
      %v2322 = vpop.f32.mrf.mxu0
      %v2323 = vpop.f32.mrf.mxu0
      %v2324 = vadd.f32 0.0, %v2323
      %v2325 = vpop.f32.mrf.mxu0
      %2326 = vmatprep.mubr.bf16.mxu0 0
      %2327 = vmatmul.mubr.bf16.gmra.mxu0 %v2223
      %v2328 = vpop.f32.mrf.mxu0
      %v2329 = vadd.f32 0.0, %v2328
      %v2330 = vpop.f32.mrf.mxu0
      %v2331 = vpop.f32.mrf.mxu0
      %v2332 = vadd.f32 0.0, %v2331
      %v2333 = vpop.f32.mrf.mxu0
      %2334 = vmatprep.mubr.bf16.mxu0 0
      %2335 = vmatmul.mubr.bf16.gmra.mxu0 %v2226
      %v2336 = vpop.f32.mrf.mxu0
      %v2337 = vadd.f32 0.0, %v2336
      %v2338 = vpop.f32.mrf.mxu0
      %v2339 = vpop.f32.mrf.mxu0
      %v2340 = vadd.f32 0.0, %v2339
      %v2341 = vpop.f32.mrf.mxu0
      %2342 = vmatprep.mubr.bf16.mxu0 0
      %2343 = vmatmul.mubr.bf16.gmra.mxu0 %v2229
      %v2344 = vpop.f32.mrf.mxu0
      %v2345 = vadd.f32 0.0, %v2344
      %v2346 = vpop.f32.mrf.mxu0
      %v2347 = vpop.f32.mrf.mxu0
      %v2348 = vadd.f32 0.0, %v2347
      %v2349 = vpop.f32.mrf.mxu0
      %2350 = vmatprep.mubr.bf16.mxu0 0
      %2351 = vmatmul.mubr.bf16.gmra.mxu0 %v2232
      %v2352 = vpop.f32.mrf.mxu0
      %v2353 = vadd.f32 0.0, %v2352
      %v2354 = vpop.f32.mrf.mxu0
      %v2355 = vpop.f32.mrf.mxu0
      %v2356 = vadd.f32 0.0, %v2355
      %v2357 = vpop.f32.mrf.mxu0
      %2358 = vmatprep.mubr.bf16.mxu0 0
      %2359 = vmatmul.mubr.bf16.gmra.mxu0 %v2235
      %v2360 = vpop.f32.mrf.mxu0
      %v2361 = vadd.f32 0.0, %v2360
      %v2362 = vpop.f32.mrf.mxu0
      %v2363 = vpop.f32.mrf.mxu0
      %v2364 = vadd.f32 0.0, %v2363
      %v2365 = vpop.f32.mrf.mxu0
      %2366 = vmatprep.mubr.bf16.mxu0 0
      %2367 = vmatmul.mubr.bf16.gmra.mxu0 %v2238
      %v2368 = vpop.f32.mrf.mxu0
      %v2369 = vadd.f32 0.0, %v2368
      %v2370 = vpop.f32.mrf.mxu0
      %v2371 = vpop.f32.mrf.mxu0
      %v2372 = vadd.f32 0.0, %v2371
      %v2373 = vpop.f32.mrf.mxu0
      %2374 = vmatprep.mubr.bf16.mxu0 0
      %2375 = vmatmul.mubr.bf16.gmra.mxu0 %v2241
      %v2376 = vpop.f32.mrf.mxu0
      %v2377 = vadd.f32 0.0, %v2376
      %v2378 = vpop.f32.mrf.mxu0
      %v2379 = vpop.f32.mrf.mxu0
      %v2380 = vadd.f32 0.0, %v2379
      %v2381 = vpop.f32.mrf.mxu0
      %2382 = vmatprep.mubr.bf16.mxu0 0
      %2383 = vmatmul.mubr.bf16.gmra.mxu0 %v2244
      %v2384 = vpop.f32.mrf.mxu0
      %v2385 = vadd.f32 0.0, %v2384
      %v2386 = vpop.f32.mrf.mxu0
      %v2387 = vpop.f32.mrf.mxu0
      %v2388 = vadd.f32 0.0, %v2387
      %v2389 = vpop.f32.mrf.mxu0
      %2390 = vmatprep.mubr.bf16.mxu0 0
      %2391 = vmatmul.mubr.bf16.gmra.mxu0 %v2247
      %v2392 = vpop.f32.mrf.mxu0
      %v2393 = vadd.f32 0.0, %v2392
      %v2394 = vpop.f32.mrf.mxu0
      %v2395 = vpop.f32.mrf.mxu0
      %v2396 = vadd.f32 0.0, %v2395
      %v2397 = vpop.f32.mrf.mxu0
      %2398 = vmatprep.mubr.bf16.mxu0 0
      %2399 = vmatmul.mubr.bf16.gmra.mxu0 %v2250
      %v2400 = vpop.f32.mrf.mxu0
      %v2401 = vadd.f32 0.0, %v2400
      %v2402 = vpop.f32.mrf.mxu0
      %v2403 = vpop.f32.mrf.mxu0
      %v2404 = vadd.f32 0.0, %v2403
      %v2405 = vpop.f32.mrf.mxu0
      %2406 = vmatprep.mubr.bf16.mxu0 0
      %2407 = vmatmul.mubr.bf16.gmra.mxu0 %v2253
      %v2408 = vpop.f32.mrf.mxu0
      %v2409 = vadd.f32 0.0, %v2408
      %v2410 = vpop.f32.mrf.mxu0
      %v2411 = vpop.f32.mrf.mxu0
      %v2412 = vadd.f32 0.0, %v2411
      %v2413 = vpop.f32.mrf.mxu0
      %2414 = vmatprep.mubr.bf16.mxu0 0
      %2415 = vmatmul.mubr.bf16.gmra.mxu0 %v2256
      %v2416 = vpop.f32.mrf.mxu0
      %v2417 = vadd.f32 0.0, %v2416
      %v2418 = vpop.f32.mrf.mxu0
      %v2419 = vpop.f32.mrf.mxu0
      %v2420 = vadd.f32 0.0, %v2419
      %v2421 = vpop.f32.mrf.mxu0
      %2422 = vmatprep.mubr.bf16.mxu0 0
      %2423 = vmatmul.mubr.bf16.gmra.mxu0 %v2259
      %v2424 = vpop.f32.mrf.mxu0
      %v2425 = vadd.f32 0.0, %v2424
      %v2426 = vpop.f32.mrf.mxu0
      %v2427 = vpop.f32.mrf.mxu0
      %v2428 = vadd.f32 0.0, %v2427
      %v2429 = vpop.f32.mrf.mxu0
      %2430 = vmatprep.mubr.bf16.mxu0 0
      %2431 = vmatmul.mubr.bf16.gmra.mxu0 %v2262
      %v2432 = vpop.f32.mrf.mxu0
      %v2433 = vadd.f32 0.0, %v2432
      %v2434 = vpop.f32.mrf.mxu0
      %v2435 = vpop.f32.mrf.mxu0
      %v2436 = vadd.f32 0.0, %v2435
      %v2437 = vpop.f32.mrf.mxu0
      %2438 = vmatprep.mubr.bf16.mxu0 0
      %2439 = vmatmul.mubr.bf16.gmra.mxu0 %v2265
      %v2440 = vpop.f32.mrf.mxu0
      %v2441 = vadd.f32 0.0, %v2440
      %v2442 = vpop.f32.mrf.mxu0
      %v2443 = vpop.f32.mrf.mxu0
      %v2444 = vadd.f32 0.0, %v2443
      %v2445 = vpop.f32.mrf.mxu0
      %2446 = vdwg.mxu0
      %v2447 = vadd.f32 %v2133, %v2305
      %v2448 = vadd.f32 %v2134, %v2308
      %v2449 = vadd.f32 %v2135, %v2313
      %v2450 = vadd.f32 %v2136, %v2316
      %v2451 = vadd.f32 %v2137, %v2321
      %v2452 = vadd.f32 %v2138, %v2324
      %v2453 = vadd.f32 %v2139, %v2329
      %v2454 = vadd.f32 %v2140, %v2332
      %v2455 = vadd.f32 %v2141, %v2337
      %v2456 = vadd.f32 %v2142, %v2340
      %v2457 = vadd.f32 %v2143, %v2345
      %v2458 = vadd.f32 %v2144, %v2348
      %v2459 = vadd.f32 %v2145, %v2353
      %v2460 = vadd.f32 %v2146, %v2356
      %v2461 = vadd.f32 %v2147, %v2361
      %v2462 = vadd.f32 %v2148, %v2364
      %v2463 = vadd.f32 %v2149, %v2369
      %v2464 = vadd.f32 %v2150, %v2372
      %v2465 = vadd.f32 %v2151, %v2377
      %v2466 = vadd.f32 %v2152, %v2380
      %v2467 = vadd.f32 %v2153, %v2385
      %v2468 = vadd.f32 %v2154, %v2388
      %v2469 = vadd.f32 %v2155, %v2393
      %v2470 = vadd.f32 %v2156, %v2396
      %v2471 = vadd.f32 %v2157, %v2401
      %v2472 = vadd.f32 %v2158, %v2404
      %v2473 = vadd.f32 %v2159, %v2409
      %v2474 = vadd.f32 %v2160, %v2412
      %v2475 = vadd.f32 %v2161, %v2417
      %v2476 = vadd.f32 %v2162, %v2420
      %v2477 = vadd.f32 %v2163, %v2425
      %v2478 = vadd.f32 %v2164, %v2428
      %v2479 = vadd.f32 %v2165, %v2433
      %v2480 = vadd.f32 %v2166, %v2436
      %v2481 = vadd.f32 %v2167, %v2441
      %v2482 = vadd.f32 %v2168, %v2444
      %v2483 = vld [vmem:[%s224 + $0x10] sm:$0xc]
      %v2484 = vld [vmem:[%s224 + $0x14] sm:$0xf]
      %v2485 = vld [vmem:[%s224 + $0x18] sm:$0xf]
      %v2486 = vld [vmem:[%s224 + $0x1c] sm:$0xf]
      %v2487 = vld [vmem:[%s224 + $0x20] sm:$0xf]
      %v2488 = vld [vmem:[%s224 + $0x24] sm:$0xf]
      %v2489 = vld [vmem:[%s224 + $0x28] sm:$0xf]
      %v2490 = vld [vmem:[%s224 + $0x2c] sm:$0xf]
      %v2491 = vld [vmem:[%s224 + $0x30] sm:$0xf]
      %v2492 = vld [vmem:[%s224 + $0x34] sm:$0xf]
      %v2493 = vld [vmem:[%s224 + $0x38] sm:$0xf]
      %v2494 = vld [vmem:[%s224 + $0x3c] sm:$0xf]
      %v2495 = vld [vmem:[%s224 + $0x40] sm:$0xf]
      %v2496 = vld [vmem:[%s224 + $0x44] sm:$0xf]
      %v2497 = vld [vmem:[%s224 + $0x48] sm:$0xf]
      %v2498 = vld [vmem:[%s224 + $0x4c] sm:$0xf]
      %v2499 = vld [vmem:[%s224 + $0x50] sm:$0xf]
      %v2500 = vld [vmem:[%s224 + $0x54] sm:$0xf]
      %v2501 = vld [vmem:[%s224 + $0x58] sm:$0xf]
      %v2502 = vld [vmem:[%s224 + $0x5c] sm:$0xf]
      %v2503 = vld [vmem:[%s224 + $0x60] sm:$0xf]
      %v2504 = vld [vmem:[%s224 + $0x64] sm:$0xf]
      %v2505 = vld [vmem:[%s224 + $0x68] sm:$0xf]
      %v2506 = vld [vmem:[%s224 + $0x6c] sm:$0xf]
      %v2507 = vld [vmem:[%s224 + $0x70] sm:$0xf]
      %v2508 = vld [vmem:[%s224 + $0x74] sm:$0xf]
      %v2509 = vld [vmem:[%s224 + $0x78] sm:$0xf]
      %v2510 = vld [vmem:[%s224 + $0x7c] sm:$0xf]
      %v2511 = vld [vmem:[%s224 + $0x80] sm:$0xf]
      %v2512 = vld [vmem:[%s224 + $0x84] sm:$0xf]
      %v2513 = vld [vmem:[%s224 + $0x88] sm:$0xf]
      %v2514 = vld [vmem:[%s224 + $0x8c] sm:$0xf]
      %v2515 = vld [vmem:[%s224 + $0x90] sm:$0xf]
      %v2516 = vld [vmem:[%s224 + $0x94] sm:$0xf]
      %v2517 = vld [vmem:[%s224 + $0x98] sm:$0xf]
      %v2518 = vld [vmem:[%s224 + $0x9c] sm:$0xf]
      %v2519 = vld [vmem:[%s224 + $0xa0] sm:$0x3]
      %s2520 = scalar_lea.vmem %s1, 12
      %v2521 = vld [vmem:[%s2520] sm:$0x3]
      %v2559 = vunpack.c.l.b16 %v2483
      %v2560 = vunpack.c.l.b16 %v2484
      %v2561 = vunpack.c.l.b16 %v2485
      %v2562 = vunpack.c.l.b16 %v2486
      %v2563 = vunpack.c.l.b16 %v2487
      %v2564 = vunpack.c.l.b16 %v2488
      %v2565 = vunpack.c.l.b16 %v2489
      %v2566 = vunpack.c.l.b16 %v2490
      %v2567 = vunpack.c.l.b16 %v2491
      %v2568 = vunpack.c.l.b16 %v2492
      %v2569 = vunpack.c.l.b16 %v2493
      %v2570 = vunpack.c.l.b16 %v2494
      %v2571 = vunpack.c.l.b16 %v2495
      %v2572 = vunpack.c.l.b16 %v2496
      %v2573 = vunpack.c.l.b16 %v2497
      %v2574 = vunpack.c.l.b16 %v2498
      %v2575 = vunpack.c.l.b16 %v2499
      %v2576 = vunpack.c.l.b16 %v2500
      %v2577 = vunpack.c.l.b16 %v2501
      %v2578 = vunpack.c.l.b16 %v2502
      %v2579 = vunpack.c.l.b16 %v2503
      %v2580 = vunpack.c.l.b16 %v2504
      %v2581 = vunpack.c.l.b16 %v2505
      %v2582 = vunpack.c.l.b16 %v2506
      %v2583 = vunpack.c.l.b16 %v2507
      %v2584 = vunpack.c.l.b16 %v2508
      %v2585 = vunpack.c.l.b16 %v2509
      %v2586 = vunpack.c.l.b16 %v2510
      %v2587 = vunpack.c.l.b16 %v2511
      %v2588 = vunpack.c.l.b16 %v2512
      %v2589 = vunpack.c.l.b16 %v2513
      %v2590 = vunpack.c.l.b16 %v2514
      %v2591 = vunpack.c.l.b16 %v2515
      %v2592 = vunpack.c.l.b16 %v2516
      %v2593 = vunpack.c.l.b16 %v2517
      %v2594 = vunpack.c.l.b16 %v2518
      %v2595 = vunpack.c.l.b16 %v2519
      %v2596 = vpack.c.b16 %v2560, %v2559
      %v2597 = vpack.c.b16 %v2562, %v2561
      %v2598 = vpack.c.b16 %v2564, %v2563
      %v2599 = vpack.c.b16 %v2566, %v2565
      %v2600 = vpack.c.b16 %v2568, %v2567
      %v2601 = vpack.c.b16 %v2570, %v2569
      %v2602 = vpack.c.b16 %v2572, %v2571
      %v2603 = vpack.c.b16 %v2574, %v2573
      %v2604 = vpack.c.b16 %v2576, %v2575
      %v2605 = vpack.c.b16 %v2578, %v2577
      %v2606 = vpack.c.b16 %v2580, %v2579
      %v2607 = vpack.c.b16 %v2582, %v2581
      %v2608 = vpack.c.b16 %v2584, %v2583
      %v2609 = vpack.c.b16 %v2586, %v2585
      %v2610 = vpack.c.b16 %v2588, %v2587
      %v2611 = vpack.c.b16 %v2590, %v2589
      %v2612 = vpack.c.b16 %v2592, %v2591
      %v2613 = vpack.c.b16 %v2594, %v2593
      %v2614 = vpack.c.b16 %v2595, %v2595
      %v2615 = vrot.slane %v2596, 2
      %v2616 = vrot.slane %v2597, 2
      %v2617 = vsel %vm2175, %v2615, %v2616
      %v2618 = vrot.slane %v2598, 2
      %v2619 = vsel %vm2175, %v2616, %v2618
      %v2620 = vrot.slane %v2599, 2
      %v2621 = vsel %vm2175, %v2618, %v2620
      %v2622 = vrot.slane %v2600, 2
      %v2623 = vsel %vm2175, %v2620, %v2622
      %v2624 = vrot.slane %v2601, 2
      %v2625 = vsel %vm2175, %v2622, %v2624
      %v2626 = vrot.slane %v2602, 2
      %v2627 = vsel %vm2175, %v2624, %v2626
      %v2628 = vrot.slane %v2603, 2
      %v2629 = vsel %vm2175, %v2626, %v2628
      %v2630 = vrot.slane %v2604, 2
      %v2631 = vsel %vm2175, %v2628, %v2630
      %v2632 = vrot.slane %v2605, 2
      %v2633 = vsel %vm2175, %v2630, %v2632
      %v2634 = vrot.slane %v2606, 2
      %v2635 = vsel %vm2175, %v2632, %v2634
      %v2636 = vrot.slane %v2607, 2
      %v2637 = vsel %vm2175, %v2634, %v2636
      %v2638 = vrot.slane %v2608, 2
      %v2639 = vsel %vm2175, %v2636, %v2638
      %v2640 = vrot.slane %v2609, 2
      %v2641 = vsel %vm2175, %v2638, %v2640
      %v2642 = vrot.slane %v2610, 2
      %v2643 = vsel %vm2175, %v2640, %v2642
      %v2644 = vrot.slane %v2611, 2
      %v2645 = vsel %vm2175, %v2642, %v2644
      %v2646 = vrot.slane %v2612, 2
      %v2647 = vsel %vm2175, %v2644, %v2646
      %v2648 = vrot.slane %v2613, 2
      %v2649 = vsel %vm2175, %v2646, %v2648
      %v2650 = vrot.slane %v2614, 2
      %v2651 = vsel %vm2175, %v2648, %v2650
      %v2653 = vsel %vm517, %v2617, 0
      %v2656 = vsel %vm517, %v2619, 0
      %v2659 = vsel %vm517, %v2621, 0
      %v2662 = vsel %vm517, %v2623, 0
      %v2665 = vsel %vm517, %v2625, 0
      %v2668 = vsel %vm517, %v2627, 0
      %v2671 = vsel %vm517, %v2629, 0
      %v2674 = vsel %vm517, %v2631, 0
      %v2677 = vsel %vm517, %v2633, 0
      %v2680 = vsel %vm517, %v2635, 0
      %v2683 = vsel %vm517, %v2637, 0
      %v2686 = vsel %vm517, %v2639, 0
      %v2689 = vsel %vm517, %v2641, 0
      %v2692 = vsel %vm517, %v2643, 0
      %v2695 = vsel %vm517, %v2645, 0
      %v2698 = vsel %vm517, %v2647, 0
      %v2701 = vsel %vm517, %v2649, 0
      %v2704 = vsel %vm517, %v2651, 0
      %v2707 = vsel %vm572, %v2521, 0
      %2709 = vmatprep.subr.bf16.mxu0 0
      %2710 = vmatpush1.bf16.msra.mxu0 0
      %2711 = vmatprep.subr.bf16.mxu0 0
      %2712 = vmatpush1.bf16.msra.mxu0 0
      %2713 = vmatprep.subr.bf16.mxu0 0
      %2714 = vmatpush1.bf16.msra.mxu0 0
      %2715 = vmatprep.subr.bf16.mxu0 0
      %2716 = vmatpush1.bf16.msra.mxu0 0
      %2717 = vmatprep.subr.bf16.mxu0 0
      %2718 = vmatpush1.bf16.msra.mxu0 0
      %2719 = vmatprep.subr.bf16.mxu0 0
      %2720 = vmatpush1.bf16.msra.mxu0 0
      %2721 = vmatprep.subr.bf16.mxu0 0
      %2722 = vmatpush1.bf16.msra.mxu0 0
      %2723 = vmatprep.subr.bf16.mxu0 0
      %2724 = vmatpush1.bf16.msra.mxu0 %v2707
      %2725 = vmatprep.subr.bf16.mxu0 0
      %2726 = vmatpush2.bf16.msra.mxu0 0
      %2727 = vmatprep.subr.bf16.mxu0 0
      %2728 = vmatpush2.bf16.msra.mxu0 0
      %2729 = vmatprep.subr.bf16.mxu0 0
      %2730 = vmatpush2.bf16.msra.mxu0 0
      %2731 = vmatprep.subr.bf16.mxu0 0
      %2732 = vmatpush2.bf16.msra.mxu0 0
      %2733 = vmatprep.subr.bf16.mxu0 0
      %2734 = vmatpush2.bf16.msra.mxu0 0
      %2735 = vmatprep.subr.bf16.mxu0 0
      %2736 = vmatpush2.bf16.msra.mxu0 0
      %2737 = vmatprep.subr.bf16.mxu0 0
      %2738 = vmatpush2.bf16.msra.mxu0 0
      %2739 = vmatprep.subr.bf16.mxu0 0
      %2740 = vmatpush2.bf16.msra.mxu0 0
      %2741 = vmatprep.mubr.bf16.mxu0 0
      %2742 = vmatmul.mubr.bf16.gmra.mxu0 %v2653
      %v2743 = vpop.f32.mrf.mxu0
      %v2744 = vadd.f32 0.0, %v2743
      %v2745 = vpop.f32.mrf.mxu0
      %v2746 = vpop.f32.mrf.mxu0
      %v2747 = vadd.f32 0.0, %v2746
      %v2748 = vpop.f32.mrf.mxu0
      %2749 = vmatprep.mubr.bf16.mxu0 0
      %2750 = vmatmul.mubr.bf16.gmra.mxu0 %v2656
      %v2751 = vpop.f32.mrf.mxu0
      %v2752 = vadd.f32 0.0, %v2751
      %v2753 = vpop.f32.mrf.mxu0
      %v2754 = vpop.f32.mrf.mxu0
      %v2755 = vadd.f32 0.0, %v2754
      %v2756 = vpop.f32.mrf.mxu0
      %2757 = vmatprep.mubr.bf16.mxu0 0
      %2758 = vmatmul.mubr.bf16.gmra.mxu0 %v2659
      %v2759 = vpop.f32.mrf.mxu0
      %v2760 = vadd.f32 0.0, %v2759
      %v2761 = vpop.f32.mrf.mxu0
      %v2762 = vpop.f32.mrf.mxu0
      %v2763 = vadd.f32 0.0, %v2762
      %v2764 = vpop.f32.mrf.mxu0
      %2765 = vmatprep.mubr.bf16.mxu0 0
      %2766 = vmatmul.mubr.bf16.gmra.mxu0 %v2662
      %v2767 = vpop.f32.mrf.mxu0
      %v2768 = vadd.f32 0.0, %v2767
      %v2769 = vpop.f32.mrf.mxu0
      %v2770 = vpop.f32.mrf.mxu0
      %v2771 = vadd.f32 0.0, %v2770
      %v2772 = vpop.f32.mrf.mxu0
      %2773 = vmatprep.mubr.bf16.mxu0 0
      %2774 = vmatmul.mubr.bf16.gmra.mxu0 %v2665
      %v2775 = vpop.f32.mrf.mxu0
      %v2776 = vadd.f32 0.0, %v2775
      %v2777 = vpop.f32.mrf.mxu0
      %v2778 = vpop.f32.mrf.mxu0
      %v2779 = vadd.f32 0.0, %v2778
      %v2780 = vpop.f32.mrf.mxu0
      %2781 = vmatprep.mubr.bf16.mxu0 0
      %2782 = vmatmul.mubr.bf16.gmra.mxu0 %v2668
      %v2783 = vpop.f32.mrf.mxu0
      %v2784 = vadd.f32 0.0, %v2783
      %v2785 = vpop.f32.mrf.mxu0
      %v2786 = vpop.f32.mrf.mxu0
      %v2787 = vadd.f32 0.0, %v2786
      %v2788 = vpop.f32.mrf.mxu0
      %2789 = vmatprep.mubr.bf16.mxu0 0
      %2790 = vmatmul.mubr.bf16.gmra.mxu0 %v2671
      %v2791 = vpop.f32.mrf.mxu0
      %v2792 = vadd.f32 0.0, %v2791
      %v2793 = vpop.f32.mrf.mxu0
      %v2794 = vpop.f32.mrf.mxu0
      %v2795 = vadd.f32 0.0, %v2794
      %v2796 = vpop.f32.mrf.mxu0
      %2797 = vmatprep.mubr.bf16.mxu0 0
      %2798 = vmatmul.mubr.bf16.gmra.mxu0 %v2674
      %v2799 = vpop.f32.mrf.mxu0
      %v2800 = vadd.f32 0.0, %v2799
      %v2801 = vpop.f32.mrf.mxu0
      %v2802 = vpop.f32.mrf.mxu0
      %v2803 = vadd.f32 0.0, %v2802
      %v2804 = vpop.f32.mrf.mxu0
      %2805 = vmatprep.mubr.bf16.mxu0 0
      %2806 = vmatmul.mubr.bf16.gmra.mxu0 %v2677
      %v2807 = vpop.f32.mrf.mxu0
      %v2808 = vadd.f32 0.0, %v2807
      %v2809 = vpop.f32.mrf.mxu0
      %v2810 = vpop.f32.mrf.mxu0
      %v2811 = vadd.f32 0.0, %v2810
      %v2812 = vpop.f32.mrf.mxu0
      %2813 = vmatprep.mubr.bf16.mxu0 0
      %2814 = vmatmul.mubr.bf16.gmra.mxu0 %v2680
      %v2815 = vpop.f32.mrf.mxu0
      %v2816 = vadd.f32 0.0, %v2815
      %v2817 = vpop.f32.mrf.mxu0
      %v2818 = vpop.f32.mrf.mxu0
      %v2819 = vadd.f32 0.0, %v2818
      %v2820 = vpop.f32.mrf.mxu0
      %2821 = vmatprep.mubr.bf16.mxu0 0
      %2822 = vmatmul.mubr.bf16.gmra.mxu0 %v2683
      %v2823 = vpop.f32.mrf.mxu0
      %v2824 = vadd.f32 0.0, %v2823
      %v2825 = vpop.f32.mrf.mxu0
      %v2826 = vpop.f32.mrf.mxu0
      %v2827 = vadd.f32 0.0, %v2826
      %v2828 = vpop.f32.mrf.mxu0
      %2829 = vmatprep.mubr.bf16.mxu0 0
      %2830 = vmatmul.mubr.bf16.gmra.mxu0 %v2686
      %v2831 = vpop.f32.mrf.mxu0
      %v2832 = vadd.f32 0.0, %v2831
      %v2833 = vpop.f32.mrf.mxu0
      %v2834 = vpop.f32.mrf.mxu0
      %v2835 = vadd.f32 0.0, %v2834
      %v2836 = vpop.f32.mrf.mxu0
      %2837 = vmatprep.mubr.bf16.mxu0 0
      %2838 = vmatmul.mubr.bf16.gmra.mxu0 %v2689
      %v2839 = vpop.f32.mrf.mxu0
      %v2840 = vadd.f32 0.0, %v2839
      %v2841 = vpop.f32.mrf.mxu0
      %v2842 = vpop.f32.mrf.mxu0
      %v2843 = vadd.f32 0.0, %v2842
      %v2844 = vpop.f32.mrf.mxu0
      %2845 = vmatprep.mubr.bf16.mxu0 0
      %2846 = vmatmul.mubr.bf16.gmra.mxu0 %v2692
      %v2847 = vpop.f32.mrf.mxu0
      %v2848 = vadd.f32 0.0, %v2847
      %v2849 = vpop.f32.mrf.mxu0
      %v2850 = vpop.f32.mrf.mxu0
      %v2851 = vadd.f32 0.0, %v2850
      %v2852 = vpop.f32.mrf.mxu0
      %2853 = vmatprep.mubr.bf16.mxu0 0
      %2854 = vmatmul.mubr.bf16.gmra.mxu0 %v2695
      %v2855 = vpop.f32.mrf.mxu0
      %v2856 = vadd.f32 0.0, %v2855
      %v2857 = vpop.f32.mrf.mxu0
      %v2858 = vpop.f32.mrf.mxu0
      %v2859 = vadd.f32 0.0, %v2858
      %v2860 = vpop.f32.mrf.mxu0
      %2861 = vmatprep.mubr.bf16.mxu0 0
      %2862 = vmatmul.mubr.bf16.gmra.mxu0 %v2698
      %v2863 = vpop.f32.mrf.mxu0
      %v2864 = vadd.f32 0.0, %v2863
      %v2865 = vpop.f32.mrf.mxu0
      %v2866 = vpop.f32.mrf.mxu0
      %v2867 = vadd.f32 0.0, %v2866
      %v2868 = vpop.f32.mrf.mxu0
      %2869 = vmatprep.mubr.bf16.mxu0 0
      %2870 = vmatmul.mubr.bf16.gmra.mxu0 %v2701
      %v2871 = vpop.f32.mrf.mxu0
      %v2872 = vadd.f32 0.0, %v2871
      %v2873 = vpop.f32.mrf.mxu0
      %v2874 = vpop.f32.mrf.mxu0
      %v2875 = vadd.f32 0.0, %v2874
      %v2876 = vpop.f32.mrf.mxu0
      %2877 = vmatprep.mubr.bf16.mxu0 0
      %2878 = vmatmul.mubr.bf16.gmra.mxu0 %v2704
      %v2879 = vpop.f32.mrf.mxu0
      %v2880 = vadd.f32 0.0, %v2879
      %v2881 = vpop.f32.mrf.mxu0
      %v2882 = vpop.f32.mrf.mxu0
      %v2883 = vadd.f32 0.0, %v2882
      %v2884 = vpop.f32.mrf.mxu0
      %2885 = vdwg.mxu0
      %v2886 = vadd.f32 %v2447, %v2744
      %v2887 = vadd.f32 %v2448, %v2747
      %v2888 = vadd.f32 %v2449, %v2752
      %v2889 = vadd.f32 %v2450, %v2755
      %v2890 = vadd.f32 %v2451, %v2760
      %v2891 = vadd.f32 %v2452, %v2763
      %v2892 = vadd.f32 %v2453, %v2768
      %v2893 = vadd.f32 %v2454, %v2771
      %v2894 = vadd.f32 %v2455, %v2776
      %v2895 = vadd.f32 %v2456, %v2779
      %v2896 = vadd.f32 %v2457, %v2784
      %v2897 = vadd.f32 %v2458, %v2787
      %v2898 = vadd.f32 %v2459, %v2792
      %v2899 = vadd.f32 %v2460, %v2795
      %v2900 = vadd.f32 %v2461, %v2800
      %v2901 = vadd.f32 %v2462, %v2803
      %v2902 = vadd.f32 %v2463, %v2808
      %v2903 = vadd.f32 %v2464, %v2811
      %v2904 = vadd.f32 %v2465, %v2816
      %v2905 = vadd.f32 %v2466, %v2819
      %v2906 = vadd.f32 %v2467, %v2824
      %v2907 = vadd.f32 %v2468, %v2827
      %v2908 = vadd.f32 %v2469, %v2832
      %v2909 = vadd.f32 %v2470, %v2835
      %v2910 = vadd.f32 %v2471, %v2840
      %v2911 = vadd.f32 %v2472, %v2843
      %v2912 = vadd.f32 %v2473, %v2848
      %v2913 = vadd.f32 %v2474, %v2851
      %v2914 = vadd.f32 %v2475, %v2856
      %v2915 = vadd.f32 %v2476, %v2859
      %v2916 = vadd.f32 %v2477, %v2864
      %v2917 = vadd.f32 %v2478, %v2867
      %v2918 = vadd.f32 %v2479, %v2872
      %v2919 = vadd.f32 %v2480, %v2875
      %v2920 = vadd.f32 %v2481, %v2880
      %v2921 = vadd.f32 %v2482, %v2883
      %v2922 = vld [vmem:[%s224 + $0xa0] sm:$0x7]
      %s2923 = scalar_lea.vmem %s1, 14
      %v2924 = vld [vmem:[%s2923] sm:$0x3]
      %v2926 = vunpack.c.l.b16 %v2922
      %v2927 = vpack.c.b16 %v2926, %v2926
      %vm2928 = vsmask.f32 5376
      %v2930 = vshrl.u32 %v2596, 16
      %v2932 = vrot.slane %v2930, 2
      %v2933 = vshll.u32 %v2596, 16
      %v2935 = vrot.slane %v2933, 3
      %v2936 = vor.u32 %v2932, %v2935
      %v2938 = vshrl.u32 %v2597, 16
      %v2940 = vrot.slane %v2938, 2
      %v2941 = vshll.u32 %v2597, 16
      %v2943 = vrot.slane %v2941, 3
      %v2944 = vor.u32 %v2940, %v2943
      %v2945 = vsel %vm2928, %v2936, %v2944
      %v2947 = vshrl.u32 %v2598, 16
      %v2949 = vrot.slane %v2947, 2
      %v2950 = vshll.u32 %v2598, 16
      %v2952 = vrot.slane %v2950, 3
      %v2953 = vor.u32 %v2949, %v2952
      %v2954 = vsel %vm2928, %v2944, %v2953
      %v2956 = vshrl.u32 %v2599, 16
      %v2958 = vrot.slane %v2956, 2
      %v2959 = vshll.u32 %v2599, 16
      %v2961 = vrot.slane %v2959, 3
      %v2962 = vor.u32 %v2958, %v2961
      %v2963 = vsel %vm2928, %v2953, %v2962
      %v2965 = vshrl.u32 %v2600, 16
      %v2967 = vrot.slane %v2965, 2
      %v2968 = vshll.u32 %v2600, 16
      %v2970 = vrot.slane %v2968, 3
      %v2971 = vor.u32 %v2967, %v2970
      %v2972 = vsel %vm2928, %v2962, %v2971
      %v2974 = vshrl.u32 %v2601, 16
      %v2976 = vrot.slane %v2974, 2
      %v2977 = vshll.u32 %v2601, 16
      %v2979 = vrot.slane %v2977, 3
      %v2980 = vor.u32 %v2976, %v2979
      %v2981 = vsel %vm2928, %v2971, %v2980
      %v2983 = vshrl.u32 %v2602, 16
      %v2985 = vrot.slane %v2983, 2
      %v2986 = vshll.u32 %v2602, 16
      %v2988 = vrot.slane %v2986, 3
      %v2989 = vor.u32 %v2985, %v2988
      %v2990 = vsel %vm2928, %v2980, %v2989
      %v2992 = vshrl.u32 %v2603, 16
      %v2994 = vrot.slane %v2992, 2
      %v2995 = vshll.u32 %v2603, 16
      %v2997 = vrot.slane %v2995, 3
      %v2998 = vor.u32 %v2994, %v2997
      %v2999 = vsel %vm2928, %v2989, %v2998
      %v3001 = vshrl.u32 %v2604, 16
      %v3003 = vrot.slane %v3001, 2
      %v3004 = vshll.u32 %v2604, 16
      %v3006 = vrot.slane %v3004, 3
      %v3007 = vor.u32 %v3003, %v3006
      %v3008 = vsel %vm2928, %v2998, %v3007
      %v3010 = vshrl.u32 %v2605, 16
      %v3012 = vrot.slane %v3010, 2
      %v3013 = vshll.u32 %v2605, 16
      %v3015 = vrot.slane %v3013, 3
      %v3016 = vor.u32 %v3012, %v3015
      %v3017 = vsel %vm2928, %v3007, %v3016
      %v3019 = vshrl.u32 %v2606, 16
      %v3021 = vrot.slane %v3019, 2
      %v3022 = vshll.u32 %v2606, 16
      %v3024 = vrot.slane %v3022, 3
      %v3025 = vor.u32 %v3021, %v3024
      %v3026 = vsel %vm2928, %v3016, %v3025
      %v3028 = vshrl.u32 %v2607, 16
      %v3030 = vrot.slane %v3028, 2
      %v3031 = vshll.u32 %v2607, 16
      %v3033 = vrot.slane %v3031, 3
      %v3034 = vor.u32 %v3030, %v3033
      %v3035 = vsel %vm2928, %v3025, %v3034
      %v3037 = vshrl.u32 %v2608, 16
      %v3039 = vrot.slane %v3037, 2
      %v3040 = vshll.u32 %v2608, 16
      %v3042 = vrot.slane %v3040, 3
      %v3043 = vor.u32 %v3039, %v3042
      %v3044 = vsel %vm2928, %v3034, %v3043
      %v3046 = vshrl.u32 %v2609, 16
      %v3048 = vrot.slane %v3046, 2
      %v3049 = vshll.u32 %v2609, 16
      %v3051 = vrot.slane %v3049, 3
      %v3052 = vor.u32 %v3048, %v3051
      %v3053 = vsel %vm2928, %v3043, %v3052
      %v3055 = vshrl.u32 %v2610, 16
      %v3057 = vrot.slane %v3055, 2
      %v3058 = vshll.u32 %v2610, 16
      %v3060 = vrot.slane %v3058, 3
      %v3061 = vor.u32 %v3057, %v3060
      %v3062 = vsel %vm2928, %v3052, %v3061
      %v3064 = vshrl.u32 %v2611, 16
      %v3066 = vrot.slane %v3064, 2
      %v3067 = vshll.u32 %v2611, 16
      %v3069 = vrot.slane %v3067, 3
      %v3070 = vor.u32 %v3066, %v3069
      %v3071 = vsel %vm2928, %v3061, %v3070
      %v3073 = vshrl.u32 %v2612, 16
      %v3075 = vrot.slane %v3073, 2
      %v3076 = vshll.u32 %v2612, 16
      %v3078 = vrot.slane %v3076, 3
      %v3079 = vor.u32 %v3075, %v3078
      %v3080 = vsel %vm2928, %v3070, %v3079
      %v3082 = vshrl.u32 %v2613, 16
      %v3084 = vrot.slane %v3082, 2
      %v3085 = vshll.u32 %v2613, 16
      %v3087 = vrot.slane %v3085, 3
      %v3088 = vor.u32 %v3084, %v3087
      %v3089 = vsel %vm2928, %v3079, %v3088
      %v3091 = vshrl.u32 %v2927, 16
      %v3093 = vrot.slane %v3091, 2
      %v3094 = vshll.u32 %v2927, 16
      %v3096 = vrot.slane %v3094, 3
      %v3097 = vor.u32 %v3093, %v3096
      %v3098 = vsel %vm2928, %v3088, %v3097
      %v3100 = vsel %vm517, %v2945, 0
      %v3103 = vsel %vm517, %v2954, 0
      %v3106 = vsel %vm517, %v2963, 0
      %v3109 = vsel %vm517, %v2972, 0
      %v3112 = vsel %vm517, %v2981, 0
      %v3115 = vsel %vm517, %v2990, 0
      %v3118 = vsel %vm517, %v2999, 0
      %v3121 = vsel %vm517, %v3008, 0
      %v3124 = vsel %vm517, %v3017, 0
      %v3127 = vsel %vm517, %v3026, 0
      %v3130 = vsel %vm517, %v3035, 0
      %v3133 = vsel %vm517, %v3044, 0
      %v3136 = vsel %vm517, %v3053, 0
      %v3139 = vsel %vm517, %v3062, 0
      %v3142 = vsel %vm517, %v3071, 0
      %v3145 = vsel %vm517, %v3080, 0
      %v3148 = vsel %vm517, %v3089, 0
      %v3151 = vsel %vm517, %v3098, 0
      %v3154 = vsel %vm572, %v2924, 0
      %3156 = vmatprep.subr.bf16.mxu0 0
      %3157 = vmatpush1.bf16.msra.mxu0 0
      %3158 = vmatprep.subr.bf16.mxu0 0
      %3159 = vmatpush1.bf16.msra.mxu0 0
      %3160 = vmatprep.subr.bf16.mxu0 0
      %3161 = vmatpush1.bf16.msra.mxu0 0
      %3162 = vmatprep.subr.bf16.mxu0 0
      %3163 = vmatpush1.bf16.msra.mxu0 0
      %3164 = vmatprep.subr.bf16.mxu0 0
      %3165 = vmatpush1.bf16.msra.mxu0 0
      %3166 = vmatprep.subr.bf16.mxu0 0
      %3167 = vmatpush1.bf16.msra.mxu0 0
      %3168 = vmatprep.subr.bf16.mxu0 0
      %3169 = vmatpush1.bf16.msra.mxu0 0
      %3170 = vmatprep.subr.bf16.mxu0 0
      %3171 = vmatpush1.bf16.msra.mxu0 %v3154
      %3172 = vmatprep.subr.bf16.mxu0 0
      %3173 = vmatpush2.bf16.msra.mxu0 0
      %3174 = vmatprep.subr.bf16.mxu0 0
      %3175 = vmatpush2.bf16.msra.mxu0 0
      %3176 = vmatprep.subr.bf16.mxu0 0
      %3177 = vmatpush2.bf16.msra.mxu0 0
      %3178 = vmatprep.subr.bf16.mxu0 0
      %3179 = vmatpush2.bf16.msra.mxu0 0
      %3180 = vmatprep.subr.bf16.mxu0 0
      %3181 = vmatpush2.bf16.msra.mxu0 0
      %3182 = vmatprep.subr.bf16.mxu0 0
      %3183 = vmatpush2.bf16.msra.mxu0 0
      %3184 = vmatprep.subr.bf16.mxu0 0
      %3185 = vmatpush2.bf16.msra.mxu0 0
      %3186 = vmatprep.subr.bf16.mxu0 0
      %3187 = vmatpush2.bf16.msra.mxu0 0
      %3188 = vmatprep.mubr.bf16.mxu0 0
      %3189 = vmatmul.mubr.bf16.gmra.mxu0 %v3100
      %v3190 = vpop.f32.mrf.mxu0
      %v3191 = vadd.f32 0.0, %v3190
      %v3192 = vpop.f32.mrf.mxu0
      %v3193 = vpop.f32.mrf.mxu0
      %v3194 = vadd.f32 0.0, %v3193
      %v3195 = vpop.f32.mrf.mxu0
      %3196 = vmatprep.mubr.bf16.mxu0 0
      %3197 = vmatmul.mubr.bf16.gmra.mxu0 %v3103
      %v3198 = vpop.f32.mrf.mxu0
      %v3199 = vadd.f32 0.0, %v3198
      %v3200 = vpop.f32.mrf.mxu0
      %v3201 = vpop.f32.mrf.mxu0
      %v3202 = vadd.f32 0.0, %v3201
      %v3203 = vpop.f32.mrf.mxu0
      %3204 = vmatprep.mubr.bf16.mxu0 0
      %3205 = vmatmul.mubr.bf16.gmra.mxu0 %v3106
      %v3206 = vpop.f32.mrf.mxu0
      %v3207 = vadd.f32 0.0, %v3206
      %v3208 = vpop.f32.mrf.mxu0
      %v3209 = vpop.f32.mrf.mxu0
      %v3210 = vadd.f32 0.0, %v3209
      %v3211 = vpop.f32.mrf.mxu0
      %3212 = vmatprep.mubr.bf16.mxu0 0
      %3213 = vmatmul.mubr.bf16.gmra.mxu0 %v3109
      %v3214 = vpop.f32.mrf.mxu0
      %v3215 = vadd.f32 0.0, %v3214
      %v3216 = vpop.f32.mrf.mxu0
      %v3217 = vpop.f32.mrf.mxu0
      %v3218 = vadd.f32 0.0, %v3217
      %v3219 = vpop.f32.mrf.mxu0
      %3220 = vmatprep.mubr.bf16.mxu0 0
      %3221 = vmatmul.mubr.bf16.gmra.mxu0 %v3112
      %v3222 = vpop.f32.mrf.mxu0
      %v3223 = vadd.f32 0.0, %v3222
      %v3224 = vpop.f32.mrf.mxu0
      %v3225 = vpop.f32.mrf.mxu0
      %v3226 = vadd.f32 0.0, %v3225
      %v3227 = vpop.f32.mrf.mxu0
      %3228 = vmatprep.mubr.bf16.mxu0 0
      %3229 = vmatmul.mubr.bf16.gmra.mxu0 %v3115
      %v3230 = vpop.f32.mrf.mxu0
      %v3231 = vadd.f32 0.0, %v3230
      %v3232 = vpop.f32.mrf.mxu0
      %v3233 = vpop.f32.mrf.mxu0
      %v3234 = vadd.f32 0.0, %v3233
      %v3235 = vpop.f32.mrf.mxu0
      %3236 = vmatprep.mubr.bf16.mxu0 0
      %3237 = vmatmul.mubr.bf16.gmra.mxu0 %v3118
      %v3238 = vpop.f32.mrf.mxu0
      %v3239 = vadd.f32 0.0, %v3238
      %v3240 = vpop.f32.mrf.mxu0
      %v3241 = vpop.f32.mrf.mxu0
      %v3242 = vadd.f32 0.0, %v3241
      %v3243 = vpop.f32.mrf.mxu0
      %3244 = vmatprep.mubr.bf16.mxu0 0
      %3245 = vmatmul.mubr.bf16.gmra.mxu0 %v3121
      %v3246 = vpop.f32.mrf.mxu0
      %v3247 = vadd.f32 0.0, %v3246
      %v3248 = vpop.f32.mrf.mxu0
      %v3249 = vpop.f32.mrf.mxu0
      %v3250 = vadd.f32 0.0, %v3249
      %v3251 = vpop.f32.mrf.mxu0
      %3252 = vmatprep.mubr.bf16.mxu0 0
      %3253 = vmatmul.mubr.bf16.gmra.mxu0 %v3124
      %v3254 = vpop.f32.mrf.mxu0
      %v3255 = vadd.f32 0.0, %v3254
      %v3256 = vpop.f32.mrf.mxu0
      %v3257 = vpop.f32.mrf.mxu0
      %v3258 = vadd.f32 0.0, %v3257
      %v3259 = vpop.f32.mrf.mxu0
      %3260 = vmatprep.mubr.bf16.mxu0 0
      %3261 = vmatmul.mubr.bf16.gmra.mxu0 %v3127
      %v3262 = vpop.f32.mrf.mxu0
      %v3263 = vadd.f32 0.0, %v3262
      %v3264 = vpop.f32.mrf.mxu0
      %v3265 = vpop.f32.mrf.mxu0
      %v3266 = vadd.f32 0.0, %v3265
      %v3267 = vpop.f32.mrf.mxu0
      %3268 = vmatprep.mubr.bf16.mxu0 0
      %3269 = vmatmul.mubr.bf16.gmra.mxu0 %v3130
      %v3270 = vpop.f32.mrf.mxu0
      %v3271 = vadd.f32 0.0, %v3270
      %v3272 = vpop.f32.mrf.mxu0
      %v3273 = vpop.f32.mrf.mxu0
      %v3274 = vadd.f32 0.0, %v3273
      %v3275 = vpop.f32.mrf.mxu0
      %3276 = vmatprep.mubr.bf16.mxu0 0
      %3277 = vmatmul.mubr.bf16.gmra.mxu0 %v3133
      %v3278 = vpop.f32.mrf.mxu0
      %v3279 = vadd.f32 0.0, %v3278
      %v3280 = vpop.f32.mrf.mxu0
      %v3281 = vpop.f32.mrf.mxu0
      %v3282 = vadd.f32 0.0, %v3281
      %v3283 = vpop.f32.mrf.mxu0
      %3284 = vmatprep.mubr.bf16.mxu0 0
      %3285 = vmatmul.mubr.bf16.gmra.mxu0 %v3136
      %v3286 = vpop.f32.mrf.mxu0
      %v3287 = vadd.f32 0.0, %v3286
      %v3288 = vpop.f32.mrf.mxu0
      %v3289 = vpop.f32.mrf.mxu0
      %v3290 = vadd.f32 0.0, %v3289
      %v3291 = vpop.f32.mrf.mxu0
      %3292 = vmatprep.mubr.bf16.mxu0 0
      %3293 = vmatmul.mubr.bf16.gmra.mxu0 %v3139
      %v3294 = vpop.f32.mrf.mxu0
      %v3295 = vadd.f32 0.0, %v3294
      %v3296 = vpop.f32.mrf.mxu0
      %v3297 = vpop.f32.mrf.mxu0
      %v3298 = vadd.f32 0.0, %v3297
      %v3299 = vpop.f32.mrf.mxu0
      %3300 = vmatprep.mubr.bf16.mxu0 0
      %3301 = vmatmul.mubr.bf16.gmra.mxu0 %v3142
      %v3302 = vpop.f32.mrf.mxu0
      %v3303 = vadd.f32 0.0, %v3302
      %v3304 = vpop.f32.mrf.mxu0
      %v3305 = vpop.f32.mrf.mxu0
      %v3306 = vadd.f32 0.0, %v3305
      %v3307 = vpop.f32.mrf.mxu0
      %3308 = vmatprep.mubr.bf16.mxu0 0
      %3309 = vmatmul.mubr.bf16.gmra.mxu0 %v3145
      %v3310 = vpop.f32.mrf.mxu0
      %v3311 = vadd.f32 0.0, %v3310
      %v3312 = vpop.f32.mrf.mxu0
      %v3313 = vpop.f32.mrf.mxu0
      %v3314 = vadd.f32 0.0, %v3313
      %v3315 = vpop.f32.mrf.mxu0
      %3316 = vmatprep.mubr.bf16.mxu0 0
      %3317 = vmatmul.mubr.bf16.gmra.mxu0 %v3148
      %v3318 = vpop.f32.mrf.mxu0
      %v3319 = vadd.f32 0.0, %v3318
      %v3320 = vpop.f32.mrf.mxu0
      %v3321 = vpop.f32.mrf.mxu0
      %v3322 = vadd.f32 0.0, %v3321
      %v3323 = vpop.f32.mrf.mxu0
      %3324 = vmatprep.mubr.bf16.mxu0 0
      %3325 = vmatmul.mubr.bf16.gmra.mxu0 %v3151
      %v3326 = vpop.f32.mrf.mxu0
      %v3327 = vadd.f32 0.0, %v3326
      %v3328 = vpop.f32.mrf.mxu0
      %v3329 = vpop.f32.mrf.mxu0
      %v3330 = vadd.f32 0.0, %v3329
      %v3331 = vpop.f32.mrf.mxu0
      %3332 = vdwg.mxu0
      %v3333 = vadd.f32 %v2886, %v3191
      %v3334 = vadd.f32 %v2887, %v3194
      %v3335 = vadd.f32 %v2888, %v3199
      %v3336 = vadd.f32 %v2889, %v3202
      %v3337 = vadd.f32 %v2890, %v3207
      %v3338 = vadd.f32 %v2891, %v3210
      %v3339 = vadd.f32 %v2892, %v3215
      %v3340 = vadd.f32 %v2893, %v3218
      %v3341 = vadd.f32 %v2894, %v3223
      %v3342 = vadd.f32 %v2895, %v3226
      %v3343 = vadd.f32 %v2896, %v3231
      %v3344 = vadd.f32 %v2897, %v3234
      %v3345 = vadd.f32 %v2898, %v3239
      %v3346 = vadd.f32 %v2899, %v3242
      %v3347 = vadd.f32 %v2900, %v3247
      %v3348 = vadd.f32 %v2901, %v3250
      %v3349 = vadd.f32 %v2902, %v3255
      %v3350 = vadd.f32 %v2903, %v3258
      %v3351 = vadd.f32 %v2904, %v3263
      %v3352 = vadd.f32 %v2905, %v3266
      %v3353 = vadd.f32 %v2906, %v3271
      %v3354 = vadd.f32 %v2907, %v3274
      %v3355 = vadd.f32 %v2908, %v3279
      %v3356 = vadd.f32 %v2909, %v3282
      %v3357 = vadd.f32 %v2910, %v3287
      %v3358 = vadd.f32 %v2911, %v3290
      %v3359 = vadd.f32 %v2912, %v3295
      %v3360 = vadd.f32 %v2913, %v3298
      %v3361 = vadd.f32 %v2914, %v3303
      %v3362 = vadd.f32 %v2915, %v3306
      %v3363 = vadd.f32 %v2916, %v3311
      %v3364 = vadd.f32 %v2917, %v3314
      %v3365 = vadd.f32 %v2918, %v3319
      %v3366 = vadd.f32 %v2919, %v3322
      %v3367 = vadd.f32 %v2920, %v3327
      %v3368 = vadd.f32 %v2921, %v3330
      %v3369 = vld [vmem:[%s224 + $0x10] sm:$0x8]
      %s3370 = scalar_lea.vmem %s1, 16
      %v3371 = vld [vmem:[%s3370] sm:$0x3]
      %v3373 = vunpack.c.l.b16 %v3369
      %v3374 = vpack.c.b16 %v2560, %v3373
      %vm3375 = vcmask 1044480
      %v3376 = vrot.slane %v3374, 3
      %v3377 = vrot.slane %v2597, 3
      %v3378 = vsel %vm3375, %v3376, %v3377
      %v3379 = vrot.slane %v2598, 3
      %v3380 = vsel %vm3375, %v3377, %v3379
      %v3381 = vrot.slane %v2599, 3
      %v3382 = vsel %vm3375, %v3379, %v3381
      %v3383 = vrot.slane %v2600, 3
      %v3384 = vsel %vm3375, %v3381, %v3383
      %v3385 = vrot.slane %v2601, 3
      %v3386 = vsel %vm3375, %v3383, %v3385
      %v3387 = vrot.slane %v2602, 3
      %v3388 = vsel %vm3375, %v3385, %v3387
      %v3389 = vrot.slane %v2603, 3
      %v3390 = vsel %vm3375, %v3387, %v3389
      %v3391 = vrot.slane %v2604, 3
      %v3392 = vsel %vm3375, %v3389, %v3391
      %v3393 = vrot.slane %v2605, 3
      %v3394 = vsel %vm3375, %v3391, %v3393
      %v3395 = vrot.slane %v2606, 3
      %v3396 = vsel %vm3375, %v3393, %v3395
      %v3397 = vrot.slane %v2607, 3
      %v3398 = vsel %vm3375, %v3395, %v3397
      %v3399 = vrot.slane %v2608, 3
      %v3400 = vsel %vm3375, %v3397, %v3399
      %v3401 = vrot.slane %v2609, 3
      %v3402 = vsel %vm3375, %v3399, %v3401
      %v3403 = vrot.slane %v2610, 3
      %v3404 = vsel %vm3375, %v3401, %v3403
      %v3405 = vrot.slane %v2611, 3
      %v3406 = vsel %vm3375, %v3403, %v3405
      %v3407 = vrot.slane %v2612, 3
      %v3408 = vsel %vm3375, %v3405, %v3407
      %v3409 = vrot.slane %v2613, 3
      %v3410 = vsel %vm3375, %v3407, %v3409
      %v3411 = vrot.slane %v2927, 3
      %v3412 = vsel %vm3375, %v3409, %v3411
      %v3414 = vsel %vm517, %v3378, 0
      %v3417 = vsel %vm517, %v3380, 0
      %v3420 = vsel %vm517, %v3382, 0
      %v3423 = vsel %vm517, %v3384, 0
      %v3426 = vsel %vm517, %v3386, 0
      %v3429 = vsel %vm517, %v3388, 0
      %v3432 = vsel %vm517, %v3390, 0
      %v3435 = vsel %vm517, %v3392, 0
      %v3438 = vsel %vm517, %v3394, 0
      %v3441 = vsel %vm517, %v3396, 0
      %v3444 = vsel %vm517, %v3398, 0
      %v3447 = vsel %vm517, %v3400, 0
      %v3450 = vsel %vm517, %v3402, 0
      %v3453 = vsel %vm517, %v3404, 0
      %v3456 = vsel %vm517, %v3406, 0
      %v3459 = vsel %vm517, %v3408, 0
      %v3462 = vsel %vm517, %v3410, 0
      %v3465 = vsel %vm517, %v3412, 0
      %v3468 = vsel %vm572, %v3371, 0
      %3470 = vmatprep.subr.bf16.mxu0 0
      %3471 = vmatpush1.bf16.msra.mxu0 0
      %3472 = vmatprep.subr.bf16.mxu0 0
      %3473 = vmatpush1.bf16.msra.mxu0 0
      %3474 = vmatprep.subr.bf16.mxu0 0
      %3475 = vmatpush1.bf16.msra.mxu0 0
      %3476 = vmatprep.subr.bf16.mxu0 0
      %3477 = vmatpush1.bf16.msra.mxu0 0
      %3478 = vmatprep.subr.bf16.mxu0 0
      %3479 = vmatpush1.bf16.msra.mxu0 0
      %3480 = vmatprep.subr.bf16.mxu0 0
      %3481 = vmatpush1.bf16.msra.mxu0 0
      %3482 = vmatprep.subr.bf16.mxu0 0
      %3483 = vmatpush1.bf16.msra.mxu0 0
      %3484 = vmatprep.subr.bf16.mxu0 0
      %3485 = vmatpush1.bf16.msra.mxu0 %v3468
      %3486 = vmatprep.subr.bf16.mxu0 0
      %3487 = vmatpush2.bf16.msra.mxu0 0
      %3488 = vmatprep.subr.bf16.mxu0 0
      %3489 = vmatpush2.bf16.msra.mxu0 0
      %3490 = vmatprep.subr.bf16.mxu0 0
      %3491 = vmatpush2.bf16.msra.mxu0 0
      %3492 = vmatprep.subr.bf16.mxu0 0
      %3493 = vmatpush2.bf16.msra.mxu0 0
      %3494 = vmatprep.subr.bf16.mxu0 0
      %3495 = vmatpush2.bf16.msra.mxu0 0
      %3496 = vmatprep.subr.bf16.mxu0 0
      %3497 = vmatpush2.bf16.msra.mxu0 0
      %3498 = vmatprep.subr.bf16.mxu0 0
      %3499 = vmatpush2.bf16.msra.mxu0 0
      %3500 = vmatprep.subr.bf16.mxu0 0
      %3501 = vmatpush2.bf16.msra.mxu0 0
      %3502 = vmatprep.mubr.bf16.mxu0 0
      %3503 = vmatmul.mubr.bf16.gmra.mxu0 %v3414
      %v3504 = vpop.f32.mrf.mxu0
      %v3505 = vadd.f32 0.0, %v3504
      %v3506 = vpop.f32.mrf.mxu0
      %v3507 = vpop.f32.mrf.mxu0
      %v3508 = vadd.f32 0.0, %v3507
      %v3509 = vpop.f32.mrf.mxu0
      %3510 = vmatprep.mubr.bf16.mxu0 0
      %3511 = vmatmul.mubr.bf16.gmra.mxu0 %v3417
      %v3512 = vpop.f32.mrf.mxu0
      %v3513 = vadd.f32 0.0, %v3512
      %v3514 = vpop.f32.mrf.mxu0
      %v3515 = vpop.f32.mrf.mxu0
      %v3516 = vadd.f32 0.0, %v3515
      %v3517 = vpop.f32.mrf.mxu0
      %3518 = vmatprep.mubr.bf16.mxu0 0
      %3519 = vmatmul.mubr.bf16.gmra.mxu0 %v3420
      %v3520 = vpop.f32.mrf.mxu0
      %v3521 = vadd.f32 0.0, %v3520
      %v3522 = vpop.f32.mrf.mxu0
      %v3523 = vpop.f32.mrf.mxu0
      %v3524 = vadd.f32 0.0, %v3523
      %v3525 = vpop.f32.mrf.mxu0
      %3526 = vmatprep.mubr.bf16.mxu0 0
      %3527 = vmatmul.mubr.bf16.gmra.mxu0 %v3423
      %v3528 = vpop.f32.mrf.mxu0
      %v3529 = vadd.f32 0.0, %v3528
      %v3530 = vpop.f32.mrf.mxu0
      %v3531 = vpop.f32.mrf.mxu0
      %v3532 = vadd.f32 0.0, %v3531
      %v3533 = vpop.f32.mrf.mxu0
      %3534 = vmatprep.mubr.bf16.mxu0 0
      %3535 = vmatmul.mubr.bf16.gmra.mxu0 %v3426
      %v3536 = vpop.f32.mrf.mxu0
      %v3537 = vadd.f32 0.0, %v3536
      %v3538 = vpop.f32.mrf.mxu0
      %v3539 = vpop.f32.mrf.mxu0
      %v3540 = vadd.f32 0.0, %v3539
      %v3541 = vpop.f32.mrf.mxu0
      %3542 = vmatprep.mubr.bf16.mxu0 0
      %3543 = vmatmul.mubr.bf16.gmra.mxu0 %v3429
      %v3544 = vpop.f32.mrf.mxu0
      %v3545 = vadd.f32 0.0, %v3544
      %v3546 = vpop.f32.mrf.mxu0
      %v3547 = vpop.f32.mrf.mxu0
      %v3548 = vadd.f32 0.0, %v3547
      %v3549 = vpop.f32.mrf.mxu0
      %3550 = vmatprep.mubr.bf16.mxu0 0
      %3551 = vmatmul.mubr.bf16.gmra.mxu0 %v3432
      %v3552 = vpop.f32.mrf.mxu0
      %v3553 = vadd.f32 0.0, %v3552
      %v3554 = vpop.f32.mrf.mxu0
      %v3555 = vpop.f32.mrf.mxu0
      %v3556 = vadd.f32 0.0, %v3555
      %v3557 = vpop.f32.mrf.mxu0
      %3558 = vmatprep.mubr.bf16.mxu0 0
      %3559 = vmatmul.mubr.bf16.gmra.mxu0 %v3435
      %v3560 = vpop.f32.mrf.mxu0
      %v3561 = vadd.f32 0.0, %v3560
      %v3562 = vpop.f32.mrf.mxu0
      %v3563 = vpop.f32.mrf.mxu0
      %v3564 = vadd.f32 0.0, %v3563
      %v3565 = vpop.f32.mrf.mxu0
      %3566 = vmatprep.mubr.bf16.mxu0 0
      %3567 = vmatmul.mubr.bf16.gmra.mxu0 %v3438
      %v3568 = vpop.f32.mrf.mxu0
      %v3569 = vadd.f32 0.0, %v3568
      %v3570 = vpop.f32.mrf.mxu0
      %v3571 = vpop.f32.mrf.mxu0
      %v3572 = vadd.f32 0.0, %v3571
      %v3573 = vpop.f32.mrf.mxu0
      %3574 = vmatprep.mubr.bf16.mxu0 0
      %3575 = vmatmul.mubr.bf16.gmra.mxu0 %v3441
      %v3576 = vpop.f32.mrf.mxu0
      %v3577 = vadd.f32 0.0, %v3576
      %v3578 = vpop.f32.mrf.mxu0
      %v3579 = vpop.f32.mrf.mxu0
      %v3580 = vadd.f32 0.0, %v3579
      %v3581 = vpop.f32.mrf.mxu0
      %3582 = vmatprep.mubr.bf16.mxu0 0
      %3583 = vmatmul.mubr.bf16.gmra.mxu0 %v3444
      %v3584 = vpop.f32.mrf.mxu0
      %v3585 = vadd.f32 0.0, %v3584
      %v3586 = vpop.f32.mrf.mxu0
      %v3587 = vpop.f32.mrf.mxu0
      %v3588 = vadd.f32 0.0, %v3587
      %v3589 = vpop.f32.mrf.mxu0
      %3590 = vmatprep.mubr.bf16.mxu0 0
      %3591 = vmatmul.mubr.bf16.gmra.mxu0 %v3447
      %v3592 = vpop.f32.mrf.mxu0
      %v3593 = vadd.f32 0.0, %v3592
      %v3594 = vpop.f32.mrf.mxu0
      %v3595 = vpop.f32.mrf.mxu0
      %v3596 = vadd.f32 0.0, %v3595
      %v3597 = vpop.f32.mrf.mxu0
      %3598 = vmatprep.mubr.bf16.mxu0 0
      %3599 = vmatmul.mubr.bf16.gmra.mxu0 %v3450
      %v3600 = vpop.f32.mrf.mxu0
      %v3601 = vadd.f32 0.0, %v3600
      %v3602 = vpop.f32.mrf.mxu0
      %v3603 = vpop.f32.mrf.mxu0
      %v3604 = vadd.f32 0.0, %v3603
      %v3605 = vpop.f32.mrf.mxu0
      %3606 = vmatprep.mubr.bf16.mxu0 0
      %3607 = vmatmul.mubr.bf16.gmra.mxu0 %v3453
      %v3608 = vpop.f32.mrf.mxu0
      %v3609 = vadd.f32 0.0, %v3608
      %v3610 = vpop.f32.mrf.mxu0
      %v3611 = vpop.f32.mrf.mxu0
      %v3612 = vadd.f32 0.0, %v3611
      %v3613 = vpop.f32.mrf.mxu0
      %3614 = vmatprep.mubr.bf16.mxu0 0
      %3615 = vmatmul.mubr.bf16.gmra.mxu0 %v3456
      %v3616 = vpop.f32.mrf.mxu0
      %v3617 = vadd.f32 0.0, %v3616
      %v3618 = vpop.f32.mrf.mxu0
      %v3619 = vpop.f32.mrf.mxu0
      %v3620 = vadd.f32 0.0, %v3619
      %v3621 = vpop.f32.mrf.mxu0
      %3622 = vmatprep.mubr.bf16.mxu0 0
      %3623 = vmatmul.mubr.bf16.gmra.mxu0 %v3459
      %v3624 = vpop.f32.mrf.mxu0
      %v3625 = vadd.f32 0.0, %v3624
      %v3626 = vpop.f32.mrf.mxu0
      %v3627 = vpop.f32.mrf.mxu0
      %v3628 = vadd.f32 0.0, %v3627
      %v3629 = vpop.f32.mrf.mxu0
      %3630 = vmatprep.mubr.bf16.mxu0 0
      %3631 = vmatmul.mubr.bf16.gmra.mxu0 %v3462
      %v3632 = vpop.f32.mrf.mxu0
      %v3633 = vadd.f32 0.0, %v3632
      %v3634 = vpop.f32.mrf.mxu0
      %v3635 = vpop.f32.mrf.mxu0
      %v3636 = vadd.f32 0.0, %v3635
      %v3637 = vpop.f32.mrf.mxu0
      %3638 = vmatprep.mubr.bf16.mxu0 0
      %3639 = vmatmul.mubr.bf16.gmra.mxu0 %v3465
      %v3640 = vpop.f32.mrf.mxu0
      %v3641 = vadd.f32 0.0, %v3640
      %v3642 = vpop.f32.mrf.mxu0
      %v3643 = vpop.f32.mrf.mxu0
      %v3644 = vadd.f32 0.0, %v3643
      %v3645 = vpop.f32.mrf.mxu0
      %3646 = vdwg.mxu0
      %v3647 = vadd.f32 %v3333, %v3505
      %v3648 = vadd.f32 %v3334, %v3508
      %v3649 = vadd.f32 %v3335, %v3513
      %v3650 = vadd.f32 %v3336, %v3516
      %v3651 = vadd.f32 %v3337, %v3521
      %v3652 = vadd.f32 %v3338, %v3524
      %v3653 = vadd.f32 %v3339, %v3529
      %v3654 = vadd.f32 %v3340, %v3532
      %v3655 = vadd.f32 %v3341, %v3537
      %v3656 = vadd.f32 %v3342, %v3540
      %v3657 = vadd.f32 %v3343, %v3545
      %v3658 = vadd.f32 %v3344, %v3548
      %v3659 = vadd.f32 %v3345, %v3553
      %v3660 = vadd.f32 %v3346, %v3556
      %v3661 = vadd.f32 %v3347, %v3561
      %v3662 = vadd.f32 %v3348, %v3564
      %v3663 = vadd.f32 %v3349, %v3569
      %v3664 = vadd.f32 %v3350, %v3572
      %v3665 = vadd.f32 %v3351, %v3577
      %v3666 = vadd.f32 %v3352, %v3580
      %v3667 = vadd.f32 %v3353, %v3585
      %v3668 = vadd.f32 %v3354, %v3588
      %v3669 = vadd.f32 %v3355, %v3593
      %v3670 = vadd.f32 %v3356, %v3596
      %v3671 = vadd.f32 %v3357, %v3601
      %v3672 = vadd.f32 %v3358, %v3604
      %v3673 = vadd.f32 %v3359, %v3609
      %v3674 = vadd.f32 %v3360, %v3612
      %v3675 = vadd.f32 %v3361, %v3617
      %v3676 = vadd.f32 %v3362, %v3620
      %v3677 = vadd.f32 %v3363, %v3625
      %v3678 = vadd.f32 %v3364, %v3628
      %v3679 = vadd.f32 %v3365, %v3633
      %v3680 = vadd.f32 %v3366, %v3636
      %v3681 = vadd.f32 %v3367, %v3641
      %v3682 = vadd.f32 %v3368, %v3644
      %v3683 = vld [vmem:[%s2] sm:$0x1]
      %v3685 = vlaneseq
      %v3686 = vshrl.u32 %v3685, 7
      %v3687 = vsub.s32 0, %v3686
      %v3688 = vrot.slane %v3683, %v3687
      %v3690 = vmul.f32 %v3647, %v3688
      %v3691 = vmul.f32 %v3648, %v3688
      %v3692 = vmul.f32 %v3649, %v3688
      %v3693 = vmul.f32 %v3650, %v3688
      %v3694 = vmul.f32 %v3651, %v3688
      %v3695 = vmul.f32 %v3652, %v3688
      %v3696 = vmul.f32 %v3653, %v3688
      %v3697 = vmul.f32 %v3654, %v3688
      %v3698 = vmul.f32 %v3655, %v3688
      %v3699 = vmul.f32 %v3656, %v3688
      %v3700 = vmul.f32 %v3657, %v3688
      %v3701 = vmul.f32 %v3658, %v3688
      %v3702 = vmul.f32 %v3659, %v3688
      %v3703 = vmul.f32 %v3660, %v3688
      %v3704 = vmul.f32 %v3661, %v3688
      %v3705 = vmul.f32 %v3662, %v3688
      %v3706 = vmul.f32 %v3663, %v3688
      %v3707 = vmul.f32 %v3664, %v3688
      %v3708 = vmul.f32 %v3665, %v3688
      %v3709 = vmul.f32 %v3666, %v3688
      %v3710 = vmul.f32 %v3667, %v3688
      %v3711 = vmul.f32 %v3668, %v3688
      %v3712 = vmul.f32 %v3669, %v3688
      %v3713 = vmul.f32 %v3670, %v3688
      %v3714 = vmul.f32 %v3671, %v3688
      %v3715 = vmul.f32 %v3672, %v3688
      %v3716 = vmul.f32 %v3673, %v3688
      %v3717 = vmul.f32 %v3674, %v3688
      %v3718 = vmul.f32 %v3675, %v3688
      %v3719 = vmul.f32 %v3676, %v3688
      %v3720 = vmul.f32 %v3677, %v3688
      %v3721 = vmul.f32 %v3678, %v3688
      %v3722 = vmul.f32 %v3679, %v3688
      %v3723 = vmul.f32 %v3680, %v3688
      %v3724 = vmul.f32 %v3681, %v3688
      %v3725 = vmul.f32 %v3682, %v3688
      %v3726 = vld [vmem:[%s3] sm:$0x1]
      %v3728 = vlaneseq
      %v3729 = vshrl.u32 %v3728, 7
      %v3730 = vsub.s32 0, %v3729
      %v3731 = vrot.slane %v3726, %v3730
      %v3733 = vadd.f32 %v3690, %v3731
      %v3734 = vadd.f32 %v3691, %v3731
      %v3735 = vadd.f32 %v3692, %v3731
      %v3736 = vadd.f32 %v3693, %v3731
      %v3737 = vadd.f32 %v3694, %v3731
      %v3738 = vadd.f32 %v3695, %v3731
      %v3739 = vadd.f32 %v3696, %v3731
      %v3740 = vadd.f32 %v3697, %v3731
      %v3741 = vadd.f32 %v3698, %v3731
      %v3742 = vadd.f32 %v3699, %v3731
      %v3743 = vadd.f32 %v3700, %v3731
      %v3744 = vadd.f32 %v3701, %v3731
      %v3745 = vadd.f32 %v3702, %v3731
      %v3746 = vadd.f32 %v3703, %v3731
      %v3747 = vadd.f32 %v3704, %v3731
      %v3748 = vadd.f32 %v3705, %v3731
      %v3749 = vadd.f32 %v3706, %v3731
      %v3750 = vadd.f32 %v3707, %v3731
      %v3751 = vadd.f32 %v3708, %v3731
      %v3752 = vadd.f32 %v3709, %v3731
      %v3753 = vadd.f32 %v3710, %v3731
      %v3754 = vadd.f32 %v3711, %v3731
      %v3755 = vadd.f32 %v3712, %v3731
      %v3756 = vadd.f32 %v3713, %v3731
      %v3757 = vadd.f32 %v3714, %v3731
      %v3758 = vadd.f32 %v3715, %v3731
      %v3759 = vadd.f32 %v3716, %v3731
      %v3760 = vadd.f32 %v3717, %v3731
      %v3761 = vadd.f32 %v3718, %v3731
      %v3762 = vadd.f32 %v3719, %v3731
      %v3763 = vadd.f32 %v3720, %v3731
      %v3764 = vadd.f32 %v3721, %v3731
      %v3765 = vadd.f32 %v3722, %v3731
      %v3766 = vadd.f32 %v3723, %v3731
      %v3767 = vadd.f32 %v3724, %v3731
      %v3768 = vadd.f32 %v3725, %v3731
      %v3769 = vmax.f32 %v3733, 0.0
      %v3770 = vmax.f32 %v3734, 0.0
      %v3771 = vmax.f32 %v3735, 0.0
      %v3772 = vmax.f32 %v3736, 0.0
      %v3773 = vmax.f32 %v3737, 0.0
      %v3774 = vmax.f32 %v3738, 0.0
      %v3775 = vmax.f32 %v3739, 0.0
      %v3776 = vmax.f32 %v3740, 0.0
      %v3777 = vmax.f32 %v3741, 0.0
      %v3778 = vmax.f32 %v3742, 0.0
      %v3779 = vmax.f32 %v3743, 0.0
      %v3780 = vmax.f32 %v3744, 0.0
      %v3781 = vmax.f32 %v3745, 0.0
      %v3782 = vmax.f32 %v3746, 0.0
      %v3783 = vmax.f32 %v3747, 0.0
      %v3784 = vmax.f32 %v3748, 0.0
      %v3785 = vmax.f32 %v3749, 0.0
      %v3786 = vmax.f32 %v3750, 0.0
      %v3787 = vmax.f32 %v3751, 0.0
      %v3788 = vmax.f32 %v3752, 0.0
      %v3789 = vmax.f32 %v3753, 0.0
      %v3790 = vmax.f32 %v3754, 0.0
      %v3791 = vmax.f32 %v3755, 0.0
      %v3792 = vmax.f32 %v3756, 0.0
      %v3793 = vmax.f32 %v3757, 0.0
      %v3794 = vmax.f32 %v3758, 0.0
      %v3795 = vmax.f32 %v3759, 0.0
      %v3796 = vmax.f32 %v3760, 0.0
      %v3797 = vmax.f32 %v3761, 0.0
      %v3798 = vmax.f32 %v3762, 0.0
      %v3799 = vmax.f32 %v3763, 0.0
      %v3800 = vmax.f32 %v3764, 0.0
      %v3801 = vmax.f32 %v3765, 0.0
      %v3802 = vmax.f32 %v3766, 0.0
      %v3803 = vmax.f32 %v3767, 0.0
      %v3804 = vmax.f32 %v3768, 0.0
      %v3805 = vpack.c.bf16 %v3770, %v3769
      %v3806 = vpack.c.bf16 %v3772, %v3771
      %v3807 = vpack.c.bf16 %v3774, %v3773
      %v3808 = vpack.c.bf16 %v3776, %v3775
      %v3809 = vpack.c.bf16 %v3778, %v3777
      %v3810 = vpack.c.bf16 %v3780, %v3779
      %v3811 = vpack.c.bf16 %v3782, %v3781
      %v3812 = vpack.c.bf16 %v3784, %v3783
      %v3813 = vpack.c.bf16 %v3786, %v3785
      %v3814 = vpack.c.bf16 %v3788, %v3787
      %v3815 = vpack.c.bf16 %v3790, %v3789
      %v3816 = vpack.c.bf16 %v3792, %v3791
      %v3817 = vpack.c.bf16 %v3794, %v3793
      %v3818 = vpack.c.bf16 %v3796, %v3795
      %v3819 = vpack.c.bf16 %v3798, %v3797
      %v3820 = vpack.c.bf16 %v3800, %v3799
      %v3821 = vpack.c.bf16 %v3802, %v3801
      %v3822 = vpack.c.bf16 %v3804, %v3803
      %v3841 = vunpack.c.l.b16 %v3805
      %v3842 = vunpack.c.h.b16 %v3805
      %v3843 = vunpack.c.l.b16 %v3806
      %v3844 = vunpack.c.h.b16 %v3806
      %v3845 = vunpack.c.l.b16 %v3807
      %v3846 = vunpack.c.h.b16 %v3807
      %v3847 = vunpack.c.l.b16 %v3808
      %v3848 = vunpack.c.h.b16 %v3808
      %v3849 = vunpack.c.l.b16 %v3809
      %v3850 = vunpack.c.h.b16 %v3809
      %v3851 = vunpack.c.l.b16 %v3810
      %v3852 = vunpack.c.h.b16 %v3810
      %v3853 = vunpack.c.l.b16 %v3811
      %v3854 = vunpack.c.h.b16 %v3811
      %v3855 = vunpack.c.l.b16 %v3812
      %v3856 = vunpack.c.h.b16 %v3812
      %v3857 = vunpack.c.l.b16 %v3813
      %v3858 = vunpack.c.h.b16 %v3813
      %v3859 = vunpack.c.l.b16 %v3814
      %v3860 = vunpack.c.h.b16 %v3814
      %v3861 = vunpack.c.l.b16 %v3815
      %v3862 = vunpack.c.h.b16 %v3815
      %v3863 = vunpack.c.l.b16 %v3816
      %v3864 = vunpack.c.h.b16 %v3816
      %v3865 = vunpack.c.l.b16 %v3817
      %v3866 = vunpack.c.h.b16 %v3817
      %v3867 = vunpack.c.l.b16 %v3818
      %v3868 = vunpack.c.h.b16 %v3818
      %v3869 = vunpack.c.l.b16 %v3819
      %v3870 = vunpack.c.h.b16 %v3819
      %v3871 = vunpack.c.l.b16 %v3820
      %v3872 = vunpack.c.h.b16 %v3820
      %v3873 = vunpack.c.l.b16 %v3821
      %v3874 = vunpack.c.h.b16 %v3821
      %v3875 = vunpack.c.l.b16 %v3822
      %v3876 = vunpack.c.h.b16 %v3822
      %v3877 = vpack.c.b16 %v3841, %v3841
      %v3878 = vpack.c.b16 %v3842, %v3842
      %v3879 = vpack.c.b16 %v3843, %v3843
      %v3880 = vpack.c.b16 %v3844, %v3844
      %v3881 = vpack.c.b16 %v3845, %v3845
      %v3882 = vpack.c.b16 %v3846, %v3846
      %v3883 = vpack.c.b16 %v3847, %v3847
      %v3884 = vpack.c.b16 %v3848, %v3848
      %v3885 = vpack.c.b16 %v3849, %v3849
      %v3886 = vpack.c.b16 %v3850, %v3850
      %v3887 = vpack.c.b16 %v3851, %v3851
      %v3888 = vpack.c.b16 %v3852, %v3852
      %v3889 = vpack.c.b16 %v3853, %v3853
      %v3890 = vpack.c.b16 %v3854, %v3854
      %v3891 = vpack.c.b16 %v3855, %v3855
      %v3892 = vpack.c.b16 %v3856, %v3856
      %v3893 = vpack.c.b16 %v3857, %v3857
      %v3894 = vpack.c.b16 %v3858, %v3858
      %v3895 = vpack.c.b16 %v3859, %v3859
      %v3896 = vpack.c.b16 %v3860, %v3860
      %v3897 = vpack.c.b16 %v3861, %v3861
      %v3898 = vpack.c.b16 %v3862, %v3862
      %v3899 = vpack.c.b16 %v3863, %v3863
      %v3900 = vpack.c.b16 %v3864, %v3864
      %v3901 = vpack.c.b16 %v3865, %v3865
      %v3902 = vpack.c.b16 %v3866, %v3866
      %v3903 = vpack.c.b16 %v3867, %v3867
      %v3904 = vpack.c.b16 %v3868, %v3868
      %v3905 = vpack.c.b16 %v3869, %v3869
      %v3906 = vpack.c.b16 %v3870, %v3870
      %v3907 = vpack.c.b16 %v3871, %v3871
      %v3908 = vpack.c.b16 %v3872, %v3872
      %v3909 = vpack.c.b16 %v3873, %v3873
      %v3910 = vpack.c.b16 %v3874, %v3874
      %v3911 = vpack.c.b16 %v3875, %v3875
      %v3912 = vpack.c.b16 %v3876, %v3876
      %3949 = vst [vmem:[%s233] sm:$0xf] %v3877
      %3950 = vst [vmem:[%s233 + $0x4] sm:$0xf] %v3878
      %3951 = vst [vmem:[%s233 + $0x8] sm:$0xf] %v3879
      %3952 = vst [vmem:[%s233 + $0xc] sm:$0xf] %v3880
      %3953 = vst [vmem:[%s233 + $0x10] sm:$0xf] %v3881
      %3954 = vst [vmem:[%s233 + $0x14] sm:$0xf] %v3882
      %3955 = vst [vmem:[%s233 + $0x18] sm:$0xf] %v3883
      %3956 = vst [vmem:[%s233 + $0x1c] sm:$0xf] %v3884
      %3957 = vst [vmem:[%s233 + $0x20] sm:$0xf] %v3885
      %3958 = vst [vmem:[%s233 + $0x24] sm:$0xf] %v3886
      %3959 = vst [vmem:[%s233 + $0x28] sm:$0xf] %v3887
      %3960 = vst [vmem:[%s233 + $0x2c] sm:$0xf] %v3888
      %3961 = vst [vmem:[%s233 + $0x30] sm:$0xf] %v3889
      %3962 = vst [vmem:[%s233 + $0x34] sm:$0xf] %v3890
      %3963 = vst [vmem:[%s233 + $0x38] sm:$0xf] %v3891
      %3964 = vst [vmem:[%s233 + $0x3c] sm:$0xf] %v3892
      %3965 = vst [vmem:[%s233 + $0x40] sm:$0xf] %v3893
      %3966 = vst [vmem:[%s233 + $0x44] sm:$0xf] %v3894
      %3967 = vst [vmem:[%s233 + $0x48] sm:$0xf] %v3895
      %3968 = vst [vmem:[%s233 + $0x4c] sm:$0xf] %v3896
      %3969 = vst [vmem:[%s233 + $0x50] sm:$0xf] %v3897
      %3970 = vst [vmem:[%s233 + $0x54] sm:$0xf] %v3898
      %3971 = vst [vmem:[%s233 + $0x58] sm:$0xf] %v3899
      %3972 = vst [vmem:[%s233 + $0x5c] sm:$0xf] %v3900
      %3973 = vst [vmem:[%s233 + $0x60] sm:$0xf] %v3901
      %3974 = vst [vmem:[%s233 + $0x64] sm:$0xf] %v3902
      %3975 = vst [vmem:[%s233 + $0x68] sm:$0xf] %v3903
      %3976 = vst [vmem:[%s233 + $0x6c] sm:$0xf] %v3904
      %3977 = vst [vmem:[%s233 + $0x70] sm:$0xf] %v3905
      %3978 = vst [vmem:[%s233 + $0x74] sm:$0xf] %v3906
      %3979 = vst [vmem:[%s233 + $0x78] sm:$0xf] %v3907
      %3980 = vst [vmem:[%s233 + $0x7c] sm:$0xf] %v3908
      %3981 = vst [vmem:[%s233 + $0x80] sm:$0xf] %v3909
      %3982 = vst [vmem:[%s233 + $0x84] sm:$0xf] %v3910
      %3983 = vst [vmem:[%s233 + $0x88] sm:$0xf] %v3911
      %3984 = vst [vmem:[%s233 + $0x8c] sm:$0xf] %v3912
      %p3985 = scmp.lt.s32.totalorder %s19, 1
      %s3986 = scalar_select %p3985, %s19, 1
      %p3987 = scmp.lt.s32.totalorder %s20, 0
      %s3988 = scalar_select %p3987, %s20, 0
      %s3989 = smul.addr %s3988, 36
      %s3990 = smul.addr %s3986, 36
      %s3991 = sadd.s32 %s3989, %s3990
      %s3992 = smul.addr %s3991, 4
      %s3993 = scalar_lea.vmem %s4, %s3992
      // Predicated region
      $region37: #{myconv_forward.2} parent=35 // pred_check
        %p3994 = pneg %p138
      $region38: #{myconv_forward.2} parent=35 // pred_check_branch
        %3996 = sbr.rel (%p3994) target = $region40
      $region39: #{myconv_forward.2} parent=35 // pred_region
        _
      $region40: #{myconv_forward.2} parent=35 // pred_fallthru
        _
    $region36: #{myconv_forward.2} parent=5 // pred_fallthru
      _
    %p3997 = scmp.le.s32.totalorder 2, %s10
    // Predicated region
    $region41: #{myconv_forward.2} parent=5 // pred_check
      %p3998 = pneg %p3997
    $region42: #{myconv_forward.2} parent=5 // pred_check_branch
      %4000 = sbr.rel (%p3998) target = $region44
    $region43: #{myconv_forward.2} parent=5 // pred_region
      %s4001 = ssub.s32 %s10, 2
      // Predicated region
      $region45: #{myconv_forward.2} parent=43 // pred_check
        %p4002 = pneg %p144
      $region46: #{myconv_forward.2} parent=43 // pred_check_branch
        %4004 = sbr.rel (%p4002) target = $region48
      $region47: #{myconv_forward.2} parent=43 // pred_region
        %p4005 = scmp.lt.s32.totalorder %s21, 1
        %s4006 = scalar_select %p4005, %s21, 1
        %p4007 = scmp.lt.s32.totalorder %s22, 0
        %s4008 = scalar_select %p4007, %s22, 0
        %s4009 = smul.addr %s4008, 36
        %s4010 = smul.addr %s4006, 36
        %s4011 = sadd.s32 %s4009, %s4010
        %s4012 = smul.addr %s4011, 4
        %s4013 = scalar_lea.vmem %s4, %s4012
      $region48: #{myconv_forward.2} parent=43 // pred_fallthru
        _
    $region44: #{myconv_forward.2} parent=5 // pred_fallthru
      _
  $region6: #{myconv_forward.2} parent=0 // loop_footer
    %s14 = sadd.s32 1, %s10
  $region7: #{myconv_forward.2} parent=0 // loop_footer_branch
    %9 = sbr.rel target = $region3
  $region8: #{myconv_forward.2} parent=0 // loop_exit
    _

// kernel: myconv_forward.3
$region0: #{myconv_forward.3}
  #allocation0 [shape = 'u32[]', space=smem, size = 0x4, offset = 0x4, fixed_abs, tag = 'smem constant byte address 0x4 - core index']
  #allocation1 [shape = 'u32[144,128]{1,0:T(1,128)}', space=vmem, size = 0x12000, scoped, tag = 'internal scratch']
  %s0 = inlined_call_operand.vmem [shape: bf16[2,1,326,8], index: 0, kind: input, shape index: {}]
  %s1 = inlined_call_operand.vmem [shape: bf16[9,8,128], index: 1, kind: input, shape index: {}]
  %s2 = inlined_call_operand.vmem [shape: f32[1,128], index: 2, kind: input, shape index: {}]
  %s3 = inlined_call_operand.vmem [shape: f32[1,128], index: 3, kind: input, shape index: {}]
  %s4 = inlined_call_operand.vmem [shape: f32[2,1,288,128], index: 4, kind: output, shape index: {}]
  %s5 = sld [smem:[#allocation0]]
  $region49: #{myconv_forward.3} parent=0
    _
  %s7 = ssub.s32 1, %s5
  %s8 = scalar_select 0, %s7, %s5
  loop: start=0, step=1, limit=4
  $region2: #{myconv_forward.3} parent=0 // loop_pre_header
    _
  $region3: #{myconv_forward.3} parent=0 // loop_header
    %s10 = sphi 0, %s14
    %p11 = scmp.ge.s32.totalorder %s10, 4
    %s17 = sphi 0, %s29
    %s18 = sphi 0, %s25
    %s19 = sphi 0, %s17
    %s20 = sphi 0, %s18
    %s21 = sphi 0, %s19
    %s22 = sphi 0, %s20
    %s34 = sphi 0, %s36
    %s37 = sphi 0, %s34
    %s38 = sphi 0, %s37
    %s54 = sphi 0, %s38
    %s58 = sphi 0, %s58
    %s60 = sphi 0, %s58
    %s61 = sphi 0, %s60
    %s75 = sphi 0, %s61
    %s79 = sphi 0, %s79
    %s81 = sphi 0, %s79
    %s82 = sphi 0, %s81
    %s96 = sphi 0, %s82
    %s100 = sphi 0, %s100
    %s102 = sphi 0, %s100
    %s103 = sphi 0, %s102
    %s117 = sphi 0, %s103
    %s125 = sphi 0, %s127
    %s128 = sphi 0, %s125
    %s129 = sphi 0, %s128
    %s145 = sphi 0, %s129
  $region4: #{myconv_forward.3} parent=0 // loop_header_branch
    %13 = sbr.rel (%p11) target = $region8
  $region5: #{myconv_forward.3} parent=0 // loop_body
    %s15 = ssub.s32 %s10, 1
    %s16 = ssub.s32 %s10, 2
    %s23 = sadd.s32 1, %s18
    %p24 = scmp.ge.s32.totalorder %s23, 1
    %s25 = scalar_select %p24, 0, %s23
    %s26 = sadd.s32 1, %s17
    %s27 = scalar_select %p24, %s26, %s17
    %p28 = scmp.ge.s32.totalorder %s27, 2
    %s29 = scalar_select %p28, 0, %s27
    %s30 = ssub.s32 %s17, %s29
    %s31 = ssub.s32 %s18, %s25
    %s32 = sor.u32 %s30, %s31
    %p33 = scmp.eq.s32.totalorder %s32, 0
    %s35 = sadd.s32 %s34, 1
    %s36 = scalar_select %p33, %s34, %s35
    %p39 = pneg %p33
    %p40 = scmp.eq.s32.totalorder %s10, 1
    %p41 = por %p39, %p40
    %p42 = scmp.ne.s32.totalorder %s34, %s37
    %p43 = scmp.eq.s32.totalorder %s10, 0
    %p44 = por %p42, %p43
    %p45 = scmp.ne.s32.totalorder %s34, %s37
    %p46 = scmp.eq.s32.totalorder %s15, 1
    %p47 = por %p45, %p46
    %p48 = scmp.ne.s32.totalorder %s37, %s38
    %p49 = scmp.eq.s32.totalorder %s15, 0
    %p50 = por %p48, %p49
    %p51 = scmp.ne.s32.totalorder %s37, %s38
    %p52 = scmp.eq.s32.totalorder %s16, 1
    %p53 = por %p51, %p52
    %p55 = scmp.ne.s32.totalorder %s38, %s54
    %p56 = scmp.eq.s32.totalorder %s16, 0
    %p57 = por %p55, %p56
    %s59 = sadd.s32 %s58, 1
    %p62 = scmp.eq.s32.totalorder %s10, 1
    %p63 = scmp.ne.s32.totalorder %s58, %s60
    %p64 = scmp.eq.s32.totalorder %s10, 0
    %p65 = por %p63, %p64
    %p66 = scmp.ne.s32.totalorder %s58, %s60
    %p67 = scmp.eq.s32.totalorder %s15, 1
    %p68 = por %p66, %p67
    %p69 = scmp.ne.s32.totalorder %s60, %s61
    %p70 = scmp.eq.s32.totalorder %s15, 0
    %p71 = por %p69, %p70
    %p72 = scmp.ne.s32.totalorder %s60, %s61
    %p73 = scmp.eq.s32.totalorder %s16, 1
    %p74 = por %p72, %p73
    %p76 = scmp.ne.s32.totalorder %s61, %s75
    %p77 = scmp.eq.s32.totalorder %s16, 0
    %p78 = por %p76, %p77
    %s80 = sadd.s32 %s79, 1
    %p83 = scmp.eq.s32.totalorder %s10, 1
    %p84 = scmp.ne.s32.totalorder %s79, %s81
    %p85 = scmp.eq.s32.totalorder %s10, 0
    %p86 = por %p84, %p85
    %p87 = scmp.ne.s32.totalorder %s79, %s81
    %p88 = scmp.eq.s32.totalorder %s15, 1
    %p89 = por %p87, %p88
    %p90 = scmp.ne.s32.totalorder %s81, %s82
    %p91 = scmp.eq.s32.totalorder %s15, 0
    %p92 = por %p90, %p91
    %p93 = scmp.ne.s32.totalorder %s81, %s82
    %p94 = scmp.eq.s32.totalorder %s16, 1
    %p95 = por %p93, %p94
    %p97 = scmp.ne.s32.totalorder %s82, %s96
    %p98 = scmp.eq.s32.totalorder %s16, 0
    %p99 = por %p97, %p98
    %s101 = sadd.s32 %s100, 1
    %p104 = scmp.eq.s32.totalorder %s10, 1
    %p105 = scmp.ne.s32.totalorder %s100, %s102
    %p106 = scmp.eq.s32.totalorder %s10, 0
    %p107 = por %p105, %p106
    %p108 = scmp.ne.s32.totalorder %s100, %s102
    %p109 = scmp.eq.s32.totalorder %s15, 1
    %p110 = por %p108, %p109
    %p111 = scmp.ne.s32.totalorder %s102, %s103
    %p112 = scmp.eq.s32.totalorder %s15, 0
    %p113 = por %p111, %p112
    %p114 = scmp.ne.s32.totalorder %s102, %s103
    %p115 = scmp.eq.s32.totalorder %s16, 1
    %p116 = por %p114, %p115
    %p118 = scmp.ne.s32.totalorder %s103, %s117
    %p119 = scmp.eq.s32.totalorder %s16, 0
    %p120 = por %p118, %p119
    %s121 = ssub.s32 %s17, %s29
    %s122 = ssub.s32 %s18, %s25
    %s123 = sor.u32 %s121, %s122
    %p124 = scmp.eq.s32.totalorder %s123, 0
    %s126 = sadd.s32 %s125, 1
    %s127 = scalar_select %p124, %s125, %s126
    %p130 = pneg %p124
    %p131 = scmp.eq.s32.totalorder %s10, 1
    %p132 = por %p130, %p131
    %p133 = scmp.ne.s32.totalorder %s125, %s128
    %p134 = scmp.eq.s32.totalorder %s10, 0
    %p135 = por %p133, %p134
    %p136 = scmp.ne.s32.totalorder %s125, %s128
    %p137 = scmp.eq.s32.totalorder %s15, 1
    %p138 = por %p136, %p137
    %p139 = scmp.ne.s32.totalorder %s128, %s129
    %p140 = scmp.eq.s32.totalorder %s15, 0
    %p141 = por %p139, %p140
    %p142 = scmp.ne.s32.totalorder %s128, %s129
    %p143 = scmp.eq.s32.totalorder %s16, 1
    %p144 = por %p142, %p143
    %p146 = scmp.ne.s32.totalorder %s129, %s145
    %p147 = scmp.eq.s32.totalorder %s16, 0
    %p148 = por %p146, %p147
    %p149 = scmp.le.s32.totalorder 1, %s10
    %p150 = scmp.lt.s32.totalorder %s10, 3
    %p151 = pnand %p149, %p150
    %p152 = pneg %p151
    // Predicated region
    $region9: #{myconv_forward.3} parent=5 // pred_check
      _
    $region10: #{myconv_forward.3} parent=5 // pred_check_branch
      %154 = sbr.rel (%p151) target = $region12
    $region11: #{myconv_forward.3} parent=5 // pred_region
      %s155 = ssub.s32 %s10, 1
      // Predicated region
      $region13: #{myconv_forward.3} parent=11 // pred_check
        %p156 = pneg %p71
      $region14: #{myconv_forward.3} parent=11 // pred_check_branch
        %158 = sbr.rel (%p156) target = $region16
      $region15: #{myconv_forward.3} parent=11 // pred_region
        _
      $region16: #{myconv_forward.3} parent=11 // pred_fallthru
        _
      // Predicated region
      $region17: #{myconv_forward.3} parent=11 // pred_check
        %p159 = pneg %p92
      $region18: #{myconv_forward.3} parent=11 // pred_check_branch
        %161 = sbr.rel (%p159) target = $region20
      $region19: #{myconv_forward.3} parent=11 // pred_region
        _
      $region20: #{myconv_forward.3} parent=11 // pred_fallthru
        _
      // Predicated region
      $region21: #{myconv_forward.3} parent=11 // pred_check
        %p162 = pneg %p113
      $region22: #{myconv_forward.3} parent=11 // pred_check_branch
        %164 = sbr.rel (%p162) target = $region24
      $region23: #{myconv_forward.3} parent=11 // pred_region
        _
      $region24: #{myconv_forward.3} parent=11 // pred_fallthru
        _
    $region12: #{myconv_forward.3} parent=5 // pred_fallthru
      _
    %p165 = scmp.lt.s32.totalorder %s10, 2
    // Predicated region
    $region25: #{myconv_forward.3} parent=5 // pred_check
      %p166 = pneg %p165
    $region26: #{myconv_forward.3} parent=5 // pred_check_branch
      %168 = sbr.rel (%p166) target = $region28
    $region27: #{myconv_forward.3} parent=5 // pred_region
      // Predicated region
      $region29: #{myconv_forward.3} parent=27 // pred_check
        %p169 = pneg %p44
      $region30: #{myconv_forward.3} parent=27 // pred_check_branch
        %171 = sbr.rel (%p169) target = $region32
      $region31: #{myconv_forward.3} parent=27 // pred_region
        %p172 = scmp.lt.s32.totalorder %s17, 1
        %s173 = scalar_select %p172, %s17, 1
        %p174 = scmp.lt.s32.totalorder %s18, 0
        %s175 = scalar_select %p174, %s18, 0
        %s176 = smul.addr %s175, 41
        %s177 = smul.addr %s173, 41
        %s178 = sadd.s32 %s176, %s177
        %s179 = smul.addr %s178, 4
        %s180 = scalar_lea.vmem %s0, %s179
      $region32: #{myconv_forward.3} parent=27 // pred_fallthru
        _
    $region28: #{myconv_forward.3} parent=5 // pred_fallthru
      _
    %p181 = scmp.le.s32.totalorder 1, %s10
    %p182 = scmp.lt.s32.totalorder %s10, 3
    %p183 = pnand %p181, %p182
    %p184 = pneg %p183
    // Predicated region
    $region33: #{myconv_forward.3} parent=5 // pred_check
      _
    $region34: #{myconv_forward.3} parent=5 // pred_check_branch
      %186 = sbr.rel (%p183) target = $region36
    $region35: #{myconv_forward.3} parent=5 // pred_region
      %s187 = ssub.s32 %s10, 1
      %p188 = scmp.lt.s32.totalorder %s19, 1
      %s189 = scalar_select %p188, %s19, 1
      %p190 = scmp.lt.s32.totalorder %s20, 0
      %s191 = scalar_select %p190, %s20, 0
      %s192 = smul.addr %s191, 41
      %s193 = smul.addr %s189, 41
      %s194 = sadd.s32 %s192, %s193
      %s195 = smul.addr %s194, 4
      %s196 = scalar_lea.vmem %s0, %s195
      %p197 = pneg %p50
      %p198 = pneg %p47
      %p199 = pneg %p71
      %p200 = pneg %p68
      %p201 = pneg %p92
      %p202 = pneg %p89
      %p203 = pneg %p113
      %p204 = pneg %p110
      %p205 = pneg %p141
      %p206 = pneg %p138
      %p207 = scmp.lt.s32.totalorder %s19, 1
      %s208 = scalar_select %p207, %s19, 1
      %p209 = scmp.lt.s32.totalorder %s20, 0
      %s210 = scalar_select %p209, %s20, 0
      %s211 = smul.addr %s210, 36
      %s212 = smul.addr %s208, 36
      %s213 = sadd.s32 %s211, %s212
      %s214 = smul.addr %s213, 8
      %s215 = scalar_lea.vmem %s4, %s214
      %p216 = scmp.lt.s32.totalorder %s19, 1
      %s217 = scalar_select %p216, %s19, 1
      %p218 = scmp.lt.s32.totalorder %s20, 0
      %s219 = scalar_select %p218, %s20, 0
      %s220 = smul.addr %s219, 41
      %s221 = smul.addr %s217, 41
      %s222 = sadd.s32 %s220, %s221
      %s223 = smul.addr %s222, 4
      %s224 = scalar_lea.vmem %s0, %s223
      %p225 = scmp.lt.s32.totalorder %s19, 1
      %s226 = scalar_select %p225, %s19, 1
      %p227 = scmp.lt.s32.totalorder %s20, 0
      %s228 = scalar_select %p227, %s20, 0
      %s229 = smul.addr %s228, 36
      %s230 = smul.addr %s226, 36
      %s231 = sadd.s32 %s229, %s230
      %s232 = smul.addr %s231, 8
      %s233 = scalar_lea.vmem %s4, %s232
      %v235 = vld [vmem:[%s224] sm:$0xf]
      %v236 = vld [vmem:[%s224 + $0x4] sm:$0xf]
      %v237 = vld [vmem:[%s224 + $0x8] sm:$0xf]
      %v238 = vld [vmem:[%s224 + $0xc] sm:$0xf]
      %v239 = vld [vmem:[%s224 + $0x10] sm:$0xf]
      %v240 = vld [vmem:[%s224 + $0x14] sm:$0xf]
      %v241 = vld [vmem:[%s224 + $0x18] sm:$0xf]
      %v242 = vld [vmem:[%s224 + $0x1c] sm:$0xf]
      %v243 = vld [vmem:[%s224 + $0x20] sm:$0xf]
      %v244 = vld [vmem:[%s224 + $0x24] sm:$0xf]
      %v245 = vld [vmem:[%s224 + $0x28] sm:$0xf]
      %v246 = vld [vmem:[%s224 + $0x2c] sm:$0xf]
      %v247 = vld [vmem:[%s224 + $0x30] sm:$0xf]
      %v248 = vld [vmem:[%s224 + $0x34] sm:$0xf]
      %v249 = vld [vmem:[%s224 + $0x38] sm:$0xf]
      %v250 = vld [vmem:[%s224 + $0x3c] sm:$0xf]
      %v251 = vld [vmem:[%s224 + $0x40] sm:$0xf]
      %v252 = vld [vmem:[%s224 + $0x44] sm:$0xf]
      %v253 = vld [vmem:[%s224 + $0x48] sm:$0xf]
      %v254 = vld [vmem:[%s224 + $0x4c] sm:$0xf]
      %v255 = vld [vmem:[%s224 + $0x50] sm:$0xf]
      %v256 = vld [vmem:[%s224 + $0x54] sm:$0xf]
      %v257 = vld [vmem:[%s224 + $0x58] sm:$0xf]
      %v258 = vld [vmem:[%s224 + $0x5c] sm:$0xf]
      %v259 = vld [vmem:[%s224 + $0x60] sm:$0xf]
      %v260 = vld [vmem:[%s224 + $0x64] sm:$0xf]
      %v261 = vld [vmem:[%s224 + $0x68] sm:$0xf]
      %v262 = vld [vmem:[%s224 + $0x6c] sm:$0xf]
      %v263 = vld [vmem:[%s224 + $0x70] sm:$0xf]
      %v264 = vld [vmem:[%s224 + $0x74] sm:$0xf]
      %v265 = vld [vmem:[%s224 + $0x78] sm:$0xf]
      %v266 = vld [vmem:[%s224 + $0x7c] sm:$0xf]
      %v267 = vld [vmem:[%s224 + $0x80] sm:$0xf]
      %v268 = vld [vmem:[%s224 + $0x84] sm:$0xf]
      %v269 = vld [vmem:[%s224 + $0x88] sm:$0xf]
      %v270 = vld [vmem:[%s224 + $0x8c] sm:$0xf]
      %v271 = vld [vmem:[%s1] sm:$0xf]
      %v272 = vld [vmem:[%s224 + $0x90] sm:$0x1]
      %s273 = scalar_lea.vmem %s1, 4
      %v274 = vld [vmem:[%s273] sm:$0xf]
      %v312 = vunpack.c.l.b16 %v235
      %v313 = vunpack.c.l.b16 %v236
      %v314 = vunpack.c.l.b16 %v237
      %v315 = vunpack.c.l.b16 %v238
      %v316 = vunpack.c.l.b16 %v239
      %v317 = vunpack.c.l.b16 %v240
      %v318 = vunpack.c.l.b16 %v241
      %v319 = vunpack.c.l.b16 %v242
      %v320 = vunpack.c.l.b16 %v243
      %v321 = vunpack.c.l.b16 %v244
      %v322 = vunpack.c.l.b16 %v245
      %v323 = vunpack.c.l.b16 %v246
      %v324 = vunpack.c.l.b16 %v247
      %v325 = vunpack.c.l.b16 %v248
      %v326 = vunpack.c.l.b16 %v249
      %v327 = vunpack.c.l.b16 %v250
      %v328 = vunpack.c.l.b16 %v251
      %v329 = vunpack.c.l.b16 %v252
      %v330 = vunpack.c.l.b16 %v253
      %v331 = vunpack.c.l.b16 %v254
      %v332 = vunpack.c.l.b16 %v255
      %v333 = vunpack.c.l.b16 %v256
      %v334 = vunpack.c.l.b16 %v257
      %v335 = vunpack.c.l.b16 %v258
      %v336 = vunpack.c.l.b16 %v259
      %v337 = vunpack.c.l.b16 %v260
      %v338 = vunpack.c.l.b16 %v261
      %v339 = vunpack.c.l.b16 %v262
      %v340 = vunpack.c.l.b16 %v263
      %v341 = vunpack.c.l.b16 %v264
      %v342 = vunpack.c.l.b16 %v265
      %v343 = vunpack.c.l.b16 %v266
      %v344 = vunpack.c.l.b16 %v267
      %v345 = vunpack.c.l.b16 %v268
      %v346 = vunpack.c.l.b16 %v269
      %v347 = vunpack.c.l.b16 %v270
      %v348 = vunpack.c.l.b16 %v272
      %v349 = vpack.c.b16 %v313, %v312
      %v350 = vpack.c.b16 %v315, %v314
      %v351 = vpack.c.b16 %v317, %v316
      %v352 = vpack.c.b16 %v319, %v318
      %v353 = vpack.c.b16 %v321, %v320
      %v354 = vpack.c.b16 %v323, %v322
      %v355 = vpack.c.b16 %v325, %v324
      %v356 = vpack.c.b16 %v327, %v326
      %v357 = vpack.c.b16 %v329, %v328
      %v358 = vpack.c.b16 %v331, %v330
      %v359 = vpack.c.b16 %v333, %v332
      %v360 = vpack.c.b16 %v335, %v334
      %v361 = vpack.c.b16 %v337, %v336
      %v362 = vpack.c.b16 %v339, %v338
      %v363 = vpack.c.b16 %v341, %v340
      %v364 = vpack.c.b16 %v343, %v342
      %v365 = vpack.c.b16 %v345, %v344
      %v366 = vpack.c.b16 %v347, %v346
      %v367 = vpack.c.b16 %v348, %v348
      %vm368 = vsmask.f32 7424
      %v370 = vshrl.u32 %v349, 16
      %v372 = vshll.u32 %v349, 16
      %v374 = vrot.slane %v372, 1
      %v375 = vor.u32 %v370, %v374
      %v377 = vshll.u32 %v350, 16
      %v379 = vrot.slane %v377, 1
      %v380 = vsel %vm368, %v375, %v379
      %v381 = vshrl.u32 %v350, 16
      %v383 = vor.u32 %v381, %v379
      %v385 = vshll.u32 %v351, 16
      %v387 = vrot.slane %v385, 1
      %v388 = vsel %vm368, %v383, %v387
      %v389 = vshrl.u32 %v351, 16
      %v391 = vor.u32 %v389, %v387
      %v393 = vshll.u32 %v352, 16
      %v395 = vrot.slane %v393, 1
      %v396 = vsel %vm368, %v391, %v395
      %v397 = vshrl.u32 %v352, 16
      %v399 = vor.u32 %v397, %v395
      %v401 = vshll.u32 %v353, 16
      %v403 = vrot.slane %v401, 1
      %v404 = vsel %vm368, %v399, %v403
      %v405 = vshrl.u32 %v353, 16
      %v407 = vor.u32 %v405, %v403
      %v409 = vshll.u32 %v354, 16
      %v411 = vrot.slane %v409, 1
      %v412 = vsel %vm368, %v407, %v411
      %v413 = vshrl.u32 %v354, 16
      %v415 = vor.u32 %v413, %v411
      %v417 = vshll.u32 %v355, 16
      %v419 = vrot.slane %v417, 1
      %v420 = vsel %vm368, %v415, %v419
      %v421 = vshrl.u32 %v355, 16
      %v423 = vor.u32 %v421, %v419
      %v425 = vshll.u32 %v356, 16
      %v427 = vrot.slane %v425, 1
      %v428 = vsel %vm368, %v423, %v427
      %v429 = vshrl.u32 %v356, 16
      %v431 = vor.u32 %v429, %v427
      %v433 = vshll.u32 %v357, 16
      %v435 = vrot.slane %v433, 1
      %v436 = vsel %vm368, %v431, %v435
      %v437 = vshrl.u32 %v357, 16
      %v439 = vor.u32 %v437, %v435
      %v441 = vshll.u32 %v358, 16
      %v443 = vrot.slane %v441, 1
      %v444 = vsel %vm368, %v439, %v443
      %v445 = vshrl.u32 %v358, 16
      %v447 = vor.u32 %v445, %v443
      %v449 = vshll.u32 %v359, 16
      %v451 = vrot.slane %v449, 1
      %v452 = vsel %vm368, %v447, %v451
      %v453 = vshrl.u32 %v359, 16
      %v455 = vor.u32 %v453, %v451
      %v457 = vshll.u32 %v360, 16
      %v459 = vrot.slane %v457, 1
      %v460 = vsel %vm368, %v455, %v459
      %v461 = vshrl.u32 %v360, 16
      %v463 = vor.u32 %v461, %v459
      %v465 = vshll.u32 %v361, 16
      %v467 = vrot.slane %v465, 1
      %v468 = vsel %vm368, %v463, %v467
      %v469 = vshrl.u32 %v361, 16
      %v471 = vor.u32 %v469, %v467
      %v473 = vshll.u32 %v362, 16
      %v475 = vrot.slane %v473, 1
      %v476 = vsel %vm368, %v471, %v475
      %v477 = vshrl.u32 %v362, 16
      %v479 = vor.u32 %v477, %v475
      %v481 = vshll.u32 %v363, 16
      %v483 = vrot.slane %v481, 1
      %v484 = vsel %vm368, %v479, %v483
      %v485 = vshrl.u32 %v363, 16
      %v487 = vor.u32 %v485, %v483
      %v489 = vshll.u32 %v364, 16
      %v491 = vrot.slane %v489, 1
      %v492 = vsel %vm368, %v487, %v491
      %v493 = vshrl.u32 %v364, 16
      %v495 = vor.u32 %v493, %v491
      %v497 = vshll.u32 %v365, 16
      %v499 = vrot.slane %v497, 1
      %v500 = vsel %vm368, %v495, %v499
      %v501 = vshrl.u32 %v365, 16
      %v503 = vor.u32 %v501, %v499
      %v505 = vshll.u32 %v366, 16
      %v507 = vrot.slane %v505, 1
      %v508 = vsel %vm368, %v503, %v507
      %v509 = vshrl.u32 %v366, 16
      %v511 = vor.u32 %v509, %v507
      %v513 = vshll.u32 %v367, 16
      %v515 = vrot.slane %v513, 1
      %v516 = vsel %vm368, %v511, %v515
      %vm517 = vcmask 64512
      %v519 = vsel %vm517, %v380, 0
      %v522 = vsel %vm517, %v388, 0
      %v525 = vsel %vm517, %v396, 0
      %v528 = vsel %vm517, %v404, 0
      %v531 = vsel %vm517, %v412, 0
      %v534 = vsel %vm517, %v420, 0
      %v537 = vsel %vm517, %v428, 0
      %v540 = vsel %vm517, %v436, 0
      %v543 = vsel %vm517, %v444, 0
      %v546 = vsel %vm517, %v452, 0
      %v549 = vsel %vm517, %v460, 0
      %v552 = vsel %vm517, %v468, 0
      %v555 = vsel %vm517, %v476, 0
      %v558 = vsel %vm517, %v484, 0
      %v561 = vsel %vm517, %v492, 0
      %v564 = vsel %vm517, %v500, 0
      %v567 = vsel %vm517, %v508, 0
      %v570 = vsel %vm517, %v516, 0
      %vm572 = vcmask 1043456
      %v574 = vsel %vm572, %v274, 0
      %576 = vmatprep.subr.bf16.mxu0 0
      %577 = vmatpush1.bf16.msra.mxu0 0
      %578 = vmatprep.subr.bf16.mxu0 0
      %579 = vmatpush1.bf16.msra.mxu0 0
      %580 = vmatprep.subr.bf16.mxu0 0
      %581 = vmatpush1.bf16.msra.mxu0 0
      %582 = vmatprep.subr.bf16.mxu0 0
      %583 = vmatpush1.bf16.msra.mxu0 0
      %584 = vmatprep.subr.bf16.mxu0 0
      %585 = vmatpush1.bf16.msra.mxu0 0
      %586 = vmatprep.subr.bf16.mxu0 0
      %587 = vmatpush1.bf16.msra.mxu0 0
      %588 = vmatprep.subr.bf16.mxu0 0
      %589 = vmatpush1.bf16.msra.mxu0 0
      %590 = vmatprep.subr.bf16.mxu0 0
      %591 = vmatpush1.bf16.msra.mxu0 %v574
      %592 = vmatprep.subr.bf16.mxu0 0
      %593 = vmatpush2.bf16.msra.mxu0 0
      %594 = vmatprep.subr.bf16.mxu0 0
      %595 = vmatpush2.bf16.msra.mxu0 0
      %596 = vmatprep.subr.bf16.mxu0 0
      %597 = vmatpush2.bf16.msra.mxu0 0
      %598 = vmatprep.subr.bf16.mxu0 0
      %599 = vmatpush2.bf16.msra.mxu0 0
      %600 = vmatprep.subr.bf16.mxu0 0
      %601 = vmatpush2.bf16.msra.mxu0 0
      %602 = vmatprep.subr.bf16.mxu0 0
      %603 = vmatpush2.bf16.msra.mxu0 0
      %604 = vmatprep.subr.bf16.mxu0 0
      %605 = vmatpush2.bf16.msra.mxu0 0
      %606 = vmatprep.subr.bf16.mxu0 0
      %607 = vmatpush2.bf16.msra.mxu0 0
      %608 = vmatprep.mubr.bf16.mxu0 0
      %609 = vmatmul.mubr.bf16.gmra.mxu0 %v519
      %v610 = vpop.f32.mrf.mxu0
      %v611 = vadd.f32 0.0, %v610
      %v612 = vpop.f32.mrf.mxu0
      %v613 = vpop.f32.mrf.mxu0
      %v614 = vadd.f32 0.0, %v613
      %v615 = vpop.f32.mrf.mxu0
      %616 = vmatprep.mubr.bf16.mxu0 0
      %617 = vmatmul.mubr.bf16.gmra.mxu0 %v522
      %v618 = vpop.f32.mrf.mxu0
      %v619 = vadd.f32 0.0, %v618
      %v620 = vpop.f32.mrf.mxu0
      %v621 = vpop.f32.mrf.mxu0
      %v622 = vadd.f32 0.0, %v621
      %v623 = vpop.f32.mrf.mxu0
      %624 = vmatprep.mubr.bf16.mxu0 0
      %625 = vmatmul.mubr.bf16.gmra.mxu0 %v525
      %v626 = vpop.f32.mrf.mxu0
      %v627 = vadd.f32 0.0, %v626
      %v628 = vpop.f32.mrf.mxu0
      %v629 = vpop.f32.mrf.mxu0
      %v630 = vadd.f32 0.0, %v629
      %v631 = vpop.f32.mrf.mxu0
      %632 = vmatprep.mubr.bf16.mxu0 0
      %633 = vmatmul.mubr.bf16.gmra.mxu0 %v528
      %v634 = vpop.f32.mrf.mxu0
      %v635 = vadd.f32 0.0, %v634
      %v636 = vpop.f32.mrf.mxu0
      %v637 = vpop.f32.mrf.mxu0
      %v638 = vadd.f32 0.0, %v637
      %v639 = vpop.f32.mrf.mxu0
      %640 = vmatprep.mubr.bf16.mxu0 0
      %641 = vmatmul.mubr.bf16.gmra.mxu0 %v531
      %v642 = vpop.f32.mrf.mxu0
      %v643 = vadd.f32 0.0, %v642
      %v644 = vpop.f32.mrf.mxu0
      %v645 = vpop.f32.mrf.mxu0
      %v646 = vadd.f32 0.0, %v645
      %v647 = vpop.f32.mrf.mxu0
      %648 = vmatprep.mubr.bf16.mxu0 0
      %649 = vmatmul.mubr.bf16.gmra.mxu0 %v534
      %v650 = vpop.f32.mrf.mxu0
      %v651 = vadd.f32 0.0, %v650
      %v652 = vpop.f32.mrf.mxu0
      %v653 = vpop.f32.mrf.mxu0
      %v654 = vadd.f32 0.0, %v653
      %v655 = vpop.f32.mrf.mxu0
      %656 = vmatprep.mubr.bf16.mxu0 0
      %657 = vmatmul.mubr.bf16.gmra.mxu0 %v537
      %v658 = vpop.f32.mrf.mxu0
      %v659 = vadd.f32 0.0, %v658
      %v660 = vpop.f32.mrf.mxu0
      %v661 = vpop.f32.mrf.mxu0
      %v662 = vadd.f32 0.0, %v661
      %v663 = vpop.f32.mrf.mxu0
      %664 = vmatprep.mubr.bf16.mxu0 0
      %665 = vmatmul.mubr.bf16.gmra.mxu0 %v540
      %v666 = vpop.f32.mrf.mxu0
      %v667 = vadd.f32 0.0, %v666
      %v668 = vpop.f32.mrf.mxu0
      %v669 = vpop.f32.mrf.mxu0
      %v670 = vadd.f32 0.0, %v669
      %v671 = vpop.f32.mrf.mxu0
      %672 = vmatprep.mubr.bf16.mxu0 0
      %673 = vmatmul.mubr.bf16.gmra.mxu0 %v543
      %v674 = vpop.f32.mrf.mxu0
      %v675 = vadd.f32 0.0, %v674
      %v676 = vpop.f32.mrf.mxu0
      %v677 = vpop.f32.mrf.mxu0
      %v678 = vadd.f32 0.0, %v677
      %v679 = vpop.f32.mrf.mxu0
      %680 = vmatprep.mubr.bf16.mxu0 0
      %681 = vmatmul.mubr.bf16.gmra.mxu0 %v546
      %v682 = vpop.f32.mrf.mxu0
      %v683 = vadd.f32 0.0, %v682
      %v684 = vpop.f32.mrf.mxu0
      %v685 = vpop.f32.mrf.mxu0
      %v686 = vadd.f32 0.0, %v685
      %v687 = vpop.f32.mrf.mxu0
      %688 = vmatprep.mubr.bf16.mxu0 0
      %689 = vmatmul.mubr.bf16.gmra.mxu0 %v549
      %v690 = vpop.f32.mrf.mxu0
      %v691 = vadd.f32 0.0, %v690
      %v692 = vpop.f32.mrf.mxu0
      %v693 = vpop.f32.mrf.mxu0
      %v694 = vadd.f32 0.0, %v693
      %v695 = vpop.f32.mrf.mxu0
      %696 = vmatprep.mubr.bf16.mxu0 0
      %697 = vmatmul.mubr.bf16.gmra.mxu0 %v552
      %v698 = vpop.f32.mrf.mxu0
      %v699 = vadd.f32 0.0, %v698
      %v700 = vpop.f32.mrf.mxu0
      %v701 = vpop.f32.mrf.mxu0
      %v702 = vadd.f32 0.0, %v701
      %v703 = vpop.f32.mrf.mxu0
      %704 = vmatprep.mubr.bf16.mxu0 0
      %705 = vmatmul.mubr.bf16.gmra.mxu0 %v555
      %v706 = vpop.f32.mrf.mxu0
      %v707 = vadd.f32 0.0, %v706
      %v708 = vpop.f32.mrf.mxu0
      %v709 = vpop.f32.mrf.mxu0
      %v710 = vadd.f32 0.0, %v709
      %v711 = vpop.f32.mrf.mxu0
      %712 = vmatprep.mubr.bf16.mxu0 0
      %713 = vmatmul.mubr.bf16.gmra.mxu0 %v558
      %v714 = vpop.f32.mrf.mxu0
      %v715 = vadd.f32 0.0, %v714
      %v716 = vpop.f32.mrf.mxu0
      %v717 = vpop.f32.mrf.mxu0
      %v718 = vadd.f32 0.0, %v717
      %v719 = vpop.f32.mrf.mxu0
      %720 = vmatprep.mubr.bf16.mxu0 0
      %721 = vmatmul.mubr.bf16.gmra.mxu0 %v561
      %v722 = vpop.f32.mrf.mxu0
      %v723 = vadd.f32 0.0, %v722
      %v724 = vpop.f32.mrf.mxu0
      %v725 = vpop.f32.mrf.mxu0
      %v726 = vadd.f32 0.0, %v725
      %v727 = vpop.f32.mrf.mxu0
      %728 = vmatprep.mubr.bf16.mxu0 0
      %729 = vmatmul.mubr.bf16.gmra.mxu0 %v564
      %v730 = vpop.f32.mrf.mxu0
      %v731 = vadd.f32 0.0, %v730
      %v732 = vpop.f32.mrf.mxu0
      %v733 = vpop.f32.mrf.mxu0
      %v734 = vadd.f32 0.0, %v733
      %v735 = vpop.f32.mrf.mxu0
      %736 = vmatprep.mubr.bf16.mxu0 0
      %737 = vmatmul.mubr.bf16.gmra.mxu0 %v567
      %v738 = vpop.f32.mrf.mxu0
      %v739 = vadd.f32 0.0, %v738
      %v740 = vpop.f32.mrf.mxu0
      %v741 = vpop.f32.mrf.mxu0
      %v742 = vadd.f32 0.0, %v741
      %v743 = vpop.f32.mrf.mxu0
      %744 = vmatprep.mubr.bf16.mxu0 0
      %745 = vmatmul.mubr.bf16.gmra.mxu0 %v570
      %v746 = vpop.f32.mrf.mxu0
      %v747 = vadd.f32 0.0, %v746
      %v748 = vpop.f32.mrf.mxu0
      %v749 = vpop.f32.mrf.mxu0
      %v750 = vadd.f32 0.0, %v749
      %v751 = vpop.f32.mrf.mxu0
      %752 = vdwg.mxu0
      %v753 = vsel %vm517, %v349, 0
      %v755 = vsel %vm517, %v350, 0
      %v757 = vsel %vm517, %v351, 0
      %v759 = vsel %vm517, %v352, 0
      %v761 = vsel %vm517, %v353, 0
      %v763 = vsel %vm517, %v354, 0
      %v765 = vsel %vm517, %v355, 0
      %v767 = vsel %vm517, %v356, 0
      %v769 = vsel %vm517, %v357, 0
      %v771 = vsel %vm517, %v358, 0
      %v773 = vsel %vm517, %v359, 0
      %v775 = vsel %vm517, %v360, 0
      %v777 = vsel %vm517, %v361, 0
      %v779 = vsel %vm517, %v362, 0
      %v781 = vsel %vm517, %v363, 0
      %v783 = vsel %vm517, %v364, 0
      %v785 = vsel %vm517, %v365, 0
      %v787 = vsel %vm517, %v366, 0
      %v790 = vsel %vm572, %v271, 0
      %792 = vmatprep.subr.bf16.mxu0 0
      %793 = vmatpush1.bf16.msra.mxu0 0
      %794 = vmatprep.subr.bf16.mxu0 0
      %795 = vmatpush1.bf16.msra.mxu0 0
      %796 = vmatprep.subr.bf16.mxu0 0
      %797 = vmatpush1.bf16.msra.mxu0 0
      %798 = vmatprep.subr.bf16.mxu0 0
      %799 = vmatpush1.bf16.msra.mxu0 0
      %800 = vmatprep.subr.bf16.mxu0 0
      %801 = vmatpush1.bf16.msra.mxu0 0
      %802 = vmatprep.subr.bf16.mxu0 0
      %803 = vmatpush1.bf16.msra.mxu0 0
      %804 = vmatprep.subr.bf16.mxu0 0
      %805 = vmatpush1.bf16.msra.mxu0 0
      %806 = vmatprep.subr.bf16.mxu0 0
      %807 = vmatpush1.bf16.msra.mxu0 %v790
      %808 = vmatprep.subr.bf16.mxu0 0
      %809 = vmatpush2.bf16.msra.mxu0 0
      %810 = vmatprep.subr.bf16.mxu0 0
      %811 = vmatpush2.bf16.msra.mxu0 0
      %812 = vmatprep.subr.bf16.mxu0 0
      %813 = vmatpush2.bf16.msra.mxu0 0
      %814 = vmatprep.subr.bf16.mxu0 0
      %815 = vmatpush2.bf16.msra.mxu0 0
      %816 = vmatprep.subr.bf16.mxu0 0
      %817 = vmatpush2.bf16.msra.mxu0 0
      %818 = vmatprep.subr.bf16.mxu0 0
      %819 = vmatpush2.bf16.msra.mxu0 0
      %820 = vmatprep.subr.bf16.mxu0 0
      %821 = vmatpush2.bf16.msra.mxu0 0
      %822 = vmatprep.subr.bf16.mxu0 0
      %823 = vmatpush2.bf16.msra.mxu0 0
      %824 = vmatprep.mubr.bf16.mxu0 0
      %825 = vmatmul.mubr.bf16.gmra.mxu0 %v753
      %v826 = vpop.f32.mrf.mxu0
      %v827 = vadd.f32 %v611, %v826
      %v828 = vpop.f32.mrf.mxu0
      %v829 = vpop.f32.mrf.mxu0
      %v830 = vadd.f32 %v614, %v829
      %v831 = vpop.f32.mrf.mxu0
      %832 = vmatprep.mubr.bf16.mxu0 0
      %833 = vmatmul.mubr.bf16.gmra.mxu0 %v755
      %v834 = vpop.f32.mrf.mxu0
      %v835 = vadd.f32 %v619, %v834
      %v836 = vpop.f32.mrf.mxu0
      %v837 = vpop.f32.mrf.mxu0
      %v838 = vadd.f32 %v622, %v837
      %v839 = vpop.f32.mrf.mxu0
      %840 = vmatprep.mubr.bf16.mxu0 0
      %841 = vmatmul.mubr.bf16.gmra.mxu0 %v757
      %v842 = vpop.f32.mrf.mxu0
      %v843 = vadd.f32 %v627, %v842
      %v844 = vpop.f32.mrf.mxu0
      %v845 = vpop.f32.mrf.mxu0
      %v846 = vadd.f32 %v630, %v845
      %v847 = vpop.f32.mrf.mxu0
      %848 = vmatprep.mubr.bf16.mxu0 0
      %849 = vmatmul.mubr.bf16.gmra.mxu0 %v759
      %v850 = vpop.f32.mrf.mxu0
      %v851 = vadd.f32 %v635, %v850
      %v852 = vpop.f32.mrf.mxu0
      %v853 = vpop.f32.mrf.mxu0
      %v854 = vadd.f32 %v638, %v853
      %v855 = vpop.f32.mrf.mxu0
      %856 = vmatprep.mubr.bf16.mxu0 0
      %857 = vmatmul.mubr.bf16.gmra.mxu0 %v761
      %v858 = vpop.f32.mrf.mxu0
      %v859 = vadd.f32 %v643, %v858
      %v860 = vpop.f32.mrf.mxu0
      %v861 = vpop.f32.mrf.mxu0
      %v862 = vadd.f32 %v646, %v861
      %v863 = vpop.f32.mrf.mxu0
      %864 = vmatprep.mubr.bf16.mxu0 0
      %865 = vmatmul.mubr.bf16.gmra.mxu0 %v763
      %v866 = vpop.f32.mrf.mxu0
      %v867 = vadd.f32 %v651, %v866
      %v868 = vpop.f32.mrf.mxu0
      %v869 = vpop.f32.mrf.mxu0
      %v870 = vadd.f32 %v654, %v869
      %v871 = vpop.f32.mrf.mxu0
      %872 = vmatprep.mubr.bf16.mxu0 0
      %873 = vmatmul.mubr.bf16.gmra.mxu0 %v765
      %v874 = vpop.f32.mrf.mxu0
      %v875 = vadd.f32 %v659, %v874
      %v876 = vpop.f32.mrf.mxu0
      %v877 = vpop.f32.mrf.mxu0
      %v878 = vadd.f32 %v662, %v877
      %v879 = vpop.f32.mrf.mxu0
      %880 = vmatprep.mubr.bf16.mxu0 0
      %881 = vmatmul.mubr.bf16.gmra.mxu0 %v767
      %v882 = vpop.f32.mrf.mxu0
      %v883 = vadd.f32 %v667, %v882
      %v884 = vpop.f32.mrf.mxu0
      %v885 = vpop.f32.mrf.mxu0
      %v886 = vadd.f32 %v670, %v885
      %v887 = vpop.f32.mrf.mxu0
      %888 = vmatprep.mubr.bf16.mxu0 0
      %889 = vmatmul.mubr.bf16.gmra.mxu0 %v769
      %v890 = vpop.f32.mrf.mxu0
      %v891 = vadd.f32 %v675, %v890
      %v892 = vpop.f32.mrf.mxu0
      %v893 = vpop.f32.mrf.mxu0
      %v894 = vadd.f32 %v678, %v893
      %v895 = vpop.f32.mrf.mxu0
      %896 = vmatprep.mubr.bf16.mxu0 0
      %897 = vmatmul.mubr.bf16.gmra.mxu0 %v771
      %v898 = vpop.f32.mrf.mxu0
      %v899 = vadd.f32 %v683, %v898
      %v900 = vpop.f32.mrf.mxu0
      %v901 = vpop.f32.mrf.mxu0
      %v902 = vadd.f32 %v686, %v901
      %v903 = vpop.f32.mrf.mxu0
      %904 = vmatprep.mubr.bf16.mxu0 0
      %905 = vmatmul.mubr.bf16.gmra.mxu0 %v773
      %v906 = vpop.f32.mrf.mxu0
      %v907 = vadd.f32 %v691, %v906
      %v908 = vpop.f32.mrf.mxu0
      %v909 = vpop.f32.mrf.mxu0
      %v910 = vadd.f32 %v694, %v909
      %v911 = vpop.f32.mrf.mxu0
      %912 = vmatprep.mubr.bf16.mxu0 0
      %913 = vmatmul.mubr.bf16.gmra.mxu0 %v775
      %v914 = vpop.f32.mrf.mxu0
      %v915 = vadd.f32 %v699, %v914
      %v916 = vpop.f32.mrf.mxu0
      %v917 = vpop.f32.mrf.mxu0
      %v918 = vadd.f32 %v702, %v917
      %v919 = vpop.f32.mrf.mxu0
      %920 = vmatprep.mubr.bf16.mxu0 0
      %921 = vmatmul.mubr.bf16.gmra.mxu0 %v777
      %v922 = vpop.f32.mrf.mxu0
      %v923 = vadd.f32 %v707, %v922
      %v924 = vpop.f32.mrf.mxu0
      %v925 = vpop.f32.mrf.mxu0
      %v926 = vadd.f32 %v710, %v925
      %v927 = vpop.f32.mrf.mxu0
      %928 = vmatprep.mubr.bf16.mxu0 0
      %929 = vmatmul.mubr.bf16.gmra.mxu0 %v779
      %v930 = vpop.f32.mrf.mxu0
      %v931 = vadd.f32 %v715, %v930
      %v932 = vpop.f32.mrf.mxu0
      %v933 = vpop.f32.mrf.mxu0
      %v934 = vadd.f32 %v718, %v933
      %v935 = vpop.f32.mrf.mxu0
      %936 = vmatprep.mubr.bf16.mxu0 0
      %937 = vmatmul.mubr.bf16.gmra.mxu0 %v781
      %v938 = vpop.f32.mrf.mxu0
      %v939 = vadd.f32 %v723, %v938
      %v940 = vpop.f32.mrf.mxu0
      %v941 = vpop.f32.mrf.mxu0
      %v942 = vadd.f32 %v726, %v941
      %v943 = vpop.f32.mrf.mxu0
      %944 = vmatprep.mubr.bf16.mxu0 0
      %945 = vmatmul.mubr.bf16.gmra.mxu0 %v783
      %v946 = vpop.f32.mrf.mxu0
      %v947 = vadd.f32 %v731, %v946
      %v948 = vpop.f32.mrf.mxu0
      %v949 = vpop.f32.mrf.mxu0
      %v950 = vadd.f32 %v734, %v949
      %v951 = vpop.f32.mrf.mxu0
      %952 = vmatprep.mubr.bf16.mxu0 0
      %953 = vmatmul.mubr.bf16.gmra.mxu0 %v785
      %v954 = vpop.f32.mrf.mxu0
      %v955 = vadd.f32 %v739, %v954
      %v956 = vpop.f32.mrf.mxu0
      %v957 = vpop.f32.mrf.mxu0
      %v958 = vadd.f32 %v742, %v957
      %v959 = vpop.f32.mrf.mxu0
      %960 = vmatprep.mubr.bf16.mxu0 0
      %961 = vmatmul.mubr.bf16.gmra.mxu0 %v787
      %v962 = vpop.f32.mrf.mxu0
      %v963 = vadd.f32 %v747, %v962
      %v964 = vpop.f32.mrf.mxu0
      %v965 = vpop.f32.mrf.mxu0
      %v966 = vadd.f32 %v750, %v965
      %v967 = vpop.f32.mrf.mxu0
      %968 = vdwg.mxu0
      %v969 = vld [vmem:[%s224] sm:$0xe]
      %s970 = scalar_lea.vmem %s1, 8
      %v971 = vld [vmem:[%s970] sm:$0xf]
      %v973 = vunpack.c.l.b16 %v969
      %v974 = vpack.c.b16 %v313, %v973
      %vm975 = vcmask 1046528
      %v976 = vrot.slane %v974, 1
      %v977 = vrot.slane %v350, 1
      %v978 = vsel %vm975, %v976, %v977
      %v979 = vrot.slane %v351, 1
      %v980 = vsel %vm975, %v977, %v979
      %v981 = vrot.slane %v352, 1
      %v982 = vsel %vm975, %v979, %v981
      %v983 = vrot.slane %v353, 1
      %v984 = vsel %vm975, %v981, %v983
      %v985 = vrot.slane %v354, 1
      %v986 = vsel %vm975, %v983, %v985
      %v987 = vrot.slane %v355, 1
      %v988 = vsel %vm975, %v985, %v987
      %v989 = vrot.slane %v356, 1
      %v990 = vsel %vm975, %v987, %v989
      %v991 = vrot.slane %v357, 1
      %v992 = vsel %vm975, %v989, %v991
      %v993 = vrot.slane %v358, 1
      %v994 = vsel %vm975, %v991, %v993
      %v995 = vrot.slane %v359, 1
      %v996 = vsel %vm975, %v993, %v995
      %v997 = vrot.slane %v360, 1
      %v998 = vsel %vm975, %v995, %v997
      %v999 = vrot.slane %v361, 1
      %v1000 = vsel %vm975, %v997, %v999
      %v1001 = vrot.slane %v362, 1
      %v1002 = vsel %vm975, %v999, %v1001
      %v1003 = vrot.slane %v363, 1
      %v1004 = vsel %vm975, %v1001, %v1003
      %v1005 = vrot.slane %v364, 1
      %v1006 = vsel %vm975, %v1003, %v1005
      %v1007 = vrot.slane %v365, 1
      %v1008 = vsel %vm975, %v1005, %v1007
      %v1009 = vrot.slane %v366, 1
      %v1010 = vsel %vm975, %v1007, %v1009
      %v1011 = vrot.slane %v367, 1
      %v1012 = vsel %vm975, %v1009, %v1011
      %v1014 = vsel %vm517, %v978, 0
      %v1017 = vsel %vm517, %v980, 0
      %v1020 = vsel %vm517, %v982, 0
      %v1023 = vsel %vm517, %v984, 0
      %v1026 = vsel %vm517, %v986, 0
      %v1029 = vsel %vm517, %v988, 0
      %v1032 = vsel %vm517, %v990, 0
      %v1035 = vsel %vm517, %v992, 0
      %v1038 = vsel %vm517, %v994, 0
      %v1041 = vsel %vm517, %v996, 0
      %v1044 = vsel %vm517, %v998, 0
      %v1047 = vsel %vm517, %v1000, 0
      %v1050 = vsel %vm517, %v1002, 0
      %v1053 = vsel %vm517, %v1004, 0
      %v1056 = vsel %vm517, %v1006, 0
      %v1059 = vsel %vm517, %v1008, 0
      %v1062 = vsel %vm517, %v1010, 0
      %v1065 = vsel %vm517, %v1012, 0
      %v1068 = vsel %vm572, %v971, 0
      %1070 = vmatprep.subr.bf16.mxu0 0
      %1071 = vmatpush1.bf16.msra.mxu0 0
      %1072 = vmatprep.subr.bf16.mxu0 0
      %1073 = vmatpush1.bf16.msra.mxu0 0
      %1074 = vmatprep.subr.bf16.mxu0 0
      %1075 = vmatpush1.bf16.msra.mxu0 0
      %1076 = vmatprep.subr.bf16.mxu0 0
      %1077 = vmatpush1.bf16.msra.mxu0 0
      %1078 = vmatprep.subr.bf16.mxu0 0
      %1079 = vmatpush1.bf16.msra.mxu0 0
      %1080 = vmatprep.subr.bf16.mxu0 0
      %1081 = vmatpush1.bf16.msra.mxu0 0
      %1082 = vmatprep.subr.bf16.mxu0 0
      %1083 = vmatpush1.bf16.msra.mxu0 0
      %1084 = vmatprep.subr.bf16.mxu0 0
      %1085 = vmatpush1.bf16.msra.mxu0 %v1068
      %1086 = vmatprep.subr.bf16.mxu0 0
      %1087 = vmatpush2.bf16.msra.mxu0 0
      %1088 = vmatprep.subr.bf16.mxu0 0
      %1089 = vmatpush2.bf16.msra.mxu0 0
      %1090 = vmatprep.subr.bf16.mxu0 0
      %1091 = vmatpush2.bf16.msra.mxu0 0
      %1092 = vmatprep.subr.bf16.mxu0 0
      %1093 = vmatpush2.bf16.msra.mxu0 0
      %1094 = vmatprep.subr.bf16.mxu0 0
      %1095 = vmatpush2.bf16.msra.mxu0 0
      %1096 = vmatprep.subr.bf16.mxu0 0
      %1097 = vmatpush2.bf16.msra.mxu0 0
      %1098 = vmatprep.subr.bf16.mxu0 0
      %1099 = vmatpush2.bf16.msra.mxu0 0
      %1100 = vmatprep.subr.bf16.mxu0 0
      %1101 = vmatpush2.bf16.msra.mxu0 0
      %1102 = vmatprep.mubr.bf16.mxu0 0
      %1103 = vmatmul.mubr.bf16.gmra.mxu0 %v1014
      %v1104 = vpop.f32.mrf.mxu0
      %v1105 = vadd.f32 0.0, %v1104
      %v1106 = vpop.f32.mrf.mxu0
      %v1107 = vpop.f32.mrf.mxu0
      %v1108 = vadd.f32 0.0, %v1107
      %v1109 = vpop.f32.mrf.mxu0
      %1110 = vmatprep.mubr.bf16.mxu0 0
      %1111 = vmatmul.mubr.bf16.gmra.mxu0 %v1017
      %v1112 = vpop.f32.mrf.mxu0
      %v1113 = vadd.f32 0.0, %v1112
      %v1114 = vpop.f32.mrf.mxu0
      %v1115 = vpop.f32.mrf.mxu0
      %v1116 = vadd.f32 0.0, %v1115
      %v1117 = vpop.f32.mrf.mxu0
      %1118 = vmatprep.mubr.bf16.mxu0 0
      %1119 = vmatmul.mubr.bf16.gmra.mxu0 %v1020
      %v1120 = vpop.f32.mrf.mxu0
      %v1121 = vadd.f32 0.0, %v1120
      %v1122 = vpop.f32.mrf.mxu0
      %v1123 = vpop.f32.mrf.mxu0
      %v1124 = vadd.f32 0.0, %v1123
      %v1125 = vpop.f32.mrf.mxu0
      %1126 = vmatprep.mubr.bf16.mxu0 0
      %1127 = vmatmul.mubr.bf16.gmra.mxu0 %v1023
      %v1128 = vpop.f32.mrf.mxu0
      %v1129 = vadd.f32 0.0, %v1128
      %v1130 = vpop.f32.mrf.mxu0
      %v1131 = vpop.f32.mrf.mxu0
      %v1132 = vadd.f32 0.0, %v1131
      %v1133 = vpop.f32.mrf.mxu0
      %1134 = vmatprep.mubr.bf16.mxu0 0
      %1135 = vmatmul.mubr.bf16.gmra.mxu0 %v1026
      %v1136 = vpop.f32.mrf.mxu0
      %v1137 = vadd.f32 0.0, %v1136
      %v1138 = vpop.f32.mrf.mxu0
      %v1139 = vpop.f32.mrf.mxu0
      %v1140 = vadd.f32 0.0, %v1139
      %v1141 = vpop.f32.mrf.mxu0
      %1142 = vmatprep.mubr.bf16.mxu0 0
      %1143 = vmatmul.mubr.bf16.gmra.mxu0 %v1029
      %v1144 = vpop.f32.mrf.mxu0
      %v1145 = vadd.f32 0.0, %v1144
      %v1146 = vpop.f32.mrf.mxu0
      %v1147 = vpop.f32.mrf.mxu0
      %v1148 = vadd.f32 0.0, %v1147
      %v1149 = vpop.f32.mrf.mxu0
      %1150 = vmatprep.mubr.bf16.mxu0 0
      %1151 = vmatmul.mubr.bf16.gmra.mxu0 %v1032
      %v1152 = vpop.f32.mrf.mxu0
      %v1153 = vadd.f32 0.0, %v1152
      %v1154 = vpop.f32.mrf.mxu0
      %v1155 = vpop.f32.mrf.mxu0
      %v1156 = vadd.f32 0.0, %v1155
      %v1157 = vpop.f32.mrf.mxu0
      %1158 = vmatprep.mubr.bf16.mxu0 0
      %1159 = vmatmul.mubr.bf16.gmra.mxu0 %v1035
      %v1160 = vpop.f32.mrf.mxu0
      %v1161 = vadd.f32 0.0, %v1160
      %v1162 = vpop.f32.mrf.mxu0
      %v1163 = vpop.f32.mrf.mxu0
      %v1164 = vadd.f32 0.0, %v1163
      %v1165 = vpop.f32.mrf.mxu0
      %1166 = vmatprep.mubr.bf16.mxu0 0
      %1167 = vmatmul.mubr.bf16.gmra.mxu0 %v1038
      %v1168 = vpop.f32.mrf.mxu0
      %v1169 = vadd.f32 0.0, %v1168
      %v1170 = vpop.f32.mrf.mxu0
      %v1171 = vpop.f32.mrf.mxu0
      %v1172 = vadd.f32 0.0, %v1171
      %v1173 = vpop.f32.mrf.mxu0
      %1174 = vmatprep.mubr.bf16.mxu0 0
      %1175 = vmatmul.mubr.bf16.gmra.mxu0 %v1041
      %v1176 = vpop.f32.mrf.mxu0
      %v1177 = vadd.f32 0.0, %v1176
      %v1178 = vpop.f32.mrf.mxu0
      %v1179 = vpop.f32.mrf.mxu0
      %v1180 = vadd.f32 0.0, %v1179
      %v1181 = vpop.f32.mrf.mxu0
      %1182 = vmatprep.mubr.bf16.mxu0 0
      %1183 = vmatmul.mubr.bf16.gmra.mxu0 %v1044
      %v1184 = vpop.f32.mrf.mxu0
      %v1185 = vadd.f32 0.0, %v1184
      %v1186 = vpop.f32.mrf.mxu0
      %v1187 = vpop.f32.mrf.mxu0
      %v1188 = vadd.f32 0.0, %v1187
      %v1189 = vpop.f32.mrf.mxu0
      %1190 = vmatprep.mubr.bf16.mxu0 0
      %1191 = vmatmul.mubr.bf16.gmra.mxu0 %v1047
      %v1192 = vpop.f32.mrf.mxu0
      %v1193 = vadd.f32 0.0, %v1192
      %v1194 = vpop.f32.mrf.mxu0
      %v1195 = vpop.f32.mrf.mxu0
      %v1196 = vadd.f32 0.0, %v1195
      %v1197 = vpop.f32.mrf.mxu0
      %1198 = vmatprep.mubr.bf16.mxu0 0
      %1199 = vmatmul.mubr.bf16.gmra.mxu0 %v1050
      %v1200 = vpop.f32.mrf.mxu0
      %v1201 = vadd.f32 0.0, %v1200
      %v1202 = vpop.f32.mrf.mxu0
      %v1203 = vpop.f32.mrf.mxu0
      %v1204 = vadd.f32 0.0, %v1203
      %v1205 = vpop.f32.mrf.mxu0
      %1206 = vmatprep.mubr.bf16.mxu0 0
      %1207 = vmatmul.mubr.bf16.gmra.mxu0 %v1053
      %v1208 = vpop.f32.mrf.mxu0
      %v1209 = vadd.f32 0.0, %v1208
      %v1210 = vpop.f32.mrf.mxu0
      %v1211 = vpop.f32.mrf.mxu0
      %v1212 = vadd.f32 0.0, %v1211
      %v1213 = vpop.f32.mrf.mxu0
      %1214 = vmatprep.mubr.bf16.mxu0 0
      %1215 = vmatmul.mubr.bf16.gmra.mxu0 %v1056
      %v1216 = vpop.f32.mrf.mxu0
      %v1217 = vadd.f32 0.0, %v1216
      %v1218 = vpop.f32.mrf.mxu0
      %v1219 = vpop.f32.mrf.mxu0
      %v1220 = vadd.f32 0.0, %v1219
      %v1221 = vpop.f32.mrf.mxu0
      %1222 = vmatprep.mubr.bf16.mxu0 0
      %1223 = vmatmul.mubr.bf16.gmra.mxu0 %v1059
      %v1224 = vpop.f32.mrf.mxu0
      %v1225 = vadd.f32 0.0, %v1224
      %v1226 = vpop.f32.mrf.mxu0
      %v1227 = vpop.f32.mrf.mxu0
      %v1228 = vadd.f32 0.0, %v1227
      %v1229 = vpop.f32.mrf.mxu0
      %1230 = vmatprep.mubr.bf16.mxu0 0
      %1231 = vmatmul.mubr.bf16.gmra.mxu0 %v1062
      %v1232 = vpop.f32.mrf.mxu0
      %v1233 = vadd.f32 0.0, %v1232
      %v1234 = vpop.f32.mrf.mxu0
      %v1235 = vpop.f32.mrf.mxu0
      %v1236 = vadd.f32 0.0, %v1235
      %v1237 = vpop.f32.mrf.mxu0
      %1238 = vmatprep.mubr.bf16.mxu0 0
      %1239 = vmatmul.mubr.bf16.gmra.mxu0 %v1065
      %v1240 = vpop.f32.mrf.mxu0
      %v1241 = vadd.f32 0.0, %v1240
      %v1242 = vpop.f32.mrf.mxu0
      %v1243 = vpop.f32.mrf.mxu0
      %v1244 = vadd.f32 0.0, %v1243
      %v1245 = vpop.f32.mrf.mxu0
      %1246 = vdwg.mxu0
      %v1247 = vadd.f32 %v827, %v1105
      %v1248 = vadd.f32 %v830, %v1108
      %v1249 = vadd.f32 %v835, %v1113
      %v1250 = vadd.f32 %v838, %v1116
      %v1251 = vadd.f32 %v843, %v1121
      %v1252 = vadd.f32 %v846, %v1124
      %v1253 = vadd.f32 %v851, %v1129
      %v1254 = vadd.f32 %v854, %v1132
      %v1255 = vadd.f32 %v859, %v1137
      %v1256 = vadd.f32 %v862, %v1140
      %v1257 = vadd.f32 %v867, %v1145
      %v1258 = vadd.f32 %v870, %v1148
      %v1259 = vadd.f32 %v875, %v1153
      %v1260 = vadd.f32 %v878, %v1156
      %v1261 = vadd.f32 %v883, %v1161
      %v1262 = vadd.f32 %v886, %v1164
      %v1263 = vadd.f32 %v891, %v1169
      %v1264 = vadd.f32 %v894, %v1172
      %v1265 = vadd.f32 %v899, %v1177
      %v1266 = vadd.f32 %v902, %v1180
      %v1267 = vadd.f32 %v907, %v1185
      %v1268 = vadd.f32 %v910, %v1188
      %v1269 = vadd.f32 %v915, %v1193
      %v1270 = vadd.f32 %v918, %v1196
      %v1271 = vadd.f32 %v923, %v1201
      %v1272 = vadd.f32 %v926, %v1204
      %v1273 = vadd.f32 %v931, %v1209
      %v1274 = vadd.f32 %v934, %v1212
      %v1275 = vadd.f32 %v939, %v1217
      %v1276 = vadd.f32 %v942, %v1220
      %v1277 = vadd.f32 %v947, %v1225
      %v1278 = vadd.f32 %v950, %v1228
      %v1279 = vadd.f32 %v955, %v1233
      %v1280 = vadd.f32 %v958, %v1236
      %v1281 = vadd.f32 %v963, %v1241
      %v1282 = vadd.f32 %v966, %v1244
      %v1283 = vld [vmem:[%s224 + $0x8] sm:$0xe]
      %v1284 = vld [vmem:[%s224 + $0xc] sm:$0xf]
      %v1285 = vld [vmem:[%s224 + $0x10] sm:$0xf]
      %v1286 = vld [vmem:[%s224 + $0x14] sm:$0xf]
      %v1287 = vld [vmem:[%s224 + $0x18] sm:$0xf]
      %v1288 = vld [vmem:[%s224 + $0x1c] sm:$0xf]
      %v1289 = vld [vmem:[%s224 + $0x20] sm:$0xf]
      %v1290 = vld [vmem:[%s224 + $0x24] sm:$0xf]
      %v1291 = vld [vmem:[%s224 + $0x28] sm:$0xf]
      %v1292 = vld [vmem:[%s224 + $0x2c] sm:$0xf]
      %v1293 = vld [vmem:[%s224 + $0x30] sm:$0xf]
      %v1294 = vld [vmem:[%s224 + $0x34] sm:$0xf]
      %v1295 = vld [vmem:[%s224 + $0x38] sm:$0xf]
      %v1296 = vld [vmem:[%s224 + $0x3c] sm:$0xf]
      %v1297 = vld [vmem:[%s224 + $0x40] sm:$0xf]
      %v1298 = vld [vmem:[%s224 + $0x44] sm:$0xf]
      %v1299 = vld [vmem:[%s224 + $0x48] sm:$0xf]
      %v1300 = vld [vmem:[%s224 + $0x4c] sm:$0xf]
      %v1301 = vld [vmem:[%s224 + $0x50] sm:$0xf]
      %v1302 = vld [vmem:[%s224 + $0x54] sm:$0xf]
      %v1303 = vld [vmem:[%s224 + $0x58] sm:$0xf]
      %v1304 = vld [vmem:[%s224 + $0x5c] sm:$0xf]
      %v1305 = vld [vmem:[%s224 + $0x60] sm:$0xf]
      %v1306 = vld [vmem:[%s224 + $0x64] sm:$0xf]
      %v1307 = vld [vmem:[%s224 + $0x68] sm:$0xf]
      %v1308 = vld [vmem:[%s224 + $0x6c] sm:$0xf]
      %v1309 = vld [vmem:[%s224 + $0x70] sm:$0xf]
      %v1310 = vld [vmem:[%s224 + $0x74] sm:$0xf]
      %v1311 = vld [vmem:[%s224 + $0x78] sm:$0xf]
      %v1312 = vld [vmem:[%s224 + $0x7c] sm:$0xf]
      %v1313 = vld [vmem:[%s224 + $0x80] sm:$0xf]
      %v1314 = vld [vmem:[%s224 + $0x84] sm:$0xf]
      %v1315 = vld [vmem:[%s224 + $0x88] sm:$0xf]
      %v1316 = vld [vmem:[%s224 + $0x8c] sm:$0xf]
      %v1317 = vld [vmem:[%s224 + $0x90] sm:$0xf]
      %v1318 = vld [vmem:[%s224 + $0x94] sm:$0xf]
      %v1319 = vld [vmem:[%s224 + $0x98] sm:$0x1]
      %s1320 = scalar_lea.vmem %s1, 12
      %v1321 = vld [vmem:[%s1320] sm:$0xf]
      %v1359 = vunpack.c.l.b16 %v1283
      %v1360 = vunpack.c.l.b16 %v1284
      %v1361 = vunpack.c.l.b16 %v1285
      %v1362 = vunpack.c.l.b16 %v1286
      %v1363 = vunpack.c.l.b16 %v1287
      %v1364 = vunpack.c.l.b16 %v1288
      %v1365 = vunpack.c.l.b16 %v1289
      %v1366 = vunpack.c.l.b16 %v1290
      %v1367 = vunpack.c.l.b16 %v1291
      %v1368 = vunpack.c.l.b16 %v1292
      %v1369 = vunpack.c.l.b16 %v1293
      %v1370 = vunpack.c.l.b16 %v1294
      %v1371 = vunpack.c.l.b16 %v1295
      %v1372 = vunpack.c.l.b16 %v1296
      %v1373 = vunpack.c.l.b16 %v1297
      %v1374 = vunpack.c.l.b16 %v1298
      %v1375 = vunpack.c.l.b16 %v1299
      %v1376 = vunpack.c.l.b16 %v1300
      %v1377 = vunpack.c.l.b16 %v1301
      %v1378 = vunpack.c.l.b16 %v1302
      %v1379 = vunpack.c.l.b16 %v1303
      %v1380 = vunpack.c.l.b16 %v1304
      %v1381 = vunpack.c.l.b16 %v1305
      %v1382 = vunpack.c.l.b16 %v1306
      %v1383 = vunpack.c.l.b16 %v1307
      %v1384 = vunpack.c.l.b16 %v1308
      %v1385 = vunpack.c.l.b16 %v1309
      %v1386 = vunpack.c.l.b16 %v1310
      %v1387 = vunpack.c.l.b16 %v1311
      %v1388 = vunpack.c.l.b16 %v1312
      %v1389 = vunpack.c.l.b16 %v1313
      %v1390 = vunpack.c.l.b16 %v1314
      %v1391 = vunpack.c.l.b16 %v1315
      %v1392 = vunpack.c.l.b16 %v1316
      %v1393 = vunpack.c.l.b16 %v1317
      %v1394 = vunpack.c.l.b16 %v1318
      %v1395 = vunpack.c.l.b16 %v1319
      %v1396 = vpack.c.b16 %v1360, %v1359
      %v1397 = vpack.c.b16 %v1362, %v1361
      %v1398 = vpack.c.b16 %v1364, %v1363
      %v1399 = vpack.c.b16 %v1366, %v1365
      %v1400 = vpack.c.b16 %v1368, %v1367
      %v1401 = vpack.c.b16 %v1370, %v1369
      %v1402 = vpack.c.b16 %v1372, %v1371
      %v1403 = vpack.c.b16 %v1374, %v1373
      %v1404 = vpack.c.b16 %v1376, %v1375
      %v1405 = vpack.c.b16 %v1378, %v1377
      %v1406 = vpack.c.b16 %v1380, %v1379
      %v1407 = vpack.c.b16 %v1382, %v1381
      %v1408 = vpack.c.b16 %v1384, %v1383
      %v1409 = vpack.c.b16 %v1386, %v1385
      %v1410 = vpack.c.b16 %v1388, %v1387
      %v1411 = vpack.c.b16 %v1390, %v1389
      %v1412 = vpack.c.b16 %v1392, %v1391
      %v1413 = vpack.c.b16 %v1394, %v1393
      %v1414 = vpack.c.b16 %v1395, %v1395
      %v1415 = vrot.slane %v1396, 1
      %v1416 = vrot.slane %v1397, 1
      %v1417 = vsel %vm975, %v1415, %v1416
      %v1418 = vrot.slane %v1398, 1
      %v1419 = vsel %vm975, %v1416, %v1418
      %v1420 = vrot.slane %v1399, 1
      %v1421 = vsel %vm975, %v1418, %v1420
      %v1422 = vrot.slane %v1400, 1
      %v1423 = vsel %vm975, %v1420, %v1422
      %v1424 = vrot.slane %v1401, 1
      %v1425 = vsel %vm975, %v1422, %v1424
      %v1426 = vrot.slane %v1402, 1
      %v1427 = vsel %vm975, %v1424, %v1426
      %v1428 = vrot.slane %v1403, 1
      %v1429 = vsel %vm975, %v1426, %v1428
      %v1430 = vrot.slane %v1404, 1
      %v1431 = vsel %vm975, %v1428, %v1430
      %v1432 = vrot.slane %v1405, 1
      %v1433 = vsel %vm975, %v1430, %v1432
      %v1434 = vrot.slane %v1406, 1
      %v1435 = vsel %vm975, %v1432, %v1434
      %v1436 = vrot.slane %v1407, 1
      %v1437 = vsel %vm975, %v1434, %v1436
      %v1438 = vrot.slane %v1408, 1
      %v1439 = vsel %vm975, %v1436, %v1438
      %v1440 = vrot.slane %v1409, 1
      %v1441 = vsel %vm975, %v1438, %v1440
      %v1442 = vrot.slane %v1410, 1
      %v1443 = vsel %vm975, %v1440, %v1442
      %v1444 = vrot.slane %v1411, 1
      %v1445 = vsel %vm975, %v1442, %v1444
      %v1446 = vrot.slane %v1412, 1
      %v1447 = vsel %vm975, %v1444, %v1446
      %v1448 = vrot.slane %v1413, 1
      %v1449 = vsel %vm975, %v1446, %v1448
      %v1450 = vrot.slane %v1414, 1
      %v1451 = vsel %vm975, %v1448, %v1450
      %v1453 = vsel %vm517, %v1417, 0
      %v1456 = vsel %vm517, %v1419, 0
      %v1459 = vsel %vm517, %v1421, 0
      %v1462 = vsel %vm517, %v1423, 0
      %v1465 = vsel %vm517, %v1425, 0
      %v1468 = vsel %vm517, %v1427, 0
      %v1471 = vsel %vm517, %v1429, 0
      %v1474 = vsel %vm517, %v1431, 0
      %v1477 = vsel %vm517, %v1433, 0
      %v1480 = vsel %vm517, %v1435, 0
      %v1483 = vsel %vm517, %v1437, 0
      %v1486 = vsel %vm517, %v1439, 0
      %v1489 = vsel %vm517, %v1441, 0
      %v1492 = vsel %vm517, %v1443, 0
      %v1495 = vsel %vm517, %v1445, 0
      %v1498 = vsel %vm517, %v1447, 0
      %v1501 = vsel %vm517, %v1449, 0
      %v1504 = vsel %vm517, %v1451, 0
      %v1507 = vsel %vm572, %v1321, 0
      %1509 = vmatprep.subr.bf16.mxu0 0
      %1510 = vmatpush1.bf16.msra.mxu0 0
      %1511 = vmatprep.subr.bf16.mxu0 0
      %1512 = vmatpush1.bf16.msra.mxu0 0
      %1513 = vmatprep.subr.bf16.mxu0 0
      %1514 = vmatpush1.bf16.msra.mxu0 0
      %1515 = vmatprep.subr.bf16.mxu0 0
      %1516 = vmatpush1.bf16.msra.mxu0 0
      %1517 = vmatprep.subr.bf16.mxu0 0
      %1518 = vmatpush1.bf16.msra.mxu0 0
      %1519 = vmatprep.subr.bf16.mxu0 0
      %1520 = vmatpush1.bf16.msra.mxu0 0
      %1521 = vmatprep.subr.bf16.mxu0 0
      %1522 = vmatpush1.bf16.msra.mxu0 0
      %1523 = vmatprep.subr.bf16.mxu0 0
      %1524 = vmatpush1.bf16.msra.mxu0 %v1507
      %1525 = vmatprep.subr.bf16.mxu0 0
      %1526 = vmatpush2.bf16.msra.mxu0 0
      %1527 = vmatprep.subr.bf16.mxu0 0
      %1528 = vmatpush2.bf16.msra.mxu0 0
      %1529 = vmatprep.subr.bf16.mxu0 0
      %1530 = vmatpush2.bf16.msra.mxu0 0
      %1531 = vmatprep.subr.bf16.mxu0 0
      %1532 = vmatpush2.bf16.msra.mxu0 0
      %1533 = vmatprep.subr.bf16.mxu0 0
      %1534 = vmatpush2.bf16.msra.mxu0 0
      %1535 = vmatprep.subr.bf16.mxu0 0
      %1536 = vmatpush2.bf16.msra.mxu0 0
      %1537 = vmatprep.subr.bf16.mxu0 0
      %1538 = vmatpush2.bf16.msra.mxu0 0
      %1539 = vmatprep.subr.bf16.mxu0 0
      %1540 = vmatpush2.bf16.msra.mxu0 0
      %1541 = vmatprep.mubr.bf16.mxu0 0
      %1542 = vmatmul.mubr.bf16.gmra.mxu0 %v1453
      %v1543 = vpop.f32.mrf.mxu0
      %v1544 = vadd.f32 0.0, %v1543
      %v1545 = vpop.f32.mrf.mxu0
      %v1546 = vpop.f32.mrf.mxu0
      %v1547 = vadd.f32 0.0, %v1546
      %v1548 = vpop.f32.mrf.mxu0
      %1549 = vmatprep.mubr.bf16.mxu0 0
      %1550 = vmatmul.mubr.bf16.gmra.mxu0 %v1456
      %v1551 = vpop.f32.mrf.mxu0
      %v1552 = vadd.f32 0.0, %v1551
      %v1553 = vpop.f32.mrf.mxu0
      %v1554 = vpop.f32.mrf.mxu0
      %v1555 = vadd.f32 0.0, %v1554
      %v1556 = vpop.f32.mrf.mxu0
      %1557 = vmatprep.mubr.bf16.mxu0 0
      %1558 = vmatmul.mubr.bf16.gmra.mxu0 %v1459
      %v1559 = vpop.f32.mrf.mxu0
      %v1560 = vadd.f32 0.0, %v1559
      %v1561 = vpop.f32.mrf.mxu0
      %v1562 = vpop.f32.mrf.mxu0
      %v1563 = vadd.f32 0.0, %v1562
      %v1564 = vpop.f32.mrf.mxu0
      %1565 = vmatprep.mubr.bf16.mxu0 0
      %1566 = vmatmul.mubr.bf16.gmra.mxu0 %v1462
      %v1567 = vpop.f32.mrf.mxu0
      %v1568 = vadd.f32 0.0, %v1567
      %v1569 = vpop.f32.mrf.mxu0
      %v1570 = vpop.f32.mrf.mxu0
      %v1571 = vadd.f32 0.0, %v1570
      %v1572 = vpop.f32.mrf.mxu0
      %1573 = vmatprep.mubr.bf16.mxu0 0
      %1574 = vmatmul.mubr.bf16.gmra.mxu0 %v1465
      %v1575 = vpop.f32.mrf.mxu0
      %v1576 = vadd.f32 0.0, %v1575
      %v1577 = vpop.f32.mrf.mxu0
      %v1578 = vpop.f32.mrf.mxu0
      %v1579 = vadd.f32 0.0, %v1578
      %v1580 = vpop.f32.mrf.mxu0
      %1581 = vmatprep.mubr.bf16.mxu0 0
      %1582 = vmatmul.mubr.bf16.gmra.mxu0 %v1468
      %v1583 = vpop.f32.mrf.mxu0
      %v1584 = vadd.f32 0.0, %v1583
      %v1585 = vpop.f32.mrf.mxu0
      %v1586 = vpop.f32.mrf.mxu0
      %v1587 = vadd.f32 0.0, %v1586
      %v1588 = vpop.f32.mrf.mxu0
      %1589 = vmatprep.mubr.bf16.mxu0 0
      %1590 = vmatmul.mubr.bf16.gmra.mxu0 %v1471
      %v1591 = vpop.f32.mrf.mxu0
      %v1592 = vadd.f32 0.0, %v1591
      %v1593 = vpop.f32.mrf.mxu0
      %v1594 = vpop.f32.mrf.mxu0
      %v1595 = vadd.f32 0.0, %v1594
      %v1596 = vpop.f32.mrf.mxu0
      %1597 = vmatprep.mubr.bf16.mxu0 0
      %1598 = vmatmul.mubr.bf16.gmra.mxu0 %v1474
      %v1599 = vpop.f32.mrf.mxu0
      %v1600 = vadd.f32 0.0, %v1599
      %v1601 = vpop.f32.mrf.mxu0
      %v1602 = vpop.f32.mrf.mxu0
      %v1603 = vadd.f32 0.0, %v1602
      %v1604 = vpop.f32.mrf.mxu0
      %1605 = vmatprep.mubr.bf16.mxu0 0
      %1606 = vmatmul.mubr.bf16.gmra.mxu0 %v1477
      %v1607 = vpop.f32.mrf.mxu0
      %v1608 = vadd.f32 0.0, %v1607
      %v1609 = vpop.f32.mrf.mxu0
      %v1610 = vpop.f32.mrf.mxu0
      %v1611 = vadd.f32 0.0, %v1610
      %v1612 = vpop.f32.mrf.mxu0
      %1613 = vmatprep.mubr.bf16.mxu0 0
      %1614 = vmatmul.mubr.bf16.gmra.mxu0 %v1480
      %v1615 = vpop.f32.mrf.mxu0
      %v1616 = vadd.f32 0.0, %v1615
      %v1617 = vpop.f32.mrf.mxu0
      %v1618 = vpop.f32.mrf.mxu0
      %v1619 = vadd.f32 0.0, %v1618
      %v1620 = vpop.f32.mrf.mxu0
      %1621 = vmatprep.mubr.bf16.mxu0 0
      %1622 = vmatmul.mubr.bf16.gmra.mxu0 %v1483
      %v1623 = vpop.f32.mrf.mxu0
      %v1624 = vadd.f32 0.0, %v1623
      %v1625 = vpop.f32.mrf.mxu0
      %v1626 = vpop.f32.mrf.mxu0
      %v1627 = vadd.f32 0.0, %v1626
      %v1628 = vpop.f32.mrf.mxu0
      %1629 = vmatprep.mubr.bf16.mxu0 0
      %1630 = vmatmul.mubr.bf16.gmra.mxu0 %v1486
      %v1631 = vpop.f32.mrf.mxu0
      %v1632 = vadd.f32 0.0, %v1631
      %v1633 = vpop.f32.mrf.mxu0
      %v1634 = vpop.f32.mrf.mxu0
      %v1635 = vadd.f32 0.0, %v1634
      %v1636 = vpop.f32.mrf.mxu0
      %1637 = vmatprep.mubr.bf16.mxu0 0
      %1638 = vmatmul.mubr.bf16.gmra.mxu0 %v1489
      %v1639 = vpop.f32.mrf.mxu0
      %v1640 = vadd.f32 0.0, %v1639
      %v1641 = vpop.f32.mrf.mxu0
      %v1642 = vpop.f32.mrf.mxu0
      %v1643 = vadd.f32 0.0, %v1642
      %v1644 = vpop.f32.mrf.mxu0
      %1645 = vmatprep.mubr.bf16.mxu0 0
      %1646 = vmatmul.mubr.bf16.gmra.mxu0 %v1492
      %v1647 = vpop.f32.mrf.mxu0
      %v1648 = vadd.f32 0.0, %v1647
      %v1649 = vpop.f32.mrf.mxu0
      %v1650 = vpop.f32.mrf.mxu0
      %v1651 = vadd.f32 0.0, %v1650
      %v1652 = vpop.f32.mrf.mxu0
      %1653 = vmatprep.mubr.bf16.mxu0 0
      %1654 = vmatmul.mubr.bf16.gmra.mxu0 %v1495
      %v1655 = vpop.f32.mrf.mxu0
      %v1656 = vadd.f32 0.0, %v1655
      %v1657 = vpop.f32.mrf.mxu0
      %v1658 = vpop.f32.mrf.mxu0
      %v1659 = vadd.f32 0.0, %v1658
      %v1660 = vpop.f32.mrf.mxu0
      %1661 = vmatprep.mubr.bf16.mxu0 0
      %1662 = vmatmul.mubr.bf16.gmra.mxu0 %v1498
      %v1663 = vpop.f32.mrf.mxu0
      %v1664 = vadd.f32 0.0, %v1663
      %v1665 = vpop.f32.mrf.mxu0
      %v1666 = vpop.f32.mrf.mxu0
      %v1667 = vadd.f32 0.0, %v1666
      %v1668 = vpop.f32.mrf.mxu0
      %1669 = vmatprep.mubr.bf16.mxu0 0
      %1670 = vmatmul.mubr.bf16.gmra.mxu0 %v1501
      %v1671 = vpop.f32.mrf.mxu0
      %v1672 = vadd.f32 0.0, %v1671
      %v1673 = vpop.f32.mrf.mxu0
      %v1674 = vpop.f32.mrf.mxu0
      %v1675 = vadd.f32 0.0, %v1674
      %v1676 = vpop.f32.mrf.mxu0
      %1677 = vmatprep.mubr.bf16.mxu0 0
      %1678 = vmatmul.mubr.bf16.gmra.mxu0 %v1504
      %v1679 = vpop.f32.mrf.mxu0
      %v1680 = vadd.f32 0.0, %v1679
      %v1681 = vpop.f32.mrf.mxu0
      %v1682 = vpop.f32.mrf.mxu0
      %v1683 = vadd.f32 0.0, %v1682
      %v1684 = vpop.f32.mrf.mxu0
      %1685 = vdwg.mxu0
      %v1686 = vadd.f32 %v1247, %v1544
      %v1687 = vadd.f32 %v1248, %v1547
      %v1688 = vadd.f32 %v1249, %v1552
      %v1689 = vadd.f32 %v1250, %v1555
      %v1690 = vadd.f32 %v1251, %v1560
      %v1691 = vadd.f32 %v1252, %v1563
      %v1692 = vadd.f32 %v1253, %v1568
      %v1693 = vadd.f32 %v1254, %v1571
      %v1694 = vadd.f32 %v1255, %v1576
      %v1695 = vadd.f32 %v1256, %v1579
      %v1696 = vadd.f32 %v1257, %v1584
      %v1697 = vadd.f32 %v1258, %v1587
      %v1698 = vadd.f32 %v1259, %v1592
      %v1699 = vadd.f32 %v1260, %v1595
      %v1700 = vadd.f32 %v1261, %v1600
      %v1701 = vadd.f32 %v1262, %v1603
      %v1702 = vadd.f32 %v1263, %v1608
      %v1703 = vadd.f32 %v1264, %v1611
      %v1704 = vadd.f32 %v1265, %v1616
      %v1705 = vadd.f32 %v1266, %v1619
      %v1706 = vadd.f32 %v1267, %v1624
      %v1707 = vadd.f32 %v1268, %v1627
      %v1708 = vadd.f32 %v1269, %v1632
      %v1709 = vadd.f32 %v1270, %v1635
      %v1710 = vadd.f32 %v1271, %v1640
      %v1711 = vadd.f32 %v1272, %v1643
      %v1712 = vadd.f32 %v1273, %v1648
      %v1713 = vadd.f32 %v1274, %v1651
      %v1714 = vadd.f32 %v1275, %v1656
      %v1715 = vadd.f32 %v1276, %v1659
      %v1716 = vadd.f32 %v1277, %v1664
      %v1717 = vadd.f32 %v1278, %v1667
      %v1718 = vadd.f32 %v1279, %v1672
      %v1719 = vadd.f32 %v1280, %v1675
      %v1720 = vadd.f32 %v1281, %v1680
      %v1721 = vadd.f32 %v1282, %v1683
      %v1722 = vld [vmem:[%s224 + $0x98] sm:$0x3]
      %s1723 = scalar_lea.vmem %s1, 16
      %v1724 = vld [vmem:[%s1723] sm:$0xf]
      %v1726 = vunpack.c.l.b16 %v1722
      %v1727 = vpack.c.b16 %v1726, %v1726
      %vm1728 = vsmask.f32 6400
      %v1730 = vshrl.u32 %v1396, 16
      %v1732 = vrot.slane %v1730, 1
      %v1733 = vshll.u32 %v1396, 16
      %v1735 = vrot.slane %v1733, 2
      %v1736 = vor.u32 %v1732, %v1735
      %v1738 = vshrl.u32 %v1397, 16
      %v1740 = vrot.slane %v1738, 1
      %v1741 = vshll.u32 %v1397, 16
      %v1743 = vrot.slane %v1741, 2
      %v1744 = vor.u32 %v1740, %v1743
      %v1745 = vsel %vm1728, %v1736, %v1744
      %v1747 = vshrl.u32 %v1398, 16
      %v1749 = vrot.slane %v1747, 1
      %v1750 = vshll.u32 %v1398, 16
      %v1752 = vrot.slane %v1750, 2
      %v1753 = vor.u32 %v1749, %v1752
      %v1754 = vsel %vm1728, %v1744, %v1753
      %v1756 = vshrl.u32 %v1399, 16
      %v1758 = vrot.slane %v1756, 1
      %v1759 = vshll.u32 %v1399, 16
      %v1761 = vrot.slane %v1759, 2
      %v1762 = vor.u32 %v1758, %v1761
      %v1763 = vsel %vm1728, %v1753, %v1762
      %v1765 = vshrl.u32 %v1400, 16
      %v1767 = vrot.slane %v1765, 1
      %v1768 = vshll.u32 %v1400, 16
      %v1770 = vrot.slane %v1768, 2
      %v1771 = vor.u32 %v1767, %v1770
      %v1772 = vsel %vm1728, %v1762, %v1771
      %v1774 = vshrl.u32 %v1401, 16
      %v1776 = vrot.slane %v1774, 1
      %v1777 = vshll.u32 %v1401, 16
      %v1779 = vrot.slane %v1777, 2
      %v1780 = vor.u32 %v1776, %v1779
      %v1781 = vsel %vm1728, %v1771, %v1780
      %v1783 = vshrl.u32 %v1402, 16
      %v1785 = vrot.slane %v1783, 1
      %v1786 = vshll.u32 %v1402, 16
      %v1788 = vrot.slane %v1786, 2
      %v1789 = vor.u32 %v1785, %v1788
      %v1790 = vsel %vm1728, %v1780, %v1789
      %v1792 = vshrl.u32 %v1403, 16
      %v1794 = vrot.slane %v1792, 1
      %v1795 = vshll.u32 %v1403, 16
      %v1797 = vrot.slane %v1795, 2
      %v1798 = vor.u32 %v1794, %v1797
      %v1799 = vsel %vm1728, %v1789, %v1798
      %v1801 = vshrl.u32 %v1404, 16
      %v1803 = vrot.slane %v1801, 1
      %v1804 = vshll.u32 %v1404, 16
      %v1806 = vrot.slane %v1804, 2
      %v1807 = vor.u32 %v1803, %v1806
      %v1808 = vsel %vm1728, %v1798, %v1807
      %v1810 = vshrl.u32 %v1405, 16
      %v1812 = vrot.slane %v1810, 1
      %v1813 = vshll.u32 %v1405, 16
      %v1815 = vrot.slane %v1813, 2
      %v1816 = vor.u32 %v1812, %v1815
      %v1817 = vsel %vm1728, %v1807, %v1816
      %v1819 = vshrl.u32 %v1406, 16
      %v1821 = vrot.slane %v1819, 1
      %v1822 = vshll.u32 %v1406, 16
      %v1824 = vrot.slane %v1822, 2
      %v1825 = vor.u32 %v1821, %v1824
      %v1826 = vsel %vm1728, %v1816, %v1825
      %v1828 = vshrl.u32 %v1407, 16
      %v1830 = vrot.slane %v1828, 1
      %v1831 = vshll.u32 %v1407, 16
      %v1833 = vrot.slane %v1831, 2
      %v1834 = vor.u32 %v1830, %v1833
      %v1835 = vsel %vm1728, %v1825, %v1834
      %v1837 = vshrl.u32 %v1408, 16
      %v1839 = vrot.slane %v1837, 1
      %v1840 = vshll.u32 %v1408, 16
      %v1842 = vrot.slane %v1840, 2
      %v1843 = vor.u32 %v1839, %v1842
      %v1844 = vsel %vm1728, %v1834, %v1843
      %v1846 = vshrl.u32 %v1409, 16
      %v1848 = vrot.slane %v1846, 1
      %v1849 = vshll.u32 %v1409, 16
      %v1851 = vrot.slane %v1849, 2
      %v1852 = vor.u32 %v1848, %v1851
      %v1853 = vsel %vm1728, %v1843, %v1852
      %v1855 = vshrl.u32 %v1410, 16
      %v1857 = vrot.slane %v1855, 1
      %v1858 = vshll.u32 %v1410, 16
      %v1860 = vrot.slane %v1858, 2
      %v1861 = vor.u32 %v1857, %v1860
      %v1862 = vsel %vm1728, %v1852, %v1861
      %v1864 = vshrl.u32 %v1411, 16
      %v1866 = vrot.slane %v1864, 1
      %v1867 = vshll.u32 %v1411, 16
      %v1869 = vrot.slane %v1867, 2
      %v1870 = vor.u32 %v1866, %v1869
      %v1871 = vsel %vm1728, %v1861, %v1870
      %v1873 = vshrl.u32 %v1412, 16
      %v1875 = vrot.slane %v1873, 1
      %v1876 = vshll.u32 %v1412, 16
      %v1878 = vrot.slane %v1876, 2
      %v1879 = vor.u32 %v1875, %v1878
      %v1880 = vsel %vm1728, %v1870, %v1879
      %v1882 = vshrl.u32 %v1413, 16
      %v1884 = vrot.slane %v1882, 1
      %v1885 = vshll.u32 %v1413, 16
      %v1887 = vrot.slane %v1885, 2
      %v1888 = vor.u32 %v1884, %v1887
      %v1889 = vsel %vm1728, %v1879, %v1888
      %v1891 = vshrl.u32 %v1727, 16
      %v1893 = vrot.slane %v1891, 1
      %v1894 = vshll.u32 %v1727, 16
      %v1896 = vrot.slane %v1894, 2
      %v1897 = vor.u32 %v1893, %v1896
      %v1898 = vsel %vm1728, %v1888, %v1897
      %v1900 = vsel %vm517, %v1745, 0
      %v1903 = vsel %vm517, %v1754, 0
      %v1906 = vsel %vm517, %v1763, 0
      %v1909 = vsel %vm517, %v1772, 0
      %v1912 = vsel %vm517, %v1781, 0
      %v1915 = vsel %vm517, %v1790, 0
      %v1918 = vsel %vm517, %v1799, 0
      %v1921 = vsel %vm517, %v1808, 0
      %v1924 = vsel %vm517, %v1817, 0
      %v1927 = vsel %vm517, %v1826, 0
      %v1930 = vsel %vm517, %v1835, 0
      %v1933 = vsel %vm517, %v1844, 0
      %v1936 = vsel %vm517, %v1853, 0
      %v1939 = vsel %vm517, %v1862, 0
      %v1942 = vsel %vm517, %v1871, 0
      %v1945 = vsel %vm517, %v1880, 0
      %v1948 = vsel %vm517, %v1889, 0
      %v1951 = vsel %vm517, %v1898, 0
      %v1954 = vsel %vm572, %v1724, 0
      %1956 = vmatprep.subr.bf16.mxu0 0
      %1957 = vmatpush1.bf16.msra.mxu0 0
      %1958 = vmatprep.subr.bf16.mxu0 0
      %1959 = vmatpush1.bf16.msra.mxu0 0
      %1960 = vmatprep.subr.bf16.mxu0 0
      %1961 = vmatpush1.bf16.msra.mxu0 0
      %1962 = vmatprep.subr.bf16.mxu0 0
      %1963 = vmatpush1.bf16.msra.mxu0 0
      %1964 = vmatprep.subr.bf16.mxu0 0
      %1965 = vmatpush1.bf16.msra.mxu0 0
      %1966 = vmatprep.subr.bf16.mxu0 0
      %1967 = vmatpush1.bf16.msra.mxu0 0
      %1968 = vmatprep.subr.bf16.mxu0 0
      %1969 = vmatpush1.bf16.msra.mxu0 0
      %1970 = vmatprep.subr.bf16.mxu0 0
      %1971 = vmatpush1.bf16.msra.mxu0 %v1954
      %1972 = vmatprep.subr.bf16.mxu0 0
      %1973 = vmatpush2.bf16.msra.mxu0 0
      %1974 = vmatprep.subr.bf16.mxu0 0
      %1975 = vmatpush2.bf16.msra.mxu0 0
      %1976 = vmatprep.subr.bf16.mxu0 0
      %1977 = vmatpush2.bf16.msra.mxu0 0
      %1978 = vmatprep.subr.bf16.mxu0 0
      %1979 = vmatpush2.bf16.msra.mxu0 0
      %1980 = vmatprep.subr.bf16.mxu0 0
      %1981 = vmatpush2.bf16.msra.mxu0 0
      %1982 = vmatprep.subr.bf16.mxu0 0
      %1983 = vmatpush2.bf16.msra.mxu0 0
      %1984 = vmatprep.subr.bf16.mxu0 0
      %1985 = vmatpush2.bf16.msra.mxu0 0
      %1986 = vmatprep.subr.bf16.mxu0 0
      %1987 = vmatpush2.bf16.msra.mxu0 0
      %1988 = vmatprep.mubr.bf16.mxu0 0
      %1989 = vmatmul.mubr.bf16.gmra.mxu0 %v1900
      %v1990 = vpop.f32.mrf.mxu0
      %v1991 = vadd.f32 0.0, %v1990
      %v1992 = vpop.f32.mrf.mxu0
      %v1993 = vpop.f32.mrf.mxu0
      %v1994 = vadd.f32 0.0, %v1993
      %v1995 = vpop.f32.mrf.mxu0
      %1996 = vmatprep.mubr.bf16.mxu0 0
      %1997 = vmatmul.mubr.bf16.gmra.mxu0 %v1903
      %v1998 = vpop.f32.mrf.mxu0
      %v1999 = vadd.f32 0.0, %v1998
      %v2000 = vpop.f32.mrf.mxu0
      %v2001 = vpop.f32.mrf.mxu0
      %v2002 = vadd.f32 0.0, %v2001
      %v2003 = vpop.f32.mrf.mxu0
      %2004 = vmatprep.mubr.bf16.mxu0 0
      %2005 = vmatmul.mubr.bf16.gmra.mxu0 %v1906
      %v2006 = vpop.f32.mrf.mxu0
      %v2007 = vadd.f32 0.0, %v2006
      %v2008 = vpop.f32.mrf.mxu0
      %v2009 = vpop.f32.mrf.mxu0
      %v2010 = vadd.f32 0.0, %v2009
      %v2011 = vpop.f32.mrf.mxu0
      %2012 = vmatprep.mubr.bf16.mxu0 0
      %2013 = vmatmul.mubr.bf16.gmra.mxu0 %v1909
      %v2014 = vpop.f32.mrf.mxu0
      %v2015 = vadd.f32 0.0, %v2014
      %v2016 = vpop.f32.mrf.mxu0
      %v2017 = vpop.f32.mrf.mxu0
      %v2018 = vadd.f32 0.0, %v2017
      %v2019 = vpop.f32.mrf.mxu0
      %2020 = vmatprep.mubr.bf16.mxu0 0
      %2021 = vmatmul.mubr.bf16.gmra.mxu0 %v1912
      %v2022 = vpop.f32.mrf.mxu0
      %v2023 = vadd.f32 0.0, %v2022
      %v2024 = vpop.f32.mrf.mxu0
      %v2025 = vpop.f32.mrf.mxu0
      %v2026 = vadd.f32 0.0, %v2025
      %v2027 = vpop.f32.mrf.mxu0
      %2028 = vmatprep.mubr.bf16.mxu0 0
      %2029 = vmatmul.mubr.bf16.gmra.mxu0 %v1915
      %v2030 = vpop.f32.mrf.mxu0
      %v2031 = vadd.f32 0.0, %v2030
      %v2032 = vpop.f32.mrf.mxu0
      %v2033 = vpop.f32.mrf.mxu0
      %v2034 = vadd.f32 0.0, %v2033
      %v2035 = vpop.f32.mrf.mxu0
      %2036 = vmatprep.mubr.bf16.mxu0 0
      %2037 = vmatmul.mubr.bf16.gmra.mxu0 %v1918
      %v2038 = vpop.f32.mrf.mxu0
      %v2039 = vadd.f32 0.0, %v2038
      %v2040 = vpop.f32.mrf.mxu0
      %v2041 = vpop.f32.mrf.mxu0
      %v2042 = vadd.f32 0.0, %v2041
      %v2043 = vpop.f32.mrf.mxu0
      %2044 = vmatprep.mubr.bf16.mxu0 0
      %2045 = vmatmul.mubr.bf16.gmra.mxu0 %v1921
      %v2046 = vpop.f32.mrf.mxu0
      %v2047 = vadd.f32 0.0, %v2046
      %v2048 = vpop.f32.mrf.mxu0
      %v2049 = vpop.f32.mrf.mxu0
      %v2050 = vadd.f32 0.0, %v2049
      %v2051 = vpop.f32.mrf.mxu0
      %2052 = vmatprep.mubr.bf16.mxu0 0
      %2053 = vmatmul.mubr.bf16.gmra.mxu0 %v1924
      %v2054 = vpop.f32.mrf.mxu0
      %v2055 = vadd.f32 0.0, %v2054
      %v2056 = vpop.f32.mrf.mxu0
      %v2057 = vpop.f32.mrf.mxu0
      %v2058 = vadd.f32 0.0, %v2057
      %v2059 = vpop.f32.mrf.mxu0
      %2060 = vmatprep.mubr.bf16.mxu0 0
      %2061 = vmatmul.mubr.bf16.gmra.mxu0 %v1927
      %v2062 = vpop.f32.mrf.mxu0
      %v2063 = vadd.f32 0.0, %v2062
      %v2064 = vpop.f32.mrf.mxu0
      %v2065 = vpop.f32.mrf.mxu0
      %v2066 = vadd.f32 0.0, %v2065
      %v2067 = vpop.f32.mrf.mxu0
      %2068 = vmatprep.mubr.bf16.mxu0 0
      %2069 = vmatmul.mubr.bf16.gmra.mxu0 %v1930
      %v2070 = vpop.f32.mrf.mxu0
      %v2071 = vadd.f32 0.0, %v2070
      %v2072 = vpop.f32.mrf.mxu0
      %v2073 = vpop.f32.mrf.mxu0
      %v2074 = vadd.f32 0.0, %v2073
      %v2075 = vpop.f32.mrf.mxu0
      %2076 = vmatprep.mubr.bf16.mxu0 0
      %2077 = vmatmul.mubr.bf16.gmra.mxu0 %v1933
      %v2078 = vpop.f32.mrf.mxu0
      %v2079 = vadd.f32 0.0, %v2078
      %v2080 = vpop.f32.mrf.mxu0
      %v2081 = vpop.f32.mrf.mxu0
      %v2082 = vadd.f32 0.0, %v2081
      %v2083 = vpop.f32.mrf.mxu0
      %2084 = vmatprep.mubr.bf16.mxu0 0
      %2085 = vmatmul.mubr.bf16.gmra.mxu0 %v1936
      %v2086 = vpop.f32.mrf.mxu0
      %v2087 = vadd.f32 0.0, %v2086
      %v2088 = vpop.f32.mrf.mxu0
      %v2089 = vpop.f32.mrf.mxu0
      %v2090 = vadd.f32 0.0, %v2089
      %v2091 = vpop.f32.mrf.mxu0
      %2092 = vmatprep.mubr.bf16.mxu0 0
      %2093 = vmatmul.mubr.bf16.gmra.mxu0 %v1939
      %v2094 = vpop.f32.mrf.mxu0
      %v2095 = vadd.f32 0.0, %v2094
      %v2096 = vpop.f32.mrf.mxu0
      %v2097 = vpop.f32.mrf.mxu0
      %v2098 = vadd.f32 0.0, %v2097
      %v2099 = vpop.f32.mrf.mxu0
      %2100 = vmatprep.mubr.bf16.mxu0 0
      %2101 = vmatmul.mubr.bf16.gmra.mxu0 %v1942
      %v2102 = vpop.f32.mrf.mxu0
      %v2103 = vadd.f32 0.0, %v2102
      %v2104 = vpop.f32.mrf.mxu0
      %v2105 = vpop.f32.mrf.mxu0
      %v2106 = vadd.f32 0.0, %v2105
      %v2107 = vpop.f32.mrf.mxu0
      %2108 = vmatprep.mubr.bf16.mxu0 0
      %2109 = vmatmul.mubr.bf16.gmra.mxu0 %v1945
      %v2110 = vpop.f32.mrf.mxu0
      %v2111 = vadd.f32 0.0, %v2110
      %v2112 = vpop.f32.mrf.mxu0
      %v2113 = vpop.f32.mrf.mxu0
      %v2114 = vadd.f32 0.0, %v2113
      %v2115 = vpop.f32.mrf.mxu0
      %2116 = vmatprep.mubr.bf16.mxu0 0
      %2117 = vmatmul.mubr.bf16.gmra.mxu0 %v1948
      %v2118 = vpop.f32.mrf.mxu0
      %v2119 = vadd.f32 0.0, %v2118
      %v2120 = vpop.f32.mrf.mxu0
      %v2121 = vpop.f32.mrf.mxu0
      %v2122 = vadd.f32 0.0, %v2121
      %v2123 = vpop.f32.mrf.mxu0
      %2124 = vmatprep.mubr.bf16.mxu0 0
      %2125 = vmatmul.mubr.bf16.gmra.mxu0 %v1951
      %v2126 = vpop.f32.mrf.mxu0
      %v2127 = vadd.f32 0.0, %v2126
      %v2128 = vpop.f32.mrf.mxu0
      %v2129 = vpop.f32.mrf.mxu0
      %v2130 = vadd.f32 0.0, %v2129
      %v2131 = vpop.f32.mrf.mxu0
      %2132 = vdwg.mxu0
      %v2133 = vadd.f32 %v1686, %v1991
      %v2134 = vadd.f32 %v1687, %v1994
      %v2135 = vadd.f32 %v1688, %v1999
      %v2136 = vadd.f32 %v1689, %v2002
      %v2137 = vadd.f32 %v1690, %v2007
      %v2138 = vadd.f32 %v1691, %v2010
      %v2139 = vadd.f32 %v1692, %v2015
      %v2140 = vadd.f32 %v1693, %v2018
      %v2141 = vadd.f32 %v1694, %v2023
      %v2142 = vadd.f32 %v1695, %v2026
      %v2143 = vadd.f32 %v1696, %v2031
      %v2144 = vadd.f32 %v1697, %v2034
      %v2145 = vadd.f32 %v1698, %v2039
      %v2146 = vadd.f32 %v1699, %v2042
      %v2147 = vadd.f32 %v1700, %v2047
      %v2148 = vadd.f32 %v1701, %v2050
      %v2149 = vadd.f32 %v1702, %v2055
      %v2150 = vadd.f32 %v1703, %v2058
      %v2151 = vadd.f32 %v1704, %v2063
      %v2152 = vadd.f32 %v1705, %v2066
      %v2153 = vadd.f32 %v1706, %v2071
      %v2154 = vadd.f32 %v1707, %v2074
      %v2155 = vadd.f32 %v1708, %v2079
      %v2156 = vadd.f32 %v1709, %v2082
      %v2157 = vadd.f32 %v1710, %v2087
      %v2158 = vadd.f32 %v1711, %v2090
      %v2159 = vadd.f32 %v1712, %v2095
      %v2160 = vadd.f32 %v1713, %v2098
      %v2161 = vadd.f32 %v1714, %v2103
      %v2162 = vadd.f32 %v1715, %v2106
      %v2163 = vadd.f32 %v1716, %v2111
      %v2164 = vadd.f32 %v1717, %v2114
      %v2165 = vadd.f32 %v1718, %v2119
      %v2166 = vadd.f32 %v1719, %v2122
      %v2167 = vadd.f32 %v1720, %v2127
      %v2168 = vadd.f32 %v1721, %v2130
      %v2169 = vld [vmem:[%s224 + $0x8] sm:$0xc]
      %s2170 = scalar_lea.vmem %s1, 20
      %v2171 = vld [vmem:[%s2170] sm:$0xf]
      %v2173 = vunpack.c.l.b16 %v2169
      %v2174 = vpack.c.b16 %v1360, %v2173
      %vm2175 = vcmask 1045504
      %v2176 = vrot.slane %v2174, 2
      %v2177 = vrot.slane %v1397, 2
      %v2178 = vsel %vm2175, %v2176, %v2177
      %v2179 = vrot.slane %v1398, 2
      %v2180 = vsel %vm2175, %v2177, %v2179
      %v2181 = vrot.slane %v1399, 2
      %v2182 = vsel %vm2175, %v2179, %v2181
      %v2183 = vrot.slane %v1400, 2
      %v2184 = vsel %vm2175, %v2181, %v2183
      %v2185 = vrot.slane %v1401, 2
      %v2186 = vsel %vm2175, %v2183, %v2185
      %v2187 = vrot.slane %v1402, 2
      %v2188 = vsel %vm2175, %v2185, %v2187
      %v2189 = vrot.slane %v1403, 2
      %v2190 = vsel %vm2175, %v2187, %v2189
      %v2191 = vrot.slane %v1404, 2
      %v2192 = vsel %vm2175, %v2189, %v2191
      %v2193 = vrot.slane %v1405, 2
      %v2194 = vsel %vm2175, %v2191, %v2193
      %v2195 = vrot.slane %v1406, 2
      %v2196 = vsel %vm2175, %v2193, %v2195
      %v2197 = vrot.slane %v1407, 2
      %v2198 = vsel %vm2175, %v2195, %v2197
      %v2199 = vrot.slane %v1408, 2
      %v2200 = vsel %vm2175, %v2197, %v2199
      %v2201 = vrot.slane %v1409, 2
      %v2202 = vsel %vm2175, %v2199, %v2201
      %v2203 = vrot.slane %v1410, 2
      %v2204 = vsel %vm2175, %v2201, %v2203
      %v2205 = vrot.slane %v1411, 2
      %v2206 = vsel %vm2175, %v2203, %v2205
      %v2207 = vrot.slane %v1412, 2
      %v2208 = vsel %vm2175, %v2205, %v2207
      %v2209 = vrot.slane %v1413, 2
      %v2210 = vsel %vm2175, %v2207, %v2209
      %v2211 = vrot.slane %v1727, 2
      %v2212 = vsel %vm2175, %v2209, %v2211
      %v2214 = vsel %vm517, %v2178, 0
      %v2217 = vsel %vm517, %v2180, 0
      %v2220 = vsel %vm517, %v2182, 0
      %v2223 = vsel %vm517, %v2184, 0
      %v2226 = vsel %vm517, %v2186, 0
      %v2229 = vsel %vm517, %v2188, 0
      %v2232 = vsel %vm517, %v2190, 0
      %v2235 = vsel %vm517, %v2192, 0
      %v2238 = vsel %vm517, %v2194, 0
      %v2241 = vsel %vm517, %v2196, 0
      %v2244 = vsel %vm517, %v2198, 0
      %v2247 = vsel %vm517, %v2200, 0
      %v2250 = vsel %vm517, %v2202, 0
      %v2253 = vsel %vm517, %v2204, 0
      %v2256 = vsel %vm517, %v2206, 0
      %v2259 = vsel %vm517, %v2208, 0
      %v2262 = vsel %vm517, %v2210, 0
      %v2265 = vsel %vm517, %v2212, 0
      %v2268 = vsel %vm572, %v2171, 0
      %2270 = vmatprep.subr.bf16.mxu0 0
      %2271 = vmatpush1.bf16.msra.mxu0 0
      %2272 = vmatprep.subr.bf16.mxu0 0
      %2273 = vmatpush1.bf16.msra.mxu0 0
      %2274 = vmatprep.subr.bf16.mxu0 0
      %2275 = vmatpush1.bf16.msra.mxu0 0
      %2276 = vmatprep.subr.bf16.mxu0 0
      %2277 = vmatpush1.bf16.msra.mxu0 0
      %2278 = vmatprep.subr.bf16.mxu0 0
      %2279 = vmatpush1.bf16.msra.mxu0 0
      %2280 = vmatprep.subr.bf16.mxu0 0
      %2281 = vmatpush1.bf16.msra.mxu0 0
      %2282 = vmatprep.subr.bf16.mxu0 0
      %2283 = vmatpush1.bf16.msra.mxu0 0
      %2284 = vmatprep.subr.bf16.mxu0 0
      %2285 = vmatpush1.bf16.msra.mxu0 %v2268
      %2286 = vmatprep.subr.bf16.mxu0 0
      %2287 = vmatpush2.bf16.msra.mxu0 0
      %2288 = vmatprep.subr.bf16.mxu0 0
      %2289 = vmatpush2.bf16.msra.mxu0 0
      %2290 = vmatprep.subr.bf16.mxu0 0
      %2291 = vmatpush2.bf16.msra.mxu0 0
      %2292 = vmatprep.subr.bf16.mxu0 0
      %2293 = vmatpush2.bf16.msra.mxu0 0
      %2294 = vmatprep.subr.bf16.mxu0 0
      %2295 = vmatpush2.bf16.msra.mxu0 0
      %2296 = vmatprep.subr.bf16.mxu0 0
      %2297 = vmatpush2.bf16.msra.mxu0 0
      %2298 = vmatprep.subr.bf16.mxu0 0
      %2299 = vmatpush2.bf16.msra.mxu0 0
      %2300 = vmatprep.subr.bf16.mxu0 0
      %2301 = vmatpush2.bf16.msra.mxu0 0
      %2302 = vmatprep.mubr.bf16.mxu0 0
      %2303 = vmatmul.mubr.bf16.gmra.mxu0 %v2214
      %v2304 = vpop.f32.mrf.mxu0
      %v2305 = vadd.f32 0.0, %v2304
      %v2306 = vpop.f32.mrf.mxu0
      %v2307 = vpop.f32.mrf.mxu0
      %v2308 = vadd.f32 0.0, %v2307
      %v2309 = vpop.f32.mrf.mxu0
      %2310 = vmatprep.mubr.bf16.mxu0 0
      %2311 = vmatmul.mubr.bf16.gmra.mxu0 %v2217
      %v2312 = vpop.f32.mrf.mxu0
      %v2313 = vadd.f32 0.0, %v2312
      %v2314 = vpop.f32.mrf.mxu0
      %v2315 = vpop.f32.mrf.mxu0
      %v2316 = vadd.f32 0.0, %v2315
      %v2317 = vpop.f32.mrf.mxu0
      %2318 = vmatprep.mubr.bf16.mxu0 0
      %2319 = vmatmul.mubr.bf16.gmra.mxu0 %v2220
      %v2320 = vpop.f32.mrf.mxu0
      %v2321 = vadd.f32 0.0, %v2320
      %v2322 = vpop.f32.mrf.mxu0
      %v2323 = vpop.f32.mrf.mxu0
      %v2324 = vadd.f32 0.0, %v2323
      %v2325 = vpop.f32.mrf.mxu0
      %2326 = vmatprep.mubr.bf16.mxu0 0
      %2327 = vmatmul.mubr.bf16.gmra.mxu0 %v2223
      %v2328 = vpop.f32.mrf.mxu0
      %v2329 = vadd.f32 0.0, %v2328
      %v2330 = vpop.f32.mrf.mxu0
      %v2331 = vpop.f32.mrf.mxu0
      %v2332 = vadd.f32 0.0, %v2331
      %v2333 = vpop.f32.mrf.mxu0
      %2334 = vmatprep.mubr.bf16.mxu0 0
      %2335 = vmatmul.mubr.bf16.gmra.mxu0 %v2226
      %v2336 = vpop.f32.mrf.mxu0
      %v2337 = vadd.f32 0.0, %v2336
      %v2338 = vpop.f32.mrf.mxu0
      %v2339 = vpop.f32.mrf.mxu0
      %v2340 = vadd.f32 0.0, %v2339
      %v2341 = vpop.f32.mrf.mxu0
      %2342 = vmatprep.mubr.bf16.mxu0 0
      %2343 = vmatmul.mubr.bf16.gmra.mxu0 %v2229
      %v2344 = vpop.f32.mrf.mxu0
      %v2345 = vadd.f32 0.0, %v2344
      %v2346 = vpop.f32.mrf.mxu0
      %v2347 = vpop.f32.mrf.mxu0
      %v2348 = vadd.f32 0.0, %v2347
      %v2349 = vpop.f32.mrf.mxu0
      %2350 = vmatprep.mubr.bf16.mxu0 0
      %2351 = vmatmul.mubr.bf16.gmra.mxu0 %v2232
      %v2352 = vpop.f32.mrf.mxu0
      %v2353 = vadd.f32 0.0, %v2352
      %v2354 = vpop.f32.mrf.mxu0
      %v2355 = vpop.f32.mrf.mxu0
      %v2356 = vadd.f32 0.0, %v2355
      %v2357 = vpop.f32.mrf.mxu0
      %2358 = vmatprep.mubr.bf16.mxu0 0
      %2359 = vmatmul.mubr.bf16.gmra.mxu0 %v2235
      %v2360 = vpop.f32.mrf.mxu0
      %v2361 = vadd.f32 0.0, %v2360
      %v2362 = vpop.f32.mrf.mxu0
      %v2363 = vpop.f32.mrf.mxu0
      %v2364 = vadd.f32 0.0, %v2363
      %v2365 = vpop.f32.mrf.mxu0
      %2366 = vmatprep.mubr.bf16.mxu0 0
      %2367 = vmatmul.mubr.bf16.gmra.mxu0 %v2238
      %v2368 = vpop.f32.mrf.mxu0
      %v2369 = vadd.f32 0.0, %v2368
      %v2370 = vpop.f32.mrf.mxu0
      %v2371 = vpop.f32.mrf.mxu0
      %v2372 = vadd.f32 0.0, %v2371
      %v2373 = vpop.f32.mrf.mxu0
      %2374 = vmatprep.mubr.bf16.mxu0 0
      %2375 = vmatmul.mubr.bf16.gmra.mxu0 %v2241
      %v2376 = vpop.f32.mrf.mxu0
      %v2377 = vadd.f32 0.0, %v2376
      %v2378 = vpop.f32.mrf.mxu0
      %v2379 = vpop.f32.mrf.mxu0
      %v2380 = vadd.f32 0.0, %v2379
      %v2381 = vpop.f32.mrf.mxu0
      %2382 = vmatprep.mubr.bf16.mxu0 0
      %2383 = vmatmul.mubr.bf16.gmra.mxu0 %v2244
      %v2384 = vpop.f32.mrf.mxu0
      %v2385 = vadd.f32 0.0, %v2384
      %v2386 = vpop.f32.mrf.mxu0
      %v2387 = vpop.f32.mrf.mxu0
      %v2388 = vadd.f32 0.0, %v2387
      %v2389 = vpop.f32.mrf.mxu0
      %2390 = vmatprep.mubr.bf16.mxu0 0
      %2391 = vmatmul.mubr.bf16.gmra.mxu0 %v2247
      %v2392 = vpop.f32.mrf.mxu0
      %v2393 = vadd.f32 0.0, %v2392
      %v2394 = vpop.f32.mrf.mxu0
      %v2395 = vpop.f32.mrf.mxu0
      %v2396 = vadd.f32 0.0, %v2395
      %v2397 = vpop.f32.mrf.mxu0
      %2398 = vmatprep.mubr.bf16.mxu0 0
      %2399 = vmatmul.mubr.bf16.gmra.mxu0 %v2250
      %v2400 = vpop.f32.mrf.mxu0
      %v2401 = vadd.f32 0.0, %v2400
      %v2402 = vpop.f32.mrf.mxu0
      %v2403 = vpop.f32.mrf.mxu0
      %v2404 = vadd.f32 0.0, %v2403
      %v2405 = vpop.f32.mrf.mxu0
      %2406 = vmatprep.mubr.bf16.mxu0 0
      %2407 = vmatmul.mubr.bf16.gmra.mxu0 %v2253
      %v2408 = vpop.f32.mrf.mxu0
      %v2409 = vadd.f32 0.0, %v2408
      %v2410 = vpop.f32.mrf.mxu0
      %v2411 = vpop.f32.mrf.mxu0
      %v2412 = vadd.f32 0.0, %v2411
      %v2413 = vpop.f32.mrf.mxu0
      %2414 = vmatprep.mubr.bf16.mxu0 0
      %2415 = vmatmul.mubr.bf16.gmra.mxu0 %v2256
      %v2416 = vpop.f32.mrf.mxu0
      %v2417 = vadd.f32 0.0, %v2416
      %v2418 = vpop.f32.mrf.mxu0
      %v2419 = vpop.f32.mrf.mxu0
      %v2420 = vadd.f32 0.0, %v2419
      %v2421 = vpop.f32.mrf.mxu0
      %2422 = vmatprep.mubr.bf16.mxu0 0
      %2423 = vmatmul.mubr.bf16.gmra.mxu0 %v2259
      %v2424 = vpop.f32.mrf.mxu0
      %v2425 = vadd.f32 0.0, %v2424
      %v2426 = vpop.f32.mrf.mxu0
      %v2427 = vpop.f32.mrf.mxu0
      %v2428 = vadd.f32 0.0, %v2427
      %v2429 = vpop.f32.mrf.mxu0
      %2430 = vmatprep.mubr.bf16.mxu0 0
      %2431 = vmatmul.mubr.bf16.gmra.mxu0 %v2262
      %v2432 = vpop.f32.mrf.mxu0
      %v2433 = vadd.f32 0.0, %v2432
      %v2434 = vpop.f32.mrf.mxu0
      %v2435 = vpop.f32.mrf.mxu0
      %v2436 = vadd.f32 0.0, %v2435
      %v2437 = vpop.f32.mrf.mxu0
      %2438 = vmatprep.mubr.bf16.mxu0 0
      %2439 = vmatmul.mubr.bf16.gmra.mxu0 %v2265
      %v2440 = vpop.f32.mrf.mxu0
      %v2441 = vadd.f32 0.0, %v2440
      %v2442 = vpop.f32.mrf.mxu0
      %v2443 = vpop.f32.mrf.mxu0
      %v2444 = vadd.f32 0.0, %v2443
      %v2445 = vpop.f32.mrf.mxu0
      %2446 = vdwg.mxu0
      %v2447 = vadd.f32 %v2133, %v2305
      %v2448 = vadd.f32 %v2134, %v2308
      %v2449 = vadd.f32 %v2135, %v2313
      %v2450 = vadd.f32 %v2136, %v2316
      %v2451 = vadd.f32 %v2137, %v2321
      %v2452 = vadd.f32 %v2138, %v2324
      %v2453 = vadd.f32 %v2139, %v2329
      %v2454 = vadd.f32 %v2140, %v2332
      %v2455 = vadd.f32 %v2141, %v2337
      %v2456 = vadd.f32 %v2142, %v2340
      %v2457 = vadd.f32 %v2143, %v2345
      %v2458 = vadd.f32 %v2144, %v2348
      %v2459 = vadd.f32 %v2145, %v2353
      %v2460 = vadd.f32 %v2146, %v2356
      %v2461 = vadd.f32 %v2147, %v2361
      %v2462 = vadd.f32 %v2148, %v2364
      %v2463 = vadd.f32 %v2149, %v2369
      %v2464 = vadd.f32 %v2150, %v2372
      %v2465 = vadd.f32 %v2151, %v2377
      %v2466 = vadd.f32 %v2152, %v2380
      %v2467 = vadd.f32 %v2153, %v2385
      %v2468 = vadd.f32 %v2154, %v2388
      %v2469 = vadd.f32 %v2155, %v2393
      %v2470 = vadd.f32 %v2156, %v2396
      %v2471 = vadd.f32 %v2157, %v2401
      %v2472 = vadd.f32 %v2158, %v2404
      %v2473 = vadd.f32 %v2159, %v2409
      %v2474 = vadd.f32 %v2160, %v2412
      %v2475 = vadd.f32 %v2161, %v2417
      %v2476 = vadd.f32 %v2162, %v2420
      %v2477 = vadd.f32 %v2163, %v2425
      %v2478 = vadd.f32 %v2164, %v2428
      %v2479 = vadd.f32 %v2165, %v2433
      %v2480 = vadd.f32 %v2166, %v2436
      %v2481 = vadd.f32 %v2167, %v2441
      %v2482 = vadd.f32 %v2168, %v2444
      %v2483 = vld [vmem:[%s224 + $0x10] sm:$0xc]
      %v2484 = vld [vmem:[%s224 + $0x14] sm:$0xf]
      %v2485 = vld [vmem:[%s224 + $0x18] sm:$0xf]
      %v2486 = vld [vmem:[%s224 + $0x1c] sm:$0xf]
      %v2487 = vld [vmem:[%s224 + $0x20] sm:$0xf]
      %v2488 = vld [vmem:[%s224 + $0x24] sm:$0xf]
      %v2489 = vld [vmem:[%s224 + $0x28] sm:$0xf]
      %v2490 = vld [vmem:[%s224 + $0x2c] sm:$0xf]
      %v2491 = vld [vmem:[%s224 + $0x30] sm:$0xf]
      %v2492 = vld [vmem:[%s224 + $0x34] sm:$0xf]
      %v2493 = vld [vmem:[%s224 + $0x38] sm:$0xf]
      %v2494 = vld [vmem:[%s224 + $0x3c] sm:$0xf]
      %v2495 = vld [vmem:[%s224 + $0x40] sm:$0xf]
      %v2496 = vld [vmem:[%s224 + $0x44] sm:$0xf]
      %v2497 = vld [vmem:[%s224 + $0x48] sm:$0xf]
      %v2498 = vld [vmem:[%s224 + $0x4c] sm:$0xf]
      %v2499 = vld [vmem:[%s224 + $0x50] sm:$0xf]
      %v2500 = vld [vmem:[%s224 + $0x54] sm:$0xf]
      %v2501 = vld [vmem:[%s224 + $0x58] sm:$0xf]
      %v2502 = vld [vmem:[%s224 + $0x5c] sm:$0xf]
      %v2503 = vld [vmem:[%s224 + $0x60] sm:$0xf]
      %v2504 = vld [vmem:[%s224 + $0x64] sm:$0xf]
      %v2505 = vld [vmem:[%s224 + $0x68] sm:$0xf]
      %v2506 = vld [vmem:[%s224 + $0x6c] sm:$0xf]
      %v2507 = vld [vmem:[%s224 + $0x70] sm:$0xf]
      %v2508 = vld [vmem:[%s224 + $0x74] sm:$0xf]
      %v2509 = vld [vmem:[%s224 + $0x78] sm:$0xf]
      %v2510 = vld [vmem:[%s224 + $0x7c] sm:$0xf]
      %v2511 = vld [vmem:[%s224 + $0x80] sm:$0xf]
      %v2512 = vld [vmem:[%s224 + $0x84] sm:$0xf]
      %v2513 = vld [vmem:[%s224 + $0x88] sm:$0xf]
      %v2514 = vld [vmem:[%s224 + $0x8c] sm:$0xf]
      %v2515 = vld [vmem:[%s224 + $0x90] sm:$0xf]
      %v2516 = vld [vmem:[%s224 + $0x94] sm:$0xf]
      %v2517 = vld [vmem:[%s224 + $0x98] sm:$0xf]
      %v2518 = vld [vmem:[%s224 + $0x9c] sm:$0xf]
      %v2519 = vld [vmem:[%s224 + $0xa0] sm:$0x3]
      %s2520 = scalar_lea.vmem %s1, 24
      %v2521 = vld [vmem:[%s2520] sm:$0xf]
      %v2559 = vunpack.c.l.b16 %v2483
      %v2560 = vunpack.c.l.b16 %v2484
      %v2561 = vunpack.c.l.b16 %v2485
      %v2562 = vunpack.c.l.b16 %v2486
      %v2563 = vunpack.c.l.b16 %v2487
      %v2564 = vunpack.c.l.b16 %v2488
      %v2565 = vunpack.c.l.b16 %v2489
      %v2566 = vunpack.c.l.b16 %v2490
      %v2567 = vunpack.c.l.b16 %v2491
      %v2568 = vunpack.c.l.b16 %v2492
      %v2569 = vunpack.c.l.b16 %v2493
      %v2570 = vunpack.c.l.b16 %v2494
      %v2571 = vunpack.c.l.b16 %v2495
      %v2572 = vunpack.c.l.b16 %v2496
      %v2573 = vunpack.c.l.b16 %v2497
      %v2574 = vunpack.c.l.b16 %v2498
      %v2575 = vunpack.c.l.b16 %v2499
      %v2576 = vunpack.c.l.b16 %v2500
      %v2577 = vunpack.c.l.b16 %v2501
      %v2578 = vunpack.c.l.b16 %v2502
      %v2579 = vunpack.c.l.b16 %v2503
      %v2580 = vunpack.c.l.b16 %v2504
      %v2581 = vunpack.c.l.b16 %v2505
      %v2582 = vunpack.c.l.b16 %v2506
      %v2583 = vunpack.c.l.b16 %v2507
      %v2584 = vunpack.c.l.b16 %v2508
      %v2585 = vunpack.c.l.b16 %v2509
      %v2586 = vunpack.c.l.b16 %v2510
      %v2587 = vunpack.c.l.b16 %v2511
      %v2588 = vunpack.c.l.b16 %v2512
      %v2589 = vunpack.c.l.b16 %v2513
      %v2590 = vunpack.c.l.b16 %v2514
      %v2591 = vunpack.c.l.b16 %v2515
      %v2592 = vunpack.c.l.b16 %v2516
      %v2593 = vunpack.c.l.b16 %v2517
      %v2594 = vunpack.c.l.b16 %v2518
      %v2595 = vunpack.c.l.b16 %v2519
      %v2596 = vpack.c.b16 %v2560, %v2559
      %v2597 = vpack.c.b16 %v2562, %v2561
      %v2598 = vpack.c.b16 %v2564, %v2563
      %v2599 = vpack.c.b16 %v2566, %v2565
      %v2600 = vpack.c.b16 %v2568, %v2567
      %v2601 = vpack.c.b16 %v2570, %v2569
      %v2602 = vpack.c.b16 %v2572, %v2571
      %v2603 = vpack.c.b16 %v2574, %v2573
      %v2604 = vpack.c.b16 %v2576, %v2575
      %v2605 = vpack.c.b16 %v2578, %v2577
      %v2606 = vpack.c.b16 %v2580, %v2579
      %v2607 = vpack.c.b16 %v2582, %v2581
      %v2608 = vpack.c.b16 %v2584, %v2583
      %v2609 = vpack.c.b16 %v2586, %v2585
      %v2610 = vpack.c.b16 %v2588, %v2587
      %v2611 = vpack.c.b16 %v2590, %v2589
      %v2612 = vpack.c.b16 %v2592, %v2591
      %v2613 = vpack.c.b16 %v2594, %v2593
      %v2614 = vpack.c.b16 %v2595, %v2595
      %v2615 = vrot.slane %v2596, 2
      %v2616 = vrot.slane %v2597, 2
      %v2617 = vsel %vm2175, %v2615, %v2616
      %v2618 = vrot.slane %v2598, 2
      %v2619 = vsel %vm2175, %v2616, %v2618
      %v2620 = vrot.slane %v2599, 2
      %v2621 = vsel %vm2175, %v2618, %v2620
      %v2622 = vrot.slane %v2600, 2
      %v2623 = vsel %vm2175, %v2620, %v2622
      %v2624 = vrot.slane %v2601, 2
      %v2625 = vsel %vm2175, %v2622, %v2624
      %v2626 = vrot.slane %v2602, 2
      %v2627 = vsel %vm2175, %v2624, %v2626
      %v2628 = vrot.slane %v2603, 2
      %v2629 = vsel %vm2175, %v2626, %v2628
      %v2630 = vrot.slane %v2604, 2
      %v2631 = vsel %vm2175, %v2628, %v2630
      %v2632 = vrot.slane %v2605, 2
      %v2633 = vsel %vm2175, %v2630, %v2632
      %v2634 = vrot.slane %v2606, 2
      %v2635 = vsel %vm2175, %v2632, %v2634
      %v2636 = vrot.slane %v2607, 2
      %v2637 = vsel %vm2175, %v2634, %v2636
      %v2638 = vrot.slane %v2608, 2
      %v2639 = vsel %vm2175, %v2636, %v2638
      %v2640 = vrot.slane %v2609, 2
      %v2641 = vsel %vm2175, %v2638, %v2640
      %v2642 = vrot.slane %v2610, 2
      %v2643 = vsel %vm2175, %v2640, %v2642
      %v2644 = vrot.slane %v2611, 2
      %v2645 = vsel %vm2175, %v2642, %v2644
      %v2646 = vrot.slane %v2612, 2
      %v2647 = vsel %vm2175, %v2644, %v2646
      %v2648 = vrot.slane %v2613, 2
      %v2649 = vsel %vm2175, %v2646, %v2648
      %v2650 = vrot.slane %v2614, 2
      %v2651 = vsel %vm2175, %v2648, %v2650
      %v2653 = vsel %vm517, %v2617, 0
      %v2656 = vsel %vm517, %v2619, 0
      %v2659 = vsel %vm517, %v2621, 0
      %v2662 = vsel %vm517, %v2623, 0
      %v2665 = vsel %vm517, %v2625, 0
      %v2668 = vsel %vm517, %v2627, 0
      %v2671 = vsel %vm517, %v2629, 0
      %v2674 = vsel %vm517, %v2631, 0
      %v2677 = vsel %vm517, %v2633, 0
      %v2680 = vsel %vm517, %v2635, 0
      %v2683 = vsel %vm517, %v2637, 0
      %v2686 = vsel %vm517, %v2639, 0
      %v2689 = vsel %vm517, %v2641, 0
      %v2692 = vsel %vm517, %v2643, 0
      %v2695 = vsel %vm517, %v2645, 0
      %v2698 = vsel %vm517, %v2647, 0
      %v2701 = vsel %vm517, %v2649, 0
      %v2704 = vsel %vm517, %v2651, 0
      %v2707 = vsel %vm572, %v2521, 0
      %2709 = vmatprep.subr.bf16.mxu0 0
      %2710 = vmatpush1.bf16.msra.mxu0 0
      %2711 = vmatprep.subr.bf16.mxu0 0
      %2712 = vmatpush1.bf16.msra.mxu0 0
      %2713 = vmatprep.subr.bf16.mxu0 0
      %2714 = vmatpush1.bf16.msra.mxu0 0
      %2715 = vmatprep.subr.bf16.mxu0 0
      %2716 = vmatpush1.bf16.msra.mxu0 0
      %2717 = vmatprep.subr.bf16.mxu0 0
      %2718 = vmatpush1.bf16.msra.mxu0 0
      %2719 = vmatprep.subr.bf16.mxu0 0
      %2720 = vmatpush1.bf16.msra.mxu0 0
      %2721 = vmatprep.subr.bf16.mxu0 0
      %2722 = vmatpush1.bf16.msra.mxu0 0
      %2723 = vmatprep.subr.bf16.mxu0 0
      %2724 = vmatpush1.bf16.msra.mxu0 %v2707
      %2725 = vmatprep.subr.bf16.mxu0 0
      %2726 = vmatpush2.bf16.msra.mxu0 0
      %2727 = vmatprep.subr.bf16.mxu0 0
      %2728 = vmatpush2.bf16.msra.mxu0 0
      %2729 = vmatprep.subr.bf16.mxu0 0
      %2730 = vmatpush2.bf16.msra.mxu0 0
      %2731 = vmatprep.subr.bf16.mxu0 0
      %2732 = vmatpush2.bf16.msra.mxu0 0
      %2733 = vmatprep.subr.bf16.mxu0 0
      %2734 = vmatpush2.bf16.msra.mxu0 0
      %2735 = vmatprep.subr.bf16.mxu0 0
      %2736 = vmatpush2.bf16.msra.mxu0 0
      %2737 = vmatprep.subr.bf16.mxu0 0
      %2738 = vmatpush2.bf16.msra.mxu0 0
      %2739 = vmatprep.subr.bf16.mxu0 0
      %2740 = vmatpush2.bf16.msra.mxu0 0
      %2741 = vmatprep.mubr.bf16.mxu0 0
      %2742 = vmatmul.mubr.bf16.gmra.mxu0 %v2653
      %v2743 = vpop.f32.mrf.mxu0
      %v2744 = vadd.f32 0.0, %v2743
      %v2745 = vpop.f32.mrf.mxu0
      %v2746 = vpop.f32.mrf.mxu0
      %v2747 = vadd.f32 0.0, %v2746
      %v2748 = vpop.f32.mrf.mxu0
      %2749 = vmatprep.mubr.bf16.mxu0 0
      %2750 = vmatmul.mubr.bf16.gmra.mxu0 %v2656
      %v2751 = vpop.f32.mrf.mxu0
      %v2752 = vadd.f32 0.0, %v2751
      %v2753 = vpop.f32.mrf.mxu0
      %v2754 = vpop.f32.mrf.mxu0
      %v2755 = vadd.f32 0.0, %v2754
      %v2756 = vpop.f32.mrf.mxu0
      %2757 = vmatprep.mubr.bf16.mxu0 0
      %2758 = vmatmul.mubr.bf16.gmra.mxu0 %v2659
      %v2759 = vpop.f32.mrf.mxu0
      %v2760 = vadd.f32 0.0, %v2759
      %v2761 = vpop.f32.mrf.mxu0
      %v2762 = vpop.f32.mrf.mxu0
      %v2763 = vadd.f32 0.0, %v2762
      %v2764 = vpop.f32.mrf.mxu0
      %2765 = vmatprep.mubr.bf16.mxu0 0
      %2766 = vmatmul.mubr.bf16.gmra.mxu0 %v2662
      %v2767 = vpop.f32.mrf.mxu0
      %v2768 = vadd.f32 0.0, %v2767
      %v2769 = vpop.f32.mrf.mxu0
      %v2770 = vpop.f32.mrf.mxu0
      %v2771 = vadd.f32 0.0, %v2770
      %v2772 = vpop.f32.mrf.mxu0
      %2773 = vmatprep.mubr.bf16.mxu0 0
      %2774 = vmatmul.mubr.bf16.gmra.mxu0 %v2665
      %v2775 = vpop.f32.mrf.mxu0
      %v2776 = vadd.f32 0.0, %v2775
      %v2777 = vpop.f32.mrf.mxu0
      %v2778 = vpop.f32.mrf.mxu0
      %v2779 = vadd.f32 0.0, %v2778
      %v2780 = vpop.f32.mrf.mxu0
      %2781 = vmatprep.mubr.bf16.mxu0 0
      %2782 = vmatmul.mubr.bf16.gmra.mxu0 %v2668
      %v2783 = vpop.f32.mrf.mxu0
      %v2784 = vadd.f32 0.0, %v2783
      %v2785 = vpop.f32.mrf.mxu0
      %v2786 = vpop.f32.mrf.mxu0
      %v2787 = vadd.f32 0.0, %v2786
      %v2788 = vpop.f32.mrf.mxu0
      %2789 = vmatprep.mubr.bf16.mxu0 0
      %2790 = vmatmul.mubr.bf16.gmra.mxu0 %v2671
      %v2791 = vpop.f32.mrf.mxu0
      %v2792 = vadd.f32 0.0, %v2791
      %v2793 = vpop.f32.mrf.mxu0
      %v2794 = vpop.f32.mrf.mxu0
      %v2795 = vadd.f32 0.0, %v2794
      %v2796 = vpop.f32.mrf.mxu0
      %2797 = vmatprep.mubr.bf16.mxu0 0
      %2798 = vmatmul.mubr.bf16.gmra.mxu0 %v2674
      %v2799 = vpop.f32.mrf.mxu0
      %v2800 = vadd.f32 0.0, %v2799
      %v2801 = vpop.f32.mrf.mxu0
      %v2802 = vpop.f32.mrf.mxu0
      %v2803 = vadd.f32 0.0, %v2802
      %v2804 = vpop.f32.mrf.mxu0
      %2805 = vmatprep.mubr.bf16.mxu0 0
      %2806 = vmatmul.mubr.bf16.gmra.mxu0 %v2677
      %v2807 = vpop.f32.mrf.mxu0
      %v2808 = vadd.f32 0.0, %v2807
      %v2809 = vpop.f32.mrf.mxu0
      %v2810 = vpop.f32.mrf.mxu0
      %v2811 = vadd.f32 0.0, %v2810
      %v2812 = vpop.f32.mrf.mxu0
      %2813 = vmatprep.mubr.bf16.mxu0 0
      %2814 = vmatmul.mubr.bf16.gmra.mxu0 %v2680
      %v2815 = vpop.f32.mrf.mxu0
      %v2816 = vadd.f32 0.0, %v2815
      %v2817 = vpop.f32.mrf.mxu0
      %v2818 = vpop.f32.mrf.mxu0
      %v2819 = vadd.f32 0.0, %v2818
      %v2820 = vpop.f32.mrf.mxu0
      %2821 = vmatprep.mubr.bf16.mxu0 0
      %2822 = vmatmul.mubr.bf16.gmra.mxu0 %v2683
      %v2823 = vpop.f32.mrf.mxu0
      %v2824 = vadd.f32 0.0, %v2823
      %v2825 = vpop.f32.mrf.mxu0
      %v2826 = vpop.f32.mrf.mxu0
      %v2827 = vadd.f32 0.0, %v2826
      %v2828 = vpop.f32.mrf.mxu0
      %2829 = vmatprep.mubr.bf16.mxu0 0
      %2830 = vmatmul.mubr.bf16.gmra.mxu0 %v2686
      %v2831 = vpop.f32.mrf.mxu0
      %v2832 = vadd.f32 0.0, %v2831
      %v2833 = vpop.f32.mrf.mxu0
      %v2834 = vpop.f32.mrf.mxu0
      %v2835 = vadd.f32 0.0, %v2834
      %v2836 = vpop.f32.mrf.mxu0
      %2837 = vmatprep.mubr.bf16.mxu0 0
      %2838 = vmatmul.mubr.bf16.gmra.mxu0 %v2689
      %v2839 = vpop.f32.mrf.mxu0
      %v2840 = vadd.f32 0.0, %v2839
      %v2841 = vpop.f32.mrf.mxu0
      %v2842 = vpop.f32.mrf.mxu0
      %v2843 = vadd.f32 0.0, %v2842
      %v2844 = vpop.f32.mrf.mxu0
      %2845 = vmatprep.mubr.bf16.mxu0 0
      %2846 = vmatmul.mubr.bf16.gmra.mxu0 %v2692
      %v2847 = vpop.f32.mrf.mxu0
      %v2848 = vadd.f32 0.0, %v2847
      %v2849 = vpop.f32.mrf.mxu0
      %v2850 = vpop.f32.mrf.mxu0
      %v2851 = vadd.f32 0.0, %v2850
      %v2852 = vpop.f32.mrf.mxu0
      %2853 = vmatprep.mubr.bf16.mxu0 0
      %2854 = vmatmul.mubr.bf16.gmra.mxu0 %v2695
      %v2855 = vpop.f32.mrf.mxu0
      %v2856 = vadd.f32 0.0, %v2855
      %v2857 = vpop.f32.mrf.mxu0
      %v2858 = vpop.f32.mrf.mxu0
      %v2859 = vadd.f32 0.0, %v2858
      %v2860 = vpop.f32.mrf.mxu0
      %2861 = vmatprep.mubr.bf16.mxu0 0
      %2862 = vmatmul.mubr.bf16.gmra.mxu0 %v2698
      %v2863 = vpop.f32.mrf.mxu0
      %v2864 = vadd.f32 0.0, %v2863
      %v2865 = vpop.f32.mrf.mxu0
      %v2866 = vpop.f32.mrf.mxu0
      %v2867 = vadd.f32 0.0, %v2866
      %v2868 = vpop.f32.mrf.mxu0
      %2869 = vmatprep.mubr.bf16.mxu0 0
      %2870 = vmatmul.mubr.bf16.gmra.mxu0 %v2701
      %v2871 = vpop.f32.mrf.mxu0
      %v2872 = vadd.f32 0.0, %v2871
      %v2873 = vpop.f32.mrf.mxu0
      %v2874 = vpop.f32.mrf.mxu0
      %v2875 = vadd.f32 0.0, %v2874
      %v2876 = vpop.f32.mrf.mxu0
      %2877 = vmatprep.mubr.bf16.mxu0 0
      %2878 = vmatmul.mubr.bf16.gmra.mxu0 %v2704
      %v2879 = vpop.f32.mrf.mxu0
      %v2880 = vadd.f32 0.0, %v2879
      %v2881 = vpop.f32.mrf.mxu0
      %v2882 = vpop.f32.mrf.mxu0
      %v2883 = vadd.f32 0.0, %v2882
      %v2884 = vpop.f32.mrf.mxu0
      %2885 = vdwg.mxu0
      %v2886 = vadd.f32 %v2447, %v2744
      %v2887 = vadd.f32 %v2448, %v2747
      %v2888 = vadd.f32 %v2449, %v2752
      %v2889 = vadd.f32 %v2450, %v2755
      %v2890 = vadd.f32 %v2451, %v2760
      %v2891 = vadd.f32 %v2452, %v2763
      %v2892 = vadd.f32 %v2453, %v2768
      %v2893 = vadd.f32 %v2454, %v2771
      %v2894 = vadd.f32 %v2455, %v2776
      %v2895 = vadd.f32 %v2456, %v2779
      %v2896 = vadd.f32 %v2457, %v2784
      %v2897 = vadd.f32 %v2458, %v2787
      %v2898 = vadd.f32 %v2459, %v2792
      %v2899 = vadd.f32 %v2460, %v2795
      %v2900 = vadd.f32 %v2461, %v2800
      %v2901 = vadd.f32 %v2462, %v2803
      %v2902 = vadd.f32 %v2463, %v2808
      %v2903 = vadd.f32 %v2464, %v2811
      %v2904 = vadd.f32 %v2465, %v2816
      %v2905 = vadd.f32 %v2466, %v2819
      %v2906 = vadd.f32 %v2467, %v2824
      %v2907 = vadd.f32 %v2468, %v2827
      %v2908 = vadd.f32 %v2469, %v2832
      %v2909 = vadd.f32 %v2470, %v2835
      %v2910 = vadd.f32 %v2471, %v2840
      %v2911 = vadd.f32 %v2472, %v2843
      %v2912 = vadd.f32 %v2473, %v2848
      %v2913 = vadd.f32 %v2474, %v2851
      %v2914 = vadd.f32 %v2475, %v2856
      %v2915 = vadd.f32 %v2476, %v2859
      %v2916 = vadd.f32 %v2477, %v2864
      %v2917 = vadd.f32 %v2478, %v2867
      %v2918 = vadd.f32 %v2479, %v2872
      %v2919 = vadd.f32 %v2480, %v2875
      %v2920 = vadd.f32 %v2481, %v2880
      %v2921 = vadd.f32 %v2482, %v2883
      %v2922 = vld [vmem:[%s224 + $0xa0] sm:$0x7]
      %s2923 = scalar_lea.vmem %s1, 28
      %v2924 = vld [vmem:[%s2923] sm:$0xf]
      %v2926 = vunpack.c.l.b16 %v2922
      %v2927 = vpack.c.b16 %v2926, %v2926
      %vm2928 = vsmask.f32 5376
      %v2930 = vshrl.u32 %v2596, 16
      %v2932 = vrot.slane %v2930, 2
      %v2933 = vshll.u32 %v2596, 16
      %v2935 = vrot.slane %v2933, 3
      %v2936 = vor.u32 %v2932, %v2935
      %v2938 = vshrl.u32 %v2597, 16
      %v2940 = vrot.slane %v2938, 2
      %v2941 = vshll.u32 %v2597, 16
      %v2943 = vrot.slane %v2941, 3
      %v2944 = vor.u32 %v2940, %v2943
      %v2945 = vsel %vm2928, %v2936, %v2944
      %v2947 = vshrl.u32 %v2598, 16
      %v2949 = vrot.slane %v2947, 2
      %v2950 = vshll.u32 %v2598, 16
      %v2952 = vrot.slane %v2950, 3
      %v2953 = vor.u32 %v2949, %v2952
      %v2954 = vsel %vm2928, %v2944, %v2953
      %v2956 = vshrl.u32 %v2599, 16
      %v2958 = vrot.slane %v2956, 2
      %v2959 = vshll.u32 %v2599, 16
      %v2961 = vrot.slane %v2959, 3
      %v2962 = vor.u32 %v2958, %v2961
      %v2963 = vsel %vm2928, %v2953, %v2962
      %v2965 = vshrl.u32 %v2600, 16
      %v2967 = vrot.slane %v2965, 2
      %v2968 = vshll.u32 %v2600, 16
      %v2970 = vrot.slane %v2968, 3
      %v2971 = vor.u32 %v2967, %v2970
      %v2972 = vsel %vm2928, %v2962, %v2971
      %v2974 = vshrl.u32 %v2601, 16
      %v2976 = vrot.slane %v2974, 2
      %v2977 = vshll.u32 %v2601, 16
      %v2979 = vrot.slane %v2977, 3
      %v2980 = vor.u32 %v2976, %v2979
      %v2981 = vsel %vm2928, %v2971, %v2980
      %v2983 = vshrl.u32 %v2602, 16
      %v2985 = vrot.slane %v2983, 2
      %v2986 = vshll.u32 %v2602, 16
      %v2988 = vrot.slane %v2986, 3
      %v2989 = vor.u32 %v2985, %v2988
      %v2990 = vsel %vm2928, %v2980, %v2989
      %v2992 = vshrl.u32 %v2603, 16
      %v2994 = vrot.slane %v2992, 2
      %v2995 = vshll.u32 %v2603, 16
      %v2997 = vrot.slane %v2995, 3
      %v2998 = vor.u32 %v2994, %v2997
      %v2999 = vsel %vm2928, %v2989, %v2998
      %v3001 = vshrl.u32 %v2604, 16
      %v3003 = vrot.slane %v3001, 2
      %v3004 = vshll.u32 %v2604, 16
      %v3006 = vrot.slane %v3004, 3
      %v3007 = vor.u32 %v3003, %v3006
      %v3008 = vsel %vm2928, %v2998, %v3007
      %v3010 = vshrl.u32 %v2605, 16
      %v3012 = vrot.slane %v3010, 2
      %v3013 = vshll.u32 %v2605, 16
      %v3015 = vrot.slane %v3013, 3
      %v3016 = vor.u32 %v3012, %v3015
      %v3017 = vsel %vm2928, %v3007, %v3016
      %v3019 = vshrl.u32 %v2606, 16
      %v3021 = vrot.slane %v3019, 2
      %v3022 = vshll.u32 %v2606, 16
      %v3024 = vrot.slane %v3022, 3
      %v3025 = vor.u32 %v3021, %v3024
      %v3026 = vsel %vm2928, %v3016, %v3025
      %v3028 = vshrl.u32 %v2607, 16
      %v3030 = vrot.slane %v3028, 2
      %v3031 = vshll.u32 %v2607, 16
      %v3033 = vrot.slane %v3031, 3
      %v3034 = vor.u32 %v3030, %v3033
      %v3035 = vsel %vm2928, %v3025, %v3034
      %v3037 = vshrl.u32 %v2608, 16
      %v3039 = vrot.slane %v3037, 2
      %v3040 = vshll.u32 %v2608, 16
      %v3042 = vrot.slane %v3040, 3
      %v3043 = vor.u32 %v3039, %v3042
      %v3044 = vsel %vm2928, %v3034, %v3043
      %v3046 = vshrl.u32 %v2609, 16
      %v3048 = vrot.slane %v3046, 2
      %v3049 = vshll.u32 %v2609, 16
      %v3051 = vrot.slane %v3049, 3
      %v3052 = vor.u32 %v3048, %v3051
      %v3053 = vsel %vm2928, %v3043, %v3052
      %v3055 = vshrl.u32 %v2610, 16
      %v3057 = vrot.slane %v3055, 2
      %v3058 = vshll.u32 %v2610, 16
      %v3060 = vrot.slane %v3058, 3
      %v3061 = vor.u32 %v3057, %v3060
      %v3062 = vsel %vm2928, %v3052, %v3061
      %v3064 = vshrl.u32 %v2611, 16
      %v3066 = vrot.slane %v3064, 2
      %v3067 = vshll.u32 %v2611, 16
      %v3069 = vrot.slane %v3067, 3
      %v3070 = vor.u32 %v3066, %v3069
      %v3071 = vsel %vm2928, %v3061, %v3070
      %v3073 = vshrl.u32 %v2612, 16
      %v3075 = vrot.slane %v3073, 2
      %v3076 = vshll.u32 %v2612, 16
      %v3078 = vrot.slane %v3076, 3
      %v3079 = vor.u32 %v3075, %v3078
      %v3080 = vsel %vm2928, %v3070, %v3079
      %v3082 = vshrl.u32 %v2613, 16
      %v3084 = vrot.slane %v3082, 2
      %v3085 = vshll.u32 %v2613, 16
      %v3087 = vrot.slane %v3085, 3
      %v3088 = vor.u32 %v3084, %v3087
      %v3089 = vsel %vm2928, %v3079, %v3088
      %v3091 = vshrl.u32 %v2927, 16
      %v3093 = vrot.slane %v3091, 2
      %v3094 = vshll.u32 %v2927, 16
      %v3096 = vrot.slane %v3094, 3
      %v3097 = vor.u32 %v3093, %v3096
      %v3098 = vsel %vm2928, %v3088, %v3097
      %v3100 = vsel %vm517, %v2945, 0
      %v3103 = vsel %vm517, %v2954, 0
      %v3106 = vsel %vm517, %v2963, 0
      %v3109 = vsel %vm517, %v2972, 0
      %v3112 = vsel %vm517, %v2981, 0
      %v3115 = vsel %vm517, %v2990, 0
      %v3118 = vsel %vm517, %v2999, 0
      %v3121 = vsel %vm517, %v3008, 0
      %v3124 = vsel %vm517, %v3017, 0
      %v3127 = vsel %vm517, %v3026, 0
      %v3130 = vsel %vm517, %v3035, 0
      %v3133 = vsel %vm517, %v3044, 0
      %v3136 = vsel %vm517, %v3053, 0
      %v3139 = vsel %vm517, %v3062, 0
      %v3142 = vsel %vm517, %v3071, 0
      %v3145 = vsel %vm517, %v3080, 0
      %v3148 = vsel %vm517, %v3089, 0
      %v3151 = vsel %vm517, %v3098, 0
      %v3154 = vsel %vm572, %v2924, 0
      %3156 = vmatprep.subr.bf16.mxu0 0
      %3157 = vmatpush1.bf16.msra.mxu0 0
      %3158 = vmatprep.subr.bf16.mxu0 0
      %3159 = vmatpush1.bf16.msra.mxu0 0
      %3160 = vmatprep.subr.bf16.mxu0 0
      %3161 = vmatpush1.bf16.msra.mxu0 0
      %3162 = vmatprep.subr.bf16.mxu0 0
      %3163 = vmatpush1.bf16.msra.mxu0 0
      %3164 = vmatprep.subr.bf16.mxu0 0
      %3165 = vmatpush1.bf16.msra.mxu0 0
      %3166 = vmatprep.subr.bf16.mxu0 0
      %3167 = vmatpush1.bf16.msra.mxu0 0
      %3168 = vmatprep.subr.bf16.mxu0 0
      %3169 = vmatpush1.bf16.msra.mxu0 0
      %3170 = vmatprep.subr.bf16.mxu0 0
      %3171 = vmatpush1.bf16.msra.mxu0 %v3154
      %3172 = vmatprep.subr.bf16.mxu0 0
      %3173 = vmatpush2.bf16.msra.mxu0 0
      %3174 = vmatprep.subr.bf16.mxu0 0
      %3175 = vmatpush2.bf16.msra.mxu0 0
      %3176 = vmatprep.subr.bf16.mxu0 0
      %3177 = vmatpush2.bf16.msra.mxu0 0
      %3178 = vmatprep.subr.bf16.mxu0 0
      %3179 = vmatpush2.bf16.msra.mxu0 0
      %3180 = vmatprep.subr.bf16.mxu0 0
      %3181 = vmatpush2.bf16.msra.mxu0 0
      %3182 = vmatprep.subr.bf16.mxu0 0
      %3183 = vmatpush2.bf16.msra.mxu0 0
      %3184 = vmatprep.subr.bf16.mxu0 0
      %3185 = vmatpush2.bf16.msra.mxu0 0
      %3186 = vmatprep.subr.bf16.mxu0 0
      %3187 = vmatpush2.bf16.msra.mxu0 0
      %3188 = vmatprep.mubr.bf16.mxu0 0
      %3189 = vmatmul.mubr.bf16.gmra.mxu0 %v3100
      %v3190 = vpop.f32.mrf.mxu0
      %v3191 = vadd.f32 0.0, %v3190
      %v3192 = vpop.f32.mrf.mxu0
      %v3193 = vpop.f32.mrf.mxu0
      %v3194 = vadd.f32 0.0, %v3193
      %v3195 = vpop.f32.mrf.mxu0
      %3196 = vmatprep.mubr.bf16.mxu0 0
      %3197 = vmatmul.mubr.bf16.gmra.mxu0 %v3103
      %v3198 = vpop.f32.mrf.mxu0
      %v3199 = vadd.f32 0.0, %v3198
      %v3200 = vpop.f32.mrf.mxu0
      %v3201 = vpop.f32.mrf.mxu0
      %v3202 = vadd.f32 0.0, %v3201
      %v3203 = vpop.f32.mrf.mxu0
      %3204 = vmatprep.mubr.bf16.mxu0 0
      %3205 = vmatmul.mubr.bf16.gmra.mxu0 %v3106
      %v3206 = vpop.f32.mrf.mxu0
      %v3207 = vadd.f32 0.0, %v3206
      %v3208 = vpop.f32.mrf.mxu0
      %v3209 = vpop.f32.mrf.mxu0
      %v3210 = vadd.f32 0.0, %v3209
      %v3211 = vpop.f32.mrf.mxu0
      %3212 = vmatprep.mubr.bf16.mxu0 0
      %3213 = vmatmul.mubr.bf16.gmra.mxu0 %v3109
      %v3214 = vpop.f32.mrf.mxu0
      %v3215 = vadd.f32 0.0, %v3214
      %v3216 = vpop.f32.mrf.mxu0
      %v3217 = vpop.f32.mrf.mxu0
      %v3218 = vadd.f32 0.0, %v3217
      %v3219 = vpop.f32.mrf.mxu0
      %3220 = vmatprep.mubr.bf16.mxu0 0
      %3221 = vmatmul.mubr.bf16.gmra.mxu0 %v3112
      %v3222 = vpop.f32.mrf.mxu0
      %v3223 = vadd.f32 0.0, %v3222
      %v3224 = vpop.f32.mrf.mxu0
      %v3225 = vpop.f32.mrf.mxu0
      %v3226 = vadd.f32 0.0, %v3225
      %v3227 = vpop.f32.mrf.mxu0
      %3228 = vmatprep.mubr.bf16.mxu0 0
      %3229 = vmatmul.mubr.bf16.gmra.mxu0 %v3115
      %v3230 = vpop.f32.mrf.mxu0
      %v3231 = vadd.f32 0.0, %v3230
      %v3232 = vpop.f32.mrf.mxu0
      %v3233 = vpop.f32.mrf.mxu0
      %v3234 = vadd.f32 0.0, %v3233
      %v3235 = vpop.f32.mrf.mxu0
      %3236 = vmatprep.mubr.bf16.mxu0 0
      %3237 = vmatmul.mubr.bf16.gmra.mxu0 %v3118
      %v3238 = vpop.f32.mrf.mxu0
      %v3239 = vadd.f32 0.0, %v3238
      %v3240 = vpop.f32.mrf.mxu0
      %v3241 = vpop.f32.mrf.mxu0
      %v3242 = vadd.f32 0.0, %v3241
      %v3243 = vpop.f32.mrf.mxu0
      %3244 = vmatprep.mubr.bf16.mxu0 0
      %3245 = vmatmul.mubr.bf16.gmra.mxu0 %v3121
      %v3246 = vpop.f32.mrf.mxu0
      %v3247 = vadd.f32 0.0, %v3246
      %v3248 = vpop.f32.mrf.mxu0
      %v3249 = vpop.f32.mrf.mxu0
      %v3250 = vadd.f32 0.0, %v3249
      %v3251 = vpop.f32.mrf.mxu0
      %3252 = vmatprep.mubr.bf16.mxu0 0
      %3253 = vmatmul.mubr.bf16.gmra.mxu0 %v3124
      %v3254 = vpop.f32.mrf.mxu0
      %v3255 = vadd.f32 0.0, %v3254
      %v3256 = vpop.f32.mrf.mxu0
      %v3257 = vpop.f32.mrf.mxu0
      %v3258 = vadd.f32 0.0, %v3257
      %v3259 = vpop.f32.mrf.mxu0
      %3260 = vmatprep.mubr.bf16.mxu0 0
      %3261 = vmatmul.mubr.bf16.gmra.mxu0 %v3127
      %v3262 = vpop.f32.mrf.mxu0
      %v3263 = vadd.f32 0.0, %v3262
      %v3264 = vpop.f32.mrf.mxu0
      %v3265 = vpop.f32.mrf.mxu0
      %v3266 = vadd.f32 0.0, %v3265
      %v3267 = vpop.f32.mrf.mxu0
      %3268 = vmatprep.mubr.bf16.mxu0 0
      %3269 = vmatmul.mubr.bf16.gmra.mxu0 %v3130
      %v3270 = vpop.f32.mrf.mxu0
      %v3271 = vadd.f32 0.0, %v3270
      %v3272 = vpop.f32.mrf.mxu0
      %v3273 = vpop.f32.mrf.mxu0
      %v3274 = vadd.f32 0.0, %v3273
      %v3275 = vpop.f32.mrf.mxu0
      %3276 = vmatprep.mubr.bf16.mxu0 0
      %3277 = vmatmul.mubr.bf16.gmra.mxu0 %v3133
      %v3278 = vpop.f32.mrf.mxu0
      %v3279 = vadd.f32 0.0, %v3278
      %v3280 = vpop.f32.mrf.mxu0
      %v3281 = vpop.f32.mrf.mxu0
      %v3282 = vadd.f32 0.0, %v3281
      %v3283 = vpop.f32.mrf.mxu0
      %3284 = vmatprep.mubr.bf16.mxu0 0
      %3285 = vmatmul.mubr.bf16.gmra.mxu0 %v3136
      %v3286 = vpop.f32.mrf.mxu0
      %v3287 = vadd.f32 0.0, %v3286
      %v3288 = vpop.f32.mrf.mxu0
      %v3289 = vpop.f32.mrf.mxu0
      %v3290 = vadd.f32 0.0, %v3289
      %v3291 = vpop.f32.mrf.mxu0
      %3292 = vmatprep.mubr.bf16.mxu0 0
      %3293 = vmatmul.mubr.bf16.gmra.mxu0 %v3139
      %v3294 = vpop.f32.mrf.mxu0
      %v3295 = vadd.f32 0.0, %v3294
      %v3296 = vpop.f32.mrf.mxu0
      %v3297 = vpop.f32.mrf.mxu0
      %v3298 = vadd.f32 0.0, %v3297
      %v3299 = vpop.f32.mrf.mxu0
      %3300 = vmatprep.mubr.bf16.mxu0 0
      %3301 = vmatmul.mubr.bf16.gmra.mxu0 %v3142
      %v3302 = vpop.f32.mrf.mxu0
      %v3303 = vadd.f32 0.0, %v3302
      %v3304 = vpop.f32.mrf.mxu0
      %v3305 = vpop.f32.mrf.mxu0
      %v3306 = vadd.f32 0.0, %v3305
      %v3307 = vpop.f32.mrf.mxu0
      %3308 = vmatprep.mubr.bf16.mxu0 0
      %3309 = vmatmul.mubr.bf16.gmra.mxu0 %v3145
      %v3310 = vpop.f32.mrf.mxu0
      %v3311 = vadd.f32 0.0, %v3310
      %v3312 = vpop.f32.mrf.mxu0
      %v3313 = vpop.f32.mrf.mxu0
      %v3314 = vadd.f32 0.0, %v3313
      %v3315 = vpop.f32.mrf.mxu0
      %3316 = vmatprep.mubr.bf16.mxu0 0
      %3317 = vmatmul.mubr.bf16.gmra.mxu0 %v3148
      %v3318 = vpop.f32.mrf.mxu0
      %v3319 = vadd.f32 0.0, %v3318
      %v3320 = vpop.f32.mrf.mxu0
      %v3321 = vpop.f32.mrf.mxu0
      %v3322 = vadd.f32 0.0, %v3321
      %v3323 = vpop.f32.mrf.mxu0
      %3324 = vmatprep.mubr.bf16.mxu0 0
      %3325 = vmatmul.mubr.bf16.gmra.mxu0 %v3151
      %v3326 = vpop.f32.mrf.mxu0
      %v3327 = vadd.f32 0.0, %v3326
      %v3328 = vpop.f32.mrf.mxu0
      %v3329 = vpop.f32.mrf.mxu0
      %v3330 = vadd.f32 0.0, %v3329
      %v3331 = vpop.f32.mrf.mxu0
      %3332 = vdwg.mxu0
      %v3333 = vadd.f32 %v2886, %v3191
      %v3334 = vadd.f32 %v2887, %v3194
      %v3335 = vadd.f32 %v2888, %v3199
      %v3336 = vadd.f32 %v2889, %v3202
      %v3337 = vadd.f32 %v2890, %v3207
      %v3338 = vadd.f32 %v2891, %v3210
      %v3339 = vadd.f32 %v2892, %v3215
      %v3340 = vadd.f32 %v2893, %v3218
      %v3341 = vadd.f32 %v2894, %v3223
      %v3342 = vadd.f32 %v2895, %v3226
      %v3343 = vadd.f32 %v2896, %v3231
      %v3344 = vadd.f32 %v2897, %v3234
      %v3345 = vadd.f32 %v2898, %v3239
      %v3346 = vadd.f32 %v2899, %v3242
      %v3347 = vadd.f32 %v2900, %v3247
      %v3348 = vadd.f32 %v2901, %v3250
      %v3349 = vadd.f32 %v2902, %v3255
      %v3350 = vadd.f32 %v2903, %v3258
      %v3351 = vadd.f32 %v2904, %v3263
      %v3352 = vadd.f32 %v2905, %v3266
      %v3353 = vadd.f32 %v2906, %v3271
      %v3354 = vadd.f32 %v2907, %v3274
      %v3355 = vadd.f32 %v2908, %v3279
      %v3356 = vadd.f32 %v2909, %v3282
      %v3357 = vadd.f32 %v2910, %v3287
      %v3358 = vadd.f32 %v2911, %v3290
      %v3359 = vadd.f32 %v2912, %v3295
      %v3360 = vadd.f32 %v2913, %v3298
      %v3361 = vadd.f32 %v2914, %v3303
      %v3362 = vadd.f32 %v2915, %v3306
      %v3363 = vadd.f32 %v2916, %v3311
      %v3364 = vadd.f32 %v2917, %v3314
      %v3365 = vadd.f32 %v2918, %v3319
      %v3366 = vadd.f32 %v2919, %v3322
      %v3367 = vadd.f32 %v2920, %v3327
      %v3368 = vadd.f32 %v2921, %v3330
      %v3369 = vld [vmem:[%s224 + $0x10] sm:$0x8]
      %s3370 = scalar_lea.vmem %s1, 32
      %v3371 = vld [vmem:[%s3370] sm:$0xf]
      %v3373 = vunpack.c.l.b16 %v3369
      %v3374 = vpack.c.b16 %v2560, %v3373
      %vm3375 = vcmask 1044480
      %v3376 = vrot.slane %v3374, 3
      %v3377 = vrot.slane %v2597, 3
      %v3378 = vsel %vm3375, %v3376, %v3377
      %v3379 = vrot.slane %v2598, 3
      %v3380 = vsel %vm3375, %v3377, %v3379
      %v3381 = vrot.slane %v2599, 3
      %v3382 = vsel %vm3375, %v3379, %v3381
      %v3383 = vrot.slane %v2600, 3
      %v3384 = vsel %vm3375, %v3381, %v3383
      %v3385 = vrot.slane %v2601, 3
      %v3386 = vsel %vm3375, %v3383, %v3385
      %v3387 = vrot.slane %v2602, 3
      %v3388 = vsel %vm3375, %v3385, %v3387
      %v3389 = vrot.slane %v2603, 3
      %v3390 = vsel %vm3375, %v3387, %v3389
      %v3391 = vrot.slane %v2604, 3
      %v3392 = vsel %vm3375, %v3389, %v3391
      %v3393 = vrot.slane %v2605, 3
      %v3394 = vsel %vm3375, %v3391, %v3393
      %v3395 = vrot.slane %v2606, 3
      %v3396 = vsel %vm3375, %v3393, %v3395
      %v3397 = vrot.slane %v2607, 3
      %v3398 = vsel %vm3375, %v3395, %v3397
      %v3399 = vrot.slane %v2608, 3
      %v3400 = vsel %vm3375, %v3397, %v3399
      %v3401 = vrot.slane %v2609, 3
      %v3402 = vsel %vm3375, %v3399, %v3401
      %v3403 = vrot.slane %v2610, 3
      %v3404 = vsel %vm3375, %v3401, %v3403
      %v3405 = vrot.slane %v2611, 3
      %v3406 = vsel %vm3375, %v3403, %v3405
      %v3407 = vrot.slane %v2612, 3
      %v3408 = vsel %vm3375, %v3405, %v3407
      %v3409 = vrot.slane %v2613, 3
      %v3410 = vsel %vm3375, %v3407, %v3409
      %v3411 = vrot.slane %v2927, 3
      %v3412 = vsel %vm3375, %v3409, %v3411
      %v3414 = vsel %vm517, %v3378, 0
      %v3417 = vsel %vm517, %v3380, 0
      %v3420 = vsel %vm517, %v3382, 0
      %v3423 = vsel %vm517, %v3384, 0
      %v3426 = vsel %vm517, %v3386, 0
      %v3429 = vsel %vm517, %v3388, 0
      %v3432 = vsel %vm517, %v3390, 0
      %v3435 = vsel %vm517, %v3392, 0
      %v3438 = vsel %vm517, %v3394, 0
      %v3441 = vsel %vm517, %v3396, 0
      %v3444 = vsel %vm517, %v3398, 0
      %v3447 = vsel %vm517, %v3400, 0
      %v3450 = vsel %vm517, %v3402, 0
      %v3453 = vsel %vm517, %v3404, 0
      %v3456 = vsel %vm517, %v3406, 0
      %v3459 = vsel %vm517, %v3408, 0
      %v3462 = vsel %vm517, %v3410, 0
      %v3465 = vsel %vm517, %v3412, 0
      %v3468 = vsel %vm572, %v3371, 0
      %3470 = vmatprep.subr.bf16.mxu0 0
      %3471 = vmatpush1.bf16.msra.mxu0 0
      %3472 = vmatprep.subr.bf16.mxu0 0
      %3473 = vmatpush1.bf16.msra.mxu0 0
      %3474 = vmatprep.subr.bf16.mxu0 0
      %3475 = vmatpush1.bf16.msra.mxu0 0
      %3476 = vmatprep.subr.bf16.mxu0 0
      %3477 = vmatpush1.bf16.msra.mxu0 0
      %3478 = vmatprep.subr.bf16.mxu0 0
      %3479 = vmatpush1.bf16.msra.mxu0 0
      %3480 = vmatprep.subr.bf16.mxu0 0
      %3481 = vmatpush1.bf16.msra.mxu0 0
      %3482 = vmatprep.subr.bf16.mxu0 0
      %3483 = vmatpush1.bf16.msra.mxu0 0
      %3484 = vmatprep.subr.bf16.mxu0 0
      %3485 = vmatpush1.bf16.msra.mxu0 %v3468
      %3486 = vmatprep.subr.bf16.mxu0 0
      %3487 = vmatpush2.bf16.msra.mxu0 0
      %3488 = vmatprep.subr.bf16.mxu0 0
      %3489 = vmatpush2.bf16.msra.mxu0 0
      %3490 = vmatprep.subr.bf16.mxu0 0
      %3491 = vmatpush2.bf16.msra.mxu0 0
      %3492 = vmatprep.subr.bf16.mxu0 0
      %3493 = vmatpush2.bf16.msra.mxu0 0
      %3494 = vmatprep.subr.bf16.mxu0 0
      %3495 = vmatpush2.bf16.msra.mxu0 0
      %3496 = vmatprep.subr.bf16.mxu0 0
      %3497 = vmatpush2.bf16.msra.mxu0 0
      %3498 = vmatprep.subr.bf16.mxu0 0
      %3499 = vmatpush2.bf16.msra.mxu0 0
      %3500 = vmatprep.subr.bf16.mxu0 0
      %3501 = vmatpush2.bf16.msra.mxu0 0
      %3502 = vmatprep.mubr.bf16.mxu0 0
      %3503 = vmatmul.mubr.bf16.gmra.mxu0 %v3414
      %v3504 = vpop.f32.mrf.mxu0
      %v3505 = vadd.f32 0.0, %v3504
      %v3506 = vpop.f32.mrf.mxu0
      %v3507 = vpop.f32.mrf.mxu0
      %v3508 = vadd.f32 0.0, %v3507
      %v3509 = vpop.f32.mrf.mxu0
      %3510 = vmatprep.mubr.bf16.mxu0 0
      %3511 = vmatmul.mubr.bf16.gmra.mxu0 %v3417
      %v3512 = vpop.f32.mrf.mxu0
      %v3513 = vadd.f32 0.0, %v3512
      %v3514 = vpop.f32.mrf.mxu0
      %v3515 = vpop.f32.mrf.mxu0
      %v3516 = vadd.f32 0.0, %v3515
      %v3517 = vpop.f32.mrf.mxu0
      %3518 = vmatprep.mubr.bf16.mxu0 0
      %3519 = vmatmul.mubr.bf16.gmra.mxu0 %v3420
      %v3520 = vpop.f32.mrf.mxu0
      %v3521 = vadd.f32 0.0, %v3520
      %v3522 = vpop.f32.mrf.mxu0
      %v3523 = vpop.f32.mrf.mxu0
      %v3524 = vadd.f32 0.0, %v3523
      %v3525 = vpop.f32.mrf.mxu0
      %3526 = vmatprep.mubr.bf16.mxu0 0
      %3527 = vmatmul.mubr.bf16.gmra.mxu0 %v3423
      %v3528 = vpop.f32.mrf.mxu0
      %v3529 = vadd.f32 0.0, %v3528
      %v3530 = vpop.f32.mrf.mxu0
      %v3531 = vpop.f32.mrf.mxu0
      %v3532 = vadd.f32 0.0, %v3531
      %v3533 = vpop.f32.mrf.mxu0
      %3534 = vmatprep.mubr.bf16.mxu0 0
      %3535 = vmatmul.mubr.bf16.gmra.mxu0 %v3426
      %v3536 = vpop.f32.mrf.mxu0
      %v3537 = vadd.f32 0.0, %v3536
      %v3538 = vpop.f32.mrf.mxu0
      %v3539 = vpop.f32.mrf.mxu0
      %v3540 = vadd.f32 0.0, %v3539
      %v3541 = vpop.f32.mrf.mxu0
      %3542 = vmatprep.mubr.bf16.mxu0 0
      %3543 = vmatmul.mubr.bf16.gmra.mxu0 %v3429
      %v3544 = vpop.f32.mrf.mxu0
      %v3545 = vadd.f32 0.0, %v3544
      %v3546 = vpop.f32.mrf.mxu0
      %v3547 = vpop.f32.mrf.mxu0
      %v3548 = vadd.f32 0.0, %v3547
      %v3549 = vpop.f32.mrf.mxu0
      %3550 = vmatprep.mubr.bf16.mxu0 0
      %3551 = vmatmul.mubr.bf16.gmra.mxu0 %v3432
      %v3552 = vpop.f32.mrf.mxu0
      %v3553 = vadd.f32 0.0, %v3552
      %v3554 = vpop.f32.mrf.mxu0
      %v3555 = vpop.f32.mrf.mxu0
      %v3556 = vadd.f32 0.0, %v3555
      %v3557 = vpop.f32.mrf.mxu0
      %3558 = vmatprep.mubr.bf16.mxu0 0
      %3559 = vmatmul.mubr.bf16.gmra.mxu0 %v3435
      %v3560 = vpop.f32.mrf.mxu0
      %v3561 = vadd.f32 0.0, %v3560
      %v3562 = vpop.f32.mrf.mxu0
      %v3563 = vpop.f32.mrf.mxu0
      %v3564 = vadd.f32 0.0, %v3563
      %v3565 = vpop.f32.mrf.mxu0
      %3566 = vmatprep.mubr.bf16.mxu0 0
      %3567 = vmatmul.mubr.bf16.gmra.mxu0 %v3438
      %v3568 = vpop.f32.mrf.mxu0
      %v3569 = vadd.f32 0.0, %v3568
      %v3570 = vpop.f32.mrf.mxu0
      %v3571 = vpop.f32.mrf.mxu0
      %v3572 = vadd.f32 0.0, %v3571
      %v3573 = vpop.f32.mrf.mxu0
      %3574 = vmatprep.mubr.bf16.mxu0 0
      %3575 = vmatmul.mubr.bf16.gmra.mxu0 %v3441
      %v3576 = vpop.f32.mrf.mxu0
      %v3577 = vadd.f32 0.0, %v3576
      %v3578 = vpop.f32.mrf.mxu0
      %v3579 = vpop.f32.mrf.mxu0
      %v3580 = vadd.f32 0.0, %v3579
      %v3581 = vpop.f32.mrf.mxu0
      %3582 = vmatprep.mubr.bf16.mxu0 0
      %3583 = vmatmul.mubr.bf16.gmra.mxu0 %v3444
      %v3584 = vpop.f32.mrf.mxu0
      %v3585 = vadd.f32 0.0, %v3584
      %v3586 = vpop.f32.mrf.mxu0
      %v3587 = vpop.f32.mrf.mxu0
      %v3588 = vadd.f32 0.0, %v3587
      %v3589 = vpop.f32.mrf.mxu0
      %3590 = vmatprep.mubr.bf16.mxu0 0
      %3591 = vmatmul.mubr.bf16.gmra.mxu0 %v3447
      %v3592 = vpop.f32.mrf.mxu0
      %v3593 = vadd.f32 0.0, %v3592
      %v3594 = vpop.f32.mrf.mxu0
      %v3595 = vpop.f32.mrf.mxu0
      %v3596 = vadd.f32 0.0, %v3595
      %v3597 = vpop.f32.mrf.mxu0
      %3598 = vmatprep.mubr.bf16.mxu0 0
      %3599 = vmatmul.mubr.bf16.gmra.mxu0 %v3450
      %v3600 = vpop.f32.mrf.mxu0
      %v3601 = vadd.f32 0.0, %v3600
      %v3602 = vpop.f32.mrf.mxu0
      %v3603 = vpop.f32.mrf.mxu0
      %v3604 = vadd.f32 0.0, %v3603
      %v3605 = vpop.f32.mrf.mxu0
      %3606 = vmatprep.mubr.bf16.mxu0 0
      %3607 = vmatmul.mubr.bf16.gmra.mxu0 %v3453
      %v3608 = vpop.f32.mrf.mxu0
      %v3609 = vadd.f32 0.0, %v3608
      %v3610 = vpop.f32.mrf.mxu0
      %v3611 = vpop.f32.mrf.mxu0
      %v3612 = vadd.f32 0.0, %v3611
      %v3613 = vpop.f32.mrf.mxu0
      %3614 = vmatprep.mubr.bf16.mxu0 0
      %3615 = vmatmul.mubr.bf16.gmra.mxu0 %v3456
      %v3616 = vpop.f32.mrf.mxu0
      %v3617 = vadd.f32 0.0, %v3616
      %v3618 = vpop.f32.mrf.mxu0
      %v3619 = vpop.f32.mrf.mxu0
      %v3620 = vadd.f32 0.0, %v3619
      %v3621 = vpop.f32.mrf.mxu0
      %3622 = vmatprep.mubr.bf16.mxu0 0
      %3623 = vmatmul.mubr.bf16.gmra.mxu0 %v3459
      %v3624 = vpop.f32.mrf.mxu0
      %v3625 = vadd.f32 0.0, %v3624
      %v3626 = vpop.f32.mrf.mxu0
      %v3627 = vpop.f32.mrf.mxu0
      %v3628 = vadd.f32 0.0, %v3627
      %v3629 = vpop.f32.mrf.mxu0
      %3630 = vmatprep.mubr.bf16.mxu0 0
      %3631 = vmatmul.mubr.bf16.gmra.mxu0 %v3462
      %v3632 = vpop.f32.mrf.mxu0
      %v3633 = vadd.f32 0.0, %v3632
      %v3634 = vpop.f32.mrf.mxu0
      %v3635 = vpop.f32.mrf.mxu0
      %v3636 = vadd.f32 0.0, %v3635
      %v3637 = vpop.f32.mrf.mxu0
      %3638 = vmatprep.mubr.bf16.mxu0 0
      %3639 = vmatmul.mubr.bf16.gmra.mxu0 %v3465
      %v3640 = vpop.f32.mrf.mxu0
      %v3641 = vadd.f32 0.0, %v3640
      %v3642 = vpop.f32.mrf.mxu0
      %v3643 = vpop.f32.mrf.mxu0
      %v3644 = vadd.f32 0.0, %v3643
      %v3645 = vpop.f32.mrf.mxu0
      %3646 = vdwg.mxu0
      %v3647 = vadd.f32 %v3333, %v3505
      %v3648 = vadd.f32 %v3334, %v3508
      %v3649 = vadd.f32 %v3335, %v3513
      %v3650 = vadd.f32 %v3336, %v3516
      %v3651 = vadd.f32 %v3337, %v3521
      %v3652 = vadd.f32 %v3338, %v3524
      %v3653 = vadd.f32 %v3339, %v3529
      %v3654 = vadd.f32 %v3340, %v3532
      %v3655 = vadd.f32 %v3341, %v3537
      %v3656 = vadd.f32 %v3342, %v3540
      %v3657 = vadd.f32 %v3343, %v3545
      %v3658 = vadd.f32 %v3344, %v3548
      %v3659 = vadd.f32 %v3345, %v3553
      %v3660 = vadd.f32 %v3346, %v3556
      %v3661 = vadd.f32 %v3347, %v3561
      %v3662 = vadd.f32 %v3348, %v3564
      %v3663 = vadd.f32 %v3349, %v3569
      %v3664 = vadd.f32 %v3350, %v3572
      %v3665 = vadd.f32 %v3351, %v3577
      %v3666 = vadd.f32 %v3352, %v3580
      %v3667 = vadd.f32 %v3353, %v3585
      %v3668 = vadd.f32 %v3354, %v3588
      %v3669 = vadd.f32 %v3355, %v3593
      %v3670 = vadd.f32 %v3356, %v3596
      %v3671 = vadd.f32 %v3357, %v3601
      %v3672 = vadd.f32 %v3358, %v3604
      %v3673 = vadd.f32 %v3359, %v3609
      %v3674 = vadd.f32 %v3360, %v3612
      %v3675 = vadd.f32 %v3361, %v3617
      %v3676 = vadd.f32 %v3362, %v3620
      %v3677 = vadd.f32 %v3363, %v3625
      %v3678 = vadd.f32 %v3364, %v3628
      %v3679 = vadd.f32 %v3365, %v3633
      %v3680 = vadd.f32 %v3366, %v3636
      %v3681 = vadd.f32 %v3367, %v3641
      %v3682 = vadd.f32 %v3368, %v3644
      %v3683 = vld [vmem:[%s2] sm:$0x1]
      %v3685 = vlaneseq
      %v3686 = vshrl.u32 %v3685, 7
      %v3687 = vsub.s32 0, %v3686
      %v3688 = vrot.slane %v3683, %v3687
      %v3690 = vmul.f32 %v3647, %v3688
      %v3691 = vmul.f32 %v3648, %v3688
      %v3692 = vmul.f32 %v3649, %v3688
      %v3693 = vmul.f32 %v3650, %v3688
      %v3694 = vmul.f32 %v3651, %v3688
      %v3695 = vmul.f32 %v3652, %v3688
      %v3696 = vmul.f32 %v3653, %v3688
      %v3697 = vmul.f32 %v3654, %v3688
      %v3698 = vmul.f32 %v3655, %v3688
      %v3699 = vmul.f32 %v3656, %v3688
      %v3700 = vmul.f32 %v3657, %v3688
      %v3701 = vmul.f32 %v3658, %v3688
      %v3702 = vmul.f32 %v3659, %v3688
      %v3703 = vmul.f32 %v3660, %v3688
      %v3704 = vmul.f32 %v3661, %v3688
      %v3705 = vmul.f32 %v3662, %v3688
      %v3706 = vmul.f32 %v3663, %v3688
      %v3707 = vmul.f32 %v3664, %v3688
      %v3708 = vmul.f32 %v3665, %v3688
      %v3709 = vmul.f32 %v3666, %v3688
      %v3710 = vmul.f32 %v3667, %v3688
      %v3711 = vmul.f32 %v3668, %v3688
      %v3712 = vmul.f32 %v3669, %v3688
      %v3713 = vmul.f32 %v3670, %v3688
      %v3714 = vmul.f32 %v3671, %v3688
      %v3715 = vmul.f32 %v3672, %v3688
      %v3716 = vmul.f32 %v3673, %v3688
      %v3717 = vmul.f32 %v3674, %v3688
      %v3718 = vmul.f32 %v3675, %v3688
      %v3719 = vmul.f32 %v3676, %v3688
      %v3720 = vmul.f32 %v3677, %v3688
      %v3721 = vmul.f32 %v3678, %v3688
      %v3722 = vmul.f32 %v3679, %v3688
      %v3723 = vmul.f32 %v3680, %v3688
      %v3724 = vmul.f32 %v3681, %v3688
      %v3725 = vmul.f32 %v3682, %v3688
      %v3726 = vld [vmem:[%s3] sm:$0x1]
      %v3728 = vlaneseq
      %v3729 = vshrl.u32 %v3728, 7
      %v3730 = vsub.s32 0, %v3729
      %v3731 = vrot.slane %v3726, %v3730
      %v3733 = vadd.f32 %v3690, %v3731
      %v3734 = vadd.f32 %v3691, %v3731
      %v3735 = vadd.f32 %v3692, %v3731
      %v3736 = vadd.f32 %v3693, %v3731
      %v3737 = vadd.f32 %v3694, %v3731
      %v3738 = vadd.f32 %v3695, %v3731
      %v3739 = vadd.f32 %v3696, %v3731
      %v3740 = vadd.f32 %v3697, %v3731
      %v3741 = vadd.f32 %v3698, %v3731
      %v3742 = vadd.f32 %v3699, %v3731
      %v3743 = vadd.f32 %v3700, %v3731
      %v3744 = vadd.f32 %v3701, %v3731
      %v3745 = vadd.f32 %v3702, %v3731
      %v3746 = vadd.f32 %v3703, %v3731
      %v3747 = vadd.f32 %v3704, %v3731
      %v3748 = vadd.f32 %v3705, %v3731
      %v3749 = vadd.f32 %v3706, %v3731
      %v3750 = vadd.f32 %v3707, %v3731
      %v3751 = vadd.f32 %v3708, %v3731
      %v3752 = vadd.f32 %v3709, %v3731
      %v3753 = vadd.f32 %v3710, %v3731
      %v3754 = vadd.f32 %v3711, %v3731
      %v3755 = vadd.f32 %v3712, %v3731
      %v3756 = vadd.f32 %v3713, %v3731
      %v3757 = vadd.f32 %v3714, %v3731
      %v3758 = vadd.f32 %v3715, %v3731
      %v3759 = vadd.f32 %v3716, %v3731
      %v3760 = vadd.f32 %v3717, %v3731
      %v3761 = vadd.f32 %v3718, %v3731
      %v3762 = vadd.f32 %v3719, %v3731
      %v3763 = vadd.f32 %v3720, %v3731
      %v3764 = vadd.f32 %v3721, %v3731
      %v3765 = vadd.f32 %v3722, %v3731
      %v3766 = vadd.f32 %v3723, %v3731
      %v3767 = vadd.f32 %v3724, %v3731
      %v3768 = vadd.f32 %v3725, %v3731
      %v3769 = vmax.f32 %v3733, 0.0
      %v3770 = vmax.f32 %v3734, 0.0
      %v3771 = vmax.f32 %v3735, 0.0
      %v3772 = vmax.f32 %v3736, 0.0
      %v3773 = vmax.f32 %v3737, 0.0
      %v3774 = vmax.f32 %v3738, 0.0
      %v3775 = vmax.f32 %v3739, 0.0
      %v3776 = vmax.f32 %v3740, 0.0
      %v3777 = vmax.f32 %v3741, 0.0
      %v3778 = vmax.f32 %v3742, 0.0
      %v3779 = vmax.f32 %v3743, 0.0
      %v3780 = vmax.f32 %v3744, 0.0
      %v3781 = vmax.f32 %v3745, 0.0
      %v3782 = vmax.f32 %v3746, 0.0
      %v3783 = vmax.f32 %v3747, 0.0
      %v3784 = vmax.f32 %v3748, 0.0
      %v3785 = vmax.f32 %v3749, 0.0
      %v3786 = vmax.f32 %v3750, 0.0
      %v3787 = vmax.f32 %v3751, 0.0
      %v3788 = vmax.f32 %v3752, 0.0
      %v3789 = vmax.f32 %v3753, 0.0
      %v3790 = vmax.f32 %v3754, 0.0
      %v3791 = vmax.f32 %v3755, 0.0
      %v3792 = vmax.f32 %v3756, 0.0
      %v3793 = vmax.f32 %v3757, 0.0
      %v3794 = vmax.f32 %v3758, 0.0
      %v3795 = vmax.f32 %v3759, 0.0
      %v3796 = vmax.f32 %v3760, 0.0
      %v3797 = vmax.f32 %v3761, 0.0
      %v3798 = vmax.f32 %v3762, 0.0
      %v3799 = vmax.f32 %v3763, 0.0
      %v3800 = vmax.f32 %v3764, 0.0
      %v3801 = vmax.f32 %v3765, 0.0
      %v3802 = vmax.f32 %v3766, 0.0
      %v3803 = vmax.f32 %v3767, 0.0
      %v3804 = vmax.f32 %v3768, 0.0
      %3805 = vst [vmem:[%s233] sm:$0xff] %v3769
      %3806 = vst [vmem:[%s233 + $0x8] sm:$0xff] %v3770
      %3807 = vst [vmem:[%s233 + $0x10] sm:$0xff] %v3771
      %3808 = vst [vmem:[%s233 + $0x18] sm:$0xff] %v3772
      %3809 = vst [vmem:[%s233 + $0x20] sm:$0xff] %v3773
      %3810 = vst [vmem:[%s233 + $0x28] sm:$0xff] %v3774
      %3811 = vst [vmem:[%s233 + $0x30] sm:$0xff] %v3775
      %3812 = vst [vmem:[%s233 + $0x38] sm:$0xff] %v3776
      %3813 = vst [vmem:[%s233 + $0x40] sm:$0xff] %v3777
      %3814 = vst [vmem:[%s233 + $0x48] sm:$0xff] %v3778
      %3815 = vst [vmem:[%s233 + $0x50] sm:$0xff] %v3779
      %3816 = vst [vmem:[%s233 + $0x58] sm:$0xff] %v3780
      %3817 = vst [vmem:[%s233 + $0x60] sm:$0xff] %v3781
      %3818 = vst [vmem:[%s233 + $0x68] sm:$0xff] %v3782
      %3819 = vst [vmem:[%s233 + $0x70] sm:$0xff] %v3783
      %3820 = vst [vmem:[%s233 + $0x78] sm:$0xff] %v3784
      %3821 = vst [vmem:[%s233 + $0x80] sm:$0xff] %v3785
      %3822 = vst [vmem:[%s233 + $0x88] sm:$0xff] %v3786
      %3823 = vst [vmem:[%s233 + $0x90] sm:$0xff] %v3787
      %3824 = vst [vmem:[%s233 + $0x98] sm:$0xff] %v3788
      %3825 = vst [vmem:[%s233 + $0xa0] sm:$0xff] %v3789
      %3826 = vst [vmem:[%s233 + $0xa8] sm:$0xff] %v3790
      %3827 = vst [vmem:[%s233 + $0xb0] sm:$0xff] %v3791
      %3828 = vst [vmem:[%s233 + $0xb8] sm:$0xff] %v3792
      %3829 = vst [vmem:[%s233 + $0xc0] sm:$0xff] %v3793
      %3830 = vst [vmem:[%s233 + $0xc8] sm:$0xff] %v3794
      %3831 = vst [vmem:[%s233 + $0xd0] sm:$0xff] %v3795
      %3832 = vst [vmem:[%s233 + $0xd8] sm:$0xff] %v3796
      %3833 = vst [vmem:[%s233 + $0xe0] sm:$0xff] %v3797
      %3834 = vst [vmem:[%s233 + $0xe8] sm:$0xff] %v3798
      %3835 = vst [vmem:[%s233 + $0xf0] sm:$0xff] %v3799
      %3836 = vst [vmem:[%s233 + $0xf8] sm:$0xff] %v3800
      %3837 = vst [vmem:[%s233 + $0x100] sm:$0xff] %v3801
      %3838 = vst [vmem:[%s233 + $0x108] sm:$0xff] %v3802
      %3839 = vst [vmem:[%s233 + $0x110] sm:$0xff] %v3803
      %3840 = vst [vmem:[%s233 + $0x118] sm:$0xff] %v3804
      %p3841 = scmp.lt.s32.totalorder %s19, 1
      %s3842 = scalar_select %p3841, %s19, 1
      %p3843 = scmp.lt.s32.totalorder %s20, 0
      %s3844 = scalar_select %p3843, %s20, 0
      %s3845 = smul.addr %s3844, 36
      %s3846 = smul.addr %s3842, 36
      %s3847 = sadd.s32 %s3845, %s3846
      %s3848 = smul.addr %s3847, 8
      %s3849 = scalar_lea.vmem %s4, %s3848
      // Predicated region
      $region37: #{myconv_forward.3} parent=35 // pred_check
        %p3850 = pneg %p138
      $region38: #{myconv_forward.3} parent=35 // pred_check_branch
        %3852 = sbr.rel (%p3850) target = $region40
      $region39: #{myconv_forward.3} parent=35 // pred_region
        _
      $region40: #{myconv_forward.3} parent=35 // pred_fallthru
        _
    $region36: #{myconv_forward.3} parent=5 // pred_fallthru
      _
    %p3853 = scmp.le.s32.totalorder 2, %s10
    // Predicated region
    $region41: #{myconv_forward.3} parent=5 // pred_check
      %p3854 = pneg %p3853
    $region42: #{myconv_forward.3} parent=5 // pred_check_branch
      %3856 = sbr.rel (%p3854) target = $region44
    $region43: #{myconv_forward.3} parent=5 // pred_region
      %s3857 = ssub.s32 %s10, 2
      // Predicated region
      $region45: #{myconv_forward.3} parent=43 // pred_check
        %p3858 = pneg %p144
      $region46: #{myconv_forward.3} parent=43 // pred_check_branch
        %3860 = sbr.rel (%p3858) target = $region48
      $region47: #{myconv_forward.3} parent=43 // pred_region
        %p3861 = scmp.lt.s32.totalorder %s21, 1
        %s3862 = scalar_select %p3861, %s21, 1
        %p3863 = scmp.lt.s32.totalorder %s22, 0
        %s3864 = scalar_select %p3863, %s22, 0
        %s3865 = smul.addr %s3864, 36
        %s3866 = smul.addr %s3862, 36
        %s3867 = sadd.s32 %s3865, %s3866
        %s3868 = smul.addr %s3867, 8
        %s3869 = scalar_lea.vmem %s4, %s3868
      $region48: #{myconv_forward.3} parent=43 // pred_fallthru
        _
    $region44: #{myconv_forward.3} parent=5 // pred_fallthru
      _
  $region6: #{myconv_forward.3} parent=0 // loop_footer
    %s14 = sadd.s32 1, %s10
  $region7: #{myconv_forward.3} parent=0 // loop_footer_branch
    %9 = sbr.rel target = $region3
  $region8: #{myconv_forward.3} parent=0 // loop_exit
    _

</llo_original>
